<compile_context>
chip_gen: v6e
topology: v6e:2x2x1
jax: 0.10.0
libtpu: 0.0.40
codegen_flags: <defaults>
</compile_context>

<pallas_src>
import functools

import jax
import jax.numpy as jnp
import numpy as np
from jax.experimental import pallas as pl
from jax.experimental.pallas import tpu as pltpu


# Channels per layer (fixed by Models.Encoder); padded working grid is 10x10.
_C1, _C2, _C3, _C4, _C5, _C6 = 30, 30, 20, 12, 8, 4
_GRID = 10              # 8x8 feature map + 1-pixel zero ring
_KH5, _KW5 = 7, 8       # conv5 kernel size

# Contiguous padded-grid position ranges covering the zero ring
# (hp in {0,9} or wp in {0,9}) of the 10x10 padded grid: 9 ranges, 36 positions.
_RING_RANGES = ([(0, 11)]
                + [(10 * h + 9, 10 * h + 11) for h in range(1, 8)]
                + [(89, 100)])


# ------------------------------ Pallas kernel ------------------------------ #
def _encoder_kernel(p_ref,
                    w1_ref, b1_ref, w2_ref, b2_ref,
                    w3_ref, b3_ref, w4_ref, b4_ref,
                    w5_ref, b5_ref, w6_ref,
                    out_ref, buf, *, nb, use_bf16):
    f32 = jnp.float32
    m_pad = _GRID * _GRID * nb          # rows over the padded 10x10 grid
    halo = 11 * nb                      # max |row shift| of a 3x3/pad-1 conv

    def _c(x):                          # MXU operand cast (accumulation stays f32)
        return x.astype(jnp.bfloat16) if use_bf16 else x

    # ---- conv1 (3x3, pad 1) + relu fused with conv2 (2x2, s2) + relu: 2 GEMMs
    a1 = jnp.maximum(
        jnp.dot(p_ref[...], w1_ref[...], preferred_element_type=f32)
        + b1_ref[...], 0.0)                                   # (m_pad, 120)
    a2 = jnp.maximum(
        jnp.dot(_c(a1), w2_ref[...], preferred_element_type=f32)
        + b2_ref[...], 0.0)                                   # (m_pad, 30)

    # ---- shared halo'd scratch: zero only the halo bands, store a2, zero ring
    buf[0:halo, :] = jnp.zeros((halo, _C2), f32)
    buf[halo + m_pad:m_pad + 2 * halo, :] = jnp.zeros((halo, _C2), f32)
    buf[halo:halo + m_pad, :] = a2
    for g0, g1 in _RING_RANGES:         # ring rows -> exact zero padding
        buf[halo + g0 * nb:halo + g1 * nb, :] = (
            jnp.zeros(((g1 - g0) * nb, _C2), f32))

    shifts = [((di - 1) * _GRID + (dj - 1)) * nb
              for di in range(3) for dj in range(3)]

    # ---- conv3 (3x3, pad 1) + relu: taps fused along K -> single GEMM (K=270)
    slab3 = jnp.concatenate(
        [buf[halo + d:halo + d + m_pad, :] for d in shifts], axis=-1)
    a3 = jnp.maximum(
        jnp.dot(_c(slab3), w3_ref[...], preferred_element_type=f32)
        + b3_ref[...], 0.0)                                   # (m_pad, 20)

    # ---- conv4 (3x3, pad 1) + relu: reuse the same scratch (lanes 0:20), K=180
    buf[halo:halo + m_pad, 0:_C3] = a3
    for g0, g1 in _RING_RANGES:
        buf[halo + g0 * nb:halo + g1 * nb, 0:_C3] = (
            jnp.zeros(((g1 - g0) * nb, _C3), f32))
    slab4 = jnp.concatenate(
        [buf[halo + d:halo + d + m_pad, 0:_C3] for d in shifts], axis=-1)
    a4 = jnp.maximum(
        jnp.dot(_c(slab4), w4_ref[...], preferred_element_type=f32)
        + b4_ref[...], 0.0)                                   # (m_pad, 12)

    # ---- conv5 ((7,8) kernel, single output position) + relu: ONE GEMM, K=672
    pieces = []
    for h in range(_KH5):
        for w in range(_KW5):
            base = ((h + 1) * _GRID + (w + 1)) * nb           # interior rows
            pieces.append(a4[base:base + nb, :])
    lhs5 = jnp.concatenate(pieces, axis=-1)                   # (nb, 672)
    a5 = jnp.maximum(
        jnp.dot(_c(lhs5), w5_ref[...], preferred_element_type=f32)
        + b5_ref[...], 0.0)                                   # (nb, 8)

    # ---- conv6 (1x1, no bias, no relu) ------------------------------------
    out_ref[...] = jnp.dot(_c(a5), w6_ref[...], preferred_element_type=f32)


# ------------------------------ JAX wrapper -------------------------------- #
def _prepare_inputs(x_nchw, params, nb, use_bf16):
    n_im = x_nchw.shape[0]
    n_blocks = (n_im + nb - 1) // nb
    n_pad = n_blocks * nb
    dtype = jnp.bfloat16 if use_bf16 else jnp.float32
    (w1, b1), (w2, b2), (w3, b3), (w4, b4), (w5, b5), (w6, _) = params

    # Parity-packed im2col patches of the zero-padded external input.
    # Row r = (hp*10 + wp)*nb + n on the padded 10x10 grid; lane = 9*pq + tap
    # holds the conv1 input tap for output position (2*(hp-1)+p, 2*(wp-1)+q).
    x = x_nchw[:, 0].astype(jnp.float32)
    if n_pad != n_im:
        x = jnp.pad(x, ((0, n_pad - n_im), (0, 0), (0, 0)))
    xpad = jnp.pad(x, ((0, 0), (1, 1), (1, 1)))
    cols = []
    for p in range(2):
        for q in range(2):
            for di in range(3):
                for dj in range(3):
                    h0, w0 = p + di, q + dj
                    cols.append(xpad[:, h0:h0 + 15:2, w0:w0 + 15:2])  # (n,8,8)
    patch = jnp.stack(cols, axis=-1)                          # (n_pad, 8, 8, 36)
    patch = patch.reshape(n_blocks, nb, 8, 8, 36)
    patch = jnp.transpose(patch, (0, 2, 3, 1, 4))             # (nbk, 8, 8, nb, 36)
    p_grid = jnp.zeros((n_blocks, _GRID, _GRID, nb, 36), jnp.float32)
    p_grid = p_grid.at[:, 1:9, 1:9].set(patch)
    p_rows = p_grid.reshape(n_blocks, _GRID * _GRID * nb, 36).astype(dtype)

    # Torch OIHW weights -> GEMM blocks.
    w1m = jnp.transpose(w1, (2, 3, 1, 0)).reshape(9, _C1)     # cin = 1
    w1_bd = jnp.zeros((36, 4 * _C1), jnp.float32)             # block-diagonal
    for pq in range(4):
        w1_bd = w1_bd.at[9 * pq:9 * (pq + 1),
                         _C1 * pq:_C1 * (pq + 1)].set(w1m)
    b1_t = jnp.tile(b1, 4).reshape(1, 4 * _C1)
    w2_s = jnp.transpose(w2, (2, 3, 1, 0)).reshape(4 * _C1, _C2)
    w3_c = jnp.transpose(w3, (2, 3, 1, 0)).reshape(9 * _C2, _C3)
    w4_c = jnp.transpose(w4, (2, 3, 1, 0)).reshape(9 * _C3, _C4)
    w5_c = jnp.transpose(w5, (2, 3, 1, 0)).reshape(_KH5 * _KW5 * _C4, _C5)
    w6_m = jnp.transpose(w6.reshape(_C6, _C5))                # (8, 4)

    return (p_rows,
            w1_bd.astype(dtype), b1_t,
            w2_s.astype(dtype), b2.reshape(1, _C2),
            w3_c.astype(dtype), b3.reshape(1, _C3),
            w4_c.astype(dtype), b4.reshape(1, _C4),
            w5_c.astype(dtype), b5.reshape(1, _C5),
            w6_m.astype(dtype))


@functools.partial(jax.jit, static_argnames=("block_batch", "use_bf16"))
def encoder_forward_pallas(x_nchw, params, block_batch=8, use_bf16=True):
    assert x_nchw.shape[1:] == (1, 16, 16), "Encoder expects (N, 1, 16, 16)"
    nb = int(block_batch)
    assert nb % 8 == 0 and nb > 0
    n_im = x_nchw.shape[0]
    n_blocks = (n_im + nb - 1) // nb
    n_pad = n_blocks * nb
    m_pad = _GRID * _GRID * nb
    halo = 11 * nb

    inputs = _prepare_inputs(x_nchw, params, nb, use_bf16)
    kernel = functools.partial(_encoder_kernel, nb=nb, use_bf16=use_bf16)

    dsize = 2 if use_bf16 else 4
    flops = (2 * n_pad * 100 * (36 * 120 + 120 * _C2 + 270 * _C3 + 180 * _C4)
             + 2 * n_pad * (672 * _C5 + _C5 * _C6))
    bytes_accessed = (dsize * (n_blocks * m_pad * 36 + 36 * 120 + 120 * _C2
                               + 270 * _C3 + 180 * _C4 + 672 * _C5 + _C5 * _C6)
                      + 4 * (120 + _C2 + _C3 + _C4 + _C5)
                      + 4 * n_blocks * nb * _C6)

    grid_spec = pltpu.PrefetchScalarGridSpec(
        num_scalar_prefetch=0,
        grid=(n_blocks,),
        in_specs=[
            pl.BlockSpec((None, m_pad, 36), lambda i: (i, 0, 0)),   # patches
            pl.BlockSpec((36, 120), lambda i: (0, 0)),              # conv1 (bd)
            pl.BlockSpec((1, 120), lambda i: (0, 0)),
            pl.BlockSpec((120, _C2), lambda i: (0, 0)),             # conv2
            pl.BlockSpec((1, _C2), lambda i: (0, 0)),
            pl.BlockSpec((9 * _C2, _C3), lambda i: (0, 0)),         # conv3
            pl.BlockSpec((1, _C3), lambda i: (0, 0)),
            pl.BlockSpec((9 * _C3, _C4), lambda i: (0, 0)),         # conv4
            pl.BlockSpec((1, _C4), lambda i: (0, 0)),
            pl.BlockSpec((_KH5 * _KW5 * _C4, _C5), lambda i: (0, 0)),  # conv5
            pl.BlockSpec((1, _C5), lambda i: (0, 0)),
            pl.BlockSpec((_C5, _C6), lambda i: (0, 0)),             # conv6
        ],
        out_specs=pl.BlockSpec((None, nb, _C6), lambda i: (i, 0, 0)),
        scratch_shapes=[pltpu.VMEM((m_pad + 2 * halo, _C2), jnp.float32)],
    )

    out = pl.pallas_call(
        kernel,
        out_shape=jax.ShapeDtypeStruct((n_blocks, nb, _C6), jnp.float32),
        grid_spec=grid_spec,
        compiler_params=pltpu.CompilerParams(
            dimension_semantics=("parallel",),
            vmem_limit_bytes=32 * 1024 * 1024),
        cost_estimate=pl.CostEstimate(
            flops=int(flops), transcendentals=0,
            bytes_accessed=int(bytes_accessed)),
    )(*inputs)
    return out.reshape(n_pad, _C6)[:n_im].reshape(n_im, _C6, 1, 1)


# (stride, padding, relu_after) for conv1..conv6, exactly as in Models.Encoder
_LAYER_CFG = [
    (1, 1, True),   # conv1: 1->30, k3, pad 1
    (2, 0, True),   # conv2: 30->30, k2, stride 2
    (1, 1, True),   # conv3: 30->20, k3, pad 1
    (1, 1, True),   # conv4: 20->12, k3, pad 1
    (2, 0, True),   # conv5: 12->8, k(7,8), stride 2
    (1, 0, False),  # conv6: 8->4, k1, no bias, no relu
]


# ---------------------- deterministic parameter init ----------------------- #
def init_params(key):
    specs = [
        (30, 1, 3, 3, True),
        (30, 30, 2, 2, True),
        (20, 30, 3, 3, True),
        (12, 20, 3, 3, True),
        (8, 12, 7, 8, True),
        (4, 8, 1, 1, False),
    ]
    params = []
    for i, (co, ci, kh, kw, has_bias) in enumerate(specs):
        kw_key, kb_key = jax.random.split(jax.random.fold_in(key, i))
        scale = 1.0 / np.sqrt(ci * kh * kw)
        w = jax.random.uniform(kw_key, (co, ci, kh, kw), jnp.float32,
                               minval=-scale, maxval=scale)
        if has_bias:
            b = jax.random.uniform(kb_key, (co,), jnp.float32,
                                   minval=-scale, maxval=scale)
        else:
            b = jnp.zeros((co,), jnp.float32)
        params.append((w, b))
    return params


# ---------------------------- pure-JAX reference ---------------------------- #
def encoder_forward_ref(x_nchw, params):
    x = x_nchw
    for (w, b), (s, p, relu) in zip(params, _LAYER_CFG):
        x = jax.lax.conv_general_dilated(
            x, w, window_strides=(s, s), padding=[(p, p), (p, p)],
            dimension_numbers=("NCHW", "OIHW", "NCHW"))
        x = x + b.reshape(1, -1, 1, 1)
        if relu:
            x = jnp.maximum(x, 0.0)
    return x


if __name__ == "__main__":
    key = jax.random.PRNGKey(0)
    pkey, xkey = jax.random.split(key)
    params = init_params(pkey)

    # PyTorch NCHW convention: (batch=2, channels=1, 16, 16).
    x = jax.random.normal(xkey, (2, 1, 16, 16), dtype=jnp.float32)

    ref = jax.block_until_ready(encoder_forward_ref(x, params))

    # Exact-semantics path (f32 MXU operands): tight tolerance.
    out_f32 = jax.block_until_ready(
        encoder_forward_pallas(x, params, use_bf16=False))
    assert out_f32.shape == ref.shape == (2, 4, 1, 1), out_f32.shape
    np.testing.assert_allclose(np.asarray(out_f32), np.asarray(ref),
                               rtol=1e-3, atol=1e-3)

    # Fast path (bf16 MXU operands, f32 accumulation): bf16-level tolerance.
    out_bf16 = jax.block_until_ready(
        encoder_forward_pallas(x, params, use_bf16=True))
    np.testing.assert_allclose(np.asarray(out_bf16), np.asarray(ref),
                               rtol=3e-2, atol=3e-2)

    print("KERNEL_OK")
</pallas_src>

<mosaic_0001>
module attributes {stable_mosaic.version = 11 : i64} {
  func.func @_encoder_kernel(%arg0: i32, %arg1: memref<1x800x36xf32, #tpu.memory_space<vmem>>, %arg2: memref<36x120xf32, #tpu.memory_space<vmem>>, %arg3: memref<1x120xf32, #tpu.memory_space<vmem>>, %arg4: memref<120x30xf32, #tpu.memory_space<vmem>>, %arg5: memref<1x30xf32, #tpu.memory_space<vmem>>, %arg6: memref<270x20xf32, #tpu.memory_space<vmem>>, %arg7: memref<1x20xf32, #tpu.memory_space<vmem>>, %arg8: memref<180x12xf32, #tpu.memory_space<vmem>>, %arg9: memref<1x12xf32, #tpu.memory_space<vmem>>, %arg10: memref<672x8xf32, #tpu.memory_space<vmem>>, %arg11: memref<1x8xf32, #tpu.memory_space<vmem>>, %arg12: memref<8x4xf32, #tpu.memory_space<vmem>>, %arg13: memref<1x8x4xf32, #tpu.memory_space<vmem>>, %arg14: memref<976x30xf32, #tpu.memory_space<vmem>>) attributes {dimension_semantics = [#tpu.dimension_semantics<parallel>], iteration_bounds = array<i64: 1>, scalar_prefetch = 0 : i64, scratch_operands = 1 : i64, tpu.core_type = #tpu.core_type<tc>, window_params = [{transform_indices = @transform_0, window_bounds = array<i64: 1, 800, 36>}, {pipeline_mode = #tpu.pipeline_mode<synchronous>, transform_indices = @transform_1, window_bounds = array<i64: 36, 120>}, {pipeline_mode = #tpu.pipeline_mode<synchronous>, transform_indices = @transform_2, window_bounds = array<i64: 1, 120>}, {pipeline_mode = #tpu.pipeline_mode<synchronous>, transform_indices = @transform_3, window_bounds = array<i64: 120, 30>}, {pipeline_mode = #tpu.pipeline_mode<synchronous>, transform_indices = @transform_4, window_bounds = array<i64: 1, 30>}, {pipeline_mode = #tpu.pipeline_mode<synchronous>, transform_indices = @transform_5, window_bounds = array<i64: 270, 20>}, {pipeline_mode = #tpu.pipeline_mode<synchronous>, transform_indices = @transform_6, window_bounds = array<i64: 1, 20>}, {pipeline_mode = #tpu.pipeline_mode<synchronous>, transform_indices = @transform_7, window_bounds = array<i64: 180, 12>}, {pipeline_mode = #tpu.pipeline_mode<synchronous>, transform_indices = @transform_8, window_bounds = array<i64: 1, 12>}, {pipeline_mode = #tpu.pipeline_mode<synchronous>, transform_indices = @transform_9, window_bounds = array<i64: 672, 8>}, {pipeline_mode = #tpu.pipeline_mode<synchronous>, transform_indices = @transform_10, window_bounds = array<i64: 1, 8>}, {pipeline_mode = #tpu.pipeline_mode<synchronous>, transform_indices = @transform_11, window_bounds = array<i64: 8, 4>}, {transform_indices = @transform_12, window_bounds = array<i64: 1, 8, 4>}]} {
    %c0 = arith.constant 0 : index
    %c0_0 = arith.constant 0 : index
    %c0_1 = arith.constant 0 : index
    %0 = vector.load %arg1[%c0, %c0_0, %c0_1] : memref<1x800x36xf32, #tpu.memory_space<vmem>>, vector<1x800x36xf32>
    %1 = vector.shape_cast %0 : vector<1x800x36xf32> to vector<800x36xf32>
    %c0_2 = arith.constant 0 : index
    %c0_3 = arith.constant 0 : index
    %2 = vector.load %arg2[%c0_2, %c0_3] : memref<36x120xf32, #tpu.memory_space<vmem>>, vector<36x120xf32>
    %cst = arith.constant dense<0.000000e+00> : vector<800x120xf32>
    %3 = tpu.matmul %1, %2, %cst {dimension_numbers = #tpu.dot_dimension_numbers<[1], [0], [0], [1], [0, 0, 1, 1], [], []>} : vector<800x36xf32>, vector<36x120xf32>, vector<800x120xf32> -> vector<800x120xf32>
    %c0_4 = arith.constant 0 : index
    %c0_5 = arith.constant 0 : index
    %4 = vector.load %arg3[%c0_4, %c0_5] : memref<1x120xf32, #tpu.memory_space<vmem>>, vector<1x120xf32>
    %5 = vector.broadcast %4 : vector<1x120xf32> to vector<800x120xf32>
    %6 = arith.addf %3, %5 : vector<800x120xf32>
    %cst_6 = arith.constant 0.000000e+00 : f32
    %7 = vector.broadcast %cst_6 : f32 to vector<800x120xf32>
    %8 = arith.maximumf %6, %7 : vector<800x120xf32>
    %c0_7 = arith.constant 0 : index
    %c0_8 = arith.constant 0 : index
    %9 = vector.load %arg4[%c0_7, %c0_8] : memref<120x30xf32, #tpu.memory_space<vmem>>, vector<120x30xf32>
    %cst_9 = arith.constant dense<0.000000e+00> : vector<800x30xf32>
    %10 = tpu.matmul %8, %9, %cst_9 {dimension_numbers = #tpu.dot_dimension_numbers<[1], [0], [0], [1], [0, 0, 1, 1], [], []>} : vector<800x120xf32>, vector<120x30xf32>, vector<800x30xf32> -> vector<800x30xf32>
    %c0_10 = arith.constant 0 : index
    %c0_11 = arith.constant 0 : index
    %11 = vector.load %arg5[%c0_10, %c0_11] : memref<1x30xf32, #tpu.memory_space<vmem>>, vector<1x30xf32>
    %12 = vector.broadcast %11 : vector<1x30xf32> to vector<800x30xf32>
    %13 = arith.addf %10, %12 : vector<800x30xf32>
    %cst_12 = arith.constant 0.000000e+00 : f32
    %14 = vector.broadcast %cst_12 : f32 to vector<800x30xf32>
    %15 = arith.maximumf %13, %14 : vector<800x30xf32>
    %cst_13 = arith.constant 0.000000e+00 : f32
    %16 = vector.broadcast %cst_13 : f32 to vector<88x30xf32>
    %c0_14 = arith.constant 0 : index
    %c0_15 = arith.constant 0 : index
    %17 = vector.load %arg14[%c0_14, %c0_15] : memref<976x30xf32, #tpu.memory_space<vmem>>, vector<88x30xf32>
    tpu.vector_store %arg14[%c0_14, %c0_15], %16 {strides = array<i32>} : memref<976x30xf32, #tpu.memory_space<vmem>>, vector<88x30xf32>,
    %cst_16 = arith.constant 0.000000e+00 : f32
    %18 = vector.broadcast %cst_16 : f32 to vector<88x30xf32>
    %c888 = arith.constant 888 : index
    %c0_17 = arith.constant 0 : index
    %19 = vector.load %arg14[%c888, %c0_17] : memref<976x30xf32, #tpu.memory_space<vmem>>, vector<88x30xf32>
    tpu.vector_store %arg14[%c888, %c0_17], %18 {strides = array<i32>} : memref<976x30xf32, #tpu.memory_space<vmem>>, vector<88x30xf32>,
    %c88 = arith.constant 88 : index
    %c0_18 = arith.constant 0 : index
    %20 = vector.load %arg14[%c88, %c0_18] : memref<976x30xf32, #tpu.memory_space<vmem>>, vector<800x30xf32>
    tpu.vector_store %arg14[%c88, %c0_18], %15 {strides = array<i32>} : memref<976x30xf32, #tpu.memory_space<vmem>>, vector<800x30xf32>,
    %cst_19 = arith.constant 0.000000e+00 : f32
    %21 = vector.broadcast %cst_19 : f32 to vector<88x30xf32>
    %c88_20 = arith.constant 88 : index
    %c0_21 = arith.constant 0 : index
    %22 = vector.load %arg14[%c88_20, %c0_21] : memref<976x30xf32, #tpu.memory_space<vmem>>, vector<88x30xf32>
    tpu.vector_store %arg14[%c88_20, %c0_21], %21 {strides = array<i32>} : memref<976x30xf32, #tpu.memory_space<vmem>>, vector<88x30xf32>,
    %cst_22 = arith.constant 0.000000e+00 : f32
    %23 = vector.broadcast %cst_22 : f32 to vector<16x30xf32>
    %c240 = arith.constant 240 : index
    %c0_23 = arith.constant 0 : index
    %24 = vector.load %arg14[%c240, %c0_23] : memref<976x30xf32, #tpu.memory_space<vmem>>, vector<16x30xf32>
    tpu.vector_store %arg14[%c240, %c0_23], %23 {strides = array<i32>} : memref<976x30xf32, #tpu.memory_space<vmem>>, vector<16x30xf32>,
    %cst_24 = arith.constant 0.000000e+00 : f32
    %25 = vector.broadcast %cst_24 : f32 to vector<16x30xf32>
    %c320 = arith.constant 320 : index
    %c0_25 = arith.constant 0 : index
    %26 = vector.load %arg14[%c320, %c0_25] : memref<976x30xf32, #tpu.memory_space<vmem>>, vector<16x30xf32>
    tpu.vector_store %arg14[%c320, %c0_25], %25 {strides = array<i32>} : memref<976x30xf32, #tpu.memory_space<vmem>>, vector<16x30xf32>,
    %cst_26 = arith.constant 0.000000e+00 : f32
    %27 = vector.broadcast %cst_26 : f32 to vector<16x30xf32>
    %c400 = arith.constant 400 : index
    %c0_27 = arith.constant 0 : index
    %28 = vector.load %arg14[%c400, %c0_27] : memref<976x30xf32, #tpu.memory_space<vmem>>, vector<16x30xf32>
    tpu.vector_store %arg14[%c400, %c0_27], %27 {strides = array<i32>} : memref<976x30xf32, #tpu.memory_space<vmem>>, vector<16x30xf32>,
    %cst_28 = arith.constant 0.000000e+00 : f32
    %29 = vector.broadcast %cst_28 : f32 to vector<16x30xf32>
    %c480 = arith.constant 480 : index
    %c0_29 = arith.constant 0 : index
    %30 = vector.load %arg14[%c480, %c0_29] : memref<976x30xf32, #tpu.memory_space<vmem>>, vector<16x30xf32>
    tpu.vector_store %arg14[%c480, %c0_29], %29 {strides = array<i32>} : memref<976x30xf32, #tpu.memory_space<vmem>>, vector<16x30xf32>,
    %cst_30 = arith.constant 0.000000e+00 : f32
    %31 = vector.broadcast %cst_30 : f32 to vector<16x30xf32>
    %c560 = arith.constant 560 : index
    %c0_31 = arith.constant 0 : index
    %32 = vector.load %arg14[%c560, %c0_31] : memref<976x30xf32, #tpu.memory_space<vmem>>, vector<16x30xf32>
    tpu.vector_store %arg14[%c560, %c0_31], %31 {strides = array<i32>} : memref<976x30xf32, #tpu.memory_space<vmem>>, vector<16x30xf32>,
    %cst_32 = arith.constant 0.000000e+00 : f32
    %33 = vector.broadcast %cst_32 : f32 to vector<16x30xf32>
    %c640 = arith.constant 640 : index
    %c0_33 = arith.constant 0 : index
    %34 = vector.load %arg14[%c640, %c0_33] : memref<976x30xf32, #tpu.memory_space<vmem>>, vector<16x30xf32>
    tpu.vector_store %arg14[%c640, %c0_33], %33 {strides = array<i32>} : memref<976x30xf32, #tpu.memory_space<vmem>>, vector<16x30xf32>,
    %cst_34 = arith.constant 0.000000e+00 : f32
    %35 = vector.broadcast %cst_34 : f32 to vector<16x30xf32>
    %c720 = arith.constant 720 : index
    %c0_35 = arith.constant 0 : index
    %36 = vector.load %arg14[%c720, %c0_35] : memref<976x30xf32, #tpu.memory_space<vmem>>, vector<16x30xf32>
    tpu.vector_store %arg14[%c720, %c0_35], %35 {strides = array<i32>} : memref<976x30xf32, #tpu.memory_space<vmem>>, vector<16x30xf32>,
    %cst_36 = arith.constant 0.000000e+00 : f32
    %37 = vector.broadcast %cst_36 : f32 to vector<88x30xf32>
    %c800 = arith.constant 800 : index
    %c0_37 = arith.constant 0 : index
    %38 = vector.load %arg14[%c800, %c0_37] : memref<976x30xf32, #tpu.memory_space<vmem>>, vector<88x30xf32>
    tpu.vector_store %arg14[%c800, %c0_37], %37 {strides = array<i32>} : memref<976x30xf32, #tpu.memory_space<vmem>>, vector<88x30xf32>,
    %c0_38 = arith.constant 0 : index
    %c0_39 = arith.constant 0 : index
    %39 = vector.load %arg14[%c0_38, %c0_39] : memref<976x30xf32, #tpu.memory_space<vmem>>, vector<800x30xf32>
    %c8 = arith.constant 8 : index
    %c0_40 = arith.constant 0 : index
    %40 = vector.load %arg14[%c8, %c0_40] : memref<976x30xf32, #tpu.memory_space<vmem>>, vector<800x30xf32>
    %c16 = arith.constant 16 : index
    %c0_41 = arith.constant 0 : index
    %41 = vector.load %arg14[%c16, %c0_41] : memref<976x30xf32, #tpu.memory_space<vmem>>, vector<800x30xf32>
    %c80 = arith.constant 80 : index
    %c0_42 = arith.constant 0 : index
    %42 = vector.load %arg14[%c80, %c0_42] : memref<976x30xf32, #tpu.memory_space<vmem>>, vector<800x30xf32>
    %c88_43 = arith.constant 88 : index
    %c0_44 = arith.constant 0 : index
    %43 = vector.load %arg14[%c88_43, %c0_44] : memref<976x30xf32, #tpu.memory_space<vmem>>, vector<800x30xf32>
    %c96 = arith.constant 96 : index
    %c0_45 = arith.constant 0 : index
    %44 = vector.load %arg14[%c96, %c0_45] : memref<976x30xf32, #tpu.memory_space<vmem>>, vector<800x30xf32>
    %c160 = arith.constant 160 : index
    %c0_46 = arith.constant 0 : index
    %45 = vector.load %arg14[%c160, %c0_46] : memref<976x30xf32, #tpu.memory_space<vmem>>, vector<800x30xf32>
    %c168 = arith.constant 168 : index
    %c0_47 = arith.constant 0 : index
    %46 = vector.load %arg14[%c168, %c0_47] : memref<976x30xf32, #tpu.memory_space<vmem>>, vector<800x30xf32>
    %c176 = arith.constant 176 : index
    %c0_48 = arith.constant 0 : index
    %47 = vector.load %arg14[%c176, %c0_48] : memref<976x30xf32, #tpu.memory_space<vmem>>, vector<800x30xf32>
    %48 = tpu.concatenate %39, %40, %41, %42, %43, %44, %45, %46, %47 in 1 : vector<800x30xf32>, vector<800x30xf32>, vector<800x30xf32>, vector<800x30xf32>, vector<800x30xf32>, vector<800x30xf32>, vector<800x30xf32>, vector<800x30xf32>, vector<800x30xf32> -> vector<800x270xf32>
    %c0_49 = arith.constant 0 : index
    %c0_50 = arith.constant 0 : index
    %49 = vector.load %arg6[%c0_49, %c0_50] : memref<270x20xf32, #tpu.memory_space<vmem>>, vector<270x20xf32>
    %cst_51 = arith.constant dense<0.000000e+00> : vector<800x20xf32>
    %50 = tpu.matmul %48, %49, %cst_51 {dimension_numbers = #tpu.dot_dimension_numbers<[1], [0], [0], [1], [0, 0, 1, 1], [], []>} : vector<800x270xf32>, vector<270x20xf32>, vector<800x20xf32> -> vector<800x20xf32>
    %c0_52 = arith.constant 0 : index
    %c0_53 = arith.constant 0 : index
    %51 = vector.load %arg7[%c0_52, %c0_53] : memref<1x20xf32, #tpu.memory_space<vmem>>, vector<1x20xf32>
    %52 = vector.broadcast %51 : vector<1x20xf32> to vector<800x20xf32>
    %53 = arith.addf %50, %52 : vector<800x20xf32>
    %cst_54 = arith.constant 0.000000e+00 : f32
    %54 = vector.broadcast %cst_54 : f32 to vector<800x20xf32>
    %55 = arith.maximumf %53, %54 : vector<800x20xf32>
    %c88_55 = arith.constant 88 : index
    %c0_56 = arith.constant 0 : index
    %56 = vector.load %arg14[%c88_55, %c0_56] : memref<976x30xf32, #tpu.memory_space<vmem>>, vector<800x20xf32>
    tpu.vector_store %arg14[%c88_55, %c0_56], %55 {strides = array<i32>} : memref<976x30xf32, #tpu.memory_space<vmem>>, vector<800x20xf32>,
    %cst_57 = arith.constant 0.000000e+00 : f32
    %57 = vector.broadcast %cst_57 : f32 to vector<88x20xf32>
    %c88_58 = arith.constant 88 : index
    %c0_59 = arith.constant 0 : index
    %58 = vector.load %arg14[%c88_58, %c0_59] : memref<976x30xf32, #tpu.memory_space<vmem>>, vector<88x20xf32>
    tpu.vector_store %arg14[%c88_58, %c0_59], %57 {strides = array<i32>} : memref<976x30xf32, #tpu.memory_space<vmem>>, vector<88x20xf32>,
    %cst_60 = arith.constant 0.000000e+00 : f32
    %59 = vector.broadcast %cst_60 : f32 to vector<16x20xf32>
    %c240_61 = arith.constant 240 : index
    %c0_62 = arith.constant 0 : index
    %60 = vector.load %arg14[%c240_61, %c0_62] : memref<976x30xf32, #tpu.memory_space<vmem>>, vector<16x20xf32>
    tpu.vector_store %arg14[%c240_61, %c0_62], %59 {strides = array<i32>} : memref<976x30xf32, #tpu.memory_space<vmem>>, vector<16x20xf32>,
    %cst_63 = arith.constant 0.000000e+00 : f32
    %61 = vector.broadcast %cst_63 : f32 to vector<16x20xf32>
    %c320_64 = arith.constant 320 : index
    %c0_65 = arith.constant 0 : index
    %62 = vector.load %arg14[%c320_64, %c0_65] : memref<976x30xf32, #tpu.memory_space<vmem>>, vector<16x20xf32>
    tpu.vector_store %arg14[%c320_64, %c0_65], %61 {strides = array<i32>} : memref<976x30xf32, #tpu.memory_space<vmem>>, vector<16x20xf32>,
    %cst_66 = arith.constant 0.000000e+00 : f32
    %63 = vector.broadcast %cst_66 : f32 to vector<16x20xf32>
    %c400_67 = arith.constant 400 : index
    %c0_68 = arith.constant 0 : index
    %64 = vector.load %arg14[%c400_67, %c0_68] : memref<976x30xf32, #tpu.memory_space<vmem>>, vector<16x20xf32>
    tpu.vector_store %arg14[%c400_67, %c0_68], %63 {strides = array<i32>} : memref<976x30xf32, #tpu.memory_space<vmem>>, vector<16x20xf32>,
    %cst_69 = arith.constant 0.000000e+00 : f32
    %65 = vector.broadcast %cst_69 : f32 to vector<16x20xf32>
    %c480_70 = arith.constant 480 : index
    %c0_71 = arith.constant 0 : index
    %66 = vector.load %arg14[%c480_70, %c0_71] : memref<976x30xf32, #tpu.memory_space<vmem>>, vector<16x20xf32>
    tpu.vector_store %arg14[%c480_70, %c0_71], %65 {strides = array<i32>} : memref<976x30xf32, #tpu.memory_space<vmem>>, vector<16x20xf32>,
    %cst_72 = arith.constant 0.000000e+00 : f32
    %67 = vector.broadcast %cst_72 : f32 to vector<16x20xf32>
    %c560_73 = arith.constant 560 : index
    %c0_74 = arith.constant 0 : index
    %68 = vector.load %arg14[%c560_73, %c0_74] : memref<976x30xf32, #tpu.memory_space<vmem>>, vector<16x20xf32>
    tpu.vector_store %arg14[%c560_73, %c0_74], %67 {strides = array<i32>} : memref<976x30xf32, #tpu.memory_space<vmem>>, vector<16x20xf32>,
    %cst_75 = arith.constant 0.000000e+00 : f32
    %69 = vector.broadcast %cst_75 : f32 to vector<16x20xf32>
    %c640_76 = arith.constant 640 : index
    %c0_77 = arith.constant 0 : index
    %70 = vector.load %arg14[%c640_76, %c0_77] : memref<976x30xf32, #tpu.memory_space<vmem>>, vector<16x20xf32>
    tpu.vector_store %arg14[%c640_76, %c0_77], %69 {strides = array<i32>} : memref<976x30xf32, #tpu.memory_space<vmem>>, vector<16x20xf32>,
    %cst_78 = arith.constant 0.000000e+00 : f32
    %71 = vector.broadcast %cst_78 : f32 to vector<16x20xf32>
    %c720_79 = arith.constant 720 : index
    %c0_80 = arith.constant 0 : index
    %72 = vector.load %arg14[%c720_79, %c0_80] : memref<976x30xf32, #tpu.memory_space<vmem>>, vector<16x20xf32>
    tpu.vector_store %arg14[%c720_79, %c0_80], %71 {strides = array<i32>} : memref<976x30xf32, #tpu.memory_space<vmem>>, vector<16x20xf32>,
    %cst_81 = arith.constant 0.000000e+00 : f32
    %73 = vector.broadcast %cst_81 : f32 to vector<88x20xf32>
    %c800_82 = arith.constant 800 : index
    %c0_83 = arith.constant 0 : index
    %74 = vector.load %arg14[%c800_82, %c0_83] : memref<976x30xf32, #tpu.memory_space<vmem>>, vector<88x20xf32>
    tpu.vector_store %arg14[%c800_82, %c0_83], %73 {strides = array<i32>} : memref<976x30xf32, #tpu.memory_space<vmem>>, vector<88x20xf32>,
    %c0_84 = arith.constant 0 : index
    %c0_85 = arith.constant 0 : index
    %75 = vector.load %arg14[%c0_84, %c0_85] : memref<976x30xf32, #tpu.memory_space<vmem>>, vector<800x20xf32>
    %c8_86 = arith.constant 8 : index
    %c0_87 = arith.constant 0 : index
    %76 = vector.load %arg14[%c8_86, %c0_87] : memref<976x30xf32, #tpu.memory_space<vmem>>, vector<800x20xf32>
    %c16_88 = arith.constant 16 : index
    %c0_89 = arith.constant 0 : index
    %77 = vector.load %arg14[%c16_88, %c0_89] : memref<976x30xf32, #tpu.memory_space<vmem>>, vector<800x20xf32>
    %c80_90 = arith.constant 80 : index
    %c0_91 = arith.constant 0 : index
    %78 = vector.load %arg14[%c80_90, %c0_91] : memref<976x30xf32, #tpu.memory_space<vmem>>, vector<800x20xf32>
    %c88_92 = arith.constant 88 : index
    %c0_93 = arith.constant 0 : index
    %79 = vector.load %arg14[%c88_92, %c0_93] : memref<976x30xf32, #tpu.memory_space<vmem>>, vector<800x20xf32>
    %c96_94 = arith.constant 96 : index
    %c0_95 = arith.constant 0 : index
    %80 = vector.load %arg14[%c96_94, %c0_95] : memref<976x30xf32, #tpu.memory_space<vmem>>, vector<800x20xf32>
    %c160_96 = arith.constant 160 : index
    %c0_97 = arith.constant 0 : index
    %81 = vector.load %arg14[%c160_96, %c0_97] : memref<976x30xf32, #tpu.memory_space<vmem>>, vector<800x20xf32>
    %c168_98 = arith.constant 168 : index
    %c0_99 = arith.constant 0 : index
    %82 = vector.load %arg14[%c168_98, %c0_99] : memref<976x30xf32, #tpu.memory_space<vmem>>, vector<800x20xf32>
    %c176_100 = arith.constant 176 : index
    %c0_101 = arith.constant 0 : index
    %83 = vector.load %arg14[%c176_100, %c0_101] : memref<976x30xf32, #tpu.memory_space<vmem>>, vector<800x20xf32>
    %84 = tpu.concatenate %75, %76, %77, %78, %79, %80, %81, %82, %83 in 1 : vector<800x20xf32>, vector<800x20xf32>, vector<800x20xf32>, vector<800x20xf32>, vector<800x20xf32>, vector<800x20xf32>, vector<800x20xf32>, vector<800x20xf32>, vector<800x20xf32> -> vector<800x180xf32>
    %c0_102 = arith.constant 0 : index
    %c0_103 = arith.constant 0 : index
    %85 = vector.load %arg8[%c0_102, %c0_103] : memref<180x12xf32, #tpu.memory_space<vmem>>, vector<180x12xf32>
    %cst_104 = arith.constant dense<0.000000e+00> : vector<800x12xf32>
    %86 = tpu.matmul %84, %85, %cst_104 {dimension_numbers = #tpu.dot_dimension_numbers<[1], [0], [0], [1], [0, 0, 1, 1], [], []>} : vector<800x180xf32>, vector<180x12xf32>, vector<800x12xf32> -> vector<800x12xf32>
    %c0_105 = arith.constant 0 : index
    %c0_106 = arith.constant 0 : index
    %87 = vector.load %arg9[%c0_105, %c0_106] : memref<1x12xf32, #tpu.memory_space<vmem>>, vector<1x12xf32>
    %88 = vector.broadcast %87 : vector<1x12xf32> to vector<800x12xf32>
    %89 = arith.addf %86, %88 : vector<800x12xf32>
    %cst_107 = arith.constant 0.000000e+00 : f32
    %90 = vector.broadcast %cst_107 : f32 to vector<800x12xf32>
    %91 = arith.maximumf %89, %90 : vector<800x12xf32>
    %92 = vector.extract_strided_slice %91 {offsets = [88, 0], sizes = [8, 12], strides = [1, 1]} : vector<800x12xf32> to vector<8x12xf32>
    %93 = vector.extract_strided_slice %91 {offsets = [96, 0], sizes = [8, 12], strides = [1, 1]} : vector<800x12xf32> to vector<8x12xf32>
    %94 = vector.extract_strided_slice %91 {offsets = [104, 0], sizes = [8, 12], strides = [1, 1]} : vector<800x12xf32> to vector<8x12xf32>
    %95 = vector.extract_strided_slice %91 {offsets = [112, 0], sizes = [8, 12], strides = [1, 1]} : vector<800x12xf32> to vector<8x12xf32>
    %96 = vector.extract_strided_slice %91 {offsets = [120, 0], sizes = [8, 12], strides = [1, 1]} : vector<800x12xf32> to vector<8x12xf32>
    %97 = vector.extract_strided_slice %91 {offsets = [128, 0], sizes = [8, 12], strides = [1, 1]} : vector<800x12xf32> to vector<8x12xf32>
    %98 = vector.extract_strided_slice %91 {offsets = [136, 0], sizes = [8, 12], strides = [1, 1]} : vector<800x12xf32> to vector<8x12xf32>
    %99 = vector.extract_strided_slice %91 {offsets = [144, 0], sizes = [8, 12], strides = [1, 1]} : vector<800x12xf32> to vector<8x12xf32>
    %100 = vector.extract_strided_slice %91 {offsets = [168, 0], sizes = [8, 12], strides = [1, 1]} : vector<800x12xf32> to vector<8x12xf32>
    %101 = vector.extract_strided_slice %91 {offsets = [176, 0], sizes = [8, 12], strides = [1, 1]} : vector<800x12xf32> to vector<8x12xf32>
    %102 = vector.extract_strided_slice %91 {offsets = [184, 0], sizes = [8, 12], strides = [1, 1]} : vector<800x12xf32> to vector<8x12xf32>
    %103 = vector.extract_strided_slice %91 {offsets = [192, 0], sizes = [8, 12], strides = [1, 1]} : vector<800x12xf32> to vector<8x12xf32>
    %104 = vector.extract_strided_slice %91 {offsets = [200, 0], sizes = [8, 12], strides = [1, 1]} : vector<800x12xf32> to vector<8x12xf32>
    %105 = vector.extract_strided_slice %91 {offsets = [208, 0], sizes = [8, 12], strides = [1, 1]} : vector<800x12xf32> to vector<8x12xf32>
    %106 = vector.extract_strided_slice %91 {offsets = [216, 0], sizes = [8, 12], strides = [1, 1]} : vector<800x12xf32> to vector<8x12xf32>
    %107 = vector.extract_strided_slice %91 {offsets = [224, 0], sizes = [8, 12], strides = [1, 1]} : vector<800x12xf32> to vector<8x12xf32>
    %108 = vector.extract_strided_slice %91 {offsets = [248, 0], sizes = [8, 12], strides = [1, 1]} : vector<800x12xf32> to vector<8x12xf32>
    %109 = vector.extract_strided_slice %91 {offsets = [256, 0], sizes = [8, 12], strides = [1, 1]} : vector<800x12xf32> to vector<8x12xf32>
    %110 = vector.extract_strided_slice %91 {offsets = [264, 0], sizes = [8, 12], strides = [1, 1]} : vector<800x12xf32> to vector<8x12xf32>
    %111 = vector.extract_strided_slice %91 {offsets = [272, 0], sizes = [8, 12], strides = [1, 1]} : vector<800x12xf32> to vector<8x12xf32>
    %112 = vector.extract_strided_slice %91 {offsets = [280, 0], sizes = [8, 12], strides = [1, 1]} : vector<800x12xf32> to vector<8x12xf32>
    %113 = vector.extract_strided_slice %91 {offsets = [288, 0], sizes = [8, 12], strides = [1, 1]} : vector<800x12xf32> to vector<8x12xf32>
    %114 = vector.extract_strided_slice %91 {offsets = [296, 0], sizes = [8, 12], strides = [1, 1]} : vector<800x12xf32> to vector<8x12xf32>
    %115 = vector.extract_strided_slice %91 {offsets = [304, 0], sizes = [8, 12], strides = [1, 1]} : vector<800x12xf32> to vector<8x12xf32>
    %116 = vector.extract_strided_slice %91 {offsets = [328, 0], sizes = [8, 12], strides = [1, 1]} : vector<800x12xf32> to vector<8x12xf32>
    %117 = vector.extract_strided_slice %91 {offsets = [336, 0], sizes = [8, 12], strides = [1, 1]} : vector<800x12xf32> to vector<8x12xf32>
    %118 = vector.extract_strided_slice %91 {offsets = [344, 0], sizes = [8, 12], strides = [1, 1]} : vector<800x12xf32> to vector<8x12xf32>
    %119 = vector.extract_strided_slice %91 {offsets = [352, 0], sizes = [8, 12], strides = [1, 1]} : vector<800x12xf32> to vector<8x12xf32>
    %120 = vector.extract_strided_slice %91 {offsets = [360, 0], sizes = [8, 12], strides = [1, 1]} : vector<800x12xf32> to vector<8x12xf32>
    %121 = vector.extract_strided_slice %91 {offsets = [368, 0], sizes = [8, 12], strides = [1, 1]} : vector<800x12xf32> to vector<8x12xf32>
    %122 = vector.extract_strided_slice %91 {offsets = [376, 0], sizes = [8, 12], strides = [1, 1]} : vector<800x12xf32> to vector<8x12xf32>
    %123 = vector.extract_strided_slice %91 {offsets = [384, 0], sizes = [8, 12], strides = [1, 1]} : vector<800x12xf32> to vector<8x12xf32>
    %124 = vector.extract_strided_slice %91 {offsets = [408, 0], sizes = [8, 12], strides = [1, 1]} : vector<800x12xf32> to vector<8x12xf32>
    %125 = vector.extract_strided_slice %91 {offsets = [416, 0], sizes = [8, 12], strides = [1, 1]} : vector<800x12xf32> to vector<8x12xf32>
    %126 = vector.extract_strided_slice %91 {offsets = [424, 0], sizes = [8, 12], strides = [1, 1]} : vector<800x12xf32> to vector<8x12xf32>
    %127 = vector.extract_strided_slice %91 {offsets = [432, 0], sizes = [8, 12], strides = [1, 1]} : vector<800x12xf32> to vector<8x12xf32>
    %128 = vector.extract_strided_slice %91 {offsets = [440, 0], sizes = [8, 12], strides = [1, 1]} : vector<800x12xf32> to vector<8x12xf32>
    %129 = vector.extract_strided_slice %91 {offsets = [448, 0], sizes = [8, 12], strides = [1, 1]} : vector<800x12xf32> to vector<8x12xf32>
    %130 = vector.extract_strided_slice %91 {offsets = [456, 0], sizes = [8, 12], strides = [1, 1]} : vector<800x12xf32> to vector<8x12xf32>
    %131 = vector.extract_strided_slice %91 {offsets = [464, 0], sizes = [8, 12], strides = [1, 1]} : vector<800x12xf32> to vector<8x12xf32>
    %132 = vector.extract_strided_slice %91 {offsets = [488, 0], sizes = [8, 12], strides = [1, 1]} : vector<800x12xf32> to vector<8x12xf32>
    %133 = vector.extract_strided_slice %91 {offsets = [496, 0], sizes = [8, 12], strides = [1, 1]} : vector<800x12xf32> to vector<8x12xf32>
    %134 = vector.extract_strided_slice %91 {offsets = [504, 0], sizes = [8, 12], strides = [1, 1]} : vector<800x12xf32> to vector<8x12xf32>
    %135 = vector.extract_strided_slice %91 {offsets = [512, 0], sizes = [8, 12], strides = [1, 1]} : vector<800x12xf32> to vector<8x12xf32>
    %136 = vector.extract_strided_slice %91 {offsets = [520, 0], sizes = [8, 12], strides = [1, 1]} : vector<800x12xf32> to vector<8x12xf32>
    %137 = vector.extract_strided_slice %91 {offsets = [528, 0], sizes = [8, 12], strides = [1, 1]} : vector<800x12xf32> to vector<8x12xf32>
    %138 = vector.extract_strided_slice %91 {offsets = [536, 0], sizes = [8, 12], strides = [1, 1]} : vector<800x12xf32> to vector<8x12xf32>
    %139 = vector.extract_strided_slice %91 {offsets = [544, 0], sizes = [8, 12], strides = [1, 1]} : vector<800x12xf32> to vector<8x12xf32>
    %140 = vector.extract_strided_slice %91 {offsets = [568, 0], sizes = [8, 12], strides = [1, 1]} : vector<800x12xf32> to vector<8x12xf32>
    %141 = vector.extract_strided_slice %91 {offsets = [576, 0], sizes = [8, 12], strides = [1, 1]} : vector<800x12xf32> to vector<8x12xf32>
    %142 = vector.extract_strided_slice %91 {offsets = [584, 0], sizes = [8, 12], strides = [1, 1]} : vector<800x12xf32> to vector<8x12xf32>
    %143 = vector.extract_strided_slice %91 {offsets = [592, 0], sizes = [8, 12], strides = [1, 1]} : vector<800x12xf32> to vector<8x12xf32>
    %144 = vector.extract_strided_slice %91 {offsets = [600, 0], sizes = [8, 12], strides = [1, 1]} : vector<800x12xf32> to vector<8x12xf32>
    %145 = vector.extract_strided_slice %91 {offsets = [608, 0], sizes = [8, 12], strides = [1, 1]} : vector<800x12xf32> to vector<8x12xf32>
    %146 = vector.extract_strided_slice %91 {offsets = [616, 0], sizes = [8, 12], strides = [1, 1]} : vector<800x12xf32> to vector<8x12xf32>
    %147 = vector.extract_strided_slice %91 {offsets = [624, 0], sizes = [8, 12], strides = [1, 1]} : vector<800x12xf32> to vector<8x12xf32>
    %148 = tpu.concatenate %92, %93, %94, %95, %96, %97, %98, %99, %100, %101, %102, %103, %104, %105, %106, %107 in 1 : vector<8x12xf32>, vector<8x12xf32>, vector<8x12xf32>, vector<8x12xf32>, vector<8x12xf32>, vector<8x12xf32>, vector<8x12xf32>, vector<8x12xf32>, vector<8x12xf32>, vector<8x12xf32>, vector<8x12xf32>, vector<8x12xf32>, vector<8x12xf32>, vector<8x12xf32>, vector<8x12xf32>, vector<8x12xf32> -> vector<8x192xf32>
    %149 = tpu.concatenate %108, %109, %110, %111, %112, %113, %114, %115, %116, %117, %118, %119, %120, %121, %122, %123 in 1 : vector<8x12xf32>, vector<8x12xf32>, vector<8x12xf32>, vector<8x12xf32>, vector<8x12xf32>, vector<8x12xf32>, vector<8x12xf32>, vector<8x12xf32>, vector<8x12xf32>, vector<8x12xf32>, vector<8x12xf32>, vector<8x12xf32>, vector<8x12xf32>, vector<8x12xf32>, vector<8x12xf32>, vector<8x12xf32> -> vector<8x192xf32>
    %150 = tpu.concatenate %124, %125, %126, %127, %128, %129, %130, %131, %132, %133, %134, %135, %136, %137, %138, %139 in 1 : vector<8x12xf32>, vector<8x12xf32>, vector<8x12xf32>, vector<8x12xf32>, vector<8x12xf32>, vector<8x12xf32>, vector<8x12xf32>, vector<8x12xf32>, vector<8x12xf32>, vector<8x12xf32>, vector<8x12xf32>, vector<8x12xf32>, vector<8x12xf32>, vector<8x12xf32>, vector<8x12xf32>, vector<8x12xf32> -> vector<8x192xf32>
    %151 = tpu.concatenate %140, %141, %142, %143, %144, %145, %146, %147 in 1 : vector<8x12xf32>, vector<8x12xf32>, vector<8x12xf32>, vector<8x12xf32>, vector<8x12xf32>, vector<8x12xf32>, vector<8x12xf32>, vector<8x12xf32> -> vector<8x96xf32>
    %152 = tpu.concatenate %148, %149, %150, %151 in 1 : vector<8x192xf32>, vector<8x192xf32>, vector<8x192xf32>, vector<8x96xf32> -> vector<8x672xf32>
    %c0_108 = arith.constant 0 : index
    %c0_109 = arith.constant 0 : index
    %153 = vector.load %arg10[%c0_108, %c0_109] : memref<672x8xf32, #tpu.memory_space<vmem>>, vector<672x8xf32>
    %cst_110 = arith.constant dense<0.000000e+00> : vector<8x8xf32>
    %154 = tpu.matmul %152, %153, %cst_110 {dimension_numbers = #tpu.dot_dimension_numbers<[1], [0], [0], [1], [0, 0, 1, 1], [], []>} : vector<8x672xf32>, vector<672x8xf32>, vector<8x8xf32> -> vector<8x8xf32>
    %c0_111 = arith.constant 0 : index
    %c0_112 = arith.constant 0 : index
    %155 = vector.load %arg11[%c0_111, %c0_112] : memref<1x8xf32, #tpu.memory_space<vmem>>, vector<1x8xf32>
    %156 = vector.broadcast %155 : vector<1x8xf32> to vector<8x8xf32>
    %157 = arith.addf %154, %156 : vector<8x8xf32>
    %cst_113 = arith.constant 0.000000e+00 : f32
    %158 = vector.broadcast %cst_113 : f32 to vector<8x8xf32>
    %159 = arith.maximumf %157, %158 : vector<8x8xf32>
    %c0_114 = arith.constant 0 : index
    %c0_115 = arith.constant 0 : index
    %160 = vector.load %arg12[%c0_114, %c0_115] : memref<8x4xf32, #tpu.memory_space<vmem>>, vector<8x4xf32>
    %cst_116 = arith.constant dense<0.000000e+00> : vector<8x4xf32>
    %161 = tpu.matmul %159, %160, %cst_116 {dimension_numbers = #tpu.dot_dimension_numbers<[1], [0], [0], [1], [0, 0, 1, 1], [], []>} : vector<8x8xf32>, vector<8x4xf32>, vector<8x4xf32> -> vector<8x4xf32>
    %c0_117 = arith.constant 0 : index
    %c0_118 = arith.constant 0 : index
    %c0_119 = arith.constant 0 : index
    %162 = vector.load %arg13[%c0_117, %c0_118, %c0_119] : memref<1x8x4xf32, #tpu.memory_space<vmem>>, vector<1x8x4xf32>
    %163 = vector.shape_cast %162 : vector<1x8x4xf32> to vector<8x4xf32>
    %164 = vector.shape_cast %161 : vector<8x4xf32> to vector<1x8x4xf32>
    tpu.vector_store %arg13[%c0_117, %c0_118, %c0_119], %164 {strides = array<i32>} : memref<1x8x4xf32, #tpu.memory_space<vmem>>, vector<1x8x4xf32>,
    return
  }
  func.func @transform_0(%arg0: i32) -> (i32, i32, i32) {
    %c0_i32 = arith.constant 0 : i32
    %c0_i32_0 = arith.constant 0 : i32
    %c0_i32_1 = arith.constant 0 : i32
    return %arg0, %c0_i32, %c0_i32_0 : i32, i32, i32
  }
  func.func @transform_1(%arg0: i32) -> (i32, i32) {
    %c0_i32 = arith.constant 0 : i32
    %c0_i32_0 = arith.constant 0 : i32
    %c0_i32_1 = arith.constant 0 : i32
    return %c0_i32, %c0_i32_0 : i32, i32
  }
  func.func @transform_2(%arg0: i32) -> (i32, i32) {
    %c0_i32 = arith.constant 0 : i32
    %c0_i32_0 = arith.constant 0 : i32
    %c0_i32_1 = arith.constant 0 : i32
    return %c0_i32, %c0_i32_0 : i32, i32
  }
  func.func @transform_3(%arg0: i32) -> (i32, i32) {
    %c0_i32 = arith.constant 0 : i32
    %c0_i32_0 = arith.constant 0 : i32
    %c0_i32_1 = arith.constant 0 : i32
    return %c0_i32, %c0_i32_0 : i32, i32
  }
  func.func @transform_4(%arg0: i32) -> (i32, i32) {
    %c0_i32 = arith.constant 0 : i32
    %c0_i32_0 = arith.constant 0 : i32
    %c0_i32_1 = arith.constant 0 : i32
    return %c0_i32, %c0_i32_0 : i32, i32
  }
  func.func @transform_5(%arg0: i32) -> (i32, i32) {
    %c0_i32 = arith.constant 0 : i32
    %c0_i32_0 = arith.constant 0 : i32
    %c0_i32_1 = arith.constant 0 : i32
    return %c0_i32, %c0_i32_0 : i32, i32
  }
  func.func @transform_6(%arg0: i32) -> (i32, i32) {
    %c0_i32 = arith.constant 0 : i32
    %c0_i32_0 = arith.constant 0 : i32
    %c0_i32_1 = arith.constant 0 : i32
    return %c0_i32, %c0_i32_0 : i32, i32
  }
  func.func @transform_7(%arg0: i32) -> (i32, i32) {
    %c0_i32 = arith.constant 0 : i32
    %c0_i32_0 = arith.constant 0 : i32
    %c0_i32_1 = arith.constant 0 : i32
    return %c0_i32, %c0_i32_0 : i32, i32
  }
  func.func @transform_8(%arg0: i32) -> (i32, i32) {
    %c0_i32 = arith.constant 0 : i32
    %c0_i32_0 = arith.constant 0 : i32
    %c0_i32_1 = arith.constant 0 : i32
    return %c0_i32, %c0_i32_0 : i32, i32
  }
  func.func @transform_9(%arg0: i32) -> (i32, i32) {
    %c0_i32 = arith.constant 0 : i32
    %c0_i32_0 = arith.constant 0 : i32
    %c0_i32_1 = arith.constant 0 : i32
    return %c0_i32, %c0_i32_0 : i32, i32
  }
  func.func @transform_10(%arg0: i32) -> (i32, i32) {
    %c0_i32 = arith.constant 0 : i32
    %c0_i32_0 = arith.constant 0 : i32
    %c0_i32_1 = arith.constant 0 : i32
    return %c0_i32, %c0_i32_0 : i32, i32
  }
  func.func @transform_11(%arg0: i32) -> (i32, i32) {
    %c0_i32 = arith.constant 0 : i32
    %c0_i32_0 = arith.constant 0 : i32
    %c0_i32_1 = arith.constant 0 : i32
    return %c0_i32, %c0_i32_0 : i32, i32
  }
  func.func @transform_12(%arg0: i32) -> (i32, i32, i32) {
    %c0_i32 = arith.constant 0 : i32
    %c0_i32_0 = arith.constant 0 : i32
    %c0_i32_1 = arith.constant 0 : i32
    return %arg0, %c0_i32, %c0_i32_0 : i32, i32, i32
  }
}

</mosaic_0001>

<llo_original>
// kernel: tile.8
$region0: #{tile.8}
  #allocation0 [shape = 's32[1]{0}', space=sflag, size = 0x4, scoped, tag = 'scoped memory for tile.8']
  %s0 = inlined_call_operand.vmem [shape: f32[30], index: 0, kind: input, shape index: {}]
  %s1 = inlined_call_operand.vmem [shape: f32[4,30], index: 1, kind: output, shape index: {}]
  // Predicated region
  $region2: #{tile.8} parent=0 // pred_check
    _
  $region3: #{tile.8} parent=0 // pred_check_branch
    %3 = sbr.rel (0) target = $region5
  $region4: #{tile.8} parent=0 // pred_region
    _
  $region5: #{tile.8} parent=0 // pred_fallthru
    _
  %v4 = vld [vmem:[%s0] ss:$0 sm:$0xff]
  %5 = vst [vmem:[%s1] sm:$0xf] %v4

// kernel: tile.9
$region0: #{tile.9}
  %s0 = inlined_call_operand.vmem [shape: f32[4,30], index: 0, kind: input, shape index: {}]
  %s1 = inlined_call_operand.vmem [shape: f32[1,120], index: 1, kind: output, shape index: {}]
  $region1: #{tile.9} parent=0
    #allocation0 [shape = 'u8[4096]{0}', space=vmem, size = 0x1000, scoped, tag = 'scoped mem for output reshape']
    #allocation1 [shape = 'u8[4096]{0}', space=vmem, size = 0x1000, scoped, tag = 'scoped mem for input reshape']
    %s3 = sshll.u32 1, 4
    %s4 = ssub.s32 %s3, 1
    %v5 = vld [vmem:[%s0] sm:%s4]
    %6 = vst [vmem:[#allocation1] sm:%s4] %v5
    %v7 = vld [vmem:[#allocation1] sm:$0x1]
    %vm8 = vcmask 244736
    %9 = vst.msk [vmem:[#allocation0] sm:$0x1] %vm8, %v7
    %s10 = scalar_lea.vmem [#allocation1], 3
    %v11 = vld [vmem:[%s10] sm:$0x1]
    %12 = vrot.lane.b32.xlu0 %v11, 90
    %v13 = vpop.permute.xlu0 %12
    %vm14 = vcmask 982736
    %15 = vst.msk [vmem:[#allocation0] sm:$0x1] %vm14, %v13
    %s16 = scalar_lea.vmem [#allocation1], 2
    %v17 = vld [vmem:[%s16] sm:$0x1]
    %18 = vrot.lane.b32.xlu0 %v17, 60
    %v19 = vpop.permute.xlu0 %18
    %vm20 = vcmask 736736
    %21 = vst.msk [vmem:[#allocation0] sm:$0x1] %vm20, %v19
    %s22 = scalar_lea.vmem [#allocation1], 1
    %v23 = vld [vmem:[%s22] sm:$0x1]
    %24 = vrot.lane.b32.xlu0 %v23, 30
    %v25 = vpop.permute.xlu0 %24
    %vm26 = vcmask 490736
    %27 = vst.msk [vmem:[#allocation0] sm:$0x1] %vm26, %v25
    %s29 = sshll.u32 1, 1
    %s30 = ssub.s32 %s29, 1
    %v32 = vld [vmem:[#allocation0] sm:%s30]
    %s33 = sshll.u32 1, 1
    %s34 = ssub.s32 %s33, 1
    %35 = vst [vmem:[%s1] sm:%s34] %v32

// kernel: encoder_forward_pallas.1
$region0: #{encoder_forward_pallas.1}
  #allocation0 [shape = 'u32[]', space=smem, size = 0x4, offset = 0x4, fixed_abs, tag = 'smem constant byte address 0x4 - core index']
  #allocation1 [shape = 'u32[144,128]{1,0:T(1,128)}', space=vmem, size = 0x12000, scoped, tag = 'internal scratch']
  #allocation2 [shape = 'f32[976,30]{1,0:T(8,128)}', space=vmem, size = 0x7a000, scoped, tag = 'scratch operand']
  %s0 = inlined_call_operand.vmem [shape: f32[1,800,36], index: 0, kind: input, shape index: {}]
  %s1 = inlined_call_operand.vmem [shape: f32[36,120], index: 1, kind: input, shape index: {}]
  %s2 = inlined_call_operand.vmem [shape: f32[1,120], index: 2, kind: input, shape index: {}]
  %s3 = inlined_call_operand.vmem [shape: f32[120,30], index: 3, kind: input, shape index: {}]
  %s4 = inlined_call_operand.vmem [shape: f32[1,30], index: 4, kind: input, shape index: {}]
  %s5 = inlined_call_operand.vmem [shape: f32[270,20], index: 5, kind: input, shape index: {}]
  %s6 = inlined_call_operand.vmem [shape: f32[1,20], index: 6, kind: input, shape index: {}]
  %s7 = inlined_call_operand.vmem [shape: f32[180,12], index: 7, kind: input, shape index: {}]
  %s8 = inlined_call_operand.vmem [shape: f32[1,12], index: 8, kind: input, shape index: {}]
  %s9 = inlined_call_operand.vmem [shape: f32[672,8], index: 9, kind: input, shape index: {}]
  %s10 = inlined_call_operand.vmem [shape: f32[1,8], index: 10, kind: input, shape index: {}]
  %s11 = inlined_call_operand.vmem [shape: f32[8,4], index: 11, kind: input, shape index: {}]
  %s12 = inlined_call_operand.vmem [shape: f32[1,8,4], index: 12, kind: output, shape index: {}]
  %s13 = sld [smem:[#allocation0]]
  $region58: #{encoder_forward_pallas.1} parent=0
    _
  %s15 = ssub.s32 1, %s13
  %s16 = scalar_select 0, %s15, %s13
  // Predicated region
  $region2: #{encoder_forward_pallas.1} parent=0 // pred_check
    _
  $region3: #{encoder_forward_pallas.1} parent=0 // pred_check_branch
    %18 = sbr.rel (0) target = $region5
  $region4: #{encoder_forward_pallas.1} parent=0 // pred_region
    _
  $region5: #{encoder_forward_pallas.1} parent=0 // pred_fallthru
    _
  // Predicated region
  $region6: #{encoder_forward_pallas.1} parent=0 // pred_check
    _
  $region7: #{encoder_forward_pallas.1} parent=0 // pred_check_branch
    %20 = sbr.rel (0) target = $region9
  $region8: #{encoder_forward_pallas.1} parent=0 // pred_region
    _
  $region9: #{encoder_forward_pallas.1} parent=0 // pred_fallthru
    _
  // Predicated region
  $region10: #{encoder_forward_pallas.1} parent=0 // pred_check
    _
  $region11: #{encoder_forward_pallas.1} parent=0 // pred_check_branch
    %22 = sbr.rel (0) target = $region13
  $region12: #{encoder_forward_pallas.1} parent=0 // pred_region
    _
  $region13: #{encoder_forward_pallas.1} parent=0 // pred_fallthru
    _
  // Predicated region
  $region14: #{encoder_forward_pallas.1} parent=0 // pred_check
    _
  $region15: #{encoder_forward_pallas.1} parent=0 // pred_check_branch
    %24 = sbr.rel (0) target = $region17
  $region16: #{encoder_forward_pallas.1} parent=0 // pred_region
    _
  $region17: #{encoder_forward_pallas.1} parent=0 // pred_fallthru
    _
  // Predicated region
  $region18: #{encoder_forward_pallas.1} parent=0 // pred_check
    _
  $region19: #{encoder_forward_pallas.1} parent=0 // pred_check_branch
    %26 = sbr.rel (0) target = $region21
  $region20: #{encoder_forward_pallas.1} parent=0 // pred_region
    _
  $region21: #{encoder_forward_pallas.1} parent=0 // pred_fallthru
    _
  // Predicated region
  $region22: #{encoder_forward_pallas.1} parent=0 // pred_check
    _
  $region23: #{encoder_forward_pallas.1} parent=0 // pred_check_branch
    %28 = sbr.rel (0) target = $region25
  $region24: #{encoder_forward_pallas.1} parent=0 // pred_region
    _
  $region25: #{encoder_forward_pallas.1} parent=0 // pred_fallthru
    _
  // Predicated region
  $region26: #{encoder_forward_pallas.1} parent=0 // pred_check
    _
  $region27: #{encoder_forward_pallas.1} parent=0 // pred_check_branch
    %30 = sbr.rel (0) target = $region29
  $region28: #{encoder_forward_pallas.1} parent=0 // pred_region
    _
  $region29: #{encoder_forward_pallas.1} parent=0 // pred_fallthru
    _
  // Predicated region
  $region30: #{encoder_forward_pallas.1} parent=0 // pred_check
    _
  $region31: #{encoder_forward_pallas.1} parent=0 // pred_check_branch
    %32 = sbr.rel (0) target = $region33
  $region32: #{encoder_forward_pallas.1} parent=0 // pred_region
    _
  $region33: #{encoder_forward_pallas.1} parent=0 // pred_fallthru
    _
  // Predicated region
  $region34: #{encoder_forward_pallas.1} parent=0 // pred_check
    _
  $region35: #{encoder_forward_pallas.1} parent=0 // pred_check_branch
    %34 = sbr.rel (0) target = $region37
  $region36: #{encoder_forward_pallas.1} parent=0 // pred_region
    _
  $region37: #{encoder_forward_pallas.1} parent=0 // pred_fallthru
    _
  // Predicated region
  $region38: #{encoder_forward_pallas.1} parent=0 // pred_check
    _
  $region39: #{encoder_forward_pallas.1} parent=0 // pred_check_branch
    %36 = sbr.rel (0) target = $region41
  $region40: #{encoder_forward_pallas.1} parent=0 // pred_region
    _
  $region41: #{encoder_forward_pallas.1} parent=0 // pred_fallthru
    _
  // Predicated region
  $region42: #{encoder_forward_pallas.1} parent=0 // pred_check
    _
  $region43: #{encoder_forward_pallas.1} parent=0 // pred_check_branch
    %38 = sbr.rel (0) target = $region45
  $region44: #{encoder_forward_pallas.1} parent=0 // pred_region
    _
  $region45: #{encoder_forward_pallas.1} parent=0 // pred_fallthru
    _
  // Predicated region
  $region46: #{encoder_forward_pallas.1} parent=0 // pred_check
    _
  $region47: #{encoder_forward_pallas.1} parent=0 // pred_check_branch
    %40 = sbr.rel (0) target = $region49
  $region48: #{encoder_forward_pallas.1} parent=0 // pred_region
    _
  $region49: #{encoder_forward_pallas.1} parent=0 // pred_fallthru
    _
  %v41 = vld [vmem:[%s0] sm:$0xff]
  %v42 = vld [vmem:[%s0 + $0x8] sm:$0xff]
  %v43 = vld [vmem:[%s0 + $0x10] sm:$0xff]
  %v44 = vld [vmem:[%s0 + $0x18] sm:$0xff]
  %v45 = vld [vmem:[%s0 + $0x20] sm:$0xff]
  %v46 = vld [vmem:[%s0 + $0x28] sm:$0xff]
  %v47 = vld [vmem:[%s0 + $0x30] sm:$0xff]
  %v48 = vld [vmem:[%s0 + $0x38] sm:$0xff]
  %v49 = vld [vmem:[%s0 + $0x40] sm:$0xff]
  %v50 = vld [vmem:[%s0 + $0x48] sm:$0xff]
  %v51 = vld [vmem:[%s0 + $0x50] sm:$0xff]
  %v52 = vld [vmem:[%s0 + $0x58] sm:$0xff]
  %v53 = vld [vmem:[%s0 + $0x60] sm:$0xff]
  %v54 = vld [vmem:[%s0 + $0x68] sm:$0xff]
  %v55 = vld [vmem:[%s0 + $0x70] sm:$0xff]
  %v56 = vld [vmem:[%s0 + $0x78] sm:$0xff]
  %v57 = vld [vmem:[%s0 + $0x80] sm:$0xff]
  %v58 = vld [vmem:[%s0 + $0x88] sm:$0xff]
  %v59 = vld [vmem:[%s0 + $0x90] sm:$0xff]
  %v60 = vld [vmem:[%s0 + $0x98] sm:$0xff]
  %v61 = vld [vmem:[%s0 + $0xa0] sm:$0xff]
  %v62 = vld [vmem:[%s0 + $0xa8] sm:$0xff]
  %v63 = vld [vmem:[%s0 + $0xb0] sm:$0xff]
  %v64 = vld [vmem:[%s0 + $0xb8] sm:$0xff]
  %v65 = vld [vmem:[%s0 + $0xc0] sm:$0xff]
  %v66 = vld [vmem:[%s0 + $0xc8] sm:$0xff]
  %v67 = vld [vmem:[%s0 + $0xd0] sm:$0xff]
  %v68 = vld [vmem:[%s0 + $0xd8] sm:$0xff]
  %v69 = vld [vmem:[%s0 + $0xe0] sm:$0xff]
  %v70 = vld [vmem:[%s0 + $0xe8] sm:$0xff]
  %v71 = vld [vmem:[%s0 + $0xf0] sm:$0xff]
  %v72 = vld [vmem:[%s0 + $0xf8] sm:$0xff]
  %v73 = vld [vmem:[%s0 + $0x100] sm:$0xff]
  %v74 = vld [vmem:[%s0 + $0x108] sm:$0xff]
  %v75 = vld [vmem:[%s0 + $0x110] sm:$0xff]
  %v76 = vld [vmem:[%s0 + $0x118] sm:$0xff]
  %v77 = vld [vmem:[%s0 + $0x120] sm:$0xff]
  %v78 = vld [vmem:[%s0 + $0x128] sm:$0xff]
  %v79 = vld [vmem:[%s0 + $0x130] sm:$0xff]
  %v80 = vld [vmem:[%s0 + $0x138] sm:$0xff]
  %v81 = vld [vmem:[%s0 + $0x140] sm:$0xff]
  %v82 = vld [vmem:[%s0 + $0x148] sm:$0xff]
  %v83 = vld [vmem:[%s0 + $0x150] sm:$0xff]
  %v84 = vld [vmem:[%s0 + $0x158] sm:$0xff]
  %v85 = vld [vmem:[%s0 + $0x160] sm:$0xff]
  %v86 = vld [vmem:[%s0 + $0x168] sm:$0xff]
  %v87 = vld [vmem:[%s0 + $0x170] sm:$0xff]
  %v88 = vld [vmem:[%s0 + $0x178] sm:$0xff]
  %v89 = vld [vmem:[%s0 + $0x180] sm:$0xff]
  %v90 = vld [vmem:[%s0 + $0x188] sm:$0xff]
  %v91 = vld [vmem:[%s0 + $0x190] sm:$0xff]
  %v92 = vld [vmem:[%s0 + $0x198] sm:$0xff]
  %v93 = vld [vmem:[%s0 + $0x1a0] sm:$0xff]
  %v94 = vld [vmem:[%s0 + $0x1a8] sm:$0xff]
  %v95 = vld [vmem:[%s0 + $0x1b0] sm:$0xff]
  %v96 = vld [vmem:[%s0 + $0x1b8] sm:$0xff]
  %v97 = vld [vmem:[%s0 + $0x1c0] sm:$0xff]
  %v98 = vld [vmem:[%s0 + $0x1c8] sm:$0xff]
  %v99 = vld [vmem:[%s0 + $0x1d0] sm:$0xff]
  %v100 = vld [vmem:[%s0 + $0x1d8] sm:$0xff]
  %v101 = vld [vmem:[%s0 + $0x1e0] sm:$0xff]
  %v102 = vld [vmem:[%s0 + $0x1e8] sm:$0xff]
  %v103 = vld [vmem:[%s0 + $0x1f0] sm:$0xff]
  %v104 = vld [vmem:[%s0 + $0x1f8] sm:$0xff]
  %v105 = vld [vmem:[%s0 + $0x200] sm:$0xff]
  %v106 = vld [vmem:[%s0 + $0x208] sm:$0xff]
  %v107 = vld [vmem:[%s0 + $0x210] sm:$0xff]
  %v108 = vld [vmem:[%s0 + $0x218] sm:$0xff]
  %v109 = vld [vmem:[%s0 + $0x220] sm:$0xff]
  %v110 = vld [vmem:[%s0 + $0x228] sm:$0xff]
  %v111 = vld [vmem:[%s0 + $0x230] sm:$0xff]
  %v112 = vld [vmem:[%s0 + $0x238] sm:$0xff]
  %v113 = vld [vmem:[%s0 + $0x240] sm:$0xff]
  %v114 = vld [vmem:[%s0 + $0x248] sm:$0xff]
  %v115 = vld [vmem:[%s0 + $0x250] sm:$0xff]
  %v116 = vld [vmem:[%s0 + $0x258] sm:$0xff]
  %v117 = vld [vmem:[%s0 + $0x260] sm:$0xff]
  %v118 = vld [vmem:[%s0 + $0x268] sm:$0xff]
  %v119 = vld [vmem:[%s0 + $0x270] sm:$0xff]
  %v120 = vld [vmem:[%s0 + $0x278] sm:$0xff]
  %v121 = vld [vmem:[%s0 + $0x280] sm:$0xff]
  %v122 = vld [vmem:[%s0 + $0x288] sm:$0xff]
  %v123 = vld [vmem:[%s0 + $0x290] sm:$0xff]
  %v124 = vld [vmem:[%s0 + $0x298] sm:$0xff]
  %v125 = vld [vmem:[%s0 + $0x2a0] sm:$0xff]
  %v126 = vld [vmem:[%s0 + $0x2a8] sm:$0xff]
  %v127 = vld [vmem:[%s0 + $0x2b0] sm:$0xff]
  %v128 = vld [vmem:[%s0 + $0x2b8] sm:$0xff]
  %v129 = vld [vmem:[%s0 + $0x2c0] sm:$0xff]
  %v130 = vld [vmem:[%s0 + $0x2c8] sm:$0xff]
  %v131 = vld [vmem:[%s0 + $0x2d0] sm:$0xff]
  %v132 = vld [vmem:[%s0 + $0x2d8] sm:$0xff]
  %v133 = vld [vmem:[%s0 + $0x2e0] sm:$0xff]
  %v134 = vld [vmem:[%s0 + $0x2e8] sm:$0xff]
  %v135 = vld [vmem:[%s0 + $0x2f0] sm:$0xff]
  %v136 = vld [vmem:[%s0 + $0x2f8] sm:$0xff]
  %v137 = vld [vmem:[%s0 + $0x300] sm:$0xff]
  %v138 = vld [vmem:[%s0 + $0x308] sm:$0xff]
  %v139 = vld [vmem:[%s0 + $0x310] sm:$0xff]
  %v140 = vld [vmem:[%s0 + $0x318] sm:$0xff]
  %v141 = vld [vmem:[%s1] sm:$0xff]
  %v142 = vld [vmem:[%s1 + $0x8] sm:$0xff]
  %v143 = vld [vmem:[%s1 + $0x10] sm:$0xff]
  %v144 = vld [vmem:[%s1 + $0x18] sm:$0xff]
  %v145 = vld [vmem:[%s1 + $0x20] sm:$0xf]
  %v146 = vld [vmem:[%s2] sm:$0x1]
  %v148 = vlaneseq
  %v149 = vshrl.u32 %v148, 7
  %v150 = vsub.s32 0, %v149
  %v151 = vrot.slane %v146, %v150
  %vm153 = vcmask 293888
  %v155 = vsel %vm153, %v41, 0
  %v158 = vsel %vm153, %v42, 0
  %v161 = vsel %vm153, %v43, 0
  %v164 = vsel %vm153, %v44, 0
  %v167 = vsel %vm153, %v45, 0
  %v170 = vsel %vm153, %v46, 0
  %v173 = vsel %vm153, %v47, 0
  %v176 = vsel %vm153, %v48, 0
  %v179 = vsel %vm153, %v49, 0
  %v182 = vsel %vm153, %v50, 0
  %v185 = vsel %vm153, %v51, 0
  %v188 = vsel %vm153, %v52, 0
  %v191 = vsel %vm153, %v53, 0
  %v194 = vsel %vm153, %v54, 0
  %v197 = vsel %vm153, %v55, 0
  %v200 = vsel %vm153, %v56, 0
  %v203 = vsel %vm153, %v57, 0
  %v206 = vsel %vm153, %v58, 0
  %v209 = vsel %vm153, %v59, 0
  %v212 = vsel %vm153, %v60, 0
  %v215 = vsel %vm153, %v61, 0
  %v218 = vsel %vm153, %v62, 0
  %v221 = vsel %vm153, %v63, 0
  %v224 = vsel %vm153, %v64, 0
  %v227 = vsel %vm153, %v65, 0
  %v230 = vsel %vm153, %v66, 0
  %v233 = vsel %vm153, %v67, 0
  %v236 = vsel %vm153, %v68, 0
  %v239 = vsel %vm153, %v69, 0
  %v242 = vsel %vm153, %v70, 0
  %v245 = vsel %vm153, %v71, 0
  %v248 = vsel %vm153, %v72, 0
  %v251 = vsel %vm153, %v73, 0
  %v254 = vsel %vm153, %v74, 0
  %v257 = vsel %vm153, %v75, 0
  %v260 = vsel %vm153, %v76, 0
  %v263 = vsel %vm153, %v77, 0
  %v266 = vsel %vm153, %v78, 0
  %v269 = vsel %vm153, %v79, 0
  %v272 = vsel %vm153, %v80, 0
  %v275 = vsel %vm153, %v81, 0
  %v278 = vsel %vm153, %v82, 0
  %v281 = vsel %vm153, %v83, 0
  %v284 = vsel %vm153, %v84, 0
  %v287 = vsel %vm153, %v85, 0
  %v290 = vsel %vm153, %v86, 0
  %v293 = vsel %vm153, %v87, 0
  %v296 = vsel %vm153, %v88, 0
  %v299 = vsel %vm153, %v89, 0
  %v302 = vsel %vm153, %v90, 0
  %v305 = vsel %vm153, %v91, 0
  %v308 = vsel %vm153, %v92, 0
  %v311 = vsel %vm153, %v93, 0
  %v314 = vsel %vm153, %v94, 0
  %v317 = vsel %vm153, %v95, 0
  %v320 = vsel %vm153, %v96, 0
  %v323 = vsel %vm153, %v97, 0
  %v326 = vsel %vm153, %v98, 0
  %v329 = vsel %vm153, %v99, 0
  %v332 = vsel %vm153, %v100, 0
  %v335 = vsel %vm153, %v101, 0
  %v338 = vsel %vm153, %v102, 0
  %v341 = vsel %vm153, %v103, 0
  %v344 = vsel %vm153, %v104, 0
  %v347 = vsel %vm153, %v105, 0
  %v350 = vsel %vm153, %v106, 0
  %v353 = vsel %vm153, %v107, 0
  %v356 = vsel %vm153, %v108, 0
  %v359 = vsel %vm153, %v109, 0
  %v362 = vsel %vm153, %v110, 0
  %v365 = vsel %vm153, %v111, 0
  %v368 = vsel %vm153, %v112, 0
  %v371 = vsel %vm153, %v113, 0
  %v374 = vsel %vm153, %v114, 0
  %v377 = vsel %vm153, %v115, 0
  %v380 = vsel %vm153, %v116, 0
  %v383 = vsel %vm153, %v117, 0
  %v386 = vsel %vm153, %v118, 0
  %v389 = vsel %vm153, %v119, 0
  %v392 = vsel %vm153, %v120, 0
  %v395 = vsel %vm153, %v121, 0
  %v398 = vsel %vm153, %v122, 0
  %v401 = vsel %vm153, %v123, 0
  %v404 = vsel %vm153, %v124, 0
  %v407 = vsel %vm153, %v125, 0
  %v410 = vsel %vm153, %v126, 0
  %v413 = vsel %vm153, %v127, 0
  %v416 = vsel %vm153, %v128, 0
  %v419 = vsel %vm153, %v129, 0
  %v422 = vsel %vm153, %v130, 0
  %v425 = vsel %vm153, %v131, 0
  %v428 = vsel %vm153, %v132, 0
  %v431 = vsel %vm153, %v133, 0
  %v434 = vsel %vm153, %v134, 0
  %v437 = vsel %vm153, %v135, 0
  %v440 = vsel %vm153, %v136, 0
  %v443 = vsel %vm153, %v137, 0
  %v446 = vsel %vm153, %v138, 0
  %v449 = vsel %vm153, %v139, 0
  %v452 = vsel %vm153, %v140, 0
  %vm454 = vcmask 1043456
  %v456 = vsel %vm454, %v145, 0
  %458 = vmatprep.subr.mxu0 0.0
  %459 = vmatpush1.msra.mxu0 0.0
  %460 = vmatprep.subr.mxu0 0.0
  %461 = vmatpush1.msra.mxu0 0.0
  %462 = vmatprep.subr.mxu0 0.0
  %463 = vmatpush1.msra.mxu0 0.0
  %464 = vmatprep.subr.mxu0 0.0
  %465 = vmatpush1.msra.mxu0 0.0
  %466 = vmatprep.subr.mxu0 0.0
  %467 = vmatpush1.msra.mxu0 0.0
  %468 = vmatprep.subr.mxu0 0.0
  %469 = vmatpush1.msra.mxu0 0.0
  %470 = vmatprep.subr.mxu0 0.0
  %471 = vmatpush1.msra.mxu0 0.0
  %472 = vmatprep.subr.mxu0 0.0
  %473 = vmatpush1.msra.mxu0 0.0
  %474 = vmatprep.subr.mxu0 0.0
  %475 = vmatpush1.msra.mxu0 0.0
  %476 = vmatprep.subr.mxu0 0.0
  %477 = vmatpush1.msra.mxu0 0.0
  %478 = vmatprep.subr.mxu0 0.0
  %479 = vmatpush1.msra.mxu0 0.0
  %480 = vmatprep.subr.mxu0 0.0
  %481 = vmatpush1.msra.mxu0 %v456
  %482 = vmatprep.subr.mxu0 0.0
  %483 = vmatpush1.msra.mxu0 %v144
  %484 = vmatprep.subr.mxu0 0.0
  %485 = vmatpush1.msra.mxu0 %v143
  %486 = vmatprep.subr.mxu0 0.0
  %487 = vmatpush1.msra.mxu0 %v142
  %488 = vmatprep.subr.mxu0 0.0
  %489 = vmatpush1.msra.mxu0 %v141
  %490 = vmatprep.subr.mxu0 0.0
  %491 = vmatpush2.msra.mxu0 0.0
  %492 = vmatprep.subr.mxu0 0.0
  %493 = vmatpush2.msra.mxu0 0.0
  %494 = vmatprep.subr.mxu0 0.0
  %495 = vmatpush2.msra.mxu0 0.0
  %496 = vmatprep.subr.mxu0 0.0
  %497 = vmatpush2.msra.mxu0 0.0
  %498 = vmatprep.subr.mxu0 0.0
  %499 = vmatpush2.msra.mxu0 0.0
  %500 = vmatprep.subr.mxu0 0.0
  %501 = vmatpush2.msra.mxu0 0.0
  %502 = vmatprep.subr.mxu0 0.0
  %503 = vmatpush2.msra.mxu0 0.0
  %504 = vmatprep.subr.mxu0 0.0
  %505 = vmatpush2.msra.mxu0 0.0
  %506 = vmatprep.subr.mxu0 0.0
  %507 = vmatpush2.msra.mxu0 0.0
  %508 = vmatprep.subr.mxu0 0.0
  %509 = vmatpush2.msra.mxu0 0.0
  %510 = vmatprep.subr.mxu0 0.0
  %511 = vmatpush2.msra.mxu0 0.0
  %512 = vmatprep.subr.mxu0 0.0
  %513 = vmatpush2.msra.mxu0 0.0
  %514 = vmatprep.subr.mxu0 0.0
  %515 = vmatpush2.msra.mxu0 0.0
  %516 = vmatprep.subr.mxu0 0.0
  %517 = vmatpush2.msra.mxu0 0.0
  %518 = vmatprep.subr.mxu0 0.0
  %519 = vmatpush2.msra.mxu0 0.0
  %520 = vmatprep.subr.mxu0 0.0
  %521 = vmatpush2.msra.mxu0 0.0
  %522 = vmatprep.mubr.f32.mxu0 0.0
  %523 = vmatmul.mubr.f32.gmra.mxu0 %v155
  %v524 = vpop.f32.mrf.mxu0
  %v525 = vadd.f32 %v151, %v524
  %v526 = vpop.f32.mrf.mxu0
  %527 = vmatprep.mubr.f32.mxu0 0.0
  %528 = vmatmul.mubr.f32.gmra.mxu0 %v158
  %v529 = vpop.f32.mrf.mxu0
  %v530 = vadd.f32 %v151, %v529
  %v531 = vpop.f32.mrf.mxu0
  %532 = vmatprep.mubr.f32.mxu0 0.0
  %533 = vmatmul.mubr.f32.gmra.mxu0 %v161
  %v534 = vpop.f32.mrf.mxu0
  %v535 = vadd.f32 %v151, %v534
  %v536 = vpop.f32.mrf.mxu0
  %537 = vmatprep.mubr.f32.mxu0 0.0
  %538 = vmatmul.mubr.f32.gmra.mxu0 %v164
  %v539 = vpop.f32.mrf.mxu0
  %v540 = vadd.f32 %v151, %v539
  %v541 = vpop.f32.mrf.mxu0
  %542 = vmatprep.mubr.f32.mxu0 0.0
  %543 = vmatmul.mubr.f32.gmra.mxu0 %v167
  %v544 = vpop.f32.mrf.mxu0
  %v545 = vadd.f32 %v151, %v544
  %v546 = vpop.f32.mrf.mxu0
  %547 = vmatprep.mubr.f32.mxu0 0.0
  %548 = vmatmul.mubr.f32.gmra.mxu0 %v170
  %v549 = vpop.f32.mrf.mxu0
  %v550 = vadd.f32 %v151, %v549
  %v551 = vpop.f32.mrf.mxu0
  %552 = vmatprep.mubr.f32.mxu0 0.0
  %553 = vmatmul.mubr.f32.gmra.mxu0 %v173
  %v554 = vpop.f32.mrf.mxu0
  %v555 = vadd.f32 %v151, %v554
  %v556 = vpop.f32.mrf.mxu0
  %557 = vmatprep.mubr.f32.mxu0 0.0
  %558 = vmatmul.mubr.f32.gmra.mxu0 %v176
  %v559 = vpop.f32.mrf.mxu0
  %v560 = vadd.f32 %v151, %v559
  %v561 = vpop.f32.mrf.mxu0
  %562 = vmatprep.mubr.f32.mxu0 0.0
  %563 = vmatmul.mubr.f32.gmra.mxu0 %v179
  %v564 = vpop.f32.mrf.mxu0
  %v565 = vadd.f32 %v151, %v564
  %v566 = vpop.f32.mrf.mxu0
  %567 = vmatprep.mubr.f32.mxu0 0.0
  %568 = vmatmul.mubr.f32.gmra.mxu0 %v182
  %v569 = vpop.f32.mrf.mxu0
  %v570 = vadd.f32 %v151, %v569
  %v571 = vpop.f32.mrf.mxu0
  %572 = vmatprep.mubr.f32.mxu0 0.0
  %573 = vmatmul.mubr.f32.gmra.mxu0 %v185
  %v574 = vpop.f32.mrf.mxu0
  %v575 = vadd.f32 %v151, %v574
  %v576 = vpop.f32.mrf.mxu0
  %577 = vmatprep.mubr.f32.mxu0 0.0
  %578 = vmatmul.mubr.f32.gmra.mxu0 %v188
  %v579 = vpop.f32.mrf.mxu0
  %v580 = vadd.f32 %v151, %v579
  %v581 = vpop.f32.mrf.mxu0
  %582 = vmatprep.mubr.f32.mxu0 0.0
  %583 = vmatmul.mubr.f32.gmra.mxu0 %v191
  %v584 = vpop.f32.mrf.mxu0
  %v585 = vadd.f32 %v151, %v584
  %v586 = vpop.f32.mrf.mxu0
  %587 = vmatprep.mubr.f32.mxu0 0.0
  %588 = vmatmul.mubr.f32.gmra.mxu0 %v194
  %v589 = vpop.f32.mrf.mxu0
  %v590 = vadd.f32 %v151, %v589
  %v591 = vpop.f32.mrf.mxu0
  %592 = vmatprep.mubr.f32.mxu0 0.0
  %593 = vmatmul.mubr.f32.gmra.mxu0 %v197
  %v594 = vpop.f32.mrf.mxu0
  %v595 = vadd.f32 %v151, %v594
  %v596 = vpop.f32.mrf.mxu0
  %597 = vmatprep.mubr.f32.mxu0 0.0
  %598 = vmatmul.mubr.f32.gmra.mxu0 %v200
  %v599 = vpop.f32.mrf.mxu0
  %v600 = vadd.f32 %v151, %v599
  %v601 = vpop.f32.mrf.mxu0
  %602 = vmatprep.mubr.f32.mxu0 0.0
  %603 = vmatmul.mubr.f32.gmra.mxu0 %v203
  %v604 = vpop.f32.mrf.mxu0
  %v605 = vadd.f32 %v151, %v604
  %v606 = vpop.f32.mrf.mxu0
  %607 = vmatprep.mubr.f32.mxu0 0.0
  %608 = vmatmul.mubr.f32.gmra.mxu0 %v206
  %v609 = vpop.f32.mrf.mxu0
  %v610 = vadd.f32 %v151, %v609
  %v611 = vpop.f32.mrf.mxu0
  %612 = vmatprep.mubr.f32.mxu0 0.0
  %613 = vmatmul.mubr.f32.gmra.mxu0 %v209
  %v614 = vpop.f32.mrf.mxu0
  %v615 = vadd.f32 %v151, %v614
  %v616 = vpop.f32.mrf.mxu0
  %617 = vmatprep.mubr.f32.mxu0 0.0
  %618 = vmatmul.mubr.f32.gmra.mxu0 %v212
  %v619 = vpop.f32.mrf.mxu0
  %v620 = vadd.f32 %v151, %v619
  %v621 = vpop.f32.mrf.mxu0
  %622 = vmatprep.mubr.f32.mxu0 0.0
  %623 = vmatmul.mubr.f32.gmra.mxu0 %v215
  %v624 = vpop.f32.mrf.mxu0
  %v625 = vadd.f32 %v151, %v624
  %v626 = vpop.f32.mrf.mxu0
  %627 = vmatprep.mubr.f32.mxu0 0.0
  %628 = vmatmul.mubr.f32.gmra.mxu0 %v218
  %v629 = vpop.f32.mrf.mxu0
  %v630 = vadd.f32 %v151, %v629
  %v631 = vpop.f32.mrf.mxu0
  %632 = vmatprep.mubr.f32.mxu0 0.0
  %633 = vmatmul.mubr.f32.gmra.mxu0 %v221
  %v634 = vpop.f32.mrf.mxu0
  %v635 = vadd.f32 %v151, %v634
  %v636 = vpop.f32.mrf.mxu0
  %637 = vmatprep.mubr.f32.mxu0 0.0
  %638 = vmatmul.mubr.f32.gmra.mxu0 %v224
  %v639 = vpop.f32.mrf.mxu0
  %v640 = vadd.f32 %v151, %v639
  %v641 = vpop.f32.mrf.mxu0
  %642 = vmatprep.mubr.f32.mxu0 0.0
  %643 = vmatmul.mubr.f32.gmra.mxu0 %v227
  %v644 = vpop.f32.mrf.mxu0
  %v645 = vadd.f32 %v151, %v644
  %v646 = vpop.f32.mrf.mxu0
  %647 = vmatprep.mubr.f32.mxu0 0.0
  %648 = vmatmul.mubr.f32.gmra.mxu0 %v230
  %v649 = vpop.f32.mrf.mxu0
  %v650 = vadd.f32 %v151, %v649
  %v651 = vpop.f32.mrf.mxu0
  %652 = vmatprep.mubr.f32.mxu0 0.0
  %653 = vmatmul.mubr.f32.gmra.mxu0 %v233
  %v654 = vpop.f32.mrf.mxu0
  %v655 = vadd.f32 %v151, %v654
  %v656 = vpop.f32.mrf.mxu0
  %657 = vmatprep.mubr.f32.mxu0 0.0
  %658 = vmatmul.mubr.f32.gmra.mxu0 %v236
  %v659 = vpop.f32.mrf.mxu0
  %v660 = vadd.f32 %v151, %v659
  %v661 = vpop.f32.mrf.mxu0
  %662 = vmatprep.mubr.f32.mxu0 0.0
  %663 = vmatmul.mubr.f32.gmra.mxu0 %v239
  %v664 = vpop.f32.mrf.mxu0
  %v665 = vadd.f32 %v151, %v664
  %v666 = vpop.f32.mrf.mxu0
  %667 = vmatprep.mubr.f32.mxu0 0.0
  %668 = vmatmul.mubr.f32.gmra.mxu0 %v242
  %v669 = vpop.f32.mrf.mxu0
  %v670 = vadd.f32 %v151, %v669
  %v671 = vpop.f32.mrf.mxu0
  %672 = vmatprep.mubr.f32.mxu0 0.0
  %673 = vmatmul.mubr.f32.gmra.mxu0 %v245
  %v674 = vpop.f32.mrf.mxu0
  %v675 = vadd.f32 %v151, %v674
  %v676 = vpop.f32.mrf.mxu0
  %677 = vmatprep.mubr.f32.mxu0 0.0
  %678 = vmatmul.mubr.f32.gmra.mxu0 %v248
  %v679 = vpop.f32.mrf.mxu0
  %v680 = vadd.f32 %v151, %v679
  %v681 = vpop.f32.mrf.mxu0
  %682 = vmatprep.mubr.f32.mxu0 0.0
  %683 = vmatmul.mubr.f32.gmra.mxu0 %v251
  %v684 = vpop.f32.mrf.mxu0
  %v685 = vadd.f32 %v151, %v684
  %v686 = vpop.f32.mrf.mxu0
  %687 = vmatprep.mubr.f32.mxu0 0.0
  %688 = vmatmul.mubr.f32.gmra.mxu0 %v254
  %v689 = vpop.f32.mrf.mxu0
  %v690 = vadd.f32 %v151, %v689
  %v691 = vpop.f32.mrf.mxu0
  %692 = vmatprep.mubr.f32.mxu0 0.0
  %693 = vmatmul.mubr.f32.gmra.mxu0 %v257
  %v694 = vpop.f32.mrf.mxu0
  %v695 = vadd.f32 %v151, %v694
  %v696 = vpop.f32.mrf.mxu0
  %697 = vmatprep.mubr.f32.mxu0 0.0
  %698 = vmatmul.mubr.f32.gmra.mxu0 %v260
  %v699 = vpop.f32.mrf.mxu0
  %v700 = vadd.f32 %v151, %v699
  %v701 = vpop.f32.mrf.mxu0
  %702 = vmatprep.mubr.f32.mxu0 0.0
  %703 = vmatmul.mubr.f32.gmra.mxu0 %v263
  %v704 = vpop.f32.mrf.mxu0
  %v705 = vadd.f32 %v151, %v704
  %v706 = vpop.f32.mrf.mxu0
  %707 = vmatprep.mubr.f32.mxu0 0.0
  %708 = vmatmul.mubr.f32.gmra.mxu0 %v266
  %v709 = vpop.f32.mrf.mxu0
  %v710 = vadd.f32 %v151, %v709
  %v711 = vpop.f32.mrf.mxu0
  %712 = vmatprep.mubr.f32.mxu0 0.0
  %713 = vmatmul.mubr.f32.gmra.mxu0 %v269
  %v714 = vpop.f32.mrf.mxu0
  %v715 = vadd.f32 %v151, %v714
  %v716 = vpop.f32.mrf.mxu0
  %717 = vmatprep.mubr.f32.mxu0 0.0
  %718 = vmatmul.mubr.f32.gmra.mxu0 %v272
  %v719 = vpop.f32.mrf.mxu0
  %v720 = vadd.f32 %v151, %v719
  %v721 = vpop.f32.mrf.mxu0
  %722 = vmatprep.mubr.f32.mxu0 0.0
  %723 = vmatmul.mubr.f32.gmra.mxu0 %v275
  %v724 = vpop.f32.mrf.mxu0
  %v725 = vadd.f32 %v151, %v724
  %v726 = vpop.f32.mrf.mxu0
  %727 = vmatprep.mubr.f32.mxu0 0.0
  %728 = vmatmul.mubr.f32.gmra.mxu0 %v278
  %v729 = vpop.f32.mrf.mxu0
  %v730 = vadd.f32 %v151, %v729
  %v731 = vpop.f32.mrf.mxu0
  %732 = vmatprep.mubr.f32.mxu0 0.0
  %733 = vmatmul.mubr.f32.gmra.mxu0 %v281
  %v734 = vpop.f32.mrf.mxu0
  %v735 = vadd.f32 %v151, %v734
  %v736 = vpop.f32.mrf.mxu0
  %737 = vmatprep.mubr.f32.mxu0 0.0
  %738 = vmatmul.mubr.f32.gmra.mxu0 %v284
  %v739 = vpop.f32.mrf.mxu0
  %v740 = vadd.f32 %v151, %v739
  %v741 = vpop.f32.mrf.mxu0
  %742 = vmatprep.mubr.f32.mxu0 0.0
  %743 = vmatmul.mubr.f32.gmra.mxu0 %v287
  %v744 = vpop.f32.mrf.mxu0
  %v745 = vadd.f32 %v151, %v744
  %v746 = vpop.f32.mrf.mxu0
  %747 = vmatprep.mubr.f32.mxu0 0.0
  %748 = vmatmul.mubr.f32.gmra.mxu0 %v290
  %v749 = vpop.f32.mrf.mxu0
  %v750 = vadd.f32 %v151, %v749
  %v751 = vpop.f32.mrf.mxu0
  %752 = vmatprep.mubr.f32.mxu0 0.0
  %753 = vmatmul.mubr.f32.gmra.mxu0 %v293
  %v754 = vpop.f32.mrf.mxu0
  %v755 = vadd.f32 %v151, %v754
  %v756 = vpop.f32.mrf.mxu0
  %757 = vmatprep.mubr.f32.mxu0 0.0
  %758 = vmatmul.mubr.f32.gmra.mxu0 %v296
  %v759 = vpop.f32.mrf.mxu0
  %v760 = vadd.f32 %v151, %v759
  %v761 = vpop.f32.mrf.mxu0
  %762 = vmatprep.mubr.f32.mxu0 0.0
  %763 = vmatmul.mubr.f32.gmra.mxu0 %v299
  %v764 = vpop.f32.mrf.mxu0
  %v765 = vadd.f32 %v151, %v764
  %v766 = vpop.f32.mrf.mxu0
  %767 = vmatprep.mubr.f32.mxu0 0.0
  %768 = vmatmul.mubr.f32.gmra.mxu0 %v302
  %v769 = vpop.f32.mrf.mxu0
  %v770 = vadd.f32 %v151, %v769
  %v771 = vpop.f32.mrf.mxu0
  %772 = vmatprep.mubr.f32.mxu0 0.0
  %773 = vmatmul.mubr.f32.gmra.mxu0 %v305
  %v774 = vpop.f32.mrf.mxu0
  %v775 = vadd.f32 %v151, %v774
  %v776 = vpop.f32.mrf.mxu0
  %777 = vmatprep.mubr.f32.mxu0 0.0
  %778 = vmatmul.mubr.f32.gmra.mxu0 %v308
  %v779 = vpop.f32.mrf.mxu0
  %v780 = vadd.f32 %v151, %v779
  %v781 = vpop.f32.mrf.mxu0
  %782 = vmatprep.mubr.f32.mxu0 0.0
  %783 = vmatmul.mubr.f32.gmra.mxu0 %v311
  %v784 = vpop.f32.mrf.mxu0
  %v785 = vadd.f32 %v151, %v784
  %v786 = vpop.f32.mrf.mxu0
  %787 = vmatprep.mubr.f32.mxu0 0.0
  %788 = vmatmul.mubr.f32.gmra.mxu0 %v314
  %v789 = vpop.f32.mrf.mxu0
  %v790 = vadd.f32 %v151, %v789
  %v791 = vpop.f32.mrf.mxu0
  %792 = vmatprep.mubr.f32.mxu0 0.0
  %793 = vmatmul.mubr.f32.gmra.mxu0 %v317
  %v794 = vpop.f32.mrf.mxu0
  %v795 = vadd.f32 %v151, %v794
  %v796 = vpop.f32.mrf.mxu0
  %797 = vmatprep.mubr.f32.mxu0 0.0
  %798 = vmatmul.mubr.f32.gmra.mxu0 %v320
  %v799 = vpop.f32.mrf.mxu0
  %v800 = vadd.f32 %v151, %v799
  %v801 = vpop.f32.mrf.mxu0
  %802 = vmatprep.mubr.f32.mxu0 0.0
  %803 = vmatmul.mubr.f32.gmra.mxu0 %v323
  %v804 = vpop.f32.mrf.mxu0
  %v805 = vadd.f32 %v151, %v804
  %v806 = vpop.f32.mrf.mxu0
  %807 = vmatprep.mubr.f32.mxu0 0.0
  %808 = vmatmul.mubr.f32.gmra.mxu0 %v326
  %v809 = vpop.f32.mrf.mxu0
  %v810 = vadd.f32 %v151, %v809
  %v811 = vpop.f32.mrf.mxu0
  %812 = vmatprep.mubr.f32.mxu0 0.0
  %813 = vmatmul.mubr.f32.gmra.mxu0 %v329
  %v814 = vpop.f32.mrf.mxu0
  %v815 = vadd.f32 %v151, %v814
  %v816 = vpop.f32.mrf.mxu0
  %817 = vmatprep.mubr.f32.mxu0 0.0
  %818 = vmatmul.mubr.f32.gmra.mxu0 %v332
  %v819 = vpop.f32.mrf.mxu0
  %v820 = vadd.f32 %v151, %v819
  %v821 = vpop.f32.mrf.mxu0
  %822 = vmatprep.mubr.f32.mxu0 0.0
  %823 = vmatmul.mubr.f32.gmra.mxu0 %v335
  %v824 = vpop.f32.mrf.mxu0
  %v825 = vadd.f32 %v151, %v824
  %v826 = vpop.f32.mrf.mxu0
  %827 = vmatprep.mubr.f32.mxu0 0.0
  %828 = vmatmul.mubr.f32.gmra.mxu0 %v338
  %v829 = vpop.f32.mrf.mxu0
  %v830 = vadd.f32 %v151, %v829
  %v831 = vpop.f32.mrf.mxu0
  %832 = vmatprep.mubr.f32.mxu0 0.0
  %833 = vmatmul.mubr.f32.gmra.mxu0 %v341
  %v834 = vpop.f32.mrf.mxu0
  %v835 = vadd.f32 %v151, %v834
  %v836 = vpop.f32.mrf.mxu0
  %837 = vmatprep.mubr.f32.mxu0 0.0
  %838 = vmatmul.mubr.f32.gmra.mxu0 %v344
  %v839 = vpop.f32.mrf.mxu0
  %v840 = vadd.f32 %v151, %v839
  %v841 = vpop.f32.mrf.mxu0
  %842 = vmatprep.mubr.f32.mxu0 0.0
  %843 = vmatmul.mubr.f32.gmra.mxu0 %v347
  %v844 = vpop.f32.mrf.mxu0
  %v845 = vadd.f32 %v151, %v844
  %v846 = vpop.f32.mrf.mxu0
  %847 = vmatprep.mubr.f32.mxu0 0.0
  %848 = vmatmul.mubr.f32.gmra.mxu0 %v350
  %v849 = vpop.f32.mrf.mxu0
  %v850 = vadd.f32 %v151, %v849
  %v851 = vpop.f32.mrf.mxu0
  %852 = vmatprep.mubr.f32.mxu0 0.0
  %853 = vmatmul.mubr.f32.gmra.mxu0 %v353
  %v854 = vpop.f32.mrf.mxu0
  %v855 = vadd.f32 %v151, %v854
  %v856 = vpop.f32.mrf.mxu0
  %857 = vmatprep.mubr.f32.mxu0 0.0
  %858 = vmatmul.mubr.f32.gmra.mxu0 %v356
  %v859 = vpop.f32.mrf.mxu0
  %v860 = vadd.f32 %v151, %v859
  %v861 = vpop.f32.mrf.mxu0
  %862 = vmatprep.mubr.f32.mxu0 0.0
  %863 = vmatmul.mubr.f32.gmra.mxu0 %v359
  %v864 = vpop.f32.mrf.mxu0
  %v865 = vadd.f32 %v151, %v864
  %v866 = vpop.f32.mrf.mxu0
  %867 = vmatprep.mubr.f32.mxu0 0.0
  %868 = vmatmul.mubr.f32.gmra.mxu0 %v362
  %v869 = vpop.f32.mrf.mxu0
  %v870 = vadd.f32 %v151, %v869
  %v871 = vpop.f32.mrf.mxu0
  %872 = vmatprep.mubr.f32.mxu0 0.0
  %873 = vmatmul.mubr.f32.gmra.mxu0 %v365
  %v874 = vpop.f32.mrf.mxu0
  %v875 = vadd.f32 %v151, %v874
  %v876 = vpop.f32.mrf.mxu0
  %877 = vmatprep.mubr.f32.mxu0 0.0
  %878 = vmatmul.mubr.f32.gmra.mxu0 %v368
  %v879 = vpop.f32.mrf.mxu0
  %v880 = vadd.f32 %v151, %v879
  %v881 = vpop.f32.mrf.mxu0
  %882 = vmatprep.mubr.f32.mxu0 0.0
  %883 = vmatmul.mubr.f32.gmra.mxu0 %v371
  %v884 = vpop.f32.mrf.mxu0
  %v885 = vadd.f32 %v151, %v884
  %v886 = vpop.f32.mrf.mxu0
  %887 = vmatprep.mubr.f32.mxu0 0.0
  %888 = vmatmul.mubr.f32.gmra.mxu0 %v374
  %v889 = vpop.f32.mrf.mxu0
  %v890 = vadd.f32 %v151, %v889
  %v891 = vpop.f32.mrf.mxu0
  %892 = vmatprep.mubr.f32.mxu0 0.0
  %893 = vmatmul.mubr.f32.gmra.mxu0 %v377
  %v894 = vpop.f32.mrf.mxu0
  %v895 = vadd.f32 %v151, %v894
  %v896 = vpop.f32.mrf.mxu0
  %897 = vmatprep.mubr.f32.mxu0 0.0
  %898 = vmatmul.mubr.f32.gmra.mxu0 %v380
  %v899 = vpop.f32.mrf.mxu0
  %v900 = vadd.f32 %v151, %v899
  %v901 = vpop.f32.mrf.mxu0
  %902 = vmatprep.mubr.f32.mxu0 0.0
  %903 = vmatmul.mubr.f32.gmra.mxu0 %v383
  %v904 = vpop.f32.mrf.mxu0
  %v905 = vadd.f32 %v151, %v904
  %v906 = vpop.f32.mrf.mxu0
  %907 = vmatprep.mubr.f32.mxu0 0.0
  %908 = vmatmul.mubr.f32.gmra.mxu0 %v386
  %v909 = vpop.f32.mrf.mxu0
  %v910 = vadd.f32 %v151, %v909
  %v911 = vpop.f32.mrf.mxu0
  %912 = vmatprep.mubr.f32.mxu0 0.0
  %913 = vmatmul.mubr.f32.gmra.mxu0 %v389
  %v914 = vpop.f32.mrf.mxu0
  %v915 = vadd.f32 %v151, %v914
  %v916 = vpop.f32.mrf.mxu0
  %917 = vmatprep.mubr.f32.mxu0 0.0
  %918 = vmatmul.mubr.f32.gmra.mxu0 %v392
  %v919 = vpop.f32.mrf.mxu0
  %v920 = vadd.f32 %v151, %v919
  %v921 = vpop.f32.mrf.mxu0
  %922 = vmatprep.mubr.f32.mxu0 0.0
  %923 = vmatmul.mubr.f32.gmra.mxu0 %v395
  %v924 = vpop.f32.mrf.mxu0
  %v925 = vadd.f32 %v151, %v924
  %v926 = vpop.f32.mrf.mxu0
  %927 = vmatprep.mubr.f32.mxu0 0.0
  %928 = vmatmul.mubr.f32.gmra.mxu0 %v398
  %v929 = vpop.f32.mrf.mxu0
  %v930 = vadd.f32 %v151, %v929
  %v931 = vpop.f32.mrf.mxu0
  %932 = vmatprep.mubr.f32.mxu0 0.0
  %933 = vmatmul.mubr.f32.gmra.mxu0 %v401
  %v934 = vpop.f32.mrf.mxu0
  %v935 = vadd.f32 %v151, %v934
  %v936 = vpop.f32.mrf.mxu0
  %937 = vmatprep.mubr.f32.mxu0 0.0
  %938 = vmatmul.mubr.f32.gmra.mxu0 %v404
  %v939 = vpop.f32.mrf.mxu0
  %v940 = vadd.f32 %v151, %v939
  %v941 = vpop.f32.mrf.mxu0
  %942 = vmatprep.mubr.f32.mxu0 0.0
  %943 = vmatmul.mubr.f32.gmra.mxu0 %v407
  %v944 = vpop.f32.mrf.mxu0
  %v945 = vadd.f32 %v151, %v944
  %v946 = vpop.f32.mrf.mxu0
  %947 = vmatprep.mubr.f32.mxu0 0.0
  %948 = vmatmul.mubr.f32.gmra.mxu0 %v410
  %v949 = vpop.f32.mrf.mxu0
  %v950 = vadd.f32 %v151, %v949
  %v951 = vpop.f32.mrf.mxu0
  %952 = vmatprep.mubr.f32.mxu0 0.0
  %953 = vmatmul.mubr.f32.gmra.mxu0 %v413
  %v954 = vpop.f32.mrf.mxu0
  %v955 = vadd.f32 %v151, %v954
  %v956 = vpop.f32.mrf.mxu0
  %957 = vmatprep.mubr.f32.mxu0 0.0
  %958 = vmatmul.mubr.f32.gmra.mxu0 %v416
  %v959 = vpop.f32.mrf.mxu0
  %v960 = vadd.f32 %v151, %v959
  %v961 = vpop.f32.mrf.mxu0
  %962 = vmatprep.mubr.f32.mxu0 0.0
  %963 = vmatmul.mubr.f32.gmra.mxu0 %v419
  %v964 = vpop.f32.mrf.mxu0
  %v965 = vadd.f32 %v151, %v964
  %v966 = vpop.f32.mrf.mxu0
  %967 = vmatprep.mubr.f32.mxu0 0.0
  %968 = vmatmul.mubr.f32.gmra.mxu0 %v422
  %v969 = vpop.f32.mrf.mxu0
  %v970 = vadd.f32 %v151, %v969
  %v971 = vpop.f32.mrf.mxu0
  %972 = vmatprep.mubr.f32.mxu0 0.0
  %973 = vmatmul.mubr.f32.gmra.mxu0 %v425
  %v974 = vpop.f32.mrf.mxu0
  %v975 = vadd.f32 %v151, %v974
  %v976 = vpop.f32.mrf.mxu0
  %977 = vmatprep.mubr.f32.mxu0 0.0
  %978 = vmatmul.mubr.f32.gmra.mxu0 %v428
  %v979 = vpop.f32.mrf.mxu0
  %v980 = vadd.f32 %v151, %v979
  %v981 = vpop.f32.mrf.mxu0
  %982 = vmatprep.mubr.f32.mxu0 0.0
  %983 = vmatmul.mubr.f32.gmra.mxu0 %v431
  %v984 = vpop.f32.mrf.mxu0
  %v985 = vadd.f32 %v151, %v984
  %v986 = vpop.f32.mrf.mxu0
  %987 = vmatprep.mubr.f32.mxu0 0.0
  %988 = vmatmul.mubr.f32.gmra.mxu0 %v434
  %v989 = vpop.f32.mrf.mxu0
  %v990 = vadd.f32 %v151, %v989
  %v991 = vpop.f32.mrf.mxu0
  %992 = vmatprep.mubr.f32.mxu0 0.0
  %993 = vmatmul.mubr.f32.gmra.mxu0 %v437
  %v994 = vpop.f32.mrf.mxu0
  %v995 = vadd.f32 %v151, %v994
  %v996 = vpop.f32.mrf.mxu0
  %997 = vmatprep.mubr.f32.mxu0 0.0
  %998 = vmatmul.mubr.f32.gmra.mxu0 %v440
  %v999 = vpop.f32.mrf.mxu0
  %v1000 = vadd.f32 %v151, %v999
  %v1001 = vpop.f32.mrf.mxu0
  %1002 = vmatprep.mubr.f32.mxu0 0.0
  %1003 = vmatmul.mubr.f32.gmra.mxu0 %v443
  %v1004 = vpop.f32.mrf.mxu0
  %v1005 = vadd.f32 %v151, %v1004
  %v1006 = vpop.f32.mrf.mxu0
  %1007 = vmatprep.mubr.f32.mxu0 0.0
  %1008 = vmatmul.mubr.f32.gmra.mxu0 %v446
  %v1009 = vpop.f32.mrf.mxu0
  %v1010 = vadd.f32 %v151, %v1009
  %v1011 = vpop.f32.mrf.mxu0
  %1012 = vmatprep.mubr.f32.mxu0 0.0
  %1013 = vmatmul.mubr.f32.gmra.mxu0 %v449
  %v1014 = vpop.f32.mrf.mxu0
  %v1015 = vadd.f32 %v151, %v1014
  %v1016 = vpop.f32.mrf.mxu0
  %1017 = vmatprep.mubr.f32.mxu0 0.0
  %1018 = vmatmul.mubr.f32.gmra.mxu0 %v452
  %v1019 = vpop.f32.mrf.mxu0
  %v1020 = vadd.f32 %v151, %v1019
  %v1021 = vpop.f32.mrf.mxu0
  %1022 = vdwg.mxu0
  %v1023 = vmax.f32 %v525, 0.0
  %v1024 = vmax.f32 %v530, 0.0
  %v1025 = vmax.f32 %v535, 0.0
  %v1026 = vmax.f32 %v540, 0.0
  %v1027 = vmax.f32 %v545, 0.0
  %v1028 = vmax.f32 %v550, 0.0
  %v1029 = vmax.f32 %v555, 0.0
  %v1030 = vmax.f32 %v560, 0.0
  %v1031 = vmax.f32 %v565, 0.0
  %v1032 = vmax.f32 %v570, 0.0
  %v1033 = vmax.f32 %v575, 0.0
  %v1034 = vmax.f32 %v580, 0.0
  %v1035 = vmax.f32 %v585, 0.0
  %v1036 = vmax.f32 %v590, 0.0
  %v1037 = vmax.f32 %v595, 0.0
  %v1038 = vmax.f32 %v600, 0.0
  %v1039 = vmax.f32 %v605, 0.0
  %v1040 = vmax.f32 %v610, 0.0
  %v1041 = vmax.f32 %v615, 0.0
  %v1042 = vmax.f32 %v620, 0.0
  %v1043 = vmax.f32 %v625, 0.0
  %v1044 = vmax.f32 %v630, 0.0
  %v1045 = vmax.f32 %v635, 0.0
  %v1046 = vmax.f32 %v640, 0.0
  %v1047 = vmax.f32 %v645, 0.0
  %v1048 = vmax.f32 %v650, 0.0
  %v1049 = vmax.f32 %v655, 0.0
  %v1050 = vmax.f32 %v660, 0.0
  %v1051 = vmax.f32 %v665, 0.0
  %v1052 = vmax.f32 %v670, 0.0
  %v1053 = vmax.f32 %v675, 0.0
  %v1054 = vmax.f32 %v680, 0.0
  %v1055 = vmax.f32 %v685, 0.0
  %v1056 = vmax.f32 %v690, 0.0
  %v1057 = vmax.f32 %v695, 0.0
  %v1058 = vmax.f32 %v700, 0.0
  %v1059 = vmax.f32 %v705, 0.0
  %v1060 = vmax.f32 %v710, 0.0
  %v1061 = vmax.f32 %v715, 0.0
  %v1062 = vmax.f32 %v720, 0.0
  %v1063 = vmax.f32 %v725, 0.0
  %v1064 = vmax.f32 %v730, 0.0
  %v1065 = vmax.f32 %v735, 0.0
  %v1066 = vmax.f32 %v740, 0.0
  %v1067 = vmax.f32 %v745, 0.0
  %v1068 = vmax.f32 %v750, 0.0
  %v1069 = vmax.f32 %v755, 0.0
  %v1070 = vmax.f32 %v760, 0.0
  %v1071 = vmax.f32 %v765, 0.0
  %v1072 = vmax.f32 %v770, 0.0
  %v1073 = vmax.f32 %v775, 0.0
  %v1074 = vmax.f32 %v780, 0.0
  %v1075 = vmax.f32 %v785, 0.0
  %v1076 = vmax.f32 %v790, 0.0
  %v1077 = vmax.f32 %v795, 0.0
  %v1078 = vmax.f32 %v800, 0.0
  %v1079 = vmax.f32 %v805, 0.0
  %v1080 = vmax.f32 %v810, 0.0
  %v1081 = vmax.f32 %v815, 0.0
  %v1082 = vmax.f32 %v820, 0.0
  %v1083 = vmax.f32 %v825, 0.0
  %v1084 = vmax.f32 %v830, 0.0
  %v1085 = vmax.f32 %v835, 0.0
  %v1086 = vmax.f32 %v840, 0.0
  %v1087 = vmax.f32 %v845, 0.0
  %v1088 = vmax.f32 %v850, 0.0
  %v1089 = vmax.f32 %v855, 0.0
  %v1090 = vmax.f32 %v860, 0.0
  %v1091 = vmax.f32 %v865, 0.0
  %v1092 = vmax.f32 %v870, 0.0
  %v1093 = vmax.f32 %v875, 0.0
  %v1094 = vmax.f32 %v880, 0.0
  %v1095 = vmax.f32 %v885, 0.0
  %v1096 = vmax.f32 %v890, 0.0
  %v1097 = vmax.f32 %v895, 0.0
  %v1098 = vmax.f32 %v900, 0.0
  %v1099 = vmax.f32 %v905, 0.0
  %v1100 = vmax.f32 %v910, 0.0
  %v1101 = vmax.f32 %v915, 0.0
  %v1102 = vmax.f32 %v920, 0.0
  %v1103 = vmax.f32 %v925, 0.0
  %v1104 = vmax.f32 %v930, 0.0
  %v1105 = vmax.f32 %v935, 0.0
  %v1106 = vmax.f32 %v940, 0.0
  %v1107 = vmax.f32 %v945, 0.0
  %v1108 = vmax.f32 %v950, 0.0
  %v1109 = vmax.f32 %v955, 0.0
  %v1110 = vmax.f32 %v960, 0.0
  %v1111 = vmax.f32 %v965, 0.0
  %v1112 = vmax.f32 %v970, 0.0
  %v1113 = vmax.f32 %v975, 0.0
  %v1114 = vmax.f32 %v980, 0.0
  %v1115 = vmax.f32 %v985, 0.0
  %v1116 = vmax.f32 %v990, 0.0
  %v1117 = vmax.f32 %v995, 0.0
  %v1118 = vmax.f32 %v1000, 0.0
  %v1119 = vmax.f32 %v1005, 0.0
  %v1120 = vmax.f32 %v1010, 0.0
  %v1121 = vmax.f32 %v1015, 0.0
  %v1122 = vmax.f32 %v1020, 0.0
  %v1123 = vld [vmem:[%s3] sm:$0xff]
  %v1124 = vld [vmem:[%s3 + $0x8] sm:$0xff]
  %v1125 = vld [vmem:[%s3 + $0x10] sm:$0xff]
  %v1126 = vld [vmem:[%s3 + $0x18] sm:$0xff]
  %v1127 = vld [vmem:[%s3 + $0x20] sm:$0xff]
  %v1128 = vld [vmem:[%s3 + $0x28] sm:$0xff]
  %v1129 = vld [vmem:[%s3 + $0x30] sm:$0xff]
  %v1130 = vld [vmem:[%s3 + $0x38] sm:$0xff]
  %v1131 = vld [vmem:[%s3 + $0x40] sm:$0xff]
  %v1132 = vld [vmem:[%s3 + $0x48] sm:$0xff]
  %v1133 = vld [vmem:[%s3 + $0x50] sm:$0xff]
  %v1134 = vld [vmem:[%s3 + $0x58] sm:$0xff]
  %v1135 = vld [vmem:[%s3 + $0x60] sm:$0xff]
  %v1136 = vld [vmem:[%s3 + $0x68] sm:$0xff]
  %v1137 = vld [vmem:[%s3 + $0x70] sm:$0xff]
  %v1138 = vld [vmem:[%s4] sm:$0x1]
  %v1140 = vlaneseq
  %v1141 = vshrl.u32 %v1140, 7
  %v1142 = vsub.s32 0, %v1141
  %v1143 = vrot.slane %v1138, %v1142
  %vm1145 = vcmask 982016
  %v1147 = vsel %vm1145, %v1023, 0
  %v1150 = vsel %vm1145, %v1024, 0
  %v1153 = vsel %vm1145, %v1025, 0
  %v1156 = vsel %vm1145, %v1026, 0
  %v1159 = vsel %vm1145, %v1027, 0
  %v1162 = vsel %vm1145, %v1028, 0
  %v1165 = vsel %vm1145, %v1029, 0
  %v1168 = vsel %vm1145, %v1030, 0
  %v1171 = vsel %vm1145, %v1031, 0
  %v1174 = vsel %vm1145, %v1032, 0
  %v1177 = vsel %vm1145, %v1033, 0
  %v1180 = vsel %vm1145, %v1034, 0
  %v1183 = vsel %vm1145, %v1035, 0
  %v1186 = vsel %vm1145, %v1036, 0
  %v1189 = vsel %vm1145, %v1037, 0
  %v1192 = vsel %vm1145, %v1038, 0
  %v1195 = vsel %vm1145, %v1039, 0
  %v1198 = vsel %vm1145, %v1040, 0
  %v1201 = vsel %vm1145, %v1041, 0
  %v1204 = vsel %vm1145, %v1042, 0
  %v1207 = vsel %vm1145, %v1043, 0
  %v1210 = vsel %vm1145, %v1044, 0
  %v1213 = vsel %vm1145, %v1045, 0
  %v1216 = vsel %vm1145, %v1046, 0
  %v1219 = vsel %vm1145, %v1047, 0
  %v1222 = vsel %vm1145, %v1048, 0
  %v1225 = vsel %vm1145, %v1049, 0
  %v1228 = vsel %vm1145, %v1050, 0
  %v1231 = vsel %vm1145, %v1051, 0
  %v1234 = vsel %vm1145, %v1052, 0
  %v1237 = vsel %vm1145, %v1053, 0
  %v1240 = vsel %vm1145, %v1054, 0
  %v1243 = vsel %vm1145, %v1055, 0
  %v1246 = vsel %vm1145, %v1056, 0
  %v1249 = vsel %vm1145, %v1057, 0
  %v1252 = vsel %vm1145, %v1058, 0
  %v1255 = vsel %vm1145, %v1059, 0
  %v1258 = vsel %vm1145, %v1060, 0
  %v1261 = vsel %vm1145, %v1061, 0
  %v1264 = vsel %vm1145, %v1062, 0
  %v1267 = vsel %vm1145, %v1063, 0
  %v1270 = vsel %vm1145, %v1064, 0
  %v1273 = vsel %vm1145, %v1065, 0
  %v1276 = vsel %vm1145, %v1066, 0
  %v1279 = vsel %vm1145, %v1067, 0
  %v1282 = vsel %vm1145, %v1068, 0
  %v1285 = vsel %vm1145, %v1069, 0
  %v1288 = vsel %vm1145, %v1070, 0
  %v1291 = vsel %vm1145, %v1071, 0
  %v1294 = vsel %vm1145, %v1072, 0
  %v1297 = vsel %vm1145, %v1073, 0
  %v1300 = vsel %vm1145, %v1074, 0
  %v1303 = vsel %vm1145, %v1075, 0
  %v1306 = vsel %vm1145, %v1076, 0
  %v1309 = vsel %vm1145, %v1077, 0
  %v1312 = vsel %vm1145, %v1078, 0
  %v1315 = vsel %vm1145, %v1079, 0
  %v1318 = vsel %vm1145, %v1080, 0
  %v1321 = vsel %vm1145, %v1081, 0
  %v1324 = vsel %vm1145, %v1082, 0
  %v1327 = vsel %vm1145, %v1083, 0
  %v1330 = vsel %vm1145, %v1084, 0
  %v1333 = vsel %vm1145, %v1085, 0
  %v1336 = vsel %vm1145, %v1086, 0
  %v1339 = vsel %vm1145, %v1087, 0
  %v1342 = vsel %vm1145, %v1088, 0
  %v1345 = vsel %vm1145, %v1089, 0
  %v1348 = vsel %vm1145, %v1090, 0
  %v1351 = vsel %vm1145, %v1091, 0
  %v1354 = vsel %vm1145, %v1092, 0
  %v1357 = vsel %vm1145, %v1093, 0
  %v1360 = vsel %vm1145, %v1094, 0
  %v1363 = vsel %vm1145, %v1095, 0
  %v1366 = vsel %vm1145, %v1096, 0
  %v1369 = vsel %vm1145, %v1097, 0
  %v1372 = vsel %vm1145, %v1098, 0
  %v1375 = vsel %vm1145, %v1099, 0
  %v1378 = vsel %vm1145, %v1100, 0
  %v1381 = vsel %vm1145, %v1101, 0
  %v1384 = vsel %vm1145, %v1102, 0
  %v1387 = vsel %vm1145, %v1103, 0
  %v1390 = vsel %vm1145, %v1104, 0
  %v1393 = vsel %vm1145, %v1105, 0
  %v1396 = vsel %vm1145, %v1106, 0
  %v1399 = vsel %vm1145, %v1107, 0
  %v1402 = vsel %vm1145, %v1108, 0
  %v1405 = vsel %vm1145, %v1109, 0
  %v1408 = vsel %vm1145, %v1110, 0
  %v1411 = vsel %vm1145, %v1111, 0
  %v1414 = vsel %vm1145, %v1112, 0
  %v1417 = vsel %vm1145, %v1113, 0
  %v1420 = vsel %vm1145, %v1114, 0
  %v1423 = vsel %vm1145, %v1115, 0
  %v1426 = vsel %vm1145, %v1116, 0
  %v1429 = vsel %vm1145, %v1117, 0
  %v1432 = vsel %vm1145, %v1118, 0
  %v1435 = vsel %vm1145, %v1119, 0
  %v1438 = vsel %vm1145, %v1120, 0
  %v1441 = vsel %vm1145, %v1121, 0
  %v1444 = vsel %vm1145, %v1122, 0
  %1446 = vmatprep.subr.mxu0 0.0
  %1447 = vmatpush1.msra.mxu0 0.0
  %1448 = vmatprep.subr.mxu0 0.0
  %1449 = vmatpush1.msra.mxu0 %v1137
  %1450 = vmatprep.subr.mxu0 0.0
  %1451 = vmatpush1.msra.mxu0 %v1136
  %1452 = vmatprep.subr.mxu0 0.0
  %1453 = vmatpush1.msra.mxu0 %v1135
  %1454 = vmatprep.subr.mxu0 0.0
  %1455 = vmatpush1.msra.mxu0 %v1134
  %1456 = vmatprep.subr.mxu0 0.0
  %1457 = vmatpush1.msra.mxu0 %v1133
  %1458 = vmatprep.subr.mxu0 0.0
  %1459 = vmatpush1.msra.mxu0 %v1132
  %1460 = vmatprep.subr.mxu0 0.0
  %1461 = vmatpush1.msra.mxu0 %v1131
  %1462 = vmatprep.subr.mxu0 0.0
  %1463 = vmatpush1.msra.mxu0 %v1130
  %1464 = vmatprep.subr.mxu0 0.0
  %1465 = vmatpush1.msra.mxu0 %v1129
  %1466 = vmatprep.subr.mxu0 0.0
  %1467 = vmatpush1.msra.mxu0 %v1128
  %1468 = vmatprep.subr.mxu0 0.0
  %1469 = vmatpush1.msra.mxu0 %v1127
  %1470 = vmatprep.subr.mxu0 0.0
  %1471 = vmatpush1.msra.mxu0 %v1126
  %1472 = vmatprep.subr.mxu0 0.0
  %1473 = vmatpush1.msra.mxu0 %v1125
  %1474 = vmatprep.subr.mxu0 0.0
  %1475 = vmatpush1.msra.mxu0 %v1124
  %1476 = vmatprep.subr.mxu0 0.0
  %1477 = vmatpush1.msra.mxu0 %v1123
  %1478 = vmatprep.subr.mxu0 0.0
  %1479 = vmatpush2.msra.mxu0 0.0
  %1480 = vmatprep.subr.mxu0 0.0
  %1481 = vmatpush2.msra.mxu0 0.0
  %1482 = vmatprep.subr.mxu0 0.0
  %1483 = vmatpush2.msra.mxu0 0.0
  %1484 = vmatprep.subr.mxu0 0.0
  %1485 = vmatpush2.msra.mxu0 0.0
  %1486 = vmatprep.subr.mxu0 0.0
  %1487 = vmatpush2.msra.mxu0 0.0
  %1488 = vmatprep.subr.mxu0 0.0
  %1489 = vmatpush2.msra.mxu0 0.0
  %1490 = vmatprep.subr.mxu0 0.0
  %1491 = vmatpush2.msra.mxu0 0.0
  %1492 = vmatprep.subr.mxu0 0.0
  %1493 = vmatpush2.msra.mxu0 0.0
  %1494 = vmatprep.subr.mxu0 0.0
  %1495 = vmatpush2.msra.mxu0 0.0
  %1496 = vmatprep.subr.mxu0 0.0
  %1497 = vmatpush2.msra.mxu0 0.0
  %1498 = vmatprep.subr.mxu0 0.0
  %1499 = vmatpush2.msra.mxu0 0.0
  %1500 = vmatprep.subr.mxu0 0.0
  %1501 = vmatpush2.msra.mxu0 0.0
  %1502 = vmatprep.subr.mxu0 0.0
  %1503 = vmatpush2.msra.mxu0 0.0
  %1504 = vmatprep.subr.mxu0 0.0
  %1505 = vmatpush2.msra.mxu0 0.0
  %1506 = vmatprep.subr.mxu0 0.0
  %1507 = vmatpush2.msra.mxu0 0.0
  %1508 = vmatprep.subr.mxu0 0.0
  %1509 = vmatpush2.msra.mxu0 0.0
  %1510 = vmatprep.mubr.f32.mxu0 0.0
  %1511 = vmatmul.mubr.f32.gmra.mxu0 %v1147
  %v1512 = vpop.f32.mrf.mxu0
  %v1513 = vadd.f32 %v1143, %v1512
  %v1514 = vpop.f32.mrf.mxu0
  %1515 = vmatprep.mubr.f32.mxu0 0.0
  %1516 = vmatmul.mubr.f32.gmra.mxu0 %v1150
  %v1517 = vpop.f32.mrf.mxu0
  %v1518 = vadd.f32 %v1143, %v1517
  %v1519 = vpop.f32.mrf.mxu0
  %1520 = vmatprep.mubr.f32.mxu0 0.0
  %1521 = vmatmul.mubr.f32.gmra.mxu0 %v1153
  %v1522 = vpop.f32.mrf.mxu0
  %v1523 = vadd.f32 %v1143, %v1522
  %v1524 = vpop.f32.mrf.mxu0
  %1525 = vmatprep.mubr.f32.mxu0 0.0
  %1526 = vmatmul.mubr.f32.gmra.mxu0 %v1156
  %v1527 = vpop.f32.mrf.mxu0
  %v1528 = vadd.f32 %v1143, %v1527
  %v1529 = vpop.f32.mrf.mxu0
  %1530 = vmatprep.mubr.f32.mxu0 0.0
  %1531 = vmatmul.mubr.f32.gmra.mxu0 %v1159
  %v1532 = vpop.f32.mrf.mxu0
  %v1533 = vadd.f32 %v1143, %v1532
  %v1534 = vpop.f32.mrf.mxu0
  %1535 = vmatprep.mubr.f32.mxu0 0.0
  %1536 = vmatmul.mubr.f32.gmra.mxu0 %v1162
  %v1537 = vpop.f32.mrf.mxu0
  %v1538 = vadd.f32 %v1143, %v1537
  %v1539 = vpop.f32.mrf.mxu0
  %1540 = vmatprep.mubr.f32.mxu0 0.0
  %1541 = vmatmul.mubr.f32.gmra.mxu0 %v1165
  %v1542 = vpop.f32.mrf.mxu0
  %v1543 = vadd.f32 %v1143, %v1542
  %v1544 = vpop.f32.mrf.mxu0
  %1545 = vmatprep.mubr.f32.mxu0 0.0
  %1546 = vmatmul.mubr.f32.gmra.mxu0 %v1168
  %v1547 = vpop.f32.mrf.mxu0
  %v1548 = vadd.f32 %v1143, %v1547
  %v1549 = vpop.f32.mrf.mxu0
  %1550 = vmatprep.mubr.f32.mxu0 0.0
  %1551 = vmatmul.mubr.f32.gmra.mxu0 %v1171
  %v1552 = vpop.f32.mrf.mxu0
  %v1553 = vadd.f32 %v1143, %v1552
  %v1554 = vpop.f32.mrf.mxu0
  %1555 = vmatprep.mubr.f32.mxu0 0.0
  %1556 = vmatmul.mubr.f32.gmra.mxu0 %v1174
  %v1557 = vpop.f32.mrf.mxu0
  %v1558 = vadd.f32 %v1143, %v1557
  %v1559 = vpop.f32.mrf.mxu0
  %1560 = vmatprep.mubr.f32.mxu0 0.0
  %1561 = vmatmul.mubr.f32.gmra.mxu0 %v1177
  %v1562 = vpop.f32.mrf.mxu0
  %v1563 = vadd.f32 %v1143, %v1562
  %v1564 = vpop.f32.mrf.mxu0
  %1565 = vmatprep.mubr.f32.mxu0 0.0
  %1566 = vmatmul.mubr.f32.gmra.mxu0 %v1180
  %v1567 = vpop.f32.mrf.mxu0
  %v1568 = vadd.f32 %v1143, %v1567
  %v1569 = vpop.f32.mrf.mxu0
  %1570 = vmatprep.mubr.f32.mxu0 0.0
  %1571 = vmatmul.mubr.f32.gmra.mxu0 %v1183
  %v1572 = vpop.f32.mrf.mxu0
  %v1573 = vadd.f32 %v1143, %v1572
  %v1574 = vpop.f32.mrf.mxu0
  %1575 = vmatprep.mubr.f32.mxu0 0.0
  %1576 = vmatmul.mubr.f32.gmra.mxu0 %v1186
  %v1577 = vpop.f32.mrf.mxu0
  %v1578 = vadd.f32 %v1143, %v1577
  %v1579 = vpop.f32.mrf.mxu0
  %1580 = vmatprep.mubr.f32.mxu0 0.0
  %1581 = vmatmul.mubr.f32.gmra.mxu0 %v1189
  %v1582 = vpop.f32.mrf.mxu0
  %v1583 = vadd.f32 %v1143, %v1582
  %v1584 = vpop.f32.mrf.mxu0
  %1585 = vmatprep.mubr.f32.mxu0 0.0
  %1586 = vmatmul.mubr.f32.gmra.mxu0 %v1192
  %v1587 = vpop.f32.mrf.mxu0
  %v1588 = vadd.f32 %v1143, %v1587
  %v1589 = vpop.f32.mrf.mxu0
  %1590 = vmatprep.mubr.f32.mxu0 0.0
  %1591 = vmatmul.mubr.f32.gmra.mxu0 %v1195
  %v1592 = vpop.f32.mrf.mxu0
  %v1593 = vadd.f32 %v1143, %v1592
  %v1594 = vpop.f32.mrf.mxu0
  %1595 = vmatprep.mubr.f32.mxu0 0.0
  %1596 = vmatmul.mubr.f32.gmra.mxu0 %v1198
  %v1597 = vpop.f32.mrf.mxu0
  %v1598 = vadd.f32 %v1143, %v1597
  %v1599 = vpop.f32.mrf.mxu0
  %1600 = vmatprep.mubr.f32.mxu0 0.0
  %1601 = vmatmul.mubr.f32.gmra.mxu0 %v1201
  %v1602 = vpop.f32.mrf.mxu0
  %v1603 = vadd.f32 %v1143, %v1602
  %v1604 = vpop.f32.mrf.mxu0
  %1605 = vmatprep.mubr.f32.mxu0 0.0
  %1606 = vmatmul.mubr.f32.gmra.mxu0 %v1204
  %v1607 = vpop.f32.mrf.mxu0
  %v1608 = vadd.f32 %v1143, %v1607
  %v1609 = vpop.f32.mrf.mxu0
  %1610 = vmatprep.mubr.f32.mxu0 0.0
  %1611 = vmatmul.mubr.f32.gmra.mxu0 %v1207
  %v1612 = vpop.f32.mrf.mxu0
  %v1613 = vadd.f32 %v1143, %v1612
  %v1614 = vpop.f32.mrf.mxu0
  %1615 = vmatprep.mubr.f32.mxu0 0.0
  %1616 = vmatmul.mubr.f32.gmra.mxu0 %v1210
  %v1617 = vpop.f32.mrf.mxu0
  %v1618 = vadd.f32 %v1143, %v1617
  %v1619 = vpop.f32.mrf.mxu0
  %1620 = vmatprep.mubr.f32.mxu0 0.0
  %1621 = vmatmul.mubr.f32.gmra.mxu0 %v1213
  %v1622 = vpop.f32.mrf.mxu0
  %v1623 = vadd.f32 %v1143, %v1622
  %v1624 = vpop.f32.mrf.mxu0
  %1625 = vmatprep.mubr.f32.mxu0 0.0
  %1626 = vmatmul.mubr.f32.gmra.mxu0 %v1216
  %v1627 = vpop.f32.mrf.mxu0
  %v1628 = vadd.f32 %v1143, %v1627
  %v1629 = vpop.f32.mrf.mxu0
  %1630 = vmatprep.mubr.f32.mxu0 0.0
  %1631 = vmatmul.mubr.f32.gmra.mxu0 %v1219
  %v1632 = vpop.f32.mrf.mxu0
  %v1633 = vadd.f32 %v1143, %v1632
  %v1634 = vpop.f32.mrf.mxu0
  %1635 = vmatprep.mubr.f32.mxu0 0.0
  %1636 = vmatmul.mubr.f32.gmra.mxu0 %v1222
  %v1637 = vpop.f32.mrf.mxu0
  %v1638 = vadd.f32 %v1143, %v1637
  %v1639 = vpop.f32.mrf.mxu0
  %1640 = vmatprep.mubr.f32.mxu0 0.0
  %1641 = vmatmul.mubr.f32.gmra.mxu0 %v1225
  %v1642 = vpop.f32.mrf.mxu0
  %v1643 = vadd.f32 %v1143, %v1642
  %v1644 = vpop.f32.mrf.mxu0
  %1645 = vmatprep.mubr.f32.mxu0 0.0
  %1646 = vmatmul.mubr.f32.gmra.mxu0 %v1228
  %v1647 = vpop.f32.mrf.mxu0
  %v1648 = vadd.f32 %v1143, %v1647
  %v1649 = vpop.f32.mrf.mxu0
  %1650 = vmatprep.mubr.f32.mxu0 0.0
  %1651 = vmatmul.mubr.f32.gmra.mxu0 %v1231
  %v1652 = vpop.f32.mrf.mxu0
  %v1653 = vadd.f32 %v1143, %v1652
  %v1654 = vpop.f32.mrf.mxu0
  %1655 = vmatprep.mubr.f32.mxu0 0.0
  %1656 = vmatmul.mubr.f32.gmra.mxu0 %v1234
  %v1657 = vpop.f32.mrf.mxu0
  %v1658 = vadd.f32 %v1143, %v1657
  %v1659 = vpop.f32.mrf.mxu0
  %1660 = vmatprep.mubr.f32.mxu0 0.0
  %1661 = vmatmul.mubr.f32.gmra.mxu0 %v1237
  %v1662 = vpop.f32.mrf.mxu0
  %v1663 = vadd.f32 %v1143, %v1662
  %v1664 = vpop.f32.mrf.mxu0
  %1665 = vmatprep.mubr.f32.mxu0 0.0
  %1666 = vmatmul.mubr.f32.gmra.mxu0 %v1240
  %v1667 = vpop.f32.mrf.mxu0
  %v1668 = vadd.f32 %v1143, %v1667
  %v1669 = vpop.f32.mrf.mxu0
  %1670 = vmatprep.mubr.f32.mxu0 0.0
  %1671 = vmatmul.mubr.f32.gmra.mxu0 %v1243
  %v1672 = vpop.f32.mrf.mxu0
  %v1673 = vadd.f32 %v1143, %v1672
  %v1674 = vpop.f32.mrf.mxu0
  %1675 = vmatprep.mubr.f32.mxu0 0.0
  %1676 = vmatmul.mubr.f32.gmra.mxu0 %v1246
  %v1677 = vpop.f32.mrf.mxu0
  %v1678 = vadd.f32 %v1143, %v1677
  %v1679 = vpop.f32.mrf.mxu0
  %1680 = vmatprep.mubr.f32.mxu0 0.0
  %1681 = vmatmul.mubr.f32.gmra.mxu0 %v1249
  %v1682 = vpop.f32.mrf.mxu0
  %v1683 = vadd.f32 %v1143, %v1682
  %v1684 = vpop.f32.mrf.mxu0
  %1685 = vmatprep.mubr.f32.mxu0 0.0
  %1686 = vmatmul.mubr.f32.gmra.mxu0 %v1252
  %v1687 = vpop.f32.mrf.mxu0
  %v1688 = vadd.f32 %v1143, %v1687
  %v1689 = vpop.f32.mrf.mxu0
  %1690 = vmatprep.mubr.f32.mxu0 0.0
  %1691 = vmatmul.mubr.f32.gmra.mxu0 %v1255
  %v1692 = vpop.f32.mrf.mxu0
  %v1693 = vadd.f32 %v1143, %v1692
  %v1694 = vpop.f32.mrf.mxu0
  %1695 = vmatprep.mubr.f32.mxu0 0.0
  %1696 = vmatmul.mubr.f32.gmra.mxu0 %v1258
  %v1697 = vpop.f32.mrf.mxu0
  %v1698 = vadd.f32 %v1143, %v1697
  %v1699 = vpop.f32.mrf.mxu0
  %1700 = vmatprep.mubr.f32.mxu0 0.0
  %1701 = vmatmul.mubr.f32.gmra.mxu0 %v1261
  %v1702 = vpop.f32.mrf.mxu0
  %v1703 = vadd.f32 %v1143, %v1702
  %v1704 = vpop.f32.mrf.mxu0
  %1705 = vmatprep.mubr.f32.mxu0 0.0
  %1706 = vmatmul.mubr.f32.gmra.mxu0 %v1264
  %v1707 = vpop.f32.mrf.mxu0
  %v1708 = vadd.f32 %v1143, %v1707
  %v1709 = vpop.f32.mrf.mxu0
  %1710 = vmatprep.mubr.f32.mxu0 0.0
  %1711 = vmatmul.mubr.f32.gmra.mxu0 %v1267
  %v1712 = vpop.f32.mrf.mxu0
  %v1713 = vadd.f32 %v1143, %v1712
  %v1714 = vpop.f32.mrf.mxu0
  %1715 = vmatprep.mubr.f32.mxu0 0.0
  %1716 = vmatmul.mubr.f32.gmra.mxu0 %v1270
  %v1717 = vpop.f32.mrf.mxu0
  %v1718 = vadd.f32 %v1143, %v1717
  %v1719 = vpop.f32.mrf.mxu0
  %1720 = vmatprep.mubr.f32.mxu0 0.0
  %1721 = vmatmul.mubr.f32.gmra.mxu0 %v1273
  %v1722 = vpop.f32.mrf.mxu0
  %v1723 = vadd.f32 %v1143, %v1722
  %v1724 = vpop.f32.mrf.mxu0
  %1725 = vmatprep.mubr.f32.mxu0 0.0
  %1726 = vmatmul.mubr.f32.gmra.mxu0 %v1276
  %v1727 = vpop.f32.mrf.mxu0
  %v1728 = vadd.f32 %v1143, %v1727
  %v1729 = vpop.f32.mrf.mxu0
  %1730 = vmatprep.mubr.f32.mxu0 0.0
  %1731 = vmatmul.mubr.f32.gmra.mxu0 %v1279
  %v1732 = vpop.f32.mrf.mxu0
  %v1733 = vadd.f32 %v1143, %v1732
  %v1734 = vpop.f32.mrf.mxu0
  %1735 = vmatprep.mubr.f32.mxu0 0.0
  %1736 = vmatmul.mubr.f32.gmra.mxu0 %v1282
  %v1737 = vpop.f32.mrf.mxu0
  %v1738 = vadd.f32 %v1143, %v1737
  %v1739 = vpop.f32.mrf.mxu0
  %1740 = vmatprep.mubr.f32.mxu0 0.0
  %1741 = vmatmul.mubr.f32.gmra.mxu0 %v1285
  %v1742 = vpop.f32.mrf.mxu0
  %v1743 = vadd.f32 %v1143, %v1742
  %v1744 = vpop.f32.mrf.mxu0
  %1745 = vmatprep.mubr.f32.mxu0 0.0
  %1746 = vmatmul.mubr.f32.gmra.mxu0 %v1288
  %v1747 = vpop.f32.mrf.mxu0
  %v1748 = vadd.f32 %v1143, %v1747
  %v1749 = vpop.f32.mrf.mxu0
  %1750 = vmatprep.mubr.f32.mxu0 0.0
  %1751 = vmatmul.mubr.f32.gmra.mxu0 %v1291
  %v1752 = vpop.f32.mrf.mxu0
  %v1753 = vadd.f32 %v1143, %v1752
  %v1754 = vpop.f32.mrf.mxu0
  %1755 = vmatprep.mubr.f32.mxu0 0.0
  %1756 = vmatmul.mubr.f32.gmra.mxu0 %v1294
  %v1757 = vpop.f32.mrf.mxu0
  %v1758 = vadd.f32 %v1143, %v1757
  %v1759 = vpop.f32.mrf.mxu0
  %1760 = vmatprep.mubr.f32.mxu0 0.0
  %1761 = vmatmul.mubr.f32.gmra.mxu0 %v1297
  %v1762 = vpop.f32.mrf.mxu0
  %v1763 = vadd.f32 %v1143, %v1762
  %v1764 = vpop.f32.mrf.mxu0
  %1765 = vmatprep.mubr.f32.mxu0 0.0
  %1766 = vmatmul.mubr.f32.gmra.mxu0 %v1300
  %v1767 = vpop.f32.mrf.mxu0
  %v1768 = vadd.f32 %v1143, %v1767
  %v1769 = vpop.f32.mrf.mxu0
  %1770 = vmatprep.mubr.f32.mxu0 0.0
  %1771 = vmatmul.mubr.f32.gmra.mxu0 %v1303
  %v1772 = vpop.f32.mrf.mxu0
  %v1773 = vadd.f32 %v1143, %v1772
  %v1774 = vpop.f32.mrf.mxu0
  %1775 = vmatprep.mubr.f32.mxu0 0.0
  %1776 = vmatmul.mubr.f32.gmra.mxu0 %v1306
  %v1777 = vpop.f32.mrf.mxu0
  %v1778 = vadd.f32 %v1143, %v1777
  %v1779 = vpop.f32.mrf.mxu0
  %1780 = vmatprep.mubr.f32.mxu0 0.0
  %1781 = vmatmul.mubr.f32.gmra.mxu0 %v1309
  %v1782 = vpop.f32.mrf.mxu0
  %v1783 = vadd.f32 %v1143, %v1782
  %v1784 = vpop.f32.mrf.mxu0
  %1785 = vmatprep.mubr.f32.mxu0 0.0
  %1786 = vmatmul.mubr.f32.gmra.mxu0 %v1312
  %v1787 = vpop.f32.mrf.mxu0
  %v1788 = vadd.f32 %v1143, %v1787
  %v1789 = vpop.f32.mrf.mxu0
  %1790 = vmatprep.mubr.f32.mxu0 0.0
  %1791 = vmatmul.mubr.f32.gmra.mxu0 %v1315
  %v1792 = vpop.f32.mrf.mxu0
  %v1793 = vadd.f32 %v1143, %v1792
  %v1794 = vpop.f32.mrf.mxu0
  %1795 = vmatprep.mubr.f32.mxu0 0.0
  %1796 = vmatmul.mubr.f32.gmra.mxu0 %v1318
  %v1797 = vpop.f32.mrf.mxu0
  %v1798 = vadd.f32 %v1143, %v1797
  %v1799 = vpop.f32.mrf.mxu0
  %1800 = vmatprep.mubr.f32.mxu0 0.0
  %1801 = vmatmul.mubr.f32.gmra.mxu0 %v1321
  %v1802 = vpop.f32.mrf.mxu0
  %v1803 = vadd.f32 %v1143, %v1802
  %v1804 = vpop.f32.mrf.mxu0
  %1805 = vmatprep.mubr.f32.mxu0 0.0
  %1806 = vmatmul.mubr.f32.gmra.mxu0 %v1324
  %v1807 = vpop.f32.mrf.mxu0
  %v1808 = vadd.f32 %v1143, %v1807
  %v1809 = vpop.f32.mrf.mxu0
  %1810 = vmatprep.mubr.f32.mxu0 0.0
  %1811 = vmatmul.mubr.f32.gmra.mxu0 %v1327
  %v1812 = vpop.f32.mrf.mxu0
  %v1813 = vadd.f32 %v1143, %v1812
  %v1814 = vpop.f32.mrf.mxu0
  %1815 = vmatprep.mubr.f32.mxu0 0.0
  %1816 = vmatmul.mubr.f32.gmra.mxu0 %v1330
  %v1817 = vpop.f32.mrf.mxu0
  %v1818 = vadd.f32 %v1143, %v1817
  %v1819 = vpop.f32.mrf.mxu0
  %1820 = vmatprep.mubr.f32.mxu0 0.0
  %1821 = vmatmul.mubr.f32.gmra.mxu0 %v1333
  %v1822 = vpop.f32.mrf.mxu0
  %v1823 = vadd.f32 %v1143, %v1822
  %v1824 = vpop.f32.mrf.mxu0
  %1825 = vmatprep.mubr.f32.mxu0 0.0
  %1826 = vmatmul.mubr.f32.gmra.mxu0 %v1336
  %v1827 = vpop.f32.mrf.mxu0
  %v1828 = vadd.f32 %v1143, %v1827
  %v1829 = vpop.f32.mrf.mxu0
  %1830 = vmatprep.mubr.f32.mxu0 0.0
  %1831 = vmatmul.mubr.f32.gmra.mxu0 %v1339
  %v1832 = vpop.f32.mrf.mxu0
  %v1833 = vadd.f32 %v1143, %v1832
  %v1834 = vpop.f32.mrf.mxu0
  %1835 = vmatprep.mubr.f32.mxu0 0.0
  %1836 = vmatmul.mubr.f32.gmra.mxu0 %v1342
  %v1837 = vpop.f32.mrf.mxu0
  %v1838 = vadd.f32 %v1143, %v1837
  %v1839 = vpop.f32.mrf.mxu0
  %1840 = vmatprep.mubr.f32.mxu0 0.0
  %1841 = vmatmul.mubr.f32.gmra.mxu0 %v1345
  %v1842 = vpop.f32.mrf.mxu0
  %v1843 = vadd.f32 %v1143, %v1842
  %v1844 = vpop.f32.mrf.mxu0
  %1845 = vmatprep.mubr.f32.mxu0 0.0
  %1846 = vmatmul.mubr.f32.gmra.mxu0 %v1348
  %v1847 = vpop.f32.mrf.mxu0
  %v1848 = vadd.f32 %v1143, %v1847
  %v1849 = vpop.f32.mrf.mxu0
  %1850 = vmatprep.mubr.f32.mxu0 0.0
  %1851 = vmatmul.mubr.f32.gmra.mxu0 %v1351
  %v1852 = vpop.f32.mrf.mxu0
  %v1853 = vadd.f32 %v1143, %v1852
  %v1854 = vpop.f32.mrf.mxu0
  %1855 = vmatprep.mubr.f32.mxu0 0.0
  %1856 = vmatmul.mubr.f32.gmra.mxu0 %v1354
  %v1857 = vpop.f32.mrf.mxu0
  %v1858 = vadd.f32 %v1143, %v1857
  %v1859 = vpop.f32.mrf.mxu0
  %1860 = vmatprep.mubr.f32.mxu0 0.0
  %1861 = vmatmul.mubr.f32.gmra.mxu0 %v1357
  %v1862 = vpop.f32.mrf.mxu0
  %v1863 = vadd.f32 %v1143, %v1862
  %v1864 = vpop.f32.mrf.mxu0
  %1865 = vmatprep.mubr.f32.mxu0 0.0
  %1866 = vmatmul.mubr.f32.gmra.mxu0 %v1360
  %v1867 = vpop.f32.mrf.mxu0
  %v1868 = vadd.f32 %v1143, %v1867
  %v1869 = vpop.f32.mrf.mxu0
  %1870 = vmatprep.mubr.f32.mxu0 0.0
  %1871 = vmatmul.mubr.f32.gmra.mxu0 %v1363
  %v1872 = vpop.f32.mrf.mxu0
  %v1873 = vadd.f32 %v1143, %v1872
  %v1874 = vpop.f32.mrf.mxu0
  %1875 = vmatprep.mubr.f32.mxu0 0.0
  %1876 = vmatmul.mubr.f32.gmra.mxu0 %v1366
  %v1877 = vpop.f32.mrf.mxu0
  %v1878 = vadd.f32 %v1143, %v1877
  %v1879 = vpop.f32.mrf.mxu0
  %1880 = vmatprep.mubr.f32.mxu0 0.0
  %1881 = vmatmul.mubr.f32.gmra.mxu0 %v1369
  %v1882 = vpop.f32.mrf.mxu0
  %v1883 = vadd.f32 %v1143, %v1882
  %v1884 = vpop.f32.mrf.mxu0
  %1885 = vmatprep.mubr.f32.mxu0 0.0
  %1886 = vmatmul.mubr.f32.gmra.mxu0 %v1372
  %v1887 = vpop.f32.mrf.mxu0
  %v1888 = vadd.f32 %v1143, %v1887
  %v1889 = vpop.f32.mrf.mxu0
  %1890 = vmatprep.mubr.f32.mxu0 0.0
  %1891 = vmatmul.mubr.f32.gmra.mxu0 %v1375
  %v1892 = vpop.f32.mrf.mxu0
  %v1893 = vadd.f32 %v1143, %v1892
  %v1894 = vpop.f32.mrf.mxu0
  %1895 = vmatprep.mubr.f32.mxu0 0.0
  %1896 = vmatmul.mubr.f32.gmra.mxu0 %v1378
  %v1897 = vpop.f32.mrf.mxu0
  %v1898 = vadd.f32 %v1143, %v1897
  %v1899 = vpop.f32.mrf.mxu0
  %1900 = vmatprep.mubr.f32.mxu0 0.0
  %1901 = vmatmul.mubr.f32.gmra.mxu0 %v1381
  %v1902 = vpop.f32.mrf.mxu0
  %v1903 = vadd.f32 %v1143, %v1902
  %v1904 = vpop.f32.mrf.mxu0
  %1905 = vmatprep.mubr.f32.mxu0 0.0
  %1906 = vmatmul.mubr.f32.gmra.mxu0 %v1384
  %v1907 = vpop.f32.mrf.mxu0
  %v1908 = vadd.f32 %v1143, %v1907
  %v1909 = vpop.f32.mrf.mxu0
  %1910 = vmatprep.mubr.f32.mxu0 0.0
  %1911 = vmatmul.mubr.f32.gmra.mxu0 %v1387
  %v1912 = vpop.f32.mrf.mxu0
  %v1913 = vadd.f32 %v1143, %v1912
  %v1914 = vpop.f32.mrf.mxu0
  %1915 = vmatprep.mubr.f32.mxu0 0.0
  %1916 = vmatmul.mubr.f32.gmra.mxu0 %v1390
  %v1917 = vpop.f32.mrf.mxu0
  %v1918 = vadd.f32 %v1143, %v1917
  %v1919 = vpop.f32.mrf.mxu0
  %1920 = vmatprep.mubr.f32.mxu0 0.0
  %1921 = vmatmul.mubr.f32.gmra.mxu0 %v1393
  %v1922 = vpop.f32.mrf.mxu0
  %v1923 = vadd.f32 %v1143, %v1922
  %v1924 = vpop.f32.mrf.mxu0
  %1925 = vmatprep.mubr.f32.mxu0 0.0
  %1926 = vmatmul.mubr.f32.gmra.mxu0 %v1396
  %v1927 = vpop.f32.mrf.mxu0
  %v1928 = vadd.f32 %v1143, %v1927
  %v1929 = vpop.f32.mrf.mxu0
  %1930 = vmatprep.mubr.f32.mxu0 0.0
  %1931 = vmatmul.mubr.f32.gmra.mxu0 %v1399
  %v1932 = vpop.f32.mrf.mxu0
  %v1933 = vadd.f32 %v1143, %v1932
  %v1934 = vpop.f32.mrf.mxu0
  %1935 = vmatprep.mubr.f32.mxu0 0.0
  %1936 = vmatmul.mubr.f32.gmra.mxu0 %v1402
  %v1937 = vpop.f32.mrf.mxu0
  %v1938 = vadd.f32 %v1143, %v1937
  %v1939 = vpop.f32.mrf.mxu0
  %1940 = vmatprep.mubr.f32.mxu0 0.0
  %1941 = vmatmul.mubr.f32.gmra.mxu0 %v1405
  %v1942 = vpop.f32.mrf.mxu0
  %v1943 = vadd.f32 %v1143, %v1942
  %v1944 = vpop.f32.mrf.mxu0
  %1945 = vmatprep.mubr.f32.mxu0 0.0
  %1946 = vmatmul.mubr.f32.gmra.mxu0 %v1408
  %v1947 = vpop.f32.mrf.mxu0
  %v1948 = vadd.f32 %v1143, %v1947
  %v1949 = vpop.f32.mrf.mxu0
  %1950 = vmatprep.mubr.f32.mxu0 0.0
  %1951 = vmatmul.mubr.f32.gmra.mxu0 %v1411
  %v1952 = vpop.f32.mrf.mxu0
  %v1953 = vadd.f32 %v1143, %v1952
  %v1954 = vpop.f32.mrf.mxu0
  %1955 = vmatprep.mubr.f32.mxu0 0.0
  %1956 = vmatmul.mubr.f32.gmra.mxu0 %v1414
  %v1957 = vpop.f32.mrf.mxu0
  %v1958 = vadd.f32 %v1143, %v1957
  %v1959 = vpop.f32.mrf.mxu0
  %1960 = vmatprep.mubr.f32.mxu0 0.0
  %1961 = vmatmul.mubr.f32.gmra.mxu0 %v1417
  %v1962 = vpop.f32.mrf.mxu0
  %v1963 = vadd.f32 %v1143, %v1962
  %v1964 = vpop.f32.mrf.mxu0
  %1965 = vmatprep.mubr.f32.mxu0 0.0
  %1966 = vmatmul.mubr.f32.gmra.mxu0 %v1420
  %v1967 = vpop.f32.mrf.mxu0
  %v1968 = vadd.f32 %v1143, %v1967
  %v1969 = vpop.f32.mrf.mxu0
  %1970 = vmatprep.mubr.f32.mxu0 0.0
  %1971 = vmatmul.mubr.f32.gmra.mxu0 %v1423
  %v1972 = vpop.f32.mrf.mxu0
  %v1973 = vadd.f32 %v1143, %v1972
  %v1974 = vpop.f32.mrf.mxu0
  %1975 = vmatprep.mubr.f32.mxu0 0.0
  %1976 = vmatmul.mubr.f32.gmra.mxu0 %v1426
  %v1977 = vpop.f32.mrf.mxu0
  %v1978 = vadd.f32 %v1143, %v1977
  %v1979 = vpop.f32.mrf.mxu0
  %1980 = vmatprep.mubr.f32.mxu0 0.0
  %1981 = vmatmul.mubr.f32.gmra.mxu0 %v1429
  %v1982 = vpop.f32.mrf.mxu0
  %v1983 = vadd.f32 %v1143, %v1982
  %v1984 = vpop.f32.mrf.mxu0
  %1985 = vmatprep.mubr.f32.mxu0 0.0
  %1986 = vmatmul.mubr.f32.gmra.mxu0 %v1432
  %v1987 = vpop.f32.mrf.mxu0
  %v1988 = vadd.f32 %v1143, %v1987
  %v1989 = vpop.f32.mrf.mxu0
  %1990 = vmatprep.mubr.f32.mxu0 0.0
  %1991 = vmatmul.mubr.f32.gmra.mxu0 %v1435
  %v1992 = vpop.f32.mrf.mxu0
  %v1993 = vadd.f32 %v1143, %v1992
  %v1994 = vpop.f32.mrf.mxu0
  %1995 = vmatprep.mubr.f32.mxu0 0.0
  %1996 = vmatmul.mubr.f32.gmra.mxu0 %v1438
  %v1997 = vpop.f32.mrf.mxu0
  %v1998 = vadd.f32 %v1143, %v1997
  %v1999 = vpop.f32.mrf.mxu0
  %2000 = vmatprep.mubr.f32.mxu0 0.0
  %2001 = vmatmul.mubr.f32.gmra.mxu0 %v1441
  %v2002 = vpop.f32.mrf.mxu0
  %v2003 = vadd.f32 %v1143, %v2002
  %v2004 = vpop.f32.mrf.mxu0
  %2005 = vmatprep.mubr.f32.mxu0 0.0
  %2006 = vmatmul.mubr.f32.gmra.mxu0 %v1444
  %v2007 = vpop.f32.mrf.mxu0
  %v2008 = vadd.f32 %v1143, %v2007
  %v2009 = vpop.f32.mrf.mxu0
  %2010 = vdwg.mxu0
  %v2011 = vmax.f32 %v1513, 0.0
  %v2012 = vmax.f32 %v1518, 0.0
  %v2013 = vmax.f32 %v1523, 0.0
  %v2014 = vmax.f32 %v1528, 0.0
  %v2015 = vmax.f32 %v1533, 0.0
  %v2016 = vmax.f32 %v1538, 0.0
  %v2017 = vmax.f32 %v1543, 0.0
  %v2018 = vmax.f32 %v1548, 0.0
  %v2019 = vmax.f32 %v1553, 0.0
  %v2020 = vmax.f32 %v1558, 0.0
  %v2021 = vmax.f32 %v1563, 0.0
  %v2022 = vmax.f32 %v1568, 0.0
  %v2023 = vmax.f32 %v1573, 0.0
  %v2024 = vmax.f32 %v1578, 0.0
  %v2025 = vmax.f32 %v1583, 0.0
  %v2026 = vmax.f32 %v1588, 0.0
  %v2027 = vmax.f32 %v1593, 0.0
  %v2028 = vmax.f32 %v1598, 0.0
  %v2029 = vmax.f32 %v1603, 0.0
  %v2030 = vmax.f32 %v1608, 0.0
  %v2031 = vmax.f32 %v1613, 0.0
  %v2032 = vmax.f32 %v1618, 0.0
  %v2033 = vmax.f32 %v1623, 0.0
  %v2034 = vmax.f32 %v1628, 0.0
  %v2035 = vmax.f32 %v1633, 0.0
  %v2036 = vmax.f32 %v1638, 0.0
  %v2037 = vmax.f32 %v1643, 0.0
  %v2038 = vmax.f32 %v1648, 0.0
  %v2039 = vmax.f32 %v1653, 0.0
  %v2040 = vmax.f32 %v1658, 0.0
  %v2041 = vmax.f32 %v1663, 0.0
  %v2042 = vmax.f32 %v1668, 0.0
  %v2043 = vmax.f32 %v1673, 0.0
  %v2044 = vmax.f32 %v1678, 0.0
  %v2045 = vmax.f32 %v1683, 0.0
  %v2046 = vmax.f32 %v1688, 0.0
  %v2047 = vmax.f32 %v1693, 0.0
  %v2048 = vmax.f32 %v1698, 0.0
  %v2049 = vmax.f32 %v1703, 0.0
  %v2050 = vmax.f32 %v1708, 0.0
  %v2051 = vmax.f32 %v1713, 0.0
  %v2052 = vmax.f32 %v1718, 0.0
  %v2053 = vmax.f32 %v1723, 0.0
  %v2054 = vmax.f32 %v1728, 0.0
  %v2055 = vmax.f32 %v1733, 0.0
  %v2056 = vmax.f32 %v1738, 0.0
  %v2057 = vmax.f32 %v1743, 0.0
  %v2058 = vmax.f32 %v1748, 0.0
  %v2059 = vmax.f32 %v1753, 0.0
  %v2060 = vmax.f32 %v1758, 0.0
  %v2061 = vmax.f32 %v1763, 0.0
  %v2062 = vmax.f32 %v1768, 0.0
  %v2063 = vmax.f32 %v1773, 0.0
  %v2064 = vmax.f32 %v1778, 0.0
  %v2065 = vmax.f32 %v1783, 0.0
  %v2066 = vmax.f32 %v1788, 0.0
  %v2067 = vmax.f32 %v1793, 0.0
  %v2068 = vmax.f32 %v1798, 0.0
  %v2069 = vmax.f32 %v1803, 0.0
  %v2070 = vmax.f32 %v1808, 0.0
  %v2071 = vmax.f32 %v1813, 0.0
  %v2072 = vmax.f32 %v1818, 0.0
  %v2073 = vmax.f32 %v1823, 0.0
  %v2074 = vmax.f32 %v1828, 0.0
  %v2075 = vmax.f32 %v1833, 0.0
  %v2076 = vmax.f32 %v1838, 0.0
  %v2077 = vmax.f32 %v1843, 0.0
  %v2078 = vmax.f32 %v1848, 0.0
  %v2079 = vmax.f32 %v1853, 0.0
  %v2080 = vmax.f32 %v1858, 0.0
  %v2081 = vmax.f32 %v1863, 0.0
  %v2082 = vmax.f32 %v1868, 0.0
  %v2083 = vmax.f32 %v1873, 0.0
  %v2084 = vmax.f32 %v1878, 0.0
  %v2085 = vmax.f32 %v1883, 0.0
  %v2086 = vmax.f32 %v1888, 0.0
  %v2087 = vmax.f32 %v1893, 0.0
  %v2088 = vmax.f32 %v1898, 0.0
  %v2089 = vmax.f32 %v1903, 0.0
  %v2090 = vmax.f32 %v1908, 0.0
  %v2091 = vmax.f32 %v1913, 0.0
  %v2092 = vmax.f32 %v1918, 0.0
  %v2093 = vmax.f32 %v1923, 0.0
  %v2094 = vmax.f32 %v1928, 0.0
  %v2095 = vmax.f32 %v1933, 0.0
  %v2096 = vmax.f32 %v1938, 0.0
  %v2097 = vmax.f32 %v1943, 0.0
  %v2098 = vmax.f32 %v1948, 0.0
  %v2099 = vmax.f32 %v1953, 0.0
  %v2100 = vmax.f32 %v1958, 0.0
  %v2101 = vmax.f32 %v1963, 0.0
  %v2102 = vmax.f32 %v1968, 0.0
  %v2103 = vmax.f32 %v1973, 0.0
  %v2104 = vmax.f32 %v1978, 0.0
  %v2105 = vmax.f32 %v1983, 0.0
  %v2106 = vmax.f32 %v1988, 0.0
  %v2107 = vmax.f32 %v1993, 0.0
  %v2108 = vmax.f32 %v1998, 0.0
  %v2109 = vmax.f32 %v2003, 0.0
  %v2110 = vmax.f32 %v2008, 0.0
  %vm2111 = vcmask 244736
  %2112 = vst.msk [vmem:[#allocation2] sm:$0xff] %vm2111, 0.0
  %2113 = vst.msk [vmem:[#allocation2 + $0x8] sm:$0xff] %vm2111, 0.0
  %2114 = vst.msk [vmem:[#allocation2 + $0x10] sm:$0xff] %vm2111, 0.0
  %2115 = vst.msk [vmem:[#allocation2 + $0x18] sm:$0xff] %vm2111, 0.0
  %2116 = vst.msk [vmem:[#allocation2 + $0x20] sm:$0xff] %vm2111, 0.0
  %2117 = vst.msk [vmem:[#allocation2 + $0x28] sm:$0xff] %vm2111, 0.0
  %2118 = vst.msk [vmem:[#allocation2 + $0x30] sm:$0xff] %vm2111, 0.0
  %2119 = vst.msk [vmem:[#allocation2 + $0x38] sm:$0xff] %vm2111, 0.0
  %2120 = vst.msk [vmem:[#allocation2 + $0x40] sm:$0xff] %vm2111, 0.0
  %2121 = vst.msk [vmem:[#allocation2 + $0x48] sm:$0xff] %vm2111, 0.0
  %2122 = vst.msk [vmem:[#allocation2 + $0x50] sm:$0xff] %vm2111, 0.0
  %2123 = vst.msk [vmem:[#allocation2 + $0x378] sm:$0xff] %vm2111, 0.0
  %2124 = vst.msk [vmem:[#allocation2 + $0x380] sm:$0xff] %vm2111, 0.0
  %2125 = vst.msk [vmem:[#allocation2 + $0x388] sm:$0xff] %vm2111, 0.0
  %2126 = vst.msk [vmem:[#allocation2 + $0x390] sm:$0xff] %vm2111, 0.0
  %2127 = vst.msk [vmem:[#allocation2 + $0x398] sm:$0xff] %vm2111, 0.0
  %2128 = vst.msk [vmem:[#allocation2 + $0x3a0] sm:$0xff] %vm2111, 0.0
  %2129 = vst.msk [vmem:[#allocation2 + $0x3a8] sm:$0xff] %vm2111, 0.0
  %2130 = vst.msk [vmem:[#allocation2 + $0x3b0] sm:$0xff] %vm2111, 0.0
  %2131 = vst.msk [vmem:[#allocation2 + $0x3b8] sm:$0xff] %vm2111, 0.0
  %2132 = vst.msk [vmem:[#allocation2 + $0x3c0] sm:$0xff] %vm2111, 0.0
  %2133 = vst.msk [vmem:[#allocation2 + $0x3c8] sm:$0xff] %vm2111, 0.0
  %2134 = vst.msk [vmem:[#allocation2 + $0x58] sm:$0xff] %vm2111, %v2011
  %2135 = vst.msk [vmem:[#allocation2 + $0x60] sm:$0xff] %vm2111, %v2012
  %2136 = vst.msk [vmem:[#allocation2 + $0x68] sm:$0xff] %vm2111, %v2013
  %2137 = vst.msk [vmem:[#allocation2 + $0x70] sm:$0xff] %vm2111, %v2014
  %2138 = vst.msk [vmem:[#allocation2 + $0x78] sm:$0xff] %vm2111, %v2015
  %2139 = vst.msk [vmem:[#allocation2 + $0x80] sm:$0xff] %vm2111, %v2016
  %2140 = vst.msk [vmem:[#allocation2 + $0x88] sm:$0xff] %vm2111, %v2017
  %2141 = vst.msk [vmem:[#allocation2 + $0x90] sm:$0xff] %vm2111, %v2018
  %2142 = vst.msk [vmem:[#allocation2 + $0x98] sm:$0xff] %vm2111, %v2019
  %2143 = vst.msk [vmem:[#allocation2 + $0xa0] sm:$0xff] %vm2111, %v2020
  %2144 = vst.msk [vmem:[#allocation2 + $0xa8] sm:$0xff] %vm2111, %v2021
  %2145 = vst.msk [vmem:[#allocation2 + $0xb0] sm:$0xff] %vm2111, %v2022
  %2146 = vst.msk [vmem:[#allocation2 + $0xb8] sm:$0xff] %vm2111, %v2023
  %2147 = vst.msk [vmem:[#allocation2 + $0xc0] sm:$0xff] %vm2111, %v2024
  %2148 = vst.msk [vmem:[#allocation2 + $0xc8] sm:$0xff] %vm2111, %v2025
  %2149 = vst.msk [vmem:[#allocation2 + $0xd0] sm:$0xff] %vm2111, %v2026
  %2150 = vst.msk [vmem:[#allocation2 + $0xd8] sm:$0xff] %vm2111, %v2027
  %2151 = vst.msk [vmem:[#allocation2 + $0xe0] sm:$0xff] %vm2111, %v2028
  %2152 = vst.msk [vmem:[#allocation2 + $0xe8] sm:$0xff] %vm2111, %v2029
  %2153 = vst.msk [vmem:[#allocation2 + $0xf0] sm:$0xff] %vm2111, %v2030
  %2154 = vst.msk [vmem:[#allocation2 + $0xf8] sm:$0xff] %vm2111, %v2031
  %2155 = vst.msk [vmem:[#allocation2 + $0x100] sm:$0xff] %vm2111, %v2032
  %2156 = vst.msk [vmem:[#allocation2 + $0x108] sm:$0xff] %vm2111, %v2033
  %2157 = vst.msk [vmem:[#allocation2 + $0x110] sm:$0xff] %vm2111, %v2034
  %2158 = vst.msk [vmem:[#allocation2 + $0x118] sm:$0xff] %vm2111, %v2035
  %2159 = vst.msk [vmem:[#allocation2 + $0x120] sm:$0xff] %vm2111, %v2036
  %2160 = vst.msk [vmem:[#allocation2 + $0x128] sm:$0xff] %vm2111, %v2037
  %2161 = vst.msk [vmem:[#allocation2 + $0x130] sm:$0xff] %vm2111, %v2038
  %2162 = vst.msk [vmem:[#allocation2 + $0x138] sm:$0xff] %vm2111, %v2039
  %2163 = vst.msk [vmem:[#allocation2 + $0x140] sm:$0xff] %vm2111, %v2040
  %2164 = vst.msk [vmem:[#allocation2 + $0x148] sm:$0xff] %vm2111, %v2041
  %2165 = vst.msk [vmem:[#allocation2 + $0x150] sm:$0xff] %vm2111, %v2042
  %2166 = vst.msk [vmem:[#allocation2 + $0x158] sm:$0xff] %vm2111, %v2043
  %2167 = vst.msk [vmem:[#allocation2 + $0x160] sm:$0xff] %vm2111, %v2044
  %2168 = vst.msk [vmem:[#allocation2 + $0x168] sm:$0xff] %vm2111, %v2045
  %2169 = vst.msk [vmem:[#allocation2 + $0x170] sm:$0xff] %vm2111, %v2046
  %2170 = vst.msk [vmem:[#allocation2 + $0x178] sm:$0xff] %vm2111, %v2047
  %2171 = vst.msk [vmem:[#allocation2 + $0x180] sm:$0xff] %vm2111, %v2048
  %2172 = vst.msk [vmem:[#allocation2 + $0x188] sm:$0xff] %vm2111, %v2049
  %2173 = vst.msk [vmem:[#allocation2 + $0x190] sm:$0xff] %vm2111, %v2050
  %2174 = vst.msk [vmem:[#allocation2 + $0x198] sm:$0xff] %vm2111, %v2051
  %2175 = vst.msk [vmem:[#allocation2 + $0x1a0] sm:$0xff] %vm2111, %v2052
  %2176 = vst.msk [vmem:[#allocation2 + $0x1a8] sm:$0xff] %vm2111, %v2053
  %2177 = vst.msk [vmem:[#allocation2 + $0x1b0] sm:$0xff] %vm2111, %v2054
  %2178 = vst.msk [vmem:[#allocation2 + $0x1b8] sm:$0xff] %vm2111, %v2055
  %2179 = vst.msk [vmem:[#allocation2 + $0x1c0] sm:$0xff] %vm2111, %v2056
  %2180 = vst.msk [vmem:[#allocation2 + $0x1c8] sm:$0xff] %vm2111, %v2057
  %2181 = vst.msk [vmem:[#allocation2 + $0x1d0] sm:$0xff] %vm2111, %v2058
  %2182 = vst.msk [vmem:[#allocation2 + $0x1d8] sm:$0xff] %vm2111, %v2059
  %2183 = vst.msk [vmem:[#allocation2 + $0x1e0] sm:$0xff] %vm2111, %v2060
  %2184 = vst.msk [vmem:[#allocation2 + $0x1e8] sm:$0xff] %vm2111, %v2061
  %2185 = vst.msk [vmem:[#allocation2 + $0x1f0] sm:$0xff] %vm2111, %v2062
  %2186 = vst.msk [vmem:[#allocation2 + $0x1f8] sm:$0xff] %vm2111, %v2063
  %2187 = vst.msk [vmem:[#allocation2 + $0x200] sm:$0xff] %vm2111, %v2064
  %2188 = vst.msk [vmem:[#allocation2 + $0x208] sm:$0xff] %vm2111, %v2065
  %2189 = vst.msk [vmem:[#allocation2 + $0x210] sm:$0xff] %vm2111, %v2066
  %2190 = vst.msk [vmem:[#allocation2 + $0x218] sm:$0xff] %vm2111, %v2067
  %2191 = vst.msk [vmem:[#allocation2 + $0x220] sm:$0xff] %vm2111, %v2068
  %2192 = vst.msk [vmem:[#allocation2 + $0x228] sm:$0xff] %vm2111, %v2069
  %2193 = vst.msk [vmem:[#allocation2 + $0x230] sm:$0xff] %vm2111, %v2070
  %2194 = vst.msk [vmem:[#allocation2 + $0x238] sm:$0xff] %vm2111, %v2071
  %2195 = vst.msk [vmem:[#allocation2 + $0x240] sm:$0xff] %vm2111, %v2072
  %2196 = vst.msk [vmem:[#allocation2 + $0x248] sm:$0xff] %vm2111, %v2073
  %2197 = vst.msk [vmem:[#allocation2 + $0x250] sm:$0xff] %vm2111, %v2074
  %2198 = vst.msk [vmem:[#allocation2 + $0x258] sm:$0xff] %vm2111, %v2075
  %2199 = vst.msk [vmem:[#allocation2 + $0x260] sm:$0xff] %vm2111, %v2076
  %2200 = vst.msk [vmem:[#allocation2 + $0x268] sm:$0xff] %vm2111, %v2077
  %2201 = vst.msk [vmem:[#allocation2 + $0x270] sm:$0xff] %vm2111, %v2078
  %2202 = vst.msk [vmem:[#allocation2 + $0x278] sm:$0xff] %vm2111, %v2079
  %2203 = vst.msk [vmem:[#allocation2 + $0x280] sm:$0xff] %vm2111, %v2080
  %2204 = vst.msk [vmem:[#allocation2 + $0x288] sm:$0xff] %vm2111, %v2081
  %2205 = vst.msk [vmem:[#allocation2 + $0x290] sm:$0xff] %vm2111, %v2082
  %2206 = vst.msk [vmem:[#allocation2 + $0x298] sm:$0xff] %vm2111, %v2083
  %2207 = vst.msk [vmem:[#allocation2 + $0x2a0] sm:$0xff] %vm2111, %v2084
  %2208 = vst.msk [vmem:[#allocation2 + $0x2a8] sm:$0xff] %vm2111, %v2085
  %2209 = vst.msk [vmem:[#allocation2 + $0x2b0] sm:$0xff] %vm2111, %v2086
  %2210 = vst.msk [vmem:[#allocation2 + $0x2b8] sm:$0xff] %vm2111, %v2087
  %2211 = vst.msk [vmem:[#allocation2 + $0x2c0] sm:$0xff] %vm2111, %v2088
  %2212 = vst.msk [vmem:[#allocation2 + $0x2c8] sm:$0xff] %vm2111, %v2089
  %2213 = vst.msk [vmem:[#allocation2 + $0x2d0] sm:$0xff] %vm2111, %v2090
  %2214 = vst.msk [vmem:[#allocation2 + $0x2d8] sm:$0xff] %vm2111, %v2091
  %2215 = vst.msk [vmem:[#allocation2 + $0x2e0] sm:$0xff] %vm2111, %v2092
  %2216 = vst.msk [vmem:[#allocation2 + $0x2e8] sm:$0xff] %vm2111, %v2093
  %2217 = vst.msk [vmem:[#allocation2 + $0x2f0] sm:$0xff] %vm2111, %v2094
  %2218 = vst.msk [vmem:[#allocation2 + $0x2f8] sm:$0xff] %vm2111, %v2095
  %2219 = vst.msk [vmem:[#allocation2 + $0x300] sm:$0xff] %vm2111, %v2096
  %2220 = vst.msk [vmem:[#allocation2 + $0x308] sm:$0xff] %vm2111, %v2097
  %2221 = vst.msk [vmem:[#allocation2 + $0x310] sm:$0xff] %vm2111, %v2098
  %2222 = vst.msk [vmem:[#allocation2 + $0x318] sm:$0xff] %vm2111, %v2099
  %2223 = vst.msk [vmem:[#allocation2 + $0x320] sm:$0xff] %vm2111, %v2100
  %2224 = vst.msk [vmem:[#allocation2 + $0x328] sm:$0xff] %vm2111, %v2101
  %2225 = vst.msk [vmem:[#allocation2 + $0x330] sm:$0xff] %vm2111, %v2102
  %2226 = vst.msk [vmem:[#allocation2 + $0x338] sm:$0xff] %vm2111, %v2103
  %2227 = vst.msk [vmem:[#allocation2 + $0x340] sm:$0xff] %vm2111, %v2104
  %2228 = vst.msk [vmem:[#allocation2 + $0x348] sm:$0xff] %vm2111, %v2105
  %2229 = vst.msk [vmem:[#allocation2 + $0x350] sm:$0xff] %vm2111, %v2106
  %2230 = vst.msk [vmem:[#allocation2 + $0x358] sm:$0xff] %vm2111, %v2107
  %2231 = vst.msk [vmem:[#allocation2 + $0x360] sm:$0xff] %vm2111, %v2108
  %2232 = vst.msk [vmem:[#allocation2 + $0x368] sm:$0xff] %vm2111, %v2109
  %2233 = vst.msk [vmem:[#allocation2 + $0x370] sm:$0xff] %vm2111, %v2110
  %2234 = vst.msk [vmem:[#allocation2 + $0x58] sm:$0xff] %vm2111, 0.0
  %2235 = vst.msk [vmem:[#allocation2 + $0x60] sm:$0xff] %vm2111, 0.0
  %2236 = vst.msk [vmem:[#allocation2 + $0x68] sm:$0xff] %vm2111, 0.0
  %2237 = vst.msk [vmem:[#allocation2 + $0x70] sm:$0xff] %vm2111, 0.0
  %2238 = vst.msk [vmem:[#allocation2 + $0x78] sm:$0xff] %vm2111, 0.0
  %2239 = vst.msk [vmem:[#allocation2 + $0x80] sm:$0xff] %vm2111, 0.0
  %2240 = vst.msk [vmem:[#allocation2 + $0x88] sm:$0xff] %vm2111, 0.0
  %2241 = vst.msk [vmem:[#allocation2 + $0x90] sm:$0xff] %vm2111, 0.0
  %2242 = vst.msk [vmem:[#allocation2 + $0x98] sm:$0xff] %vm2111, 0.0
  %2243 = vst.msk [vmem:[#allocation2 + $0xa0] sm:$0xff] %vm2111, 0.0
  %2244 = vst.msk [vmem:[#allocation2 + $0xa8] sm:$0xff] %vm2111, 0.0
  %2245 = vst.msk [vmem:[#allocation2 + $0xf0] sm:$0xff] %vm2111, 0.0
  %2246 = vst.msk [vmem:[#allocation2 + $0xf8] sm:$0xff] %vm2111, 0.0
  %2247 = vst.msk [vmem:[#allocation2 + $0x140] sm:$0xff] %vm2111, 0.0
  %2248 = vst.msk [vmem:[#allocation2 + $0x148] sm:$0xff] %vm2111, 0.0
  %2249 = vst.msk [vmem:[#allocation2 + $0x190] sm:$0xff] %vm2111, 0.0
  %2250 = vst.msk [vmem:[#allocation2 + $0x198] sm:$0xff] %vm2111, 0.0
  %2251 = vst.msk [vmem:[#allocation2 + $0x1e0] sm:$0xff] %vm2111, 0.0
  %2252 = vst.msk [vmem:[#allocation2 + $0x1e8] sm:$0xff] %vm2111, 0.0
  %2253 = vst.msk [vmem:[#allocation2 + $0x230] sm:$0xff] %vm2111, 0.0
  %2254 = vst.msk [vmem:[#allocation2 + $0x238] sm:$0xff] %vm2111, 0.0
  %2255 = vst.msk [vmem:[#allocation2 + $0x280] sm:$0xff] %vm2111, 0.0
  %2256 = vst.msk [vmem:[#allocation2 + $0x288] sm:$0xff] %vm2111, 0.0
  %2257 = vst.msk [vmem:[#allocation2 + $0x2d0] sm:$0xff] %vm2111, 0.0
  %2258 = vst.msk [vmem:[#allocation2 + $0x2d8] sm:$0xff] %vm2111, 0.0
  %2259 = vst.msk [vmem:[#allocation2 + $0x320] sm:$0xff] %vm2111, 0.0
  %2260 = vst.msk [vmem:[#allocation2 + $0x328] sm:$0xff] %vm2111, 0.0
  %2261 = vst.msk [vmem:[#allocation2 + $0x330] sm:$0xff] %vm2111, 0.0
  %2262 = vst.msk [vmem:[#allocation2 + $0x338] sm:$0xff] %vm2111, 0.0
  %2263 = vst.msk [vmem:[#allocation2 + $0x340] sm:$0xff] %vm2111, 0.0
  %2264 = vst.msk [vmem:[#allocation2 + $0x348] sm:$0xff] %vm2111, 0.0
  %2265 = vst.msk [vmem:[#allocation2 + $0x350] sm:$0xff] %vm2111, 0.0
  %2266 = vst.msk [vmem:[#allocation2 + $0x358] sm:$0xff] %vm2111, 0.0
  %2267 = vst.msk [vmem:[#allocation2 + $0x360] sm:$0xff] %vm2111, 0.0
  %2268 = vst.msk [vmem:[#allocation2 + $0x368] sm:$0xff] %vm2111, 0.0
  %2269 = vst.msk [vmem:[#allocation2 + $0x370] sm:$0xff] %vm2111, 0.0
  %v2270 = vld [vmem:[#allocation2] sm:$0xff]
  %v2271 = vld [vmem:[#allocation2 + $0x8] sm:$0xff]
  %v2272 = vld [vmem:[#allocation2 + $0x10] sm:$0xff]
  %v2273 = vld [vmem:[#allocation2 + $0x18] sm:$0xff]
  %v2274 = vld [vmem:[#allocation2 + $0x20] sm:$0xff]
  %v2275 = vld [vmem:[#allocation2 + $0x28] sm:$0xff]
  %v2276 = vld [vmem:[#allocation2 + $0x30] sm:$0xff]
  %v2277 = vld [vmem:[#allocation2 + $0x38] sm:$0xff]
  %v2278 = vld [vmem:[#allocation2 + $0x40] sm:$0xff]
  %v2279 = vld [vmem:[#allocation2 + $0x48] sm:$0xff]
  %v2280 = vld [vmem:[#allocation2 + $0x50] sm:$0xff]
  %v2281 = vld [vmem:[#allocation2 + $0x58] sm:$0xff]
  %v2282 = vld [vmem:[#allocation2 + $0x60] sm:$0xff]
  %v2283 = vld [vmem:[#allocation2 + $0x68] sm:$0xff]
  %v2284 = vld [vmem:[#allocation2 + $0x70] sm:$0xff]
  %v2285 = vld [vmem:[#allocation2 + $0x78] sm:$0xff]
  %v2286 = vld [vmem:[#allocation2 + $0x80] sm:$0xff]
  %v2287 = vld [vmem:[#allocation2 + $0x88] sm:$0xff]
  %v2288 = vld [vmem:[#allocation2 + $0x90] sm:$0xff]
  %v2289 = vld [vmem:[#allocation2 + $0x98] sm:$0xff]
  %v2290 = vld [vmem:[#allocation2 + $0xa0] sm:$0xff]
  %v2291 = vld [vmem:[#allocation2 + $0xa8] sm:$0xff]
  %v2292 = vld [vmem:[#allocation2 + $0xb0] sm:$0xff]
  %v2293 = vld [vmem:[#allocation2 + $0xb8] sm:$0xff]
  %v2294 = vld [vmem:[#allocation2 + $0xc0] sm:$0xff]
  %v2295 = vld [vmem:[#allocation2 + $0xc8] sm:$0xff]
  %v2296 = vld [vmem:[#allocation2 + $0xd0] sm:$0xff]
  %v2297 = vld [vmem:[#allocation2 + $0xd8] sm:$0xff]
  %v2298 = vld [vmem:[#allocation2 + $0xe0] sm:$0xff]
  %v2299 = vld [vmem:[#allocation2 + $0xe8] sm:$0xff]
  %v2300 = vld [vmem:[#allocation2 + $0xf0] sm:$0xff]
  %v2301 = vld [vmem:[#allocation2 + $0xf8] sm:$0xff]
  %v2302 = vld [vmem:[#allocation2 + $0x100] sm:$0xff]
  %v2303 = vld [vmem:[#allocation2 + $0x108] sm:$0xff]
  %v2304 = vld [vmem:[#allocation2 + $0x110] sm:$0xff]
  %v2305 = vld [vmem:[#allocation2 + $0x118] sm:$0xff]
  %v2306 = vld [vmem:[#allocation2 + $0x120] sm:$0xff]
  %v2307 = vld [vmem:[#allocation2 + $0x128] sm:$0xff]
  %v2308 = vld [vmem:[#allocation2 + $0x130] sm:$0xff]
  %v2309 = vld [vmem:[#allocation2 + $0x138] sm:$0xff]
  %v2310 = vld [vmem:[#allocation2 + $0x140] sm:$0xff]
  %v2311 = vld [vmem:[#allocation2 + $0x148] sm:$0xff]
  %v2312 = vld [vmem:[#allocation2 + $0x150] sm:$0xff]
  %v2313 = vld [vmem:[#allocation2 + $0x158] sm:$0xff]
  %v2314 = vld [vmem:[#allocation2 + $0x160] sm:$0xff]
  %v2315 = vld [vmem:[#allocation2 + $0x168] sm:$0xff]
  %v2316 = vld [vmem:[#allocation2 + $0x170] sm:$0xff]
  %v2317 = vld [vmem:[#allocation2 + $0x178] sm:$0xff]
  %v2318 = vld [vmem:[#allocation2 + $0x180] sm:$0xff]
  %v2319 = vld [vmem:[#allocation2 + $0x188] sm:$0xff]
  %v2320 = vld [vmem:[#allocation2 + $0x190] sm:$0xff]
  %v2321 = vld [vmem:[#allocation2 + $0x198] sm:$0xff]
  %v2322 = vld [vmem:[#allocation2 + $0x1a0] sm:$0xff]
  %v2323 = vld [vmem:[#allocation2 + $0x1a8] sm:$0xff]
  %v2324 = vld [vmem:[#allocation2 + $0x1b0] sm:$0xff]
  %v2325 = vld [vmem:[#allocation2 + $0x1b8] sm:$0xff]
  %v2326 = vld [vmem:[#allocation2 + $0x1c0] sm:$0xff]
  %v2327 = vld [vmem:[#allocation2 + $0x1c8] sm:$0xff]
  %v2328 = vld [vmem:[#allocation2 + $0x1d0] sm:$0xff]
  %v2329 = vld [vmem:[#allocation2 + $0x1d8] sm:$0xff]
  %v2330 = vld [vmem:[#allocation2 + $0x1e0] sm:$0xff]
  %v2331 = vld [vmem:[#allocation2 + $0x1e8] sm:$0xff]
  %v2332 = vld [vmem:[#allocation2 + $0x1f0] sm:$0xff]
  %v2333 = vld [vmem:[#allocation2 + $0x1f8] sm:$0xff]
  %v2334 = vld [vmem:[#allocation2 + $0x200] sm:$0xff]
  %v2335 = vld [vmem:[#allocation2 + $0x208] sm:$0xff]
  %v2336 = vld [vmem:[#allocation2 + $0x210] sm:$0xff]
  %v2337 = vld [vmem:[#allocation2 + $0x218] sm:$0xff]
  %v2338 = vld [vmem:[#allocation2 + $0x220] sm:$0xff]
  %v2339 = vld [vmem:[#allocation2 + $0x228] sm:$0xff]
  %v2340 = vld [vmem:[#allocation2 + $0x230] sm:$0xff]
  %v2341 = vld [vmem:[#allocation2 + $0x238] sm:$0xff]
  %v2342 = vld [vmem:[#allocation2 + $0x240] sm:$0xff]
  %v2343 = vld [vmem:[#allocation2 + $0x248] sm:$0xff]
  %v2344 = vld [vmem:[#allocation2 + $0x250] sm:$0xff]
  %v2345 = vld [vmem:[#allocation2 + $0x258] sm:$0xff]
  %v2346 = vld [vmem:[#allocation2 + $0x260] sm:$0xff]
  %v2347 = vld [vmem:[#allocation2 + $0x268] sm:$0xff]
  %v2348 = vld [vmem:[#allocation2 + $0x270] sm:$0xff]
  %v2349 = vld [vmem:[#allocation2 + $0x278] sm:$0xff]
  %v2350 = vld [vmem:[#allocation2 + $0x280] sm:$0xff]
  %v2351 = vld [vmem:[#allocation2 + $0x288] sm:$0xff]
  %v2352 = vld [vmem:[#allocation2 + $0x290] sm:$0xff]
  %v2353 = vld [vmem:[#allocation2 + $0x298] sm:$0xff]
  %v2354 = vld [vmem:[#allocation2 + $0x2a0] sm:$0xff]
  %v2355 = vld [vmem:[#allocation2 + $0x2a8] sm:$0xff]
  %v2356 = vld [vmem:[#allocation2 + $0x2b0] sm:$0xff]
  %v2357 = vld [vmem:[#allocation2 + $0x2b8] sm:$0xff]
  %v2358 = vld [vmem:[#allocation2 + $0x2c0] sm:$0xff]
  %v2359 = vld [vmem:[#allocation2 + $0x2c8] sm:$0xff]
  %v2360 = vld [vmem:[#allocation2 + $0x2d0] sm:$0xff]
  %v2361 = vld [vmem:[#allocation2 + $0x2d8] sm:$0xff]
  %v2362 = vld [vmem:[#allocation2 + $0x2e0] sm:$0xff]
  %v2363 = vld [vmem:[#allocation2 + $0x2e8] sm:$0xff]
  %v2364 = vld [vmem:[#allocation2 + $0x2f0] sm:$0xff]
  %v2365 = vld [vmem:[#allocation2 + $0x2f8] sm:$0xff]
  %v2366 = vld [vmem:[#allocation2 + $0x300] sm:$0xff]
  %v2367 = vld [vmem:[#allocation2 + $0x308] sm:$0xff]
  %v2368 = vld [vmem:[#allocation2 + $0x310] sm:$0xff]
  %v2369 = vld [vmem:[#allocation2 + $0x318] sm:$0xff]
  %v2370 = vld [vmem:[#allocation2 + $0x320] sm:$0xff]
  %v2371 = vld [vmem:[#allocation2 + $0x328] sm:$0xff]
  %v2372 = vld [vmem:[#allocation2 + $0x330] sm:$0xff]
  %v2373 = vld [vmem:[#allocation2 + $0x338] sm:$0xff]
  %v2374 = vld [vmem:[#allocation2 + $0x340] sm:$0xff]
  %v2375 = vld [vmem:[#allocation2 + $0x348] sm:$0xff]
  %v2376 = vld [vmem:[#allocation2 + $0x350] sm:$0xff]
  %v2377 = vld [vmem:[#allocation2 + $0x358] sm:$0xff]
  %v2378 = vld [vmem:[#allocation2 + $0x360] sm:$0xff]
  %v2379 = vld [vmem:[#allocation2 + $0x368] sm:$0xff]
  %v2380 = vld [vmem:[#allocation2 + $0x370] sm:$0xff]
  %v2381 = vld [vmem:[#allocation2 + $0x378] sm:$0xff]
  %v2382 = vld [vmem:[#allocation2 + $0x380] sm:$0xff]
  %v2383 = vld [vmem:[#allocation2 + $0x388] sm:$0xff]
  %v2384 = vld [vmem:[#allocation2 + $0x390] sm:$0xff]
  %v2385 = vld [vmem:[#allocation2 + $0x398] sm:$0xff]
  %v2386 = vld [vmem:[#allocation2 + $0x3a0] sm:$0xff]
  %v2387 = vld [vmem:[#allocation2 + $0x3a8] sm:$0xff]
  %v2388 = vld [vmem:[#allocation2 + $0x3b0] sm:$0xff]
  %v2389 = vld [vmem:[#allocation2 + $0x3b8] sm:$0xff]
  %v2390 = vld [vmem:[#allocation2 + $0x3c0] sm:$0xff]
  %v2391 = vld [vmem:[#allocation2 + $0x3c8] sm:$0xff]
  %2492 = vrot.lane.b32.xlu0 %v2271, 30
  %v2493 = vpop.permute.xlu0 %2492
  %2494 = vrot.lane.b32.xlu0 %v2272, 30
  %v2495 = vpop.permute.xlu0 %2494
  %2496 = vrot.lane.b32.xlu0 %v2273, 30
  %v2497 = vpop.permute.xlu0 %2496
  %2498 = vrot.lane.b32.xlu0 %v2274, 30
  %v2499 = vpop.permute.xlu0 %2498
  %2500 = vrot.lane.b32.xlu0 %v2275, 30
  %v2501 = vpop.permute.xlu0 %2500
  %2502 = vrot.lane.b32.xlu0 %v2276, 30
  %v2503 = vpop.permute.xlu0 %2502
  %2504 = vrot.lane.b32.xlu0 %v2277, 30
  %v2505 = vpop.permute.xlu0 %2504
  %2506 = vrot.lane.b32.xlu0 %v2278, 30
  %v2507 = vpop.permute.xlu0 %2506
  %2508 = vrot.lane.b32.xlu0 %v2279, 30
  %v2509 = vpop.permute.xlu0 %2508
  %2510 = vrot.lane.b32.xlu0 %v2280, 30
  %v2511 = vpop.permute.xlu0 %2510
  %2512 = vrot.lane.b32.xlu0 %v2281, 30
  %v2513 = vpop.permute.xlu0 %2512
  %2514 = vrot.lane.b32.xlu0 %v2282, 30
  %v2515 = vpop.permute.xlu0 %2514
  %2516 = vrot.lane.b32.xlu0 %v2283, 30
  %v2517 = vpop.permute.xlu0 %2516
  %2518 = vrot.lane.b32.xlu0 %v2284, 30
  %v2519 = vpop.permute.xlu0 %2518
  %2520 = vrot.lane.b32.xlu0 %v2285, 30
  %v2521 = vpop.permute.xlu0 %2520
  %2522 = vrot.lane.b32.xlu0 %v2286, 30
  %v2523 = vpop.permute.xlu0 %2522
  %2524 = vrot.lane.b32.xlu0 %v2287, 30
  %v2525 = vpop.permute.xlu0 %2524
  %2526 = vrot.lane.b32.xlu0 %v2288, 30
  %v2527 = vpop.permute.xlu0 %2526
  %2528 = vrot.lane.b32.xlu0 %v2289, 30
  %v2529 = vpop.permute.xlu0 %2528
  %2530 = vrot.lane.b32.xlu0 %v2290, 30
  %v2531 = vpop.permute.xlu0 %2530
  %2532 = vrot.lane.b32.xlu0 %v2291, 30
  %v2533 = vpop.permute.xlu0 %2532
  %2534 = vrot.lane.b32.xlu0 %v2292, 30
  %v2535 = vpop.permute.xlu0 %2534
  %2536 = vrot.lane.b32.xlu0 %v2293, 30
  %v2537 = vpop.permute.xlu0 %2536
  %2538 = vrot.lane.b32.xlu0 %v2294, 30
  %v2539 = vpop.permute.xlu0 %2538
  %2540 = vrot.lane.b32.xlu0 %v2295, 30
  %v2541 = vpop.permute.xlu0 %2540
  %2542 = vrot.lane.b32.xlu0 %v2296, 30
  %v2543 = vpop.permute.xlu0 %2542
  %2544 = vrot.lane.b32.xlu0 %v2297, 30
  %v2545 = vpop.permute.xlu0 %2544
  %2546 = vrot.lane.b32.xlu0 %v2298, 30
  %v2547 = vpop.permute.xlu0 %2546
  %2548 = vrot.lane.b32.xlu0 %v2299, 30
  %v2549 = vpop.permute.xlu0 %2548
  %2550 = vrot.lane.b32.xlu0 %v2300, 30
  %v2551 = vpop.permute.xlu0 %2550
  %2552 = vrot.lane.b32.xlu0 %v2301, 30
  %v2553 = vpop.permute.xlu0 %2552
  %2554 = vrot.lane.b32.xlu0 %v2302, 30
  %v2555 = vpop.permute.xlu0 %2554
  %2556 = vrot.lane.b32.xlu0 %v2303, 30
  %v2557 = vpop.permute.xlu0 %2556
  %2558 = vrot.lane.b32.xlu0 %v2304, 30
  %v2559 = vpop.permute.xlu0 %2558
  %2560 = vrot.lane.b32.xlu0 %v2305, 30
  %v2561 = vpop.permute.xlu0 %2560
  %2562 = vrot.lane.b32.xlu0 %v2306, 30
  %v2563 = vpop.permute.xlu0 %2562
  %2564 = vrot.lane.b32.xlu0 %v2307, 30
  %v2565 = vpop.permute.xlu0 %2564
  %2566 = vrot.lane.b32.xlu0 %v2308, 30
  %v2567 = vpop.permute.xlu0 %2566
  %2568 = vrot.lane.b32.xlu0 %v2309, 30
  %v2569 = vpop.permute.xlu0 %2568
  %2570 = vrot.lane.b32.xlu0 %v2310, 30
  %v2571 = vpop.permute.xlu0 %2570
  %2572 = vrot.lane.b32.xlu0 %v2311, 30
  %v2573 = vpop.permute.xlu0 %2572
  %2574 = vrot.lane.b32.xlu0 %v2312, 30
  %v2575 = vpop.permute.xlu0 %2574
  %2576 = vrot.lane.b32.xlu0 %v2313, 30
  %v2577 = vpop.permute.xlu0 %2576
  %2578 = vrot.lane.b32.xlu0 %v2314, 30
  %v2579 = vpop.permute.xlu0 %2578
  %2580 = vrot.lane.b32.xlu0 %v2315, 30
  %v2581 = vpop.permute.xlu0 %2580
  %2582 = vrot.lane.b32.xlu0 %v2316, 30
  %v2583 = vpop.permute.xlu0 %2582
  %2584 = vrot.lane.b32.xlu0 %v2317, 30
  %v2585 = vpop.permute.xlu0 %2584
  %2586 = vrot.lane.b32.xlu0 %v2318, 30
  %v2587 = vpop.permute.xlu0 %2586
  %2588 = vrot.lane.b32.xlu0 %v2319, 30
  %v2589 = vpop.permute.xlu0 %2588
  %2590 = vrot.lane.b32.xlu0 %v2320, 30
  %v2591 = vpop.permute.xlu0 %2590
  %2592 = vrot.lane.b32.xlu0 %v2321, 30
  %v2593 = vpop.permute.xlu0 %2592
  %2594 = vrot.lane.b32.xlu0 %v2322, 30
  %v2595 = vpop.permute.xlu0 %2594
  %2596 = vrot.lane.b32.xlu0 %v2323, 30
  %v2597 = vpop.permute.xlu0 %2596
  %2598 = vrot.lane.b32.xlu0 %v2324, 30
  %v2599 = vpop.permute.xlu0 %2598
  %2600 = vrot.lane.b32.xlu0 %v2325, 30
  %v2601 = vpop.permute.xlu0 %2600
  %2602 = vrot.lane.b32.xlu0 %v2326, 30
  %v2603 = vpop.permute.xlu0 %2602
  %2604 = vrot.lane.b32.xlu0 %v2327, 30
  %v2605 = vpop.permute.xlu0 %2604
  %2606 = vrot.lane.b32.xlu0 %v2328, 30
  %v2607 = vpop.permute.xlu0 %2606
  %2608 = vrot.lane.b32.xlu0 %v2329, 30
  %v2609 = vpop.permute.xlu0 %2608
  %2610 = vrot.lane.b32.xlu0 %v2330, 30
  %v2611 = vpop.permute.xlu0 %2610
  %2612 = vrot.lane.b32.xlu0 %v2331, 30
  %v2613 = vpop.permute.xlu0 %2612
  %2614 = vrot.lane.b32.xlu0 %v2332, 30
  %v2615 = vpop.permute.xlu0 %2614
  %2616 = vrot.lane.b32.xlu0 %v2333, 30
  %v2617 = vpop.permute.xlu0 %2616
  %2618 = vrot.lane.b32.xlu0 %v2334, 30
  %v2619 = vpop.permute.xlu0 %2618
  %2620 = vrot.lane.b32.xlu0 %v2335, 30
  %v2621 = vpop.permute.xlu0 %2620
  %2622 = vrot.lane.b32.xlu0 %v2336, 30
  %v2623 = vpop.permute.xlu0 %2622
  %2624 = vrot.lane.b32.xlu0 %v2337, 30
  %v2625 = vpop.permute.xlu0 %2624
  %2626 = vrot.lane.b32.xlu0 %v2338, 30
  %v2627 = vpop.permute.xlu0 %2626
  %2628 = vrot.lane.b32.xlu0 %v2339, 30
  %v2629 = vpop.permute.xlu0 %2628
  %2630 = vrot.lane.b32.xlu0 %v2340, 30
  %v2631 = vpop.permute.xlu0 %2630
  %2632 = vrot.lane.b32.xlu0 %v2341, 30
  %v2633 = vpop.permute.xlu0 %2632
  %2634 = vrot.lane.b32.xlu0 %v2342, 30
  %v2635 = vpop.permute.xlu0 %2634
  %2636 = vrot.lane.b32.xlu0 %v2343, 30
  %v2637 = vpop.permute.xlu0 %2636
  %2638 = vrot.lane.b32.xlu0 %v2344, 30
  %v2639 = vpop.permute.xlu0 %2638
  %2640 = vrot.lane.b32.xlu0 %v2345, 30
  %v2641 = vpop.permute.xlu0 %2640
  %2642 = vrot.lane.b32.xlu0 %v2346, 30
  %v2643 = vpop.permute.xlu0 %2642
  %2644 = vrot.lane.b32.xlu0 %v2347, 30
  %v2645 = vpop.permute.xlu0 %2644
  %2646 = vrot.lane.b32.xlu0 %v2348, 30
  %v2647 = vpop.permute.xlu0 %2646
  %2648 = vrot.lane.b32.xlu0 %v2349, 30
  %v2649 = vpop.permute.xlu0 %2648
  %2650 = vrot.lane.b32.xlu0 %v2350, 30
  %v2651 = vpop.permute.xlu0 %2650
  %2652 = vrot.lane.b32.xlu0 %v2351, 30
  %v2653 = vpop.permute.xlu0 %2652
  %2654 = vrot.lane.b32.xlu0 %v2352, 30
  %v2655 = vpop.permute.xlu0 %2654
  %2656 = vrot.lane.b32.xlu0 %v2353, 30
  %v2657 = vpop.permute.xlu0 %2656
  %2658 = vrot.lane.b32.xlu0 %v2354, 30
  %v2659 = vpop.permute.xlu0 %2658
  %2660 = vrot.lane.b32.xlu0 %v2355, 30
  %v2661 = vpop.permute.xlu0 %2660
  %2662 = vrot.lane.b32.xlu0 %v2356, 30
  %v2663 = vpop.permute.xlu0 %2662
  %2664 = vrot.lane.b32.xlu0 %v2357, 30
  %v2665 = vpop.permute.xlu0 %2664
  %2666 = vrot.lane.b32.xlu0 %v2358, 30
  %v2667 = vpop.permute.xlu0 %2666
  %2668 = vrot.lane.b32.xlu0 %v2359, 30
  %v2669 = vpop.permute.xlu0 %2668
  %2670 = vrot.lane.b32.xlu0 %v2360, 30
  %v2671 = vpop.permute.xlu0 %2670
  %2672 = vrot.lane.b32.xlu0 %v2361, 30
  %v2673 = vpop.permute.xlu0 %2672
  %2674 = vrot.lane.b32.xlu0 %v2362, 30
  %v2675 = vpop.permute.xlu0 %2674
  %2676 = vrot.lane.b32.xlu0 %v2363, 30
  %v2677 = vpop.permute.xlu0 %2676
  %2678 = vrot.lane.b32.xlu0 %v2364, 30
  %v2679 = vpop.permute.xlu0 %2678
  %2680 = vrot.lane.b32.xlu0 %v2365, 30
  %v2681 = vpop.permute.xlu0 %2680
  %2682 = vrot.lane.b32.xlu0 %v2366, 30
  %v2683 = vpop.permute.xlu0 %2682
  %2684 = vrot.lane.b32.xlu0 %v2367, 30
  %v2685 = vpop.permute.xlu0 %2684
  %2686 = vrot.lane.b32.xlu0 %v2368, 30
  %v2687 = vpop.permute.xlu0 %2686
  %2688 = vrot.lane.b32.xlu0 %v2369, 30
  %v2689 = vpop.permute.xlu0 %2688
  %2690 = vrot.lane.b32.xlu0 %v2370, 30
  %v2691 = vpop.permute.xlu0 %2690
  %2793 = vrot.lane.b32.xlu0 %v2272, 60
  %v2794 = vpop.permute.xlu0 %2793
  %2795 = vrot.lane.b32.xlu0 %v2273, 60
  %v2796 = vpop.permute.xlu0 %2795
  %2797 = vrot.lane.b32.xlu0 %v2274, 60
  %v2798 = vpop.permute.xlu0 %2797
  %2799 = vrot.lane.b32.xlu0 %v2275, 60
  %v2800 = vpop.permute.xlu0 %2799
  %2801 = vrot.lane.b32.xlu0 %v2276, 60
  %v2802 = vpop.permute.xlu0 %2801
  %2803 = vrot.lane.b32.xlu0 %v2277, 60
  %v2804 = vpop.permute.xlu0 %2803
  %2805 = vrot.lane.b32.xlu0 %v2278, 60
  %v2806 = vpop.permute.xlu0 %2805
  %2807 = vrot.lane.b32.xlu0 %v2279, 60
  %v2808 = vpop.permute.xlu0 %2807
  %2809 = vrot.lane.b32.xlu0 %v2280, 60
  %v2810 = vpop.permute.xlu0 %2809
  %2811 = vrot.lane.b32.xlu0 %v2281, 60
  %v2812 = vpop.permute.xlu0 %2811
  %2813 = vrot.lane.b32.xlu0 %v2282, 60
  %v2814 = vpop.permute.xlu0 %2813
  %2815 = vrot.lane.b32.xlu0 %v2283, 60
  %v2816 = vpop.permute.xlu0 %2815
  %2817 = vrot.lane.b32.xlu0 %v2284, 60
  %v2818 = vpop.permute.xlu0 %2817
  %2819 = vrot.lane.b32.xlu0 %v2285, 60
  %v2820 = vpop.permute.xlu0 %2819
  %2821 = vrot.lane.b32.xlu0 %v2286, 60
  %v2822 = vpop.permute.xlu0 %2821
  %2823 = vrot.lane.b32.xlu0 %v2287, 60
  %v2824 = vpop.permute.xlu0 %2823
  %2825 = vrot.lane.b32.xlu0 %v2288, 60
  %v2826 = vpop.permute.xlu0 %2825
  %2827 = vrot.lane.b32.xlu0 %v2289, 60
  %v2828 = vpop.permute.xlu0 %2827
  %2829 = vrot.lane.b32.xlu0 %v2290, 60
  %v2830 = vpop.permute.xlu0 %2829
  %2831 = vrot.lane.b32.xlu0 %v2291, 60
  %v2832 = vpop.permute.xlu0 %2831
  %2833 = vrot.lane.b32.xlu0 %v2292, 60
  %v2834 = vpop.permute.xlu0 %2833
  %2835 = vrot.lane.b32.xlu0 %v2293, 60
  %v2836 = vpop.permute.xlu0 %2835
  %2837 = vrot.lane.b32.xlu0 %v2294, 60
  %v2838 = vpop.permute.xlu0 %2837
  %2839 = vrot.lane.b32.xlu0 %v2295, 60
  %v2840 = vpop.permute.xlu0 %2839
  %2841 = vrot.lane.b32.xlu0 %v2296, 60
  %v2842 = vpop.permute.xlu0 %2841
  %2843 = vrot.lane.b32.xlu0 %v2297, 60
  %v2844 = vpop.permute.xlu0 %2843
  %2845 = vrot.lane.b32.xlu0 %v2298, 60
  %v2846 = vpop.permute.xlu0 %2845
  %2847 = vrot.lane.b32.xlu0 %v2299, 60
  %v2848 = vpop.permute.xlu0 %2847
  %2849 = vrot.lane.b32.xlu0 %v2300, 60
  %v2850 = vpop.permute.xlu0 %2849
  %2851 = vrot.lane.b32.xlu0 %v2301, 60
  %v2852 = vpop.permute.xlu0 %2851
  %2853 = vrot.lane.b32.xlu0 %v2302, 60
  %v2854 = vpop.permute.xlu0 %2853
  %2855 = vrot.lane.b32.xlu0 %v2303, 60
  %v2856 = vpop.permute.xlu0 %2855
  %2857 = vrot.lane.b32.xlu0 %v2304, 60
  %v2858 = vpop.permute.xlu0 %2857
  %2859 = vrot.lane.b32.xlu0 %v2305, 60
  %v2860 = vpop.permute.xlu0 %2859
  %2861 = vrot.lane.b32.xlu0 %v2306, 60
  %v2862 = vpop.permute.xlu0 %2861
  %2863 = vrot.lane.b32.xlu0 %v2307, 60
  %v2864 = vpop.permute.xlu0 %2863
  %2865 = vrot.lane.b32.xlu0 %v2308, 60
  %v2866 = vpop.permute.xlu0 %2865
  %2867 = vrot.lane.b32.xlu0 %v2309, 60
  %v2868 = vpop.permute.xlu0 %2867
  %2869 = vrot.lane.b32.xlu0 %v2310, 60
  %v2870 = vpop.permute.xlu0 %2869
  %2871 = vrot.lane.b32.xlu0 %v2311, 60
  %v2872 = vpop.permute.xlu0 %2871
  %2873 = vrot.lane.b32.xlu0 %v2312, 60
  %v2874 = vpop.permute.xlu0 %2873
  %2875 = vrot.lane.b32.xlu0 %v2313, 60
  %v2876 = vpop.permute.xlu0 %2875
  %2877 = vrot.lane.b32.xlu0 %v2314, 60
  %v2878 = vpop.permute.xlu0 %2877
  %2879 = vrot.lane.b32.xlu0 %v2315, 60
  %v2880 = vpop.permute.xlu0 %2879
  %2881 = vrot.lane.b32.xlu0 %v2316, 60
  %v2882 = vpop.permute.xlu0 %2881
  %2883 = vrot.lane.b32.xlu0 %v2317, 60
  %v2884 = vpop.permute.xlu0 %2883
  %2885 = vrot.lane.b32.xlu0 %v2318, 60
  %v2886 = vpop.permute.xlu0 %2885
  %2887 = vrot.lane.b32.xlu0 %v2319, 60
  %v2888 = vpop.permute.xlu0 %2887
  %2889 = vrot.lane.b32.xlu0 %v2320, 60
  %v2890 = vpop.permute.xlu0 %2889
  %2891 = vrot.lane.b32.xlu0 %v2321, 60
  %v2892 = vpop.permute.xlu0 %2891
  %2893 = vrot.lane.b32.xlu0 %v2322, 60
  %v2894 = vpop.permute.xlu0 %2893
  %2895 = vrot.lane.b32.xlu0 %v2323, 60
  %v2896 = vpop.permute.xlu0 %2895
  %2897 = vrot.lane.b32.xlu0 %v2324, 60
  %v2898 = vpop.permute.xlu0 %2897
  %2899 = vrot.lane.b32.xlu0 %v2325, 60
  %v2900 = vpop.permute.xlu0 %2899
  %2901 = vrot.lane.b32.xlu0 %v2326, 60
  %v2902 = vpop.permute.xlu0 %2901
  %2903 = vrot.lane.b32.xlu0 %v2327, 60
  %v2904 = vpop.permute.xlu0 %2903
  %2905 = vrot.lane.b32.xlu0 %v2328, 60
  %v2906 = vpop.permute.xlu0 %2905
  %2907 = vrot.lane.b32.xlu0 %v2329, 60
  %v2908 = vpop.permute.xlu0 %2907
  %2909 = vrot.lane.b32.xlu0 %v2330, 60
  %v2910 = vpop.permute.xlu0 %2909
  %2911 = vrot.lane.b32.xlu0 %v2331, 60
  %v2912 = vpop.permute.xlu0 %2911
  %2913 = vrot.lane.b32.xlu0 %v2332, 60
  %v2914 = vpop.permute.xlu0 %2913
  %2915 = vrot.lane.b32.xlu0 %v2333, 60
  %v2916 = vpop.permute.xlu0 %2915
  %2917 = vrot.lane.b32.xlu0 %v2334, 60
  %v2918 = vpop.permute.xlu0 %2917
  %2919 = vrot.lane.b32.xlu0 %v2335, 60
  %v2920 = vpop.permute.xlu0 %2919
  %2921 = vrot.lane.b32.xlu0 %v2336, 60
  %v2922 = vpop.permute.xlu0 %2921
  %2923 = vrot.lane.b32.xlu0 %v2337, 60
  %v2924 = vpop.permute.xlu0 %2923
  %2925 = vrot.lane.b32.xlu0 %v2338, 60
  %v2926 = vpop.permute.xlu0 %2925
  %2927 = vrot.lane.b32.xlu0 %v2339, 60
  %v2928 = vpop.permute.xlu0 %2927
  %2929 = vrot.lane.b32.xlu0 %v2340, 60
  %v2930 = vpop.permute.xlu0 %2929
  %2931 = vrot.lane.b32.xlu0 %v2341, 60
  %v2932 = vpop.permute.xlu0 %2931
  %2933 = vrot.lane.b32.xlu0 %v2342, 60
  %v2934 = vpop.permute.xlu0 %2933
  %2935 = vrot.lane.b32.xlu0 %v2343, 60
  %v2936 = vpop.permute.xlu0 %2935
  %2937 = vrot.lane.b32.xlu0 %v2344, 60
  %v2938 = vpop.permute.xlu0 %2937
  %2939 = vrot.lane.b32.xlu0 %v2345, 60
  %v2940 = vpop.permute.xlu0 %2939
  %2941 = vrot.lane.b32.xlu0 %v2346, 60
  %v2942 = vpop.permute.xlu0 %2941
  %2943 = vrot.lane.b32.xlu0 %v2347, 60
  %v2944 = vpop.permute.xlu0 %2943
  %2945 = vrot.lane.b32.xlu0 %v2348, 60
  %v2946 = vpop.permute.xlu0 %2945
  %2947 = vrot.lane.b32.xlu0 %v2349, 60
  %v2948 = vpop.permute.xlu0 %2947
  %2949 = vrot.lane.b32.xlu0 %v2350, 60
  %v2950 = vpop.permute.xlu0 %2949
  %2951 = vrot.lane.b32.xlu0 %v2351, 60
  %v2952 = vpop.permute.xlu0 %2951
  %2953 = vrot.lane.b32.xlu0 %v2352, 60
  %v2954 = vpop.permute.xlu0 %2953
  %2955 = vrot.lane.b32.xlu0 %v2353, 60
  %v2956 = vpop.permute.xlu0 %2955
  %2957 = vrot.lane.b32.xlu0 %v2354, 60
  %v2958 = vpop.permute.xlu0 %2957
  %2959 = vrot.lane.b32.xlu0 %v2355, 60
  %v2960 = vpop.permute.xlu0 %2959
  %2961 = vrot.lane.b32.xlu0 %v2356, 60
  %v2962 = vpop.permute.xlu0 %2961
  %2963 = vrot.lane.b32.xlu0 %v2357, 60
  %v2964 = vpop.permute.xlu0 %2963
  %2965 = vrot.lane.b32.xlu0 %v2358, 60
  %v2966 = vpop.permute.xlu0 %2965
  %2967 = vrot.lane.b32.xlu0 %v2359, 60
  %v2968 = vpop.permute.xlu0 %2967
  %2969 = vrot.lane.b32.xlu0 %v2360, 60
  %v2970 = vpop.permute.xlu0 %2969
  %2971 = vrot.lane.b32.xlu0 %v2361, 60
  %v2972 = vpop.permute.xlu0 %2971
  %2973 = vrot.lane.b32.xlu0 %v2362, 60
  %v2974 = vpop.permute.xlu0 %2973
  %2975 = vrot.lane.b32.xlu0 %v2363, 60
  %v2976 = vpop.permute.xlu0 %2975
  %2977 = vrot.lane.b32.xlu0 %v2364, 60
  %v2978 = vpop.permute.xlu0 %2977
  %2979 = vrot.lane.b32.xlu0 %v2365, 60
  %v2980 = vpop.permute.xlu0 %2979
  %2981 = vrot.lane.b32.xlu0 %v2366, 60
  %v2982 = vpop.permute.xlu0 %2981
  %2983 = vrot.lane.b32.xlu0 %v2367, 60
  %v2984 = vpop.permute.xlu0 %2983
  %2985 = vrot.lane.b32.xlu0 %v2368, 60
  %v2986 = vpop.permute.xlu0 %2985
  %2987 = vrot.lane.b32.xlu0 %v2369, 60
  %v2988 = vpop.permute.xlu0 %2987
  %2989 = vrot.lane.b32.xlu0 %v2370, 60
  %v2990 = vpop.permute.xlu0 %2989
  %2991 = vrot.lane.b32.xlu0 %v2371, 60
  %v2992 = vpop.permute.xlu0 %2991
  %3101 = vrot.lane.b32.xlu0 %v2280, 90
  %v3102 = vpop.permute.xlu0 %3101
  %3103 = vrot.lane.b32.xlu0 %v2281, 90
  %v3104 = vpop.permute.xlu0 %3103
  %3105 = vrot.lane.b32.xlu0 %v2282, 90
  %v3106 = vpop.permute.xlu0 %3105
  %3107 = vrot.lane.b32.xlu0 %v2283, 90
  %v3108 = vpop.permute.xlu0 %3107
  %3109 = vrot.lane.b32.xlu0 %v2284, 90
  %v3110 = vpop.permute.xlu0 %3109
  %3111 = vrot.lane.b32.xlu0 %v2285, 90
  %v3112 = vpop.permute.xlu0 %3111
  %3113 = vrot.lane.b32.xlu0 %v2286, 90
  %v3114 = vpop.permute.xlu0 %3113
  %3115 = vrot.lane.b32.xlu0 %v2287, 90
  %v3116 = vpop.permute.xlu0 %3115
  %3117 = vrot.lane.b32.xlu0 %v2288, 90
  %v3118 = vpop.permute.xlu0 %3117
  %3119 = vrot.lane.b32.xlu0 %v2289, 90
  %v3120 = vpop.permute.xlu0 %3119
  %3121 = vrot.lane.b32.xlu0 %v2290, 90
  %v3122 = vpop.permute.xlu0 %3121
  %3123 = vrot.lane.b32.xlu0 %v2291, 90
  %v3124 = vpop.permute.xlu0 %3123
  %3125 = vrot.lane.b32.xlu0 %v2292, 90
  %v3126 = vpop.permute.xlu0 %3125
  %3127 = vrot.lane.b32.xlu0 %v2293, 90
  %v3128 = vpop.permute.xlu0 %3127
  %3129 = vrot.lane.b32.xlu0 %v2294, 90
  %v3130 = vpop.permute.xlu0 %3129
  %3131 = vrot.lane.b32.xlu0 %v2295, 90
  %v3132 = vpop.permute.xlu0 %3131
  %3133 = vrot.lane.b32.xlu0 %v2296, 90
  %v3134 = vpop.permute.xlu0 %3133
  %3135 = vrot.lane.b32.xlu0 %v2297, 90
  %v3136 = vpop.permute.xlu0 %3135
  %3137 = vrot.lane.b32.xlu0 %v2298, 90
  %v3138 = vpop.permute.xlu0 %3137
  %3139 = vrot.lane.b32.xlu0 %v2299, 90
  %v3140 = vpop.permute.xlu0 %3139
  %3141 = vrot.lane.b32.xlu0 %v2300, 90
  %v3142 = vpop.permute.xlu0 %3141
  %3143 = vrot.lane.b32.xlu0 %v2301, 90
  %v3144 = vpop.permute.xlu0 %3143
  %3145 = vrot.lane.b32.xlu0 %v2302, 90
  %v3146 = vpop.permute.xlu0 %3145
  %3147 = vrot.lane.b32.xlu0 %v2303, 90
  %v3148 = vpop.permute.xlu0 %3147
  %3149 = vrot.lane.b32.xlu0 %v2304, 90
  %v3150 = vpop.permute.xlu0 %3149
  %3151 = vrot.lane.b32.xlu0 %v2305, 90
  %v3152 = vpop.permute.xlu0 %3151
  %3153 = vrot.lane.b32.xlu0 %v2306, 90
  %v3154 = vpop.permute.xlu0 %3153
  %3155 = vrot.lane.b32.xlu0 %v2307, 90
  %v3156 = vpop.permute.xlu0 %3155
  %3157 = vrot.lane.b32.xlu0 %v2308, 90
  %v3158 = vpop.permute.xlu0 %3157
  %3159 = vrot.lane.b32.xlu0 %v2309, 90
  %v3160 = vpop.permute.xlu0 %3159
  %3161 = vrot.lane.b32.xlu0 %v2310, 90
  %v3162 = vpop.permute.xlu0 %3161
  %3163 = vrot.lane.b32.xlu0 %v2311, 90
  %v3164 = vpop.permute.xlu0 %3163
  %3165 = vrot.lane.b32.xlu0 %v2312, 90
  %v3166 = vpop.permute.xlu0 %3165
  %3167 = vrot.lane.b32.xlu0 %v2313, 90
  %v3168 = vpop.permute.xlu0 %3167
  %3169 = vrot.lane.b32.xlu0 %v2314, 90
  %v3170 = vpop.permute.xlu0 %3169
  %3171 = vrot.lane.b32.xlu0 %v2315, 90
  %v3172 = vpop.permute.xlu0 %3171
  %3173 = vrot.lane.b32.xlu0 %v2316, 90
  %v3174 = vpop.permute.xlu0 %3173
  %3175 = vrot.lane.b32.xlu0 %v2317, 90
  %v3176 = vpop.permute.xlu0 %3175
  %3177 = vrot.lane.b32.xlu0 %v2318, 90
  %v3178 = vpop.permute.xlu0 %3177
  %3179 = vrot.lane.b32.xlu0 %v2319, 90
  %v3180 = vpop.permute.xlu0 %3179
  %3181 = vrot.lane.b32.xlu0 %v2320, 90
  %v3182 = vpop.permute.xlu0 %3181
  %3183 = vrot.lane.b32.xlu0 %v2321, 90
  %v3184 = vpop.permute.xlu0 %3183
  %3185 = vrot.lane.b32.xlu0 %v2322, 90
  %v3186 = vpop.permute.xlu0 %3185
  %3187 = vrot.lane.b32.xlu0 %v2323, 90
  %v3188 = vpop.permute.xlu0 %3187
  %3189 = vrot.lane.b32.xlu0 %v2324, 90
  %v3190 = vpop.permute.xlu0 %3189
  %3191 = vrot.lane.b32.xlu0 %v2325, 90
  %v3192 = vpop.permute.xlu0 %3191
  %3193 = vrot.lane.b32.xlu0 %v2326, 90
  %v3194 = vpop.permute.xlu0 %3193
  %3195 = vrot.lane.b32.xlu0 %v2327, 90
  %v3196 = vpop.permute.xlu0 %3195
  %3197 = vrot.lane.b32.xlu0 %v2328, 90
  %v3198 = vpop.permute.xlu0 %3197
  %3199 = vrot.lane.b32.xlu0 %v2329, 90
  %v3200 = vpop.permute.xlu0 %3199
  %3201 = vrot.lane.b32.xlu0 %v2330, 90
  %v3202 = vpop.permute.xlu0 %3201
  %3203 = vrot.lane.b32.xlu0 %v2331, 90
  %v3204 = vpop.permute.xlu0 %3203
  %3205 = vrot.lane.b32.xlu0 %v2332, 90
  %v3206 = vpop.permute.xlu0 %3205
  %3207 = vrot.lane.b32.xlu0 %v2333, 90
  %v3208 = vpop.permute.xlu0 %3207
  %3209 = vrot.lane.b32.xlu0 %v2334, 90
  %v3210 = vpop.permute.xlu0 %3209
  %3211 = vrot.lane.b32.xlu0 %v2335, 90
  %v3212 = vpop.permute.xlu0 %3211
  %3213 = vrot.lane.b32.xlu0 %v2336, 90
  %v3214 = vpop.permute.xlu0 %3213
  %3215 = vrot.lane.b32.xlu0 %v2337, 90
  %v3216 = vpop.permute.xlu0 %3215
  %3217 = vrot.lane.b32.xlu0 %v2338, 90
  %v3218 = vpop.permute.xlu0 %3217
  %3219 = vrot.lane.b32.xlu0 %v2339, 90
  %v3220 = vpop.permute.xlu0 %3219
  %3221 = vrot.lane.b32.xlu0 %v2340, 90
  %v3222 = vpop.permute.xlu0 %3221
  %3223 = vrot.lane.b32.xlu0 %v2341, 90
  %v3224 = vpop.permute.xlu0 %3223
  %3225 = vrot.lane.b32.xlu0 %v2342, 90
  %v3226 = vpop.permute.xlu0 %3225
  %3227 = vrot.lane.b32.xlu0 %v2343, 90
  %v3228 = vpop.permute.xlu0 %3227
  %3229 = vrot.lane.b32.xlu0 %v2344, 90
  %v3230 = vpop.permute.xlu0 %3229
  %3231 = vrot.lane.b32.xlu0 %v2345, 90
  %v3232 = vpop.permute.xlu0 %3231
  %3233 = vrot.lane.b32.xlu0 %v2346, 90
  %v3234 = vpop.permute.xlu0 %3233
  %3235 = vrot.lane.b32.xlu0 %v2347, 90
  %v3236 = vpop.permute.xlu0 %3235
  %3237 = vrot.lane.b32.xlu0 %v2348, 90
  %v3238 = vpop.permute.xlu0 %3237
  %3239 = vrot.lane.b32.xlu0 %v2349, 90
  %v3240 = vpop.permute.xlu0 %3239
  %3241 = vrot.lane.b32.xlu0 %v2350, 90
  %v3242 = vpop.permute.xlu0 %3241
  %3243 = vrot.lane.b32.xlu0 %v2351, 90
  %v3244 = vpop.permute.xlu0 %3243
  %3245 = vrot.lane.b32.xlu0 %v2352, 90
  %v3246 = vpop.permute.xlu0 %3245
  %3247 = vrot.lane.b32.xlu0 %v2353, 90
  %v3248 = vpop.permute.xlu0 %3247
  %3249 = vrot.lane.b32.xlu0 %v2354, 90
  %v3250 = vpop.permute.xlu0 %3249
  %3251 = vrot.lane.b32.xlu0 %v2355, 90
  %v3252 = vpop.permute.xlu0 %3251
  %3253 = vrot.lane.b32.xlu0 %v2356, 90
  %v3254 = vpop.permute.xlu0 %3253
  %3255 = vrot.lane.b32.xlu0 %v2357, 90
  %v3256 = vpop.permute.xlu0 %3255
  %3257 = vrot.lane.b32.xlu0 %v2358, 90
  %v3258 = vpop.permute.xlu0 %3257
  %3259 = vrot.lane.b32.xlu0 %v2359, 90
  %v3260 = vpop.permute.xlu0 %3259
  %3261 = vrot.lane.b32.xlu0 %v2360, 90
  %v3262 = vpop.permute.xlu0 %3261
  %3263 = vrot.lane.b32.xlu0 %v2361, 90
  %v3264 = vpop.permute.xlu0 %3263
  %3265 = vrot.lane.b32.xlu0 %v2362, 90
  %v3266 = vpop.permute.xlu0 %3265
  %3267 = vrot.lane.b32.xlu0 %v2363, 90
  %v3268 = vpop.permute.xlu0 %3267
  %3269 = vrot.lane.b32.xlu0 %v2364, 90
  %v3270 = vpop.permute.xlu0 %3269
  %3271 = vrot.lane.b32.xlu0 %v2365, 90
  %v3272 = vpop.permute.xlu0 %3271
  %3273 = vrot.lane.b32.xlu0 %v2366, 90
  %v3274 = vpop.permute.xlu0 %3273
  %3275 = vrot.lane.b32.xlu0 %v2367, 90
  %v3276 = vpop.permute.xlu0 %3275
  %3277 = vrot.lane.b32.xlu0 %v2368, 90
  %v3278 = vpop.permute.xlu0 %3277
  %3279 = vrot.lane.b32.xlu0 %v2369, 90
  %v3280 = vpop.permute.xlu0 %3279
  %3281 = vrot.lane.b32.xlu0 %v2370, 90
  %v3282 = vpop.permute.xlu0 %3281
  %3283 = vrot.lane.b32.xlu0 %v2371, 90
  %v3284 = vpop.permute.xlu0 %3283
  %3285 = vrot.lane.b32.xlu0 %v2372, 90
  %v3286 = vpop.permute.xlu0 %3285
  %3287 = vrot.lane.b32.xlu0 %v2373, 90
  %v3288 = vpop.permute.xlu0 %3287
  %3289 = vrot.lane.b32.xlu0 %v2374, 90
  %v3290 = vpop.permute.xlu0 %3289
  %3291 = vrot.lane.b32.xlu0 %v2375, 90
  %v3292 = vpop.permute.xlu0 %3291
  %3293 = vrot.lane.b32.xlu0 %v2376, 90
  %v3294 = vpop.permute.xlu0 %3293
  %3295 = vrot.lane.b32.xlu0 %v2377, 90
  %v3296 = vpop.permute.xlu0 %3295
  %3297 = vrot.lane.b32.xlu0 %v2378, 90
  %v3298 = vpop.permute.xlu0 %3297
  %3299 = vrot.lane.b32.xlu0 %v2379, 90
  %v3300 = vpop.permute.xlu0 %3299
  %3402 = vrot.lane.b32.xlu0 %v2281, 120
  %v3403 = vpop.permute.xlu0 %3402
  %3404 = vrot.lane.b32.xlu0 %v2282, 120
  %v3405 = vpop.permute.xlu0 %3404
  %3406 = vrot.lane.b32.xlu0 %v2283, 120
  %v3407 = vpop.permute.xlu0 %3406
  %3408 = vrot.lane.b32.xlu0 %v2284, 120
  %v3409 = vpop.permute.xlu0 %3408
  %3410 = vrot.lane.b32.xlu0 %v2285, 120
  %v3411 = vpop.permute.xlu0 %3410
  %3412 = vrot.lane.b32.xlu0 %v2286, 120
  %v3413 = vpop.permute.xlu0 %3412
  %3414 = vrot.lane.b32.xlu0 %v2287, 120
  %v3415 = vpop.permute.xlu0 %3414
  %3416 = vrot.lane.b32.xlu0 %v2288, 120
  %v3417 = vpop.permute.xlu0 %3416
  %3418 = vrot.lane.b32.xlu0 %v2289, 120
  %v3419 = vpop.permute.xlu0 %3418
  %3420 = vrot.lane.b32.xlu0 %v2290, 120
  %v3421 = vpop.permute.xlu0 %3420
  %3422 = vrot.lane.b32.xlu0 %v2291, 120
  %v3423 = vpop.permute.xlu0 %3422
  %3424 = vrot.lane.b32.xlu0 %v2292, 120
  %v3425 = vpop.permute.xlu0 %3424
  %3426 = vrot.lane.b32.xlu0 %v2293, 120
  %v3427 = vpop.permute.xlu0 %3426
  %3428 = vrot.lane.b32.xlu0 %v2294, 120
  %v3429 = vpop.permute.xlu0 %3428
  %3430 = vrot.lane.b32.xlu0 %v2295, 120
  %v3431 = vpop.permute.xlu0 %3430
  %3432 = vrot.lane.b32.xlu0 %v2296, 120
  %v3433 = vpop.permute.xlu0 %3432
  %3434 = vrot.lane.b32.xlu0 %v2297, 120
  %v3435 = vpop.permute.xlu0 %3434
  %3436 = vrot.lane.b32.xlu0 %v2298, 120
  %v3437 = vpop.permute.xlu0 %3436
  %3438 = vrot.lane.b32.xlu0 %v2299, 120
  %v3439 = vpop.permute.xlu0 %3438
  %3440 = vrot.lane.b32.xlu0 %v2300, 120
  %v3441 = vpop.permute.xlu0 %3440
  %3442 = vrot.lane.b32.xlu0 %v2301, 120
  %v3443 = vpop.permute.xlu0 %3442
  %3444 = vrot.lane.b32.xlu0 %v2302, 120
  %v3445 = vpop.permute.xlu0 %3444
  %3446 = vrot.lane.b32.xlu0 %v2303, 120
  %v3447 = vpop.permute.xlu0 %3446
  %3448 = vrot.lane.b32.xlu0 %v2304, 120
  %v3449 = vpop.permute.xlu0 %3448
  %3450 = vrot.lane.b32.xlu0 %v2305, 120
  %v3451 = vpop.permute.xlu0 %3450
  %3452 = vrot.lane.b32.xlu0 %v2306, 120
  %v3453 = vpop.permute.xlu0 %3452
  %3454 = vrot.lane.b32.xlu0 %v2307, 120
  %v3455 = vpop.permute.xlu0 %3454
  %3456 = vrot.lane.b32.xlu0 %v2308, 120
  %v3457 = vpop.permute.xlu0 %3456
  %3458 = vrot.lane.b32.xlu0 %v2309, 120
  %v3459 = vpop.permute.xlu0 %3458
  %3460 = vrot.lane.b32.xlu0 %v2310, 120
  %v3461 = vpop.permute.xlu0 %3460
  %3462 = vrot.lane.b32.xlu0 %v2311, 120
  %v3463 = vpop.permute.xlu0 %3462
  %3464 = vrot.lane.b32.xlu0 %v2312, 120
  %v3465 = vpop.permute.xlu0 %3464
  %3466 = vrot.lane.b32.xlu0 %v2313, 120
  %v3467 = vpop.permute.xlu0 %3466
  %3468 = vrot.lane.b32.xlu0 %v2314, 120
  %v3469 = vpop.permute.xlu0 %3468
  %3470 = vrot.lane.b32.xlu0 %v2315, 120
  %v3471 = vpop.permute.xlu0 %3470
  %3472 = vrot.lane.b32.xlu0 %v2316, 120
  %v3473 = vpop.permute.xlu0 %3472
  %3474 = vrot.lane.b32.xlu0 %v2317, 120
  %v3475 = vpop.permute.xlu0 %3474
  %3476 = vrot.lane.b32.xlu0 %v2318, 120
  %v3477 = vpop.permute.xlu0 %3476
  %3478 = vrot.lane.b32.xlu0 %v2319, 120
  %v3479 = vpop.permute.xlu0 %3478
  %3480 = vrot.lane.b32.xlu0 %v2320, 120
  %v3481 = vpop.permute.xlu0 %3480
  %3482 = vrot.lane.b32.xlu0 %v2321, 120
  %v3483 = vpop.permute.xlu0 %3482
  %3484 = vrot.lane.b32.xlu0 %v2322, 120
  %v3485 = vpop.permute.xlu0 %3484
  %3486 = vrot.lane.b32.xlu0 %v2323, 120
  %v3487 = vpop.permute.xlu0 %3486
  %3488 = vrot.lane.b32.xlu0 %v2324, 120
  %v3489 = vpop.permute.xlu0 %3488
  %3490 = vrot.lane.b32.xlu0 %v2325, 120
  %v3491 = vpop.permute.xlu0 %3490
  %3492 = vrot.lane.b32.xlu0 %v2326, 120
  %v3493 = vpop.permute.xlu0 %3492
  %3494 = vrot.lane.b32.xlu0 %v2327, 120
  %v3495 = vpop.permute.xlu0 %3494
  %3496 = vrot.lane.b32.xlu0 %v2328, 120
  %v3497 = vpop.permute.xlu0 %3496
  %3498 = vrot.lane.b32.xlu0 %v2329, 120
  %v3499 = vpop.permute.xlu0 %3498
  %3500 = vrot.lane.b32.xlu0 %v2330, 120
  %v3501 = vpop.permute.xlu0 %3500
  %3502 = vrot.lane.b32.xlu0 %v2331, 120
  %v3503 = vpop.permute.xlu0 %3502
  %3504 = vrot.lane.b32.xlu0 %v2332, 120
  %v3505 = vpop.permute.xlu0 %3504
  %3506 = vrot.lane.b32.xlu0 %v2333, 120
  %v3507 = vpop.permute.xlu0 %3506
  %3508 = vrot.lane.b32.xlu0 %v2334, 120
  %v3509 = vpop.permute.xlu0 %3508
  %3510 = vrot.lane.b32.xlu0 %v2335, 120
  %v3511 = vpop.permute.xlu0 %3510
  %3512 = vrot.lane.b32.xlu0 %v2336, 120
  %v3513 = vpop.permute.xlu0 %3512
  %3514 = vrot.lane.b32.xlu0 %v2337, 120
  %v3515 = vpop.permute.xlu0 %3514
  %3516 = vrot.lane.b32.xlu0 %v2338, 120
  %v3517 = vpop.permute.xlu0 %3516
  %3518 = vrot.lane.b32.xlu0 %v2339, 120
  %v3519 = vpop.permute.xlu0 %3518
  %3520 = vrot.lane.b32.xlu0 %v2340, 120
  %v3521 = vpop.permute.xlu0 %3520
  %3522 = vrot.lane.b32.xlu0 %v2341, 120
  %v3523 = vpop.permute.xlu0 %3522
  %3524 = vrot.lane.b32.xlu0 %v2342, 120
  %v3525 = vpop.permute.xlu0 %3524
  %3526 = vrot.lane.b32.xlu0 %v2343, 120
  %v3527 = vpop.permute.xlu0 %3526
  %3528 = vrot.lane.b32.xlu0 %v2344, 120
  %v3529 = vpop.permute.xlu0 %3528
  %3530 = vrot.lane.b32.xlu0 %v2345, 120
  %v3531 = vpop.permute.xlu0 %3530
  %3532 = vrot.lane.b32.xlu0 %v2346, 120
  %v3533 = vpop.permute.xlu0 %3532
  %3534 = vrot.lane.b32.xlu0 %v2347, 120
  %v3535 = vpop.permute.xlu0 %3534
  %3536 = vrot.lane.b32.xlu0 %v2348, 120
  %v3537 = vpop.permute.xlu0 %3536
  %3538 = vrot.lane.b32.xlu0 %v2349, 120
  %v3539 = vpop.permute.xlu0 %3538
  %3540 = vrot.lane.b32.xlu0 %v2350, 120
  %v3541 = vpop.permute.xlu0 %3540
  %3542 = vrot.lane.b32.xlu0 %v2351, 120
  %v3543 = vpop.permute.xlu0 %3542
  %3544 = vrot.lane.b32.xlu0 %v2352, 120
  %v3545 = vpop.permute.xlu0 %3544
  %3546 = vrot.lane.b32.xlu0 %v2353, 120
  %v3547 = vpop.permute.xlu0 %3546
  %3548 = vrot.lane.b32.xlu0 %v2354, 120
  %v3549 = vpop.permute.xlu0 %3548
  %3550 = vrot.lane.b32.xlu0 %v2355, 120
  %v3551 = vpop.permute.xlu0 %3550
  %3552 = vrot.lane.b32.xlu0 %v2356, 120
  %v3553 = vpop.permute.xlu0 %3552
  %3554 = vrot.lane.b32.xlu0 %v2357, 120
  %v3555 = vpop.permute.xlu0 %3554
  %3556 = vrot.lane.b32.xlu0 %v2358, 120
  %v3557 = vpop.permute.xlu0 %3556
  %3558 = vrot.lane.b32.xlu0 %v2359, 120
  %v3559 = vpop.permute.xlu0 %3558
  %3560 = vrot.lane.b32.xlu0 %v2360, 120
  %v3561 = vpop.permute.xlu0 %3560
  %3562 = vrot.lane.b32.xlu0 %v2361, 120
  %v3563 = vpop.permute.xlu0 %3562
  %3564 = vrot.lane.b32.xlu0 %v2362, 120
  %v3565 = vpop.permute.xlu0 %3564
  %3566 = vrot.lane.b32.xlu0 %v2363, 120
  %v3567 = vpop.permute.xlu0 %3566
  %3568 = vrot.lane.b32.xlu0 %v2364, 120
  %v3569 = vpop.permute.xlu0 %3568
  %3570 = vrot.lane.b32.xlu0 %v2365, 120
  %v3571 = vpop.permute.xlu0 %3570
  %3572 = vrot.lane.b32.xlu0 %v2366, 120
  %v3573 = vpop.permute.xlu0 %3572
  %3574 = vrot.lane.b32.xlu0 %v2367, 120
  %v3575 = vpop.permute.xlu0 %3574
  %3576 = vrot.lane.b32.xlu0 %v2368, 120
  %v3577 = vpop.permute.xlu0 %3576
  %3578 = vrot.lane.b32.xlu0 %v2369, 120
  %v3579 = vpop.permute.xlu0 %3578
  %3580 = vrot.lane.b32.xlu0 %v2370, 120
  %v3581 = vpop.permute.xlu0 %3580
  %3582 = vrot.lane.b32.xlu0 %v2371, 120
  %v3583 = vpop.permute.xlu0 %3582
  %3584 = vrot.lane.b32.xlu0 %v2372, 120
  %v3585 = vpop.permute.xlu0 %3584
  %3586 = vrot.lane.b32.xlu0 %v2373, 120
  %v3587 = vpop.permute.xlu0 %3586
  %3588 = vrot.lane.b32.xlu0 %v2374, 120
  %v3589 = vpop.permute.xlu0 %3588
  %3590 = vrot.lane.b32.xlu0 %v2375, 120
  %v3591 = vpop.permute.xlu0 %3590
  %3592 = vrot.lane.b32.xlu0 %v2376, 120
  %v3593 = vpop.permute.xlu0 %3592
  %3594 = vrot.lane.b32.xlu0 %v2377, 120
  %v3595 = vpop.permute.xlu0 %3594
  %3596 = vrot.lane.b32.xlu0 %v2378, 120
  %v3597 = vpop.permute.xlu0 %3596
  %3598 = vrot.lane.b32.xlu0 %v2379, 120
  %v3599 = vpop.permute.xlu0 %3598
  %3600 = vrot.lane.b32.xlu0 %v2380, 120
  %v3601 = vpop.permute.xlu0 %3600
  %3703 = vrot.lane.b32.xlu0 %v2282, 22
  %v3704 = vpop.permute.xlu0 %3703
  %3705 = vrot.lane.b32.xlu0 %v2283, 22
  %v3706 = vpop.permute.xlu0 %3705
  %3707 = vrot.lane.b32.xlu0 %v2284, 22
  %v3708 = vpop.permute.xlu0 %3707
  %3709 = vrot.lane.b32.xlu0 %v2285, 22
  %v3710 = vpop.permute.xlu0 %3709
  %3711 = vrot.lane.b32.xlu0 %v2286, 22
  %v3712 = vpop.permute.xlu0 %3711
  %3713 = vrot.lane.b32.xlu0 %v2287, 22
  %v3714 = vpop.permute.xlu0 %3713
  %3715 = vrot.lane.b32.xlu0 %v2288, 22
  %v3716 = vpop.permute.xlu0 %3715
  %3717 = vrot.lane.b32.xlu0 %v2289, 22
  %v3718 = vpop.permute.xlu0 %3717
  %3719 = vrot.lane.b32.xlu0 %v2290, 22
  %v3720 = vpop.permute.xlu0 %3719
  %3721 = vrot.lane.b32.xlu0 %v2291, 22
  %v3722 = vpop.permute.xlu0 %3721
  %3723 = vrot.lane.b32.xlu0 %v2292, 22
  %v3724 = vpop.permute.xlu0 %3723
  %3725 = vrot.lane.b32.xlu0 %v2293, 22
  %v3726 = vpop.permute.xlu0 %3725
  %3727 = vrot.lane.b32.xlu0 %v2294, 22
  %v3728 = vpop.permute.xlu0 %3727
  %3729 = vrot.lane.b32.xlu0 %v2295, 22
  %v3730 = vpop.permute.xlu0 %3729
  %3731 = vrot.lane.b32.xlu0 %v2296, 22
  %v3732 = vpop.permute.xlu0 %3731
  %3733 = vrot.lane.b32.xlu0 %v2297, 22
  %v3734 = vpop.permute.xlu0 %3733
  %3735 = vrot.lane.b32.xlu0 %v2298, 22
  %v3736 = vpop.permute.xlu0 %3735
  %3737 = vrot.lane.b32.xlu0 %v2299, 22
  %v3738 = vpop.permute.xlu0 %3737
  %3739 = vrot.lane.b32.xlu0 %v2300, 22
  %v3740 = vpop.permute.xlu0 %3739
  %3741 = vrot.lane.b32.xlu0 %v2301, 22
  %v3742 = vpop.permute.xlu0 %3741
  %3743 = vrot.lane.b32.xlu0 %v2302, 22
  %v3744 = vpop.permute.xlu0 %3743
  %3745 = vrot.lane.b32.xlu0 %v2303, 22
  %v3746 = vpop.permute.xlu0 %3745
  %3747 = vrot.lane.b32.xlu0 %v2304, 22
  %v3748 = vpop.permute.xlu0 %3747
  %3749 = vrot.lane.b32.xlu0 %v2305, 22
  %v3750 = vpop.permute.xlu0 %3749
  %3751 = vrot.lane.b32.xlu0 %v2306, 22
  %v3752 = vpop.permute.xlu0 %3751
  %3753 = vrot.lane.b32.xlu0 %v2307, 22
  %v3754 = vpop.permute.xlu0 %3753
  %3755 = vrot.lane.b32.xlu0 %v2308, 22
  %v3756 = vpop.permute.xlu0 %3755
  %3757 = vrot.lane.b32.xlu0 %v2309, 22
  %v3758 = vpop.permute.xlu0 %3757
  %3759 = vrot.lane.b32.xlu0 %v2310, 22
  %v3760 = vpop.permute.xlu0 %3759
  %3761 = vrot.lane.b32.xlu0 %v2311, 22
  %v3762 = vpop.permute.xlu0 %3761
  %3763 = vrot.lane.b32.xlu0 %v2312, 22
  %v3764 = vpop.permute.xlu0 %3763
  %3765 = vrot.lane.b32.xlu0 %v2313, 22
  %v3766 = vpop.permute.xlu0 %3765
  %3767 = vrot.lane.b32.xlu0 %v2314, 22
  %v3768 = vpop.permute.xlu0 %3767
  %3769 = vrot.lane.b32.xlu0 %v2315, 22
  %v3770 = vpop.permute.xlu0 %3769
  %3771 = vrot.lane.b32.xlu0 %v2316, 22
  %v3772 = vpop.permute.xlu0 %3771
  %3773 = vrot.lane.b32.xlu0 %v2317, 22
  %v3774 = vpop.permute.xlu0 %3773
  %3775 = vrot.lane.b32.xlu0 %v2318, 22
  %v3776 = vpop.permute.xlu0 %3775
  %3777 = vrot.lane.b32.xlu0 %v2319, 22
  %v3778 = vpop.permute.xlu0 %3777
  %3779 = vrot.lane.b32.xlu0 %v2320, 22
  %v3780 = vpop.permute.xlu0 %3779
  %3781 = vrot.lane.b32.xlu0 %v2321, 22
  %v3782 = vpop.permute.xlu0 %3781
  %3783 = vrot.lane.b32.xlu0 %v2322, 22
  %v3784 = vpop.permute.xlu0 %3783
  %3785 = vrot.lane.b32.xlu0 %v2323, 22
  %v3786 = vpop.permute.xlu0 %3785
  %3787 = vrot.lane.b32.xlu0 %v2324, 22
  %v3788 = vpop.permute.xlu0 %3787
  %3789 = vrot.lane.b32.xlu0 %v2325, 22
  %v3790 = vpop.permute.xlu0 %3789
  %3791 = vrot.lane.b32.xlu0 %v2326, 22
  %v3792 = vpop.permute.xlu0 %3791
  %3793 = vrot.lane.b32.xlu0 %v2327, 22
  %v3794 = vpop.permute.xlu0 %3793
  %3795 = vrot.lane.b32.xlu0 %v2328, 22
  %v3796 = vpop.permute.xlu0 %3795
  %3797 = vrot.lane.b32.xlu0 %v2329, 22
  %v3798 = vpop.permute.xlu0 %3797
  %3799 = vrot.lane.b32.xlu0 %v2330, 22
  %v3800 = vpop.permute.xlu0 %3799
  %3801 = vrot.lane.b32.xlu0 %v2331, 22
  %v3802 = vpop.permute.xlu0 %3801
  %3803 = vrot.lane.b32.xlu0 %v2332, 22
  %v3804 = vpop.permute.xlu0 %3803
  %3805 = vrot.lane.b32.xlu0 %v2333, 22
  %v3806 = vpop.permute.xlu0 %3805
  %3807 = vrot.lane.b32.xlu0 %v2334, 22
  %v3808 = vpop.permute.xlu0 %3807
  %3809 = vrot.lane.b32.xlu0 %v2335, 22
  %v3810 = vpop.permute.xlu0 %3809
  %3811 = vrot.lane.b32.xlu0 %v2336, 22
  %v3812 = vpop.permute.xlu0 %3811
  %3813 = vrot.lane.b32.xlu0 %v2337, 22
  %v3814 = vpop.permute.xlu0 %3813
  %3815 = vrot.lane.b32.xlu0 %v2338, 22
  %v3816 = vpop.permute.xlu0 %3815
  %3817 = vrot.lane.b32.xlu0 %v2339, 22
  %v3818 = vpop.permute.xlu0 %3817
  %3819 = vrot.lane.b32.xlu0 %v2340, 22
  %v3820 = vpop.permute.xlu0 %3819
  %3821 = vrot.lane.b32.xlu0 %v2341, 22
  %v3822 = vpop.permute.xlu0 %3821
  %3823 = vrot.lane.b32.xlu0 %v2342, 22
  %v3824 = vpop.permute.xlu0 %3823
  %3825 = vrot.lane.b32.xlu0 %v2343, 22
  %v3826 = vpop.permute.xlu0 %3825
  %3827 = vrot.lane.b32.xlu0 %v2344, 22
  %v3828 = vpop.permute.xlu0 %3827
  %3829 = vrot.lane.b32.xlu0 %v2345, 22
  %v3830 = vpop.permute.xlu0 %3829
  %3831 = vrot.lane.b32.xlu0 %v2346, 22
  %v3832 = vpop.permute.xlu0 %3831
  %3833 = vrot.lane.b32.xlu0 %v2347, 22
  %v3834 = vpop.permute.xlu0 %3833
  %3835 = vrot.lane.b32.xlu0 %v2348, 22
  %v3836 = vpop.permute.xlu0 %3835
  %3837 = vrot.lane.b32.xlu0 %v2349, 22
  %v3838 = vpop.permute.xlu0 %3837
  %3839 = vrot.lane.b32.xlu0 %v2350, 22
  %v3840 = vpop.permute.xlu0 %3839
  %3841 = vrot.lane.b32.xlu0 %v2351, 22
  %v3842 = vpop.permute.xlu0 %3841
  %3843 = vrot.lane.b32.xlu0 %v2352, 22
  %v3844 = vpop.permute.xlu0 %3843
  %3845 = vrot.lane.b32.xlu0 %v2353, 22
  %v3846 = vpop.permute.xlu0 %3845
  %3847 = vrot.lane.b32.xlu0 %v2354, 22
  %v3848 = vpop.permute.xlu0 %3847
  %3849 = vrot.lane.b32.xlu0 %v2355, 22
  %v3850 = vpop.permute.xlu0 %3849
  %3851 = vrot.lane.b32.xlu0 %v2356, 22
  %v3852 = vpop.permute.xlu0 %3851
  %3853 = vrot.lane.b32.xlu0 %v2357, 22
  %v3854 = vpop.permute.xlu0 %3853
  %3855 = vrot.lane.b32.xlu0 %v2358, 22
  %v3856 = vpop.permute.xlu0 %3855
  %3857 = vrot.lane.b32.xlu0 %v2359, 22
  %v3858 = vpop.permute.xlu0 %3857
  %3859 = vrot.lane.b32.xlu0 %v2360, 22
  %v3860 = vpop.permute.xlu0 %3859
  %3861 = vrot.lane.b32.xlu0 %v2361, 22
  %v3862 = vpop.permute.xlu0 %3861
  %3863 = vrot.lane.b32.xlu0 %v2362, 22
  %v3864 = vpop.permute.xlu0 %3863
  %3865 = vrot.lane.b32.xlu0 %v2363, 22
  %v3866 = vpop.permute.xlu0 %3865
  %3867 = vrot.lane.b32.xlu0 %v2364, 22
  %v3868 = vpop.permute.xlu0 %3867
  %3869 = vrot.lane.b32.xlu0 %v2365, 22
  %v3870 = vpop.permute.xlu0 %3869
  %3871 = vrot.lane.b32.xlu0 %v2366, 22
  %v3872 = vpop.permute.xlu0 %3871
  %3873 = vrot.lane.b32.xlu0 %v2367, 22
  %v3874 = vpop.permute.xlu0 %3873
  %3875 = vrot.lane.b32.xlu0 %v2368, 22
  %v3876 = vpop.permute.xlu0 %3875
  %3877 = vrot.lane.b32.xlu0 %v2369, 22
  %v3878 = vpop.permute.xlu0 %3877
  %3879 = vrot.lane.b32.xlu0 %v2370, 22
  %v3880 = vpop.permute.xlu0 %3879
  %3881 = vrot.lane.b32.xlu0 %v2371, 22
  %v3882 = vpop.permute.xlu0 %3881
  %3883 = vrot.lane.b32.xlu0 %v2372, 22
  %v3884 = vpop.permute.xlu0 %3883
  %3885 = vrot.lane.b32.xlu0 %v2373, 22
  %v3886 = vpop.permute.xlu0 %3885
  %3887 = vrot.lane.b32.xlu0 %v2374, 22
  %v3888 = vpop.permute.xlu0 %3887
  %3889 = vrot.lane.b32.xlu0 %v2375, 22
  %v3890 = vpop.permute.xlu0 %3889
  %3891 = vrot.lane.b32.xlu0 %v2376, 22
  %v3892 = vpop.permute.xlu0 %3891
  %3893 = vrot.lane.b32.xlu0 %v2377, 22
  %v3894 = vpop.permute.xlu0 %3893
  %3895 = vrot.lane.b32.xlu0 %v2378, 22
  %v3896 = vpop.permute.xlu0 %3895
  %3897 = vrot.lane.b32.xlu0 %v2379, 22
  %v3898 = vpop.permute.xlu0 %3897
  %3899 = vrot.lane.b32.xlu0 %v2380, 22
  %v3900 = vpop.permute.xlu0 %3899
  %3901 = vrot.lane.b32.xlu0 %v2381, 22
  %v3902 = vpop.permute.xlu0 %3901
  %4011 = vrot.lane.b32.xlu0 %v2290, 52
  %v4012 = vpop.permute.xlu0 %4011
  %4013 = vrot.lane.b32.xlu0 %v2291, 52
  %v4014 = vpop.permute.xlu0 %4013
  %4015 = vrot.lane.b32.xlu0 %v2292, 52
  %v4016 = vpop.permute.xlu0 %4015
  %4017 = vrot.lane.b32.xlu0 %v2293, 52
  %v4018 = vpop.permute.xlu0 %4017
  %4019 = vrot.lane.b32.xlu0 %v2294, 52
  %v4020 = vpop.permute.xlu0 %4019
  %4021 = vrot.lane.b32.xlu0 %v2295, 52
  %v4022 = vpop.permute.xlu0 %4021
  %4023 = vrot.lane.b32.xlu0 %v2296, 52
  %v4024 = vpop.permute.xlu0 %4023
  %4025 = vrot.lane.b32.xlu0 %v2297, 52
  %v4026 = vpop.permute.xlu0 %4025
  %4027 = vrot.lane.b32.xlu0 %v2298, 52
  %v4028 = vpop.permute.xlu0 %4027
  %4029 = vrot.lane.b32.xlu0 %v2299, 52
  %v4030 = vpop.permute.xlu0 %4029
  %4031 = vrot.lane.b32.xlu0 %v2300, 52
  %v4032 = vpop.permute.xlu0 %4031
  %4033 = vrot.lane.b32.xlu0 %v2301, 52
  %v4034 = vpop.permute.xlu0 %4033
  %4035 = vrot.lane.b32.xlu0 %v2302, 52
  %v4036 = vpop.permute.xlu0 %4035
  %4037 = vrot.lane.b32.xlu0 %v2303, 52
  %v4038 = vpop.permute.xlu0 %4037
  %4039 = vrot.lane.b32.xlu0 %v2304, 52
  %v4040 = vpop.permute.xlu0 %4039
  %4041 = vrot.lane.b32.xlu0 %v2305, 52
  %v4042 = vpop.permute.xlu0 %4041
  %4043 = vrot.lane.b32.xlu0 %v2306, 52
  %v4044 = vpop.permute.xlu0 %4043
  %4045 = vrot.lane.b32.xlu0 %v2307, 52
  %v4046 = vpop.permute.xlu0 %4045
  %4047 = vrot.lane.b32.xlu0 %v2308, 52
  %v4048 = vpop.permute.xlu0 %4047
  %4049 = vrot.lane.b32.xlu0 %v2309, 52
  %v4050 = vpop.permute.xlu0 %4049
  %4051 = vrot.lane.b32.xlu0 %v2310, 52
  %v4052 = vpop.permute.xlu0 %4051
  %4053 = vrot.lane.b32.xlu0 %v2311, 52
  %v4054 = vpop.permute.xlu0 %4053
  %4055 = vrot.lane.b32.xlu0 %v2312, 52
  %v4056 = vpop.permute.xlu0 %4055
  %4057 = vrot.lane.b32.xlu0 %v2313, 52
  %v4058 = vpop.permute.xlu0 %4057
  %4059 = vrot.lane.b32.xlu0 %v2314, 52
  %v4060 = vpop.permute.xlu0 %4059
  %4061 = vrot.lane.b32.xlu0 %v2315, 52
  %v4062 = vpop.permute.xlu0 %4061
  %4063 = vrot.lane.b32.xlu0 %v2316, 52
  %v4064 = vpop.permute.xlu0 %4063
  %4065 = vrot.lane.b32.xlu0 %v2317, 52
  %v4066 = vpop.permute.xlu0 %4065
  %4067 = vrot.lane.b32.xlu0 %v2318, 52
  %v4068 = vpop.permute.xlu0 %4067
  %4069 = vrot.lane.b32.xlu0 %v2319, 52
  %v4070 = vpop.permute.xlu0 %4069
  %4071 = vrot.lane.b32.xlu0 %v2320, 52
  %v4072 = vpop.permute.xlu0 %4071
  %4073 = vrot.lane.b32.xlu0 %v2321, 52
  %v4074 = vpop.permute.xlu0 %4073
  %4075 = vrot.lane.b32.xlu0 %v2322, 52
  %v4076 = vpop.permute.xlu0 %4075
  %4077 = vrot.lane.b32.xlu0 %v2323, 52
  %v4078 = vpop.permute.xlu0 %4077
  %4079 = vrot.lane.b32.xlu0 %v2324, 52
  %v4080 = vpop.permute.xlu0 %4079
  %4081 = vrot.lane.b32.xlu0 %v2325, 52
  %v4082 = vpop.permute.xlu0 %4081
  %4083 = vrot.lane.b32.xlu0 %v2326, 52
  %v4084 = vpop.permute.xlu0 %4083
  %4085 = vrot.lane.b32.xlu0 %v2327, 52
  %v4086 = vpop.permute.xlu0 %4085
  %4087 = vrot.lane.b32.xlu0 %v2328, 52
  %v4088 = vpop.permute.xlu0 %4087
  %4089 = vrot.lane.b32.xlu0 %v2329, 52
  %v4090 = vpop.permute.xlu0 %4089
  %4091 = vrot.lane.b32.xlu0 %v2330, 52
  %v4092 = vpop.permute.xlu0 %4091
  %4093 = vrot.lane.b32.xlu0 %v2331, 52
  %v4094 = vpop.permute.xlu0 %4093
  %4095 = vrot.lane.b32.xlu0 %v2332, 52
  %v4096 = vpop.permute.xlu0 %4095
  %4097 = vrot.lane.b32.xlu0 %v2333, 52
  %v4098 = vpop.permute.xlu0 %4097
  %4099 = vrot.lane.b32.xlu0 %v2334, 52
  %v4100 = vpop.permute.xlu0 %4099
  %4101 = vrot.lane.b32.xlu0 %v2335, 52
  %v4102 = vpop.permute.xlu0 %4101
  %4103 = vrot.lane.b32.xlu0 %v2336, 52
  %v4104 = vpop.permute.xlu0 %4103
  %4105 = vrot.lane.b32.xlu0 %v2337, 52
  %v4106 = vpop.permute.xlu0 %4105
  %4107 = vrot.lane.b32.xlu0 %v2338, 52
  %v4108 = vpop.permute.xlu0 %4107
  %4109 = vrot.lane.b32.xlu0 %v2339, 52
  %v4110 = vpop.permute.xlu0 %4109
  %4111 = vrot.lane.b32.xlu0 %v2340, 52
  %v4112 = vpop.permute.xlu0 %4111
  %4113 = vrot.lane.b32.xlu0 %v2341, 52
  %v4114 = vpop.permute.xlu0 %4113
  %4115 = vrot.lane.b32.xlu0 %v2342, 52
  %v4116 = vpop.permute.xlu0 %4115
  %4117 = vrot.lane.b32.xlu0 %v2343, 52
  %v4118 = vpop.permute.xlu0 %4117
  %4119 = vrot.lane.b32.xlu0 %v2344, 52
  %v4120 = vpop.permute.xlu0 %4119
  %4121 = vrot.lane.b32.xlu0 %v2345, 52
  %v4122 = vpop.permute.xlu0 %4121
  %4123 = vrot.lane.b32.xlu0 %v2346, 52
  %v4124 = vpop.permute.xlu0 %4123
  %4125 = vrot.lane.b32.xlu0 %v2347, 52
  %v4126 = vpop.permute.xlu0 %4125
  %4127 = vrot.lane.b32.xlu0 %v2348, 52
  %v4128 = vpop.permute.xlu0 %4127
  %4129 = vrot.lane.b32.xlu0 %v2349, 52
  %v4130 = vpop.permute.xlu0 %4129
  %4131 = vrot.lane.b32.xlu0 %v2350, 52
  %v4132 = vpop.permute.xlu0 %4131
  %4133 = vrot.lane.b32.xlu0 %v2351, 52
  %v4134 = vpop.permute.xlu0 %4133
  %4135 = vrot.lane.b32.xlu0 %v2352, 52
  %v4136 = vpop.permute.xlu0 %4135
  %4137 = vrot.lane.b32.xlu0 %v2353, 52
  %v4138 = vpop.permute.xlu0 %4137
  %4139 = vrot.lane.b32.xlu0 %v2354, 52
  %v4140 = vpop.permute.xlu0 %4139
  %4141 = vrot.lane.b32.xlu0 %v2355, 52
  %v4142 = vpop.permute.xlu0 %4141
  %4143 = vrot.lane.b32.xlu0 %v2356, 52
  %v4144 = vpop.permute.xlu0 %4143
  %4145 = vrot.lane.b32.xlu0 %v2357, 52
  %v4146 = vpop.permute.xlu0 %4145
  %4147 = vrot.lane.b32.xlu0 %v2358, 52
  %v4148 = vpop.permute.xlu0 %4147
  %4149 = vrot.lane.b32.xlu0 %v2359, 52
  %v4150 = vpop.permute.xlu0 %4149
  %4151 = vrot.lane.b32.xlu0 %v2360, 52
  %v4152 = vpop.permute.xlu0 %4151
  %4153 = vrot.lane.b32.xlu0 %v2361, 52
  %v4154 = vpop.permute.xlu0 %4153
  %4155 = vrot.lane.b32.xlu0 %v2362, 52
  %v4156 = vpop.permute.xlu0 %4155
  %4157 = vrot.lane.b32.xlu0 %v2363, 52
  %v4158 = vpop.permute.xlu0 %4157
  %4159 = vrot.lane.b32.xlu0 %v2364, 52
  %v4160 = vpop.permute.xlu0 %4159
  %4161 = vrot.lane.b32.xlu0 %v2365, 52
  %v4162 = vpop.permute.xlu0 %4161
  %4163 = vrot.lane.b32.xlu0 %v2366, 52
  %v4164 = vpop.permute.xlu0 %4163
  %4165 = vrot.lane.b32.xlu0 %v2367, 52
  %v4166 = vpop.permute.xlu0 %4165
  %4167 = vrot.lane.b32.xlu0 %v2368, 52
  %v4168 = vpop.permute.xlu0 %4167
  %4169 = vrot.lane.b32.xlu0 %v2369, 52
  %v4170 = vpop.permute.xlu0 %4169
  %4171 = vrot.lane.b32.xlu0 %v2370, 52
  %v4172 = vpop.permute.xlu0 %4171
  %4173 = vrot.lane.b32.xlu0 %v2371, 52
  %v4174 = vpop.permute.xlu0 %4173
  %4175 = vrot.lane.b32.xlu0 %v2372, 52
  %v4176 = vpop.permute.xlu0 %4175
  %4177 = vrot.lane.b32.xlu0 %v2373, 52
  %v4178 = vpop.permute.xlu0 %4177
  %4179 = vrot.lane.b32.xlu0 %v2374, 52
  %v4180 = vpop.permute.xlu0 %4179
  %4181 = vrot.lane.b32.xlu0 %v2375, 52
  %v4182 = vpop.permute.xlu0 %4181
  %4183 = vrot.lane.b32.xlu0 %v2376, 52
  %v4184 = vpop.permute.xlu0 %4183
  %4185 = vrot.lane.b32.xlu0 %v2377, 52
  %v4186 = vpop.permute.xlu0 %4185
  %4187 = vrot.lane.b32.xlu0 %v2378, 52
  %v4188 = vpop.permute.xlu0 %4187
  %4189 = vrot.lane.b32.xlu0 %v2379, 52
  %v4190 = vpop.permute.xlu0 %4189
  %4191 = vrot.lane.b32.xlu0 %v2380, 52
  %v4192 = vpop.permute.xlu0 %4191
  %4193 = vrot.lane.b32.xlu0 %v2381, 52
  %v4194 = vpop.permute.xlu0 %4193
  %4195 = vrot.lane.b32.xlu0 %v2382, 52
  %v4196 = vpop.permute.xlu0 %4195
  %4197 = vrot.lane.b32.xlu0 %v2383, 52
  %v4198 = vpop.permute.xlu0 %4197
  %4199 = vrot.lane.b32.xlu0 %v2384, 52
  %v4200 = vpop.permute.xlu0 %4199
  %4201 = vrot.lane.b32.xlu0 %v2385, 52
  %v4202 = vpop.permute.xlu0 %4201
  %4203 = vrot.lane.b32.xlu0 %v2386, 52
  %v4204 = vpop.permute.xlu0 %4203
  %4205 = vrot.lane.b32.xlu0 %v2387, 52
  %v4206 = vpop.permute.xlu0 %4205
  %4207 = vrot.lane.b32.xlu0 %v2388, 52
  %v4208 = vpop.permute.xlu0 %4207
  %4209 = vrot.lane.b32.xlu0 %v2389, 52
  %v4210 = vpop.permute.xlu0 %4209
  %4312 = vrot.lane.b32.xlu0 %v2291, 82
  %v4313 = vpop.permute.xlu0 %4312
  %4314 = vrot.lane.b32.xlu0 %v2292, 82
  %v4315 = vpop.permute.xlu0 %4314
  %4316 = vrot.lane.b32.xlu0 %v2293, 82
  %v4317 = vpop.permute.xlu0 %4316
  %4318 = vrot.lane.b32.xlu0 %v2294, 82
  %v4319 = vpop.permute.xlu0 %4318
  %4320 = vrot.lane.b32.xlu0 %v2295, 82
  %v4321 = vpop.permute.xlu0 %4320
  %4322 = vrot.lane.b32.xlu0 %v2296, 82
  %v4323 = vpop.permute.xlu0 %4322
  %4324 = vrot.lane.b32.xlu0 %v2297, 82
  %v4325 = vpop.permute.xlu0 %4324
  %4326 = vrot.lane.b32.xlu0 %v2298, 82
  %v4327 = vpop.permute.xlu0 %4326
  %4328 = vrot.lane.b32.xlu0 %v2299, 82
  %v4329 = vpop.permute.xlu0 %4328
  %4330 = vrot.lane.b32.xlu0 %v2300, 82
  %v4331 = vpop.permute.xlu0 %4330
  %4332 = vrot.lane.b32.xlu0 %v2301, 82
  %v4333 = vpop.permute.xlu0 %4332
  %4334 = vrot.lane.b32.xlu0 %v2302, 82
  %v4335 = vpop.permute.xlu0 %4334
  %4336 = vrot.lane.b32.xlu0 %v2303, 82
  %v4337 = vpop.permute.xlu0 %4336
  %4338 = vrot.lane.b32.xlu0 %v2304, 82
  %v4339 = vpop.permute.xlu0 %4338
  %4340 = vrot.lane.b32.xlu0 %v2305, 82
  %v4341 = vpop.permute.xlu0 %4340
  %4342 = vrot.lane.b32.xlu0 %v2306, 82
  %v4343 = vpop.permute.xlu0 %4342
  %4344 = vrot.lane.b32.xlu0 %v2307, 82
  %v4345 = vpop.permute.xlu0 %4344
  %4346 = vrot.lane.b32.xlu0 %v2308, 82
  %v4347 = vpop.permute.xlu0 %4346
  %4348 = vrot.lane.b32.xlu0 %v2309, 82
  %v4349 = vpop.permute.xlu0 %4348
  %4350 = vrot.lane.b32.xlu0 %v2310, 82
  %v4351 = vpop.permute.xlu0 %4350
  %4352 = vrot.lane.b32.xlu0 %v2311, 82
  %v4353 = vpop.permute.xlu0 %4352
  %4354 = vrot.lane.b32.xlu0 %v2312, 82
  %v4355 = vpop.permute.xlu0 %4354
  %4356 = vrot.lane.b32.xlu0 %v2313, 82
  %v4357 = vpop.permute.xlu0 %4356
  %4358 = vrot.lane.b32.xlu0 %v2314, 82
  %v4359 = vpop.permute.xlu0 %4358
  %4360 = vrot.lane.b32.xlu0 %v2315, 82
  %v4361 = vpop.permute.xlu0 %4360
  %4362 = vrot.lane.b32.xlu0 %v2316, 82
  %v4363 = vpop.permute.xlu0 %4362
  %4364 = vrot.lane.b32.xlu0 %v2317, 82
  %v4365 = vpop.permute.xlu0 %4364
  %4366 = vrot.lane.b32.xlu0 %v2318, 82
  %v4367 = vpop.permute.xlu0 %4366
  %4368 = vrot.lane.b32.xlu0 %v2319, 82
  %v4369 = vpop.permute.xlu0 %4368
  %4370 = vrot.lane.b32.xlu0 %v2320, 82
  %v4371 = vpop.permute.xlu0 %4370
  %4372 = vrot.lane.b32.xlu0 %v2321, 82
  %v4373 = vpop.permute.xlu0 %4372
  %4374 = vrot.lane.b32.xlu0 %v2322, 82
  %v4375 = vpop.permute.xlu0 %4374
  %4376 = vrot.lane.b32.xlu0 %v2323, 82
  %v4377 = vpop.permute.xlu0 %4376
  %4378 = vrot.lane.b32.xlu0 %v2324, 82
  %v4379 = vpop.permute.xlu0 %4378
  %4380 = vrot.lane.b32.xlu0 %v2325, 82
  %v4381 = vpop.permute.xlu0 %4380
  %4382 = vrot.lane.b32.xlu0 %v2326, 82
  %v4383 = vpop.permute.xlu0 %4382
  %4384 = vrot.lane.b32.xlu0 %v2327, 82
  %v4385 = vpop.permute.xlu0 %4384
  %4386 = vrot.lane.b32.xlu0 %v2328, 82
  %v4387 = vpop.permute.xlu0 %4386
  %4388 = vrot.lane.b32.xlu0 %v2329, 82
  %v4389 = vpop.permute.xlu0 %4388
  %4390 = vrot.lane.b32.xlu0 %v2330, 82
  %v4391 = vpop.permute.xlu0 %4390
  %4392 = vrot.lane.b32.xlu0 %v2331, 82
  %v4393 = vpop.permute.xlu0 %4392
  %4394 = vrot.lane.b32.xlu0 %v2332, 82
  %v4395 = vpop.permute.xlu0 %4394
  %4396 = vrot.lane.b32.xlu0 %v2333, 82
  %v4397 = vpop.permute.xlu0 %4396
  %4398 = vrot.lane.b32.xlu0 %v2334, 82
  %v4399 = vpop.permute.xlu0 %4398
  %4400 = vrot.lane.b32.xlu0 %v2335, 82
  %v4401 = vpop.permute.xlu0 %4400
  %4402 = vrot.lane.b32.xlu0 %v2336, 82
  %v4403 = vpop.permute.xlu0 %4402
  %4404 = vrot.lane.b32.xlu0 %v2337, 82
  %v4405 = vpop.permute.xlu0 %4404
  %4406 = vrot.lane.b32.xlu0 %v2338, 82
  %v4407 = vpop.permute.xlu0 %4406
  %4408 = vrot.lane.b32.xlu0 %v2339, 82
  %v4409 = vpop.permute.xlu0 %4408
  %4410 = vrot.lane.b32.xlu0 %v2340, 82
  %v4411 = vpop.permute.xlu0 %4410
  %4412 = vrot.lane.b32.xlu0 %v2341, 82
  %v4413 = vpop.permute.xlu0 %4412
  %4414 = vrot.lane.b32.xlu0 %v2342, 82
  %v4415 = vpop.permute.xlu0 %4414
  %4416 = vrot.lane.b32.xlu0 %v2343, 82
  %v4417 = vpop.permute.xlu0 %4416
  %4418 = vrot.lane.b32.xlu0 %v2344, 82
  %v4419 = vpop.permute.xlu0 %4418
  %4420 = vrot.lane.b32.xlu0 %v2345, 82
  %v4421 = vpop.permute.xlu0 %4420
  %4422 = vrot.lane.b32.xlu0 %v2346, 82
  %v4423 = vpop.permute.xlu0 %4422
  %4424 = vrot.lane.b32.xlu0 %v2347, 82
  %v4425 = vpop.permute.xlu0 %4424
  %4426 = vrot.lane.b32.xlu0 %v2348, 82
  %v4427 = vpop.permute.xlu0 %4426
  %4428 = vrot.lane.b32.xlu0 %v2349, 82
  %v4429 = vpop.permute.xlu0 %4428
  %4430 = vrot.lane.b32.xlu0 %v2350, 82
  %v4431 = vpop.permute.xlu0 %4430
  %4432 = vrot.lane.b32.xlu0 %v2351, 82
  %v4433 = vpop.permute.xlu0 %4432
  %4434 = vrot.lane.b32.xlu0 %v2352, 82
  %v4435 = vpop.permute.xlu0 %4434
  %4436 = vrot.lane.b32.xlu0 %v2353, 82
  %v4437 = vpop.permute.xlu0 %4436
  %4438 = vrot.lane.b32.xlu0 %v2354, 82
  %v4439 = vpop.permute.xlu0 %4438
  %4440 = vrot.lane.b32.xlu0 %v2355, 82
  %v4441 = vpop.permute.xlu0 %4440
  %4442 = vrot.lane.b32.xlu0 %v2356, 82
  %v4443 = vpop.permute.xlu0 %4442
  %4444 = vrot.lane.b32.xlu0 %v2357, 82
  %v4445 = vpop.permute.xlu0 %4444
  %4446 = vrot.lane.b32.xlu0 %v2358, 82
  %v4447 = vpop.permute.xlu0 %4446
  %4448 = vrot.lane.b32.xlu0 %v2359, 82
  %v4449 = vpop.permute.xlu0 %4448
  %4450 = vrot.lane.b32.xlu0 %v2360, 82
  %v4451 = vpop.permute.xlu0 %4450
  %4452 = vrot.lane.b32.xlu0 %v2361, 82
  %v4453 = vpop.permute.xlu0 %4452
  %4454 = vrot.lane.b32.xlu0 %v2362, 82
  %v4455 = vpop.permute.xlu0 %4454
  %4456 = vrot.lane.b32.xlu0 %v2363, 82
  %v4457 = vpop.permute.xlu0 %4456
  %4458 = vrot.lane.b32.xlu0 %v2364, 82
  %v4459 = vpop.permute.xlu0 %4458
  %4460 = vrot.lane.b32.xlu0 %v2365, 82
  %v4461 = vpop.permute.xlu0 %4460
  %4462 = vrot.lane.b32.xlu0 %v2366, 82
  %v4463 = vpop.permute.xlu0 %4462
  %4464 = vrot.lane.b32.xlu0 %v2367, 82
  %v4465 = vpop.permute.xlu0 %4464
  %4466 = vrot.lane.b32.xlu0 %v2368, 82
  %v4467 = vpop.permute.xlu0 %4466
  %4468 = vrot.lane.b32.xlu0 %v2369, 82
  %v4469 = vpop.permute.xlu0 %4468
  %4470 = vrot.lane.b32.xlu0 %v2370, 82
  %v4471 = vpop.permute.xlu0 %4470
  %4472 = vrot.lane.b32.xlu0 %v2371, 82
  %v4473 = vpop.permute.xlu0 %4472
  %4474 = vrot.lane.b32.xlu0 %v2372, 82
  %v4475 = vpop.permute.xlu0 %4474
  %4476 = vrot.lane.b32.xlu0 %v2373, 82
  %v4477 = vpop.permute.xlu0 %4476
  %4478 = vrot.lane.b32.xlu0 %v2374, 82
  %v4479 = vpop.permute.xlu0 %4478
  %4480 = vrot.lane.b32.xlu0 %v2375, 82
  %v4481 = vpop.permute.xlu0 %4480
  %4482 = vrot.lane.b32.xlu0 %v2376, 82
  %v4483 = vpop.permute.xlu0 %4482
  %4484 = vrot.lane.b32.xlu0 %v2377, 82
  %v4485 = vpop.permute.xlu0 %4484
  %4486 = vrot.lane.b32.xlu0 %v2378, 82
  %v4487 = vpop.permute.xlu0 %4486
  %4488 = vrot.lane.b32.xlu0 %v2379, 82
  %v4489 = vpop.permute.xlu0 %4488
  %4490 = vrot.lane.b32.xlu0 %v2380, 82
  %v4491 = vpop.permute.xlu0 %4490
  %4492 = vrot.lane.b32.xlu0 %v2381, 82
  %v4493 = vpop.permute.xlu0 %4492
  %4494 = vrot.lane.b32.xlu0 %v2382, 82
  %v4495 = vpop.permute.xlu0 %4494
  %4496 = vrot.lane.b32.xlu0 %v2383, 82
  %v4497 = vpop.permute.xlu0 %4496
  %4498 = vrot.lane.b32.xlu0 %v2384, 82
  %v4499 = vpop.permute.xlu0 %4498
  %4500 = vrot.lane.b32.xlu0 %v2385, 82
  %v4501 = vpop.permute.xlu0 %4500
  %4502 = vrot.lane.b32.xlu0 %v2386, 82
  %v4503 = vpop.permute.xlu0 %4502
  %4504 = vrot.lane.b32.xlu0 %v2387, 82
  %v4505 = vpop.permute.xlu0 %4504
  %4506 = vrot.lane.b32.xlu0 %v2388, 82
  %v4507 = vpop.permute.xlu0 %4506
  %4508 = vrot.lane.b32.xlu0 %v2389, 82
  %v4509 = vpop.permute.xlu0 %4508
  %4510 = vrot.lane.b32.xlu0 %v2390, 82
  %v4511 = vpop.permute.xlu0 %4510
  %4613 = vrot.lane.b32.xlu0 %v2292, 112
  %v4614 = vpop.permute.xlu0 %4613
  %4615 = vrot.lane.b32.xlu0 %v2293, 112
  %v4616 = vpop.permute.xlu0 %4615
  %4617 = vrot.lane.b32.xlu0 %v2294, 112
  %v4618 = vpop.permute.xlu0 %4617
  %4619 = vrot.lane.b32.xlu0 %v2295, 112
  %v4620 = vpop.permute.xlu0 %4619
  %4621 = vrot.lane.b32.xlu0 %v2296, 112
  %v4622 = vpop.permute.xlu0 %4621
  %4623 = vrot.lane.b32.xlu0 %v2297, 112
  %v4624 = vpop.permute.xlu0 %4623
  %4625 = vrot.lane.b32.xlu0 %v2298, 112
  %v4626 = vpop.permute.xlu0 %4625
  %4627 = vrot.lane.b32.xlu0 %v2299, 112
  %v4628 = vpop.permute.xlu0 %4627
  %4629 = vrot.lane.b32.xlu0 %v2300, 112
  %v4630 = vpop.permute.xlu0 %4629
  %4631 = vrot.lane.b32.xlu0 %v2301, 112
  %v4632 = vpop.permute.xlu0 %4631
  %4633 = vrot.lane.b32.xlu0 %v2302, 112
  %v4634 = vpop.permute.xlu0 %4633
  %4635 = vrot.lane.b32.xlu0 %v2303, 112
  %v4636 = vpop.permute.xlu0 %4635
  %4637 = vrot.lane.b32.xlu0 %v2304, 112
  %v4638 = vpop.permute.xlu0 %4637
  %4639 = vrot.lane.b32.xlu0 %v2305, 112
  %v4640 = vpop.permute.xlu0 %4639
  %4641 = vrot.lane.b32.xlu0 %v2306, 112
  %v4642 = vpop.permute.xlu0 %4641
  %4643 = vrot.lane.b32.xlu0 %v2307, 112
  %v4644 = vpop.permute.xlu0 %4643
  %4645 = vrot.lane.b32.xlu0 %v2308, 112
  %v4646 = vpop.permute.xlu0 %4645
  %4647 = vrot.lane.b32.xlu0 %v2309, 112
  %v4648 = vpop.permute.xlu0 %4647
  %4649 = vrot.lane.b32.xlu0 %v2310, 112
  %v4650 = vpop.permute.xlu0 %4649
  %4651 = vrot.lane.b32.xlu0 %v2311, 112
  %v4652 = vpop.permute.xlu0 %4651
  %4653 = vrot.lane.b32.xlu0 %v2312, 112
  %v4654 = vpop.permute.xlu0 %4653
  %4655 = vrot.lane.b32.xlu0 %v2313, 112
  %v4656 = vpop.permute.xlu0 %4655
  %4657 = vrot.lane.b32.xlu0 %v2314, 112
  %v4658 = vpop.permute.xlu0 %4657
  %4659 = vrot.lane.b32.xlu0 %v2315, 112
  %v4660 = vpop.permute.xlu0 %4659
  %4661 = vrot.lane.b32.xlu0 %v2316, 112
  %v4662 = vpop.permute.xlu0 %4661
  %4663 = vrot.lane.b32.xlu0 %v2317, 112
  %v4664 = vpop.permute.xlu0 %4663
  %4665 = vrot.lane.b32.xlu0 %v2318, 112
  %v4666 = vpop.permute.xlu0 %4665
  %4667 = vrot.lane.b32.xlu0 %v2319, 112
  %v4668 = vpop.permute.xlu0 %4667
  %4669 = vrot.lane.b32.xlu0 %v2320, 112
  %v4670 = vpop.permute.xlu0 %4669
  %4671 = vrot.lane.b32.xlu0 %v2321, 112
  %v4672 = vpop.permute.xlu0 %4671
  %4673 = vrot.lane.b32.xlu0 %v2322, 112
  %v4674 = vpop.permute.xlu0 %4673
  %4675 = vrot.lane.b32.xlu0 %v2323, 112
  %v4676 = vpop.permute.xlu0 %4675
  %4677 = vrot.lane.b32.xlu0 %v2324, 112
  %v4678 = vpop.permute.xlu0 %4677
  %4679 = vrot.lane.b32.xlu0 %v2325, 112
  %v4680 = vpop.permute.xlu0 %4679
  %4681 = vrot.lane.b32.xlu0 %v2326, 112
  %v4682 = vpop.permute.xlu0 %4681
  %4683 = vrot.lane.b32.xlu0 %v2327, 112
  %v4684 = vpop.permute.xlu0 %4683
  %4685 = vrot.lane.b32.xlu0 %v2328, 112
  %v4686 = vpop.permute.xlu0 %4685
  %4687 = vrot.lane.b32.xlu0 %v2329, 112
  %v4688 = vpop.permute.xlu0 %4687
  %4689 = vrot.lane.b32.xlu0 %v2330, 112
  %v4690 = vpop.permute.xlu0 %4689
  %4691 = vrot.lane.b32.xlu0 %v2331, 112
  %v4692 = vpop.permute.xlu0 %4691
  %4693 = vrot.lane.b32.xlu0 %v2332, 112
  %v4694 = vpop.permute.xlu0 %4693
  %4695 = vrot.lane.b32.xlu0 %v2333, 112
  %v4696 = vpop.permute.xlu0 %4695
  %4697 = vrot.lane.b32.xlu0 %v2334, 112
  %v4698 = vpop.permute.xlu0 %4697
  %4699 = vrot.lane.b32.xlu0 %v2335, 112
  %v4700 = vpop.permute.xlu0 %4699
  %4701 = vrot.lane.b32.xlu0 %v2336, 112
  %v4702 = vpop.permute.xlu0 %4701
  %4703 = vrot.lane.b32.xlu0 %v2337, 112
  %v4704 = vpop.permute.xlu0 %4703
  %4705 = vrot.lane.b32.xlu0 %v2338, 112
  %v4706 = vpop.permute.xlu0 %4705
  %4707 = vrot.lane.b32.xlu0 %v2339, 112
  %v4708 = vpop.permute.xlu0 %4707
  %4709 = vrot.lane.b32.xlu0 %v2340, 112
  %v4710 = vpop.permute.xlu0 %4709
  %4711 = vrot.lane.b32.xlu0 %v2341, 112
  %v4712 = vpop.permute.xlu0 %4711
  %4713 = vrot.lane.b32.xlu0 %v2342, 112
  %v4714 = vpop.permute.xlu0 %4713
  %4715 = vrot.lane.b32.xlu0 %v2343, 112
  %v4716 = vpop.permute.xlu0 %4715
  %4717 = vrot.lane.b32.xlu0 %v2344, 112
  %v4718 = vpop.permute.xlu0 %4717
  %4719 = vrot.lane.b32.xlu0 %v2345, 112
  %v4720 = vpop.permute.xlu0 %4719
  %4721 = vrot.lane.b32.xlu0 %v2346, 112
  %v4722 = vpop.permute.xlu0 %4721
  %4723 = vrot.lane.b32.xlu0 %v2347, 112
  %v4724 = vpop.permute.xlu0 %4723
  %4725 = vrot.lane.b32.xlu0 %v2348, 112
  %v4726 = vpop.permute.xlu0 %4725
  %4727 = vrot.lane.b32.xlu0 %v2349, 112
  %v4728 = vpop.permute.xlu0 %4727
  %4729 = vrot.lane.b32.xlu0 %v2350, 112
  %v4730 = vpop.permute.xlu0 %4729
  %4731 = vrot.lane.b32.xlu0 %v2351, 112
  %v4732 = vpop.permute.xlu0 %4731
  %4733 = vrot.lane.b32.xlu0 %v2352, 112
  %v4734 = vpop.permute.xlu0 %4733
  %4735 = vrot.lane.b32.xlu0 %v2353, 112
  %v4736 = vpop.permute.xlu0 %4735
  %4737 = vrot.lane.b32.xlu0 %v2354, 112
  %v4738 = vpop.permute.xlu0 %4737
  %4739 = vrot.lane.b32.xlu0 %v2355, 112
  %v4740 = vpop.permute.xlu0 %4739
  %4741 = vrot.lane.b32.xlu0 %v2356, 112
  %v4742 = vpop.permute.xlu0 %4741
  %4743 = vrot.lane.b32.xlu0 %v2357, 112
  %v4744 = vpop.permute.xlu0 %4743
  %4745 = vrot.lane.b32.xlu0 %v2358, 112
  %v4746 = vpop.permute.xlu0 %4745
  %4747 = vrot.lane.b32.xlu0 %v2359, 112
  %v4748 = vpop.permute.xlu0 %4747
  %4749 = vrot.lane.b32.xlu0 %v2360, 112
  %v4750 = vpop.permute.xlu0 %4749
  %4751 = vrot.lane.b32.xlu0 %v2361, 112
  %v4752 = vpop.permute.xlu0 %4751
  %4753 = vrot.lane.b32.xlu0 %v2362, 112
  %v4754 = vpop.permute.xlu0 %4753
  %4755 = vrot.lane.b32.xlu0 %v2363, 112
  %v4756 = vpop.permute.xlu0 %4755
  %4757 = vrot.lane.b32.xlu0 %v2364, 112
  %v4758 = vpop.permute.xlu0 %4757
  %4759 = vrot.lane.b32.xlu0 %v2365, 112
  %v4760 = vpop.permute.xlu0 %4759
  %4761 = vrot.lane.b32.xlu0 %v2366, 112
  %v4762 = vpop.permute.xlu0 %4761
  %4763 = vrot.lane.b32.xlu0 %v2367, 112
  %v4764 = vpop.permute.xlu0 %4763
  %4765 = vrot.lane.b32.xlu0 %v2368, 112
  %v4766 = vpop.permute.xlu0 %4765
  %4767 = vrot.lane.b32.xlu0 %v2369, 112
  %v4768 = vpop.permute.xlu0 %4767
  %4769 = vrot.lane.b32.xlu0 %v2370, 112
  %v4770 = vpop.permute.xlu0 %4769
  %4771 = vrot.lane.b32.xlu0 %v2371, 112
  %v4772 = vpop.permute.xlu0 %4771
  %4773 = vrot.lane.b32.xlu0 %v2372, 112
  %v4774 = vpop.permute.xlu0 %4773
  %4775 = vrot.lane.b32.xlu0 %v2373, 112
  %v4776 = vpop.permute.xlu0 %4775
  %4777 = vrot.lane.b32.xlu0 %v2374, 112
  %v4778 = vpop.permute.xlu0 %4777
  %4779 = vrot.lane.b32.xlu0 %v2375, 112
  %v4780 = vpop.permute.xlu0 %4779
  %4781 = vrot.lane.b32.xlu0 %v2376, 112
  %v4782 = vpop.permute.xlu0 %4781
  %4783 = vrot.lane.b32.xlu0 %v2377, 112
  %v4784 = vpop.permute.xlu0 %4783
  %4785 = vrot.lane.b32.xlu0 %v2378, 112
  %v4786 = vpop.permute.xlu0 %4785
  %4787 = vrot.lane.b32.xlu0 %v2379, 112
  %v4788 = vpop.permute.xlu0 %4787
  %4789 = vrot.lane.b32.xlu0 %v2380, 112
  %v4790 = vpop.permute.xlu0 %4789
  %4791 = vrot.lane.b32.xlu0 %v2381, 112
  %v4792 = vpop.permute.xlu0 %4791
  %4793 = vrot.lane.b32.xlu0 %v2382, 112
  %v4794 = vpop.permute.xlu0 %4793
  %4795 = vrot.lane.b32.xlu0 %v2383, 112
  %v4796 = vpop.permute.xlu0 %4795
  %4797 = vrot.lane.b32.xlu0 %v2384, 112
  %v4798 = vpop.permute.xlu0 %4797
  %4799 = vrot.lane.b32.xlu0 %v2385, 112
  %v4800 = vpop.permute.xlu0 %4799
  %4801 = vrot.lane.b32.xlu0 %v2386, 112
  %v4802 = vpop.permute.xlu0 %4801
  %4803 = vrot.lane.b32.xlu0 %v2387, 112
  %v4804 = vpop.permute.xlu0 %4803
  %4805 = vrot.lane.b32.xlu0 %v2388, 112
  %v4806 = vpop.permute.xlu0 %4805
  %4807 = vrot.lane.b32.xlu0 %v2389, 112
  %v4808 = vpop.permute.xlu0 %4807
  %4809 = vrot.lane.b32.xlu0 %v2390, 112
  %v4810 = vpop.permute.xlu0 %4809
  %4811 = vrot.lane.b32.xlu0 %v2391, 112
  %v4812 = vpop.permute.xlu0 %4811
  %v4913 = vsel %vm2111, %v2270, %v2493
  %v4914 = vsel %vm2111, %v2271, %v2495
  %v4915 = vsel %vm2111, %v2272, %v2497
  %v4916 = vsel %vm2111, %v2273, %v2499
  %v4917 = vsel %vm2111, %v2274, %v2501
  %v4918 = vsel %vm2111, %v2275, %v2503
  %v4919 = vsel %vm2111, %v2276, %v2505
  %v4920 = vsel %vm2111, %v2277, %v2507
  %v4921 = vsel %vm2111, %v2278, %v2509
  %v4922 = vsel %vm2111, %v2279, %v2511
  %v4923 = vsel %vm2111, %v2280, %v2513
  %v4924 = vsel %vm2111, %v2281, %v2515
  %v4925 = vsel %vm2111, %v2282, %v2517
  %v4926 = vsel %vm2111, %v2283, %v2519
  %v4927 = vsel %vm2111, %v2284, %v2521
  %v4928 = vsel %vm2111, %v2285, %v2523
  %v4929 = vsel %vm2111, %v2286, %v2525
  %v4930 = vsel %vm2111, %v2287, %v2527
  %v4931 = vsel %vm2111, %v2288, %v2529
  %v4932 = vsel %vm2111, %v2289, %v2531
  %v4933 = vsel %vm2111, %v2290, %v2533
  %v4934 = vsel %vm2111, %v2291, %v2535
  %v4935 = vsel %vm2111, %v2292, %v2537
  %v4936 = vsel %vm2111, %v2293, %v2539
  %v4937 = vsel %vm2111, %v2294, %v2541
  %v4938 = vsel %vm2111, %v2295, %v2543
  %v4939 = vsel %vm2111, %v2296, %v2545
  %v4940 = vsel %vm2111, %v2297, %v2547
  %v4941 = vsel %vm2111, %v2298, %v2549
  %v4942 = vsel %vm2111, %v2299, %v2551
  %v4943 = vsel %vm2111, %v2300, %v2553
  %v4944 = vsel %vm2111, %v2301, %v2555
  %v4945 = vsel %vm2111, %v2302, %v2557
  %v4946 = vsel %vm2111, %v2303, %v2559
  %v4947 = vsel %vm2111, %v2304, %v2561
  %v4948 = vsel %vm2111, %v2305, %v2563
  %v4949 = vsel %vm2111, %v2306, %v2565
  %v4950 = vsel %vm2111, %v2307, %v2567
  %v4951 = vsel %vm2111, %v2308, %v2569
  %v4952 = vsel %vm2111, %v2309, %v2571
  %v4953 = vsel %vm2111, %v2310, %v2573
  %v4954 = vsel %vm2111, %v2311, %v2575
  %v4955 = vsel %vm2111, %v2312, %v2577
  %v4956 = vsel %vm2111, %v2313, %v2579
  %v4957 = vsel %vm2111, %v2314, %v2581
  %v4958 = vsel %vm2111, %v2315, %v2583
  %v4959 = vsel %vm2111, %v2316, %v2585
  %v4960 = vsel %vm2111, %v2317, %v2587
  %v4961 = vsel %vm2111, %v2318, %v2589
  %v4962 = vsel %vm2111, %v2319, %v2591
  %v4963 = vsel %vm2111, %v2320, %v2593
  %v4964 = vsel %vm2111, %v2321, %v2595
  %v4965 = vsel %vm2111, %v2322, %v2597
  %v4966 = vsel %vm2111, %v2323, %v2599
  %v4967 = vsel %vm2111, %v2324, %v2601
  %v4968 = vsel %vm2111, %v2325, %v2603
  %v4969 = vsel %vm2111, %v2326, %v2605
  %v4970 = vsel %vm2111, %v2327, %v2607
  %v4971 = vsel %vm2111, %v2328, %v2609
  %v4972 = vsel %vm2111, %v2329, %v2611
  %v4973 = vsel %vm2111, %v2330, %v2613
  %v4974 = vsel %vm2111, %v2331, %v2615
  %v4975 = vsel %vm2111, %v2332, %v2617
  %v4976 = vsel %vm2111, %v2333, %v2619
  %v4977 = vsel %vm2111, %v2334, %v2621
  %v4978 = vsel %vm2111, %v2335, %v2623
  %v4979 = vsel %vm2111, %v2336, %v2625
  %v4980 = vsel %vm2111, %v2337, %v2627
  %v4981 = vsel %vm2111, %v2338, %v2629
  %v4982 = vsel %vm2111, %v2339, %v2631
  %v4983 = vsel %vm2111, %v2340, %v2633
  %v4984 = vsel %vm2111, %v2341, %v2635
  %v4985 = vsel %vm2111, %v2342, %v2637
  %v4986 = vsel %vm2111, %v2343, %v2639
  %v4987 = vsel %vm2111, %v2344, %v2641
  %v4988 = vsel %vm2111, %v2345, %v2643
  %v4989 = vsel %vm2111, %v2346, %v2645
  %v4990 = vsel %vm2111, %v2347, %v2647
  %v4991 = vsel %vm2111, %v2348, %v2649
  %v4992 = vsel %vm2111, %v2349, %v2651
  %v4993 = vsel %vm2111, %v2350, %v2653
  %v4994 = vsel %vm2111, %v2351, %v2655
  %v4995 = vsel %vm2111, %v2352, %v2657
  %v4996 = vsel %vm2111, %v2353, %v2659
  %v4997 = vsel %vm2111, %v2354, %v2661
  %v4998 = vsel %vm2111, %v2355, %v2663
  %v4999 = vsel %vm2111, %v2356, %v2665
  %v5000 = vsel %vm2111, %v2357, %v2667
  %v5001 = vsel %vm2111, %v2358, %v2669
  %v5002 = vsel %vm2111, %v2359, %v2671
  %v5003 = vsel %vm2111, %v2360, %v2673
  %v5004 = vsel %vm2111, %v2361, %v2675
  %v5005 = vsel %vm2111, %v2362, %v2677
  %v5006 = vsel %vm2111, %v2363, %v2679
  %v5007 = vsel %vm2111, %v2364, %v2681
  %v5008 = vsel %vm2111, %v2365, %v2683
  %v5009 = vsel %vm2111, %v2366, %v2685
  %v5010 = vsel %vm2111, %v2367, %v2687
  %v5011 = vsel %vm2111, %v2368, %v2689
  %v5012 = vsel %vm2111, %v2369, %v2691
  %vm5013 = vcmask 490496
  %v5014 = vsel %vm5013, %v4913, %v2794
  %v5015 = vsel %vm5013, %v4914, %v2796
  %v5016 = vsel %vm5013, %v4915, %v2798
  %v5017 = vsel %vm5013, %v4916, %v2800
  %v5018 = vsel %vm5013, %v4917, %v2802
  %v5019 = vsel %vm5013, %v4918, %v2804
  %v5020 = vsel %vm5013, %v4919, %v2806
  %v5021 = vsel %vm5013, %v4920, %v2808
  %v5022 = vsel %vm5013, %v4921, %v2810
  %v5023 = vsel %vm5013, %v4922, %v2812
  %v5024 = vsel %vm5013, %v4923, %v2814
  %v5025 = vsel %vm5013, %v4924, %v2816
  %v5026 = vsel %vm5013, %v4925, %v2818
  %v5027 = vsel %vm5013, %v4926, %v2820
  %v5028 = vsel %vm5013, %v4927, %v2822
  %v5029 = vsel %vm5013, %v4928, %v2824
  %v5030 = vsel %vm5013, %v4929, %v2826
  %v5031 = vsel %vm5013, %v4930, %v2828
  %v5032 = vsel %vm5013, %v4931, %v2830
  %v5033 = vsel %vm5013, %v4932, %v2832
  %v5034 = vsel %vm5013, %v4933, %v2834
  %v5035 = vsel %vm5013, %v4934, %v2836
  %v5036 = vsel %vm5013, %v4935, %v2838
  %v5037 = vsel %vm5013, %v4936, %v2840
  %v5038 = vsel %vm5013, %v4937, %v2842
  %v5039 = vsel %vm5013, %v4938, %v2844
  %v5040 = vsel %vm5013, %v4939, %v2846
  %v5041 = vsel %vm5013, %v4940, %v2848
  %v5042 = vsel %vm5013, %v4941, %v2850
  %v5043 = vsel %vm5013, %v4942, %v2852
  %v5044 = vsel %vm5013, %v4943, %v2854
  %v5045 = vsel %vm5013, %v4944, %v2856
  %v5046 = vsel %vm5013, %v4945, %v2858
  %v5047 = vsel %vm5013, %v4946, %v2860
  %v5048 = vsel %vm5013, %v4947, %v2862
  %v5049 = vsel %vm5013, %v4948, %v2864
  %v5050 = vsel %vm5013, %v4949, %v2866
  %v5051 = vsel %vm5013, %v4950, %v2868
  %v5052 = vsel %vm5013, %v4951, %v2870
  %v5053 = vsel %vm5013, %v4952, %v2872
  %v5054 = vsel %vm5013, %v4953, %v2874
  %v5055 = vsel %vm5013, %v4954, %v2876
  %v5056 = vsel %vm5013, %v4955, %v2878
  %v5057 = vsel %vm5013, %v4956, %v2880
  %v5058 = vsel %vm5013, %v4957, %v2882
  %v5059 = vsel %vm5013, %v4958, %v2884
  %v5060 = vsel %vm5013, %v4959, %v2886
  %v5061 = vsel %vm5013, %v4960, %v2888
  %v5062 = vsel %vm5013, %v4961, %v2890
  %v5063 = vsel %vm5013, %v4962, %v2892
  %v5064 = vsel %vm5013, %v4963, %v2894
  %v5065 = vsel %vm5013, %v4964, %v2896
  %v5066 = vsel %vm5013, %v4965, %v2898
  %v5067 = vsel %vm5013, %v4966, %v2900
  %v5068 = vsel %vm5013, %v4967, %v2902
  %v5069 = vsel %vm5013, %v4968, %v2904
  %v5070 = vsel %vm5013, %v4969, %v2906
  %v5071 = vsel %vm5013, %v4970, %v2908
  %v5072 = vsel %vm5013, %v4971, %v2910
  %v5073 = vsel %vm5013, %v4972, %v2912
  %v5074 = vsel %vm5013, %v4973, %v2914
  %v5075 = vsel %vm5013, %v4974, %v2916
  %v5076 = vsel %vm5013, %v4975, %v2918
  %v5077 = vsel %vm5013, %v4976, %v2920
  %v5078 = vsel %vm5013, %v4977, %v2922
  %v5079 = vsel %vm5013, %v4978, %v2924
  %v5080 = vsel %vm5013, %v4979, %v2926
  %v5081 = vsel %vm5013, %v4980, %v2928
  %v5082 = vsel %vm5013, %v4981, %v2930
  %v5083 = vsel %vm5013, %v4982, %v2932
  %v5084 = vsel %vm5013, %v4983, %v2934
  %v5085 = vsel %vm5013, %v4984, %v2936
  %v5086 = vsel %vm5013, %v4985, %v2938
  %v5087 = vsel %vm5013, %v4986, %v2940
  %v5088 = vsel %vm5013, %v4987, %v2942
  %v5089 = vsel %vm5013, %v4988, %v2944
  %v5090 = vsel %vm5013, %v4989, %v2946
  %v5091 = vsel %vm5013, %v4990, %v2948
  %v5092 = vsel %vm5013, %v4991, %v2950
  %v5093 = vsel %vm5013, %v4992, %v2952
  %v5094 = vsel %vm5013, %v4993, %v2954
  %v5095 = vsel %vm5013, %v4994, %v2956
  %v5096 = vsel %vm5013, %v4995, %v2958
  %v5097 = vsel %vm5013, %v4996, %v2960
  %v5098 = vsel %vm5013, %v4997, %v2962
  %v5099 = vsel %vm5013, %v4998, %v2964
  %v5100 = vsel %vm5013, %v4999, %v2966
  %v5101 = vsel %vm5013, %v5000, %v2968
  %v5102 = vsel %vm5013, %v5001, %v2970
  %v5103 = vsel %vm5013, %v5002, %v2972
  %v5104 = vsel %vm5013, %v5003, %v2974
  %v5105 = vsel %vm5013, %v5004, %v2976
  %v5106 = vsel %vm5013, %v5005, %v2978
  %v5107 = vsel %vm5013, %v5006, %v2980
  %v5108 = vsel %vm5013, %v5007, %v2982
  %v5109 = vsel %vm5013, %v5008, %v2984
  %v5110 = vsel %vm5013, %v5009, %v2986
  %v5111 = vsel %vm5013, %v5010, %v2988
  %v5112 = vsel %vm5013, %v5011, %v2990
  %v5113 = vsel %vm5013, %v5012, %v2992
  %vm5114 = vcmask 736256
  %v5115 = vsel %vm5114, %v5014, %v3102
  %v5116 = vsel %vm5114, %v5015, %v3104
  %v5117 = vsel %vm5114, %v5016, %v3106
  %v5118 = vsel %vm5114, %v5017, %v3108
  %v5119 = vsel %vm5114, %v5018, %v3110
  %v5120 = vsel %vm5114, %v5019, %v3112
  %v5121 = vsel %vm5114, %v5020, %v3114
  %v5122 = vsel %vm5114, %v5021, %v3116
  %v5123 = vsel %vm5114, %v5022, %v3118
  %v5124 = vsel %vm5114, %v5023, %v3120
  %v5125 = vsel %vm5114, %v5024, %v3122
  %v5126 = vsel %vm5114, %v5025, %v3124
  %v5127 = vsel %vm5114, %v5026, %v3126
  %v5128 = vsel %vm5114, %v5027, %v3128
  %v5129 = vsel %vm5114, %v5028, %v3130
  %v5130 = vsel %vm5114, %v5029, %v3132
  %v5131 = vsel %vm5114, %v5030, %v3134
  %v5132 = vsel %vm5114, %v5031, %v3136
  %v5133 = vsel %vm5114, %v5032, %v3138
  %v5134 = vsel %vm5114, %v5033, %v3140
  %v5135 = vsel %vm5114, %v5034, %v3142
  %v5136 = vsel %vm5114, %v5035, %v3144
  %v5137 = vsel %vm5114, %v5036, %v3146
  %v5138 = vsel %vm5114, %v5037, %v3148
  %v5139 = vsel %vm5114, %v5038, %v3150
  %v5140 = vsel %vm5114, %v5039, %v3152
  %v5141 = vsel %vm5114, %v5040, %v3154
  %v5142 = vsel %vm5114, %v5041, %v3156
  %v5143 = vsel %vm5114, %v5042, %v3158
  %v5144 = vsel %vm5114, %v5043, %v3160
  %v5145 = vsel %vm5114, %v5044, %v3162
  %v5146 = vsel %vm5114, %v5045, %v3164
  %v5147 = vsel %vm5114, %v5046, %v3166
  %v5148 = vsel %vm5114, %v5047, %v3168
  %v5149 = vsel %vm5114, %v5048, %v3170
  %v5150 = vsel %vm5114, %v5049, %v3172
  %v5151 = vsel %vm5114, %v5050, %v3174
  %v5152 = vsel %vm5114, %v5051, %v3176
  %v5153 = vsel %vm5114, %v5052, %v3178
  %v5154 = vsel %vm5114, %v5053, %v3180
  %v5155 = vsel %vm5114, %v5054, %v3182
  %v5156 = vsel %vm5114, %v5055, %v3184
  %v5157 = vsel %vm5114, %v5056, %v3186
  %v5158 = vsel %vm5114, %v5057, %v3188
  %v5159 = vsel %vm5114, %v5058, %v3190
  %v5160 = vsel %vm5114, %v5059, %v3192
  %v5161 = vsel %vm5114, %v5060, %v3194
  %v5162 = vsel %vm5114, %v5061, %v3196
  %v5163 = vsel %vm5114, %v5062, %v3198
  %v5164 = vsel %vm5114, %v5063, %v3200
  %v5165 = vsel %vm5114, %v5064, %v3202
  %v5166 = vsel %vm5114, %v5065, %v3204
  %v5167 = vsel %vm5114, %v5066, %v3206
  %v5168 = vsel %vm5114, %v5067, %v3208
  %v5169 = vsel %vm5114, %v5068, %v3210
  %v5170 = vsel %vm5114, %v5069, %v3212
  %v5171 = vsel %vm5114, %v5070, %v3214
  %v5172 = vsel %vm5114, %v5071, %v3216
  %v5173 = vsel %vm5114, %v5072, %v3218
  %v5174 = vsel %vm5114, %v5073, %v3220
  %v5175 = vsel %vm5114, %v5074, %v3222
  %v5176 = vsel %vm5114, %v5075, %v3224
  %v5177 = vsel %vm5114, %v5076, %v3226
  %v5178 = vsel %vm5114, %v5077, %v3228
  %v5179 = vsel %vm5114, %v5078, %v3230
  %v5180 = vsel %vm5114, %v5079, %v3232
  %v5181 = vsel %vm5114, %v5080, %v3234
  %v5182 = vsel %vm5114, %v5081, %v3236
  %v5183 = vsel %vm5114, %v5082, %v3238
  %v5184 = vsel %vm5114, %v5083, %v3240
  %v5185 = vsel %vm5114, %v5084, %v3242
  %v5186 = vsel %vm5114, %v5085, %v3244
  %v5187 = vsel %vm5114, %v5086, %v3246
  %v5188 = vsel %vm5114, %v5087, %v3248
  %v5189 = vsel %vm5114, %v5088, %v3250
  %v5190 = vsel %vm5114, %v5089, %v3252
  %v5191 = vsel %vm5114, %v5090, %v3254
  %v5192 = vsel %vm5114, %v5091, %v3256
  %v5193 = vsel %vm5114, %v5092, %v3258
  %v5194 = vsel %vm5114, %v5093, %v3260
  %v5195 = vsel %vm5114, %v5094, %v3262
  %v5196 = vsel %vm5114, %v5095, %v3264
  %v5197 = vsel %vm5114, %v5096, %v3266
  %v5198 = vsel %vm5114, %v5097, %v3268
  %v5199 = vsel %vm5114, %v5098, %v3270
  %v5200 = vsel %vm5114, %v5099, %v3272
  %v5201 = vsel %vm5114, %v5100, %v3274
  %v5202 = vsel %vm5114, %v5101, %v3276
  %v5203 = vsel %vm5114, %v5102, %v3278
  %v5204 = vsel %vm5114, %v5103, %v3280
  %v5205 = vsel %vm5114, %v5104, %v3282
  %v5206 = vsel %vm5114, %v5105, %v3284
  %v5207 = vsel %vm5114, %v5106, %v3286
  %v5208 = vsel %vm5114, %v5107, %v3288
  %v5209 = vsel %vm5114, %v5108, %v3290
  %v5210 = vsel %vm5114, %v5109, %v3292
  %v5211 = vsel %vm5114, %v5110, %v3294
  %v5212 = vsel %vm5114, %v5111, %v3296
  %v5213 = vsel %vm5114, %v5112, %v3298
  %v5214 = vsel %vm5114, %v5113, %v3300
  %v5215 = vsel %vm1145, %v5115, %v3403
  %v5216 = vsel %vm1145, %v5116, %v3405
  %v5217 = vsel %vm1145, %v5117, %v3407
  %v5218 = vsel %vm1145, %v5118, %v3409
  %v5219 = vsel %vm1145, %v5119, %v3411
  %v5220 = vsel %vm1145, %v5120, %v3413
  %v5221 = vsel %vm1145, %v5121, %v3415
  %v5222 = vsel %vm1145, %v5122, %v3417
  %v5223 = vsel %vm1145, %v5123, %v3419
  %v5224 = vsel %vm1145, %v5124, %v3421
  %v5225 = vsel %vm1145, %v5125, %v3423
  %v5226 = vsel %vm1145, %v5126, %v3425
  %v5227 = vsel %vm1145, %v5127, %v3427
  %v5228 = vsel %vm1145, %v5128, %v3429
  %v5229 = vsel %vm1145, %v5129, %v3431
  %v5230 = vsel %vm1145, %v5130, %v3433
  %v5231 = vsel %vm1145, %v5131, %v3435
  %v5232 = vsel %vm1145, %v5132, %v3437
  %v5233 = vsel %vm1145, %v5133, %v3439
  %v5234 = vsel %vm1145, %v5134, %v3441
  %v5235 = vsel %vm1145, %v5135, %v3443
  %v5236 = vsel %vm1145, %v5136, %v3445
  %v5237 = vsel %vm1145, %v5137, %v3447
  %v5238 = vsel %vm1145, %v5138, %v3449
  %v5239 = vsel %vm1145, %v5139, %v3451
  %v5240 = vsel %vm1145, %v5140, %v3453
  %v5241 = vsel %vm1145, %v5141, %v3455
  %v5242 = vsel %vm1145, %v5142, %v3457
  %v5243 = vsel %vm1145, %v5143, %v3459
  %v5244 = vsel %vm1145, %v5144, %v3461
  %v5245 = vsel %vm1145, %v5145, %v3463
  %v5246 = vsel %vm1145, %v5146, %v3465
  %v5247 = vsel %vm1145, %v5147, %v3467
  %v5248 = vsel %vm1145, %v5148, %v3469
  %v5249 = vsel %vm1145, %v5149, %v3471
  %v5250 = vsel %vm1145, %v5150, %v3473
  %v5251 = vsel %vm1145, %v5151, %v3475
  %v5252 = vsel %vm1145, %v5152, %v3477
  %v5253 = vsel %vm1145, %v5153, %v3479
  %v5254 = vsel %vm1145, %v5154, %v3481
  %v5255 = vsel %vm1145, %v5155, %v3483
  %v5256 = vsel %vm1145, %v5156, %v3485
  %v5257 = vsel %vm1145, %v5157, %v3487
  %v5258 = vsel %vm1145, %v5158, %v3489
  %v5259 = vsel %vm1145, %v5159, %v3491
  %v5260 = vsel %vm1145, %v5160, %v3493
  %v5261 = vsel %vm1145, %v5161, %v3495
  %v5262 = vsel %vm1145, %v5162, %v3497
  %v5263 = vsel %vm1145, %v5163, %v3499
  %v5264 = vsel %vm1145, %v5164, %v3501
  %v5265 = vsel %vm1145, %v5165, %v3503
  %v5266 = vsel %vm1145, %v5166, %v3505
  %v5267 = vsel %vm1145, %v5167, %v3507
  %v5268 = vsel %vm1145, %v5168, %v3509
  %v5269 = vsel %vm1145, %v5169, %v3511
  %v5270 = vsel %vm1145, %v5170, %v3513
  %v5271 = vsel %vm1145, %v5171, %v3515
  %v5272 = vsel %vm1145, %v5172, %v3517
  %v5273 = vsel %vm1145, %v5173, %v3519
  %v5274 = vsel %vm1145, %v5174, %v3521
  %v5275 = vsel %vm1145, %v5175, %v3523
  %v5276 = vsel %vm1145, %v5176, %v3525
  %v5277 = vsel %vm1145, %v5177, %v3527
  %v5278 = vsel %vm1145, %v5178, %v3529
  %v5279 = vsel %vm1145, %v5179, %v3531
  %v5280 = vsel %vm1145, %v5180, %v3533
  %v5281 = vsel %vm1145, %v5181, %v3535
  %v5282 = vsel %vm1145, %v5182, %v3537
  %v5283 = vsel %vm1145, %v5183, %v3539
  %v5284 = vsel %vm1145, %v5184, %v3541
  %v5285 = vsel %vm1145, %v5185, %v3543
  %v5286 = vsel %vm1145, %v5186, %v3545
  %v5287 = vsel %vm1145, %v5187, %v3547
  %v5288 = vsel %vm1145, %v5188, %v3549
  %v5289 = vsel %vm1145, %v5189, %v3551
  %v5290 = vsel %vm1145, %v5190, %v3553
  %v5291 = vsel %vm1145, %v5191, %v3555
  %v5292 = vsel %vm1145, %v5192, %v3557
  %v5293 = vsel %vm1145, %v5193, %v3559
  %v5294 = vsel %vm1145, %v5194, %v3561
  %v5295 = vsel %vm1145, %v5195, %v3563
  %v5296 = vsel %vm1145, %v5196, %v3565
  %v5297 = vsel %vm1145, %v5197, %v3567
  %v5298 = vsel %vm1145, %v5198, %v3569
  %v5299 = vsel %vm1145, %v5199, %v3571
  %v5300 = vsel %vm1145, %v5200, %v3573
  %v5301 = vsel %vm1145, %v5201, %v3575
  %v5302 = vsel %vm1145, %v5202, %v3577
  %v5303 = vsel %vm1145, %v5203, %v3579
  %v5304 = vsel %vm1145, %v5204, %v3581
  %v5305 = vsel %vm1145, %v5205, %v3583
  %v5306 = vsel %vm1145, %v5206, %v3585
  %v5307 = vsel %vm1145, %v5207, %v3587
  %v5308 = vsel %vm1145, %v5208, %v3589
  %v5309 = vsel %vm1145, %v5209, %v3591
  %v5310 = vsel %vm1145, %v5210, %v3593
  %v5311 = vsel %vm1145, %v5211, %v3595
  %v5312 = vsel %vm1145, %v5212, %v3597
  %v5313 = vsel %vm1145, %v5213, %v3599
  %v5314 = vsel %vm1145, %v5214, %v3601
  %vm5315 = vcmask 179200
  %v5316 = vsel %vm5315, %v3403, %v3704
  %v5317 = vsel %vm5315, %v3405, %v3706
  %v5318 = vsel %vm5315, %v3407, %v3708
  %v5319 = vsel %vm5315, %v3409, %v3710
  %v5320 = vsel %vm5315, %v3411, %v3712
  %v5321 = vsel %vm5315, %v3413, %v3714
  %v5322 = vsel %vm5315, %v3415, %v3716
  %v5323 = vsel %vm5315, %v3417, %v3718
  %v5324 = vsel %vm5315, %v3419, %v3720
  %v5325 = vsel %vm5315, %v3421, %v3722
  %v5326 = vsel %vm5315, %v3423, %v3724
  %v5327 = vsel %vm5315, %v3425, %v3726
  %v5328 = vsel %vm5315, %v3427, %v3728
  %v5329 = vsel %vm5315, %v3429, %v3730
  %v5330 = vsel %vm5315, %v3431, %v3732
  %v5331 = vsel %vm5315, %v3433, %v3734
  %v5332 = vsel %vm5315, %v3435, %v3736
  %v5333 = vsel %vm5315, %v3437, %v3738
  %v5334 = vsel %vm5315, %v3439, %v3740
  %v5335 = vsel %vm5315, %v3441, %v3742
  %v5336 = vsel %vm5315, %v3443, %v3744
  %v5337 = vsel %vm5315, %v3445, %v3746
  %v5338 = vsel %vm5315, %v3447, %v3748
  %v5339 = vsel %vm5315, %v3449, %v3750
  %v5340 = vsel %vm5315, %v3451, %v3752
  %v5341 = vsel %vm5315, %v3453, %v3754
  %v5342 = vsel %vm5315, %v3455, %v3756
  %v5343 = vsel %vm5315, %v3457, %v3758
  %v5344 = vsel %vm5315, %v3459, %v3760
  %v5345 = vsel %vm5315, %v3461, %v3762
  %v5346 = vsel %vm5315, %v3463, %v3764
  %v5347 = vsel %vm5315, %v3465, %v3766
  %v5348 = vsel %vm5315, %v3467, %v3768
  %v5349 = vsel %vm5315, %v3469, %v3770
  %v5350 = vsel %vm5315, %v3471, %v3772
  %v5351 = vsel %vm5315, %v3473, %v3774
  %v5352 = vsel %vm5315, %v3475, %v3776
  %v5353 = vsel %vm5315, %v3477, %v3778
  %v5354 = vsel %vm5315, %v3479, %v3780
  %v5355 = vsel %vm5315, %v3481, %v3782
  %v5356 = vsel %vm5315, %v3483, %v3784
  %v5357 = vsel %vm5315, %v3485, %v3786
  %v5358 = vsel %vm5315, %v3487, %v3788
  %v5359 = vsel %vm5315, %v3489, %v3790
  %v5360 = vsel %vm5315, %v3491, %v3792
  %v5361 = vsel %vm5315, %v3493, %v3794
  %v5362 = vsel %vm5315, %v3495, %v3796
  %v5363 = vsel %vm5315, %v3497, %v3798
  %v5364 = vsel %vm5315, %v3499, %v3800
  %v5365 = vsel %vm5315, %v3501, %v3802
  %v5366 = vsel %vm5315, %v3503, %v3804
  %v5367 = vsel %vm5315, %v3505, %v3806
  %v5368 = vsel %vm5315, %v3507, %v3808
  %v5369 = vsel %vm5315, %v3509, %v3810
  %v5370 = vsel %vm5315, %v3511, %v3812
  %v5371 = vsel %vm5315, %v3513, %v3814
  %v5372 = vsel %vm5315, %v3515, %v3816
  %v5373 = vsel %vm5315, %v3517, %v3818
  %v5374 = vsel %vm5315, %v3519, %v3820
  %v5375 = vsel %vm5315, %v3521, %v3822
  %v5376 = vsel %vm5315, %v3523, %v3824
  %v5377 = vsel %vm5315, %v3525, %v3826
  %v5378 = vsel %vm5315, %v3527, %v3828
  %v5379 = vsel %vm5315, %v3529, %v3830
  %v5380 = vsel %vm5315, %v3531, %v3832
  %v5381 = vsel %vm5315, %v3533, %v3834
  %v5382 = vsel %vm5315, %v3535, %v3836
  %v5383 = vsel %vm5315, %v3537, %v3838
  %v5384 = vsel %vm5315, %v3539, %v3840
  %v5385 = vsel %vm5315, %v3541, %v3842
  %v5386 = vsel %vm5315, %v3543, %v3844
  %v5387 = vsel %vm5315, %v3545, %v3846
  %v5388 = vsel %vm5315, %v3547, %v3848
  %v5389 = vsel %vm5315, %v3549, %v3850
  %v5390 = vsel %vm5315, %v3551, %v3852
  %v5391 = vsel %vm5315, %v3553, %v3854
  %v5392 = vsel %vm5315, %v3555, %v3856
  %v5393 = vsel %vm5315, %v3557, %v3858
  %v5394 = vsel %vm5315, %v3559, %v3860
  %v5395 = vsel %vm5315, %v3561, %v3862
  %v5396 = vsel %vm5315, %v3563, %v3864
  %v5397 = vsel %vm5315, %v3565, %v3866
  %v5398 = vsel %vm5315, %v3567, %v3868
  %v5399 = vsel %vm5315, %v3569, %v3870
  %v5400 = vsel %vm5315, %v3571, %v3872
  %v5401 = vsel %vm5315, %v3573, %v3874
  %v5402 = vsel %vm5315, %v3575, %v3876
  %v5403 = vsel %vm5315, %v3577, %v3878
  %v5404 = vsel %vm5315, %v3579, %v3880
  %v5405 = vsel %vm5315, %v3581, %v3882
  %v5406 = vsel %vm5315, %v3583, %v3884
  %v5407 = vsel %vm5315, %v3585, %v3886
  %v5408 = vsel %vm5315, %v3587, %v3888
  %v5409 = vsel %vm5315, %v3589, %v3890
  %v5410 = vsel %vm5315, %v3591, %v3892
  %v5411 = vsel %vm5315, %v3593, %v3894
  %v5412 = vsel %vm5315, %v3595, %v3896
  %v5413 = vsel %vm5315, %v3597, %v3898
  %v5414 = vsel %vm5315, %v3599, %v3900
  %v5415 = vsel %vm5315, %v3601, %v3902
  %vm5416 = vcmask 424960
  %v5417 = vsel %vm5416, %v5316, %v4012
  %v5418 = vsel %vm5416, %v5317, %v4014
  %v5419 = vsel %vm5416, %v5318, %v4016
  %v5420 = vsel %vm5416, %v5319, %v4018
  %v5421 = vsel %vm5416, %v5320, %v4020
  %v5422 = vsel %vm5416, %v5321, %v4022
  %v5423 = vsel %vm5416, %v5322, %v4024
  %v5424 = vsel %vm5416, %v5323, %v4026
  %v5425 = vsel %vm5416, %v5324, %v4028
  %v5426 = vsel %vm5416, %v5325, %v4030
  %v5427 = vsel %vm5416, %v5326, %v4032
  %v5428 = vsel %vm5416, %v5327, %v4034
  %v5429 = vsel %vm5416, %v5328, %v4036
  %v5430 = vsel %vm5416, %v5329, %v4038
  %v5431 = vsel %vm5416, %v5330, %v4040
  %v5432 = vsel %vm5416, %v5331, %v4042
  %v5433 = vsel %vm5416, %v5332, %v4044
  %v5434 = vsel %vm5416, %v5333, %v4046
  %v5435 = vsel %vm5416, %v5334, %v4048
  %v5436 = vsel %vm5416, %v5335, %v4050
  %v5437 = vsel %vm5416, %v5336, %v4052
  %v5438 = vsel %vm5416, %v5337, %v4054
  %v5439 = vsel %vm5416, %v5338, %v4056
  %v5440 = vsel %vm5416, %v5339, %v4058
  %v5441 = vsel %vm5416, %v5340, %v4060
  %v5442 = vsel %vm5416, %v5341, %v4062
  %v5443 = vsel %vm5416, %v5342, %v4064
  %v5444 = vsel %vm5416, %v5343, %v4066
  %v5445 = vsel %vm5416, %v5344, %v4068
  %v5446 = vsel %vm5416, %v5345, %v4070
  %v5447 = vsel %vm5416, %v5346, %v4072
  %v5448 = vsel %vm5416, %v5347, %v4074
  %v5449 = vsel %vm5416, %v5348, %v4076
  %v5450 = vsel %vm5416, %v5349, %v4078
  %v5451 = vsel %vm5416, %v5350, %v4080
  %v5452 = vsel %vm5416, %v5351, %v4082
  %v5453 = vsel %vm5416, %v5352, %v4084
  %v5454 = vsel %vm5416, %v5353, %v4086
  %v5455 = vsel %vm5416, %v5354, %v4088
  %v5456 = vsel %vm5416, %v5355, %v4090
  %v5457 = vsel %vm5416, %v5356, %v4092
  %v5458 = vsel %vm5416, %v5357, %v4094
  %v5459 = vsel %vm5416, %v5358, %v4096
  %v5460 = vsel %vm5416, %v5359, %v4098
  %v5461 = vsel %vm5416, %v5360, %v4100
  %v5462 = vsel %vm5416, %v5361, %v4102
  %v5463 = vsel %vm5416, %v5362, %v4104
  %v5464 = vsel %vm5416, %v5363, %v4106
  %v5465 = vsel %vm5416, %v5364, %v4108
  %v5466 = vsel %vm5416, %v5365, %v4110
  %v5467 = vsel %vm5416, %v5366, %v4112
  %v5468 = vsel %vm5416, %v5367, %v4114
  %v5469 = vsel %vm5416, %v5368, %v4116
  %v5470 = vsel %vm5416, %v5369, %v4118
  %v5471 = vsel %vm5416, %v5370, %v4120
  %v5472 = vsel %vm5416, %v5371, %v4122
  %v5473 = vsel %vm5416, %v5372, %v4124
  %v5474 = vsel %vm5416, %v5373, %v4126
  %v5475 = vsel %vm5416, %v5374, %v4128
  %v5476 = vsel %vm5416, %v5375, %v4130
  %v5477 = vsel %vm5416, %v5376, %v4132
  %v5478 = vsel %vm5416, %v5377, %v4134
  %v5479 = vsel %vm5416, %v5378, %v4136
  %v5480 = vsel %vm5416, %v5379, %v4138
  %v5481 = vsel %vm5416, %v5380, %v4140
  %v5482 = vsel %vm5416, %v5381, %v4142
  %v5483 = vsel %vm5416, %v5382, %v4144
  %v5484 = vsel %vm5416, %v5383, %v4146
  %v5485 = vsel %vm5416, %v5384, %v4148
  %v5486 = vsel %vm5416, %v5385, %v4150
  %v5487 = vsel %vm5416, %v5386, %v4152
  %v5488 = vsel %vm5416, %v5387, %v4154
  %v5489 = vsel %vm5416, %v5388, %v4156
  %v5490 = vsel %vm5416, %v5389, %v4158
  %v5491 = vsel %vm5416, %v5390, %v4160
  %v5492 = vsel %vm5416, %v5391, %v4162
  %v5493 = vsel %vm5416, %v5392, %v4164
  %v5494 = vsel %vm5416, %v5393, %v4166
  %v5495 = vsel %vm5416, %v5394, %v4168
  %v5496 = vsel %vm5416, %v5395, %v4170
  %v5497 = vsel %vm5416, %v5396, %v4172
  %v5498 = vsel %vm5416, %v5397, %v4174
  %v5499 = vsel %vm5416, %v5398, %v4176
  %v5500 = vsel %vm5416, %v5399, %v4178
  %v5501 = vsel %vm5416, %v5400, %v4180
  %v5502 = vsel %vm5416, %v5401, %v4182
  %v5503 = vsel %vm5416, %v5402, %v4184
  %v5504 = vsel %vm5416, %v5403, %v4186
  %v5505 = vsel %vm5416, %v5404, %v4188
  %v5506 = vsel %vm5416, %v5405, %v4190
  %v5507 = vsel %vm5416, %v5406, %v4192
  %v5508 = vsel %vm5416, %v5407, %v4194
  %v5509 = vsel %vm5416, %v5408, %v4196
  %v5510 = vsel %vm5416, %v5409, %v4198
  %v5511 = vsel %vm5416, %v5410, %v4200
  %v5512 = vsel %vm5416, %v5411, %v4202
  %v5513 = vsel %vm5416, %v5412, %v4204
  %v5514 = vsel %vm5416, %v5413, %v4206
  %v5515 = vsel %vm5416, %v5414, %v4208
  %v5516 = vsel %vm5416, %v5415, %v4210
  %vm5517 = vcmask 670720
  %v5518 = vsel %vm5517, %v5417, %v4313
  %v5519 = vsel %vm5517, %v5418, %v4315
  %v5520 = vsel %vm5517, %v5419, %v4317
  %v5521 = vsel %vm5517, %v5420, %v4319
  %v5522 = vsel %vm5517, %v5421, %v4321
  %v5523 = vsel %vm5517, %v5422, %v4323
  %v5524 = vsel %vm5517, %v5423, %v4325
  %v5525 = vsel %vm5517, %v5424, %v4327
  %v5526 = vsel %vm5517, %v5425, %v4329
  %v5527 = vsel %vm5517, %v5426, %v4331
  %v5528 = vsel %vm5517, %v5427, %v4333
  %v5529 = vsel %vm5517, %v5428, %v4335
  %v5530 = vsel %vm5517, %v5429, %v4337
  %v5531 = vsel %vm5517, %v5430, %v4339
  %v5532 = vsel %vm5517, %v5431, %v4341
  %v5533 = vsel %vm5517, %v5432, %v4343
  %v5534 = vsel %vm5517, %v5433, %v4345
  %v5535 = vsel %vm5517, %v5434, %v4347
  %v5536 = vsel %vm5517, %v5435, %v4349
  %v5537 = vsel %vm5517, %v5436, %v4351
  %v5538 = vsel %vm5517, %v5437, %v4353
  %v5539 = vsel %vm5517, %v5438, %v4355
  %v5540 = vsel %vm5517, %v5439, %v4357
  %v5541 = vsel %vm5517, %v5440, %v4359
  %v5542 = vsel %vm5517, %v5441, %v4361
  %v5543 = vsel %vm5517, %v5442, %v4363
  %v5544 = vsel %vm5517, %v5443, %v4365
  %v5545 = vsel %vm5517, %v5444, %v4367
  %v5546 = vsel %vm5517, %v5445, %v4369
  %v5547 = vsel %vm5517, %v5446, %v4371
  %v5548 = vsel %vm5517, %v5447, %v4373
  %v5549 = vsel %vm5517, %v5448, %v4375
  %v5550 = vsel %vm5517, %v5449, %v4377
  %v5551 = vsel %vm5517, %v5450, %v4379
  %v5552 = vsel %vm5517, %v5451, %v4381
  %v5553 = vsel %vm5517, %v5452, %v4383
  %v5554 = vsel %vm5517, %v5453, %v4385
  %v5555 = vsel %vm5517, %v5454, %v4387
  %v5556 = vsel %vm5517, %v5455, %v4389
  %v5557 = vsel %vm5517, %v5456, %v4391
  %v5558 = vsel %vm5517, %v5457, %v4393
  %v5559 = vsel %vm5517, %v5458, %v4395
  %v5560 = vsel %vm5517, %v5459, %v4397
  %v5561 = vsel %vm5517, %v5460, %v4399
  %v5562 = vsel %vm5517, %v5461, %v4401
  %v5563 = vsel %vm5517, %v5462, %v4403
  %v5564 = vsel %vm5517, %v5463, %v4405
  %v5565 = vsel %vm5517, %v5464, %v4407
  %v5566 = vsel %vm5517, %v5465, %v4409
  %v5567 = vsel %vm5517, %v5466, %v4411
  %v5568 = vsel %vm5517, %v5467, %v4413
  %v5569 = vsel %vm5517, %v5468, %v4415
  %v5570 = vsel %vm5517, %v5469, %v4417
  %v5571 = vsel %vm5517, %v5470, %v4419
  %v5572 = vsel %vm5517, %v5471, %v4421
  %v5573 = vsel %vm5517, %v5472, %v4423
  %v5574 = vsel %vm5517, %v5473, %v4425
  %v5575 = vsel %vm5517, %v5474, %v4427
  %v5576 = vsel %vm5517, %v5475, %v4429
  %v5577 = vsel %vm5517, %v5476, %v4431
  %v5578 = vsel %vm5517, %v5477, %v4433
  %v5579 = vsel %vm5517, %v5478, %v4435
  %v5580 = vsel %vm5517, %v5479, %v4437
  %v5581 = vsel %vm5517, %v5480, %v4439
  %v5582 = vsel %vm5517, %v5481, %v4441
  %v5583 = vsel %vm5517, %v5482, %v4443
  %v5584 = vsel %vm5517, %v5483, %v4445
  %v5585 = vsel %vm5517, %v5484, %v4447
  %v5586 = vsel %vm5517, %v5485, %v4449
  %v5587 = vsel %vm5517, %v5486, %v4451
  %v5588 = vsel %vm5517, %v5487, %v4453
  %v5589 = vsel %vm5517, %v5488, %v4455
  %v5590 = vsel %vm5517, %v5489, %v4457
  %v5591 = vsel %vm5517, %v5490, %v4459
  %v5592 = vsel %vm5517, %v5491, %v4461
  %v5593 = vsel %vm5517, %v5492, %v4463
  %v5594 = vsel %vm5517, %v5493, %v4465
  %v5595 = vsel %vm5517, %v5494, %v4467
  %v5596 = vsel %vm5517, %v5495, %v4469
  %v5597 = vsel %vm5517, %v5496, %v4471
  %v5598 = vsel %vm5517, %v5497, %v4473
  %v5599 = vsel %vm5517, %v5498, %v4475
  %v5600 = vsel %vm5517, %v5499, %v4477
  %v5601 = vsel %vm5517, %v5500, %v4479
  %v5602 = vsel %vm5517, %v5501, %v4481
  %v5603 = vsel %vm5517, %v5502, %v4483
  %v5604 = vsel %vm5517, %v5503, %v4485
  %v5605 = vsel %vm5517, %v5504, %v4487
  %v5606 = vsel %vm5517, %v5505, %v4489
  %v5607 = vsel %vm5517, %v5506, %v4491
  %v5608 = vsel %vm5517, %v5507, %v4493
  %v5609 = vsel %vm5517, %v5508, %v4495
  %v5610 = vsel %vm5517, %v5509, %v4497
  %v5611 = vsel %vm5517, %v5510, %v4499
  %v5612 = vsel %vm5517, %v5511, %v4501
  %v5613 = vsel %vm5517, %v5512, %v4503
  %v5614 = vsel %vm5517, %v5513, %v4505
  %v5615 = vsel %vm5517, %v5514, %v4507
  %v5616 = vsel %vm5517, %v5515, %v4509
  %v5617 = vsel %vm5517, %v5516, %v4511
  %vm5618 = vcmask 916480
  %v5619 = vsel %vm5618, %v5518, %v4614
  %v5620 = vsel %vm5618, %v5519, %v4616
  %v5621 = vsel %vm5618, %v5520, %v4618
  %v5622 = vsel %vm5618, %v5521, %v4620
  %v5623 = vsel %vm5618, %v5522, %v4622
  %v5624 = vsel %vm5618, %v5523, %v4624
  %v5625 = vsel %vm5618, %v5524, %v4626
  %v5626 = vsel %vm5618, %v5525, %v4628
  %v5627 = vsel %vm5618, %v5526, %v4630
  %v5628 = vsel %vm5618, %v5527, %v4632
  %v5629 = vsel %vm5618, %v5528, %v4634
  %v5630 = vsel %vm5618, %v5529, %v4636
  %v5631 = vsel %vm5618, %v5530, %v4638
  %v5632 = vsel %vm5618, %v5531, %v4640
  %v5633 = vsel %vm5618, %v5532, %v4642
  %v5634 = vsel %vm5618, %v5533, %v4644
  %v5635 = vsel %vm5618, %v5534, %v4646
  %v5636 = vsel %vm5618, %v5535, %v4648
  %v5637 = vsel %vm5618, %v5536, %v4650
  %v5638 = vsel %vm5618, %v5537, %v4652
  %v5639 = vsel %vm5618, %v5538, %v4654
  %v5640 = vsel %vm5618, %v5539, %v4656
  %v5641 = vsel %vm5618, %v5540, %v4658
  %v5642 = vsel %vm5618, %v5541, %v4660
  %v5643 = vsel %vm5618, %v5542, %v4662
  %v5644 = vsel %vm5618, %v5543, %v4664
  %v5645 = vsel %vm5618, %v5544, %v4666
  %v5646 = vsel %vm5618, %v5545, %v4668
  %v5647 = vsel %vm5618, %v5546, %v4670
  %v5648 = vsel %vm5618, %v5547, %v4672
  %v5649 = vsel %vm5618, %v5548, %v4674
  %v5650 = vsel %vm5618, %v5549, %v4676
  %v5651 = vsel %vm5618, %v5550, %v4678
  %v5652 = vsel %vm5618, %v5551, %v4680
  %v5653 = vsel %vm5618, %v5552, %v4682
  %v5654 = vsel %vm5618, %v5553, %v4684
  %v5655 = vsel %vm5618, %v5554, %v4686
  %v5656 = vsel %vm5618, %v5555, %v4688
  %v5657 = vsel %vm5618, %v5556, %v4690
  %v5658 = vsel %vm5618, %v5557, %v4692
  %v5659 = vsel %vm5618, %v5558, %v4694
  %v5660 = vsel %vm5618, %v5559, %v4696
  %v5661 = vsel %vm5618, %v5560, %v4698
  %v5662 = vsel %vm5618, %v5561, %v4700
  %v5663 = vsel %vm5618, %v5562, %v4702
  %v5664 = vsel %vm5618, %v5563, %v4704
  %v5665 = vsel %vm5618, %v5564, %v4706
  %v5666 = vsel %vm5618, %v5565, %v4708
  %v5667 = vsel %vm5618, %v5566, %v4710
  %v5668 = vsel %vm5618, %v5567, %v4712
  %v5669 = vsel %vm5618, %v5568, %v4714
  %v5670 = vsel %vm5618, %v5569, %v4716
  %v5671 = vsel %vm5618, %v5570, %v4718
  %v5672 = vsel %vm5618, %v5571, %v4720
  %v5673 = vsel %vm5618, %v5572, %v4722
  %v5674 = vsel %vm5618, %v5573, %v4724
  %v5675 = vsel %vm5618, %v5574, %v4726
  %v5676 = vsel %vm5618, %v5575, %v4728
  %v5677 = vsel %vm5618, %v5576, %v4730
  %v5678 = vsel %vm5618, %v5577, %v4732
  %v5679 = vsel %vm5618, %v5578, %v4734
  %v5680 = vsel %vm5618, %v5579, %v4736
  %v5681 = vsel %vm5618, %v5580, %v4738
  %v5682 = vsel %vm5618, %v5581, %v4740
  %v5683 = vsel %vm5618, %v5582, %v4742
  %v5684 = vsel %vm5618, %v5583, %v4744
  %v5685 = vsel %vm5618, %v5584, %v4746
  %v5686 = vsel %vm5618, %v5585, %v4748
  %v5687 = vsel %vm5618, %v5586, %v4750
  %v5688 = vsel %vm5618, %v5587, %v4752
  %v5689 = vsel %vm5618, %v5588, %v4754
  %v5690 = vsel %vm5618, %v5589, %v4756
  %v5691 = vsel %vm5618, %v5590, %v4758
  %v5692 = vsel %vm5618, %v5591, %v4760
  %v5693 = vsel %vm5618, %v5592, %v4762
  %v5694 = vsel %vm5618, %v5593, %v4764
  %v5695 = vsel %vm5618, %v5594, %v4766
  %v5696 = vsel %vm5618, %v5595, %v4768
  %v5697 = vsel %vm5618, %v5596, %v4770
  %v5698 = vsel %vm5618, %v5597, %v4772
  %v5699 = vsel %vm5618, %v5598, %v4774
  %v5700 = vsel %vm5618, %v5599, %v4776
  %v5701 = vsel %vm5618, %v5600, %v4778
  %v5702 = vsel %vm5618, %v5601, %v4780
  %v5703 = vsel %vm5618, %v5602, %v4782
  %v5704 = vsel %vm5618, %v5603, %v4784
  %v5705 = vsel %vm5618, %v5604, %v4786
  %v5706 = vsel %vm5618, %v5605, %v4788
  %v5707 = vsel %vm5618, %v5606, %v4790
  %v5708 = vsel %vm5618, %v5607, %v4792
  %v5709 = vsel %vm5618, %v5608, %v4794
  %v5710 = vsel %vm5618, %v5609, %v4796
  %v5711 = vsel %vm5618, %v5610, %v4798
  %v5712 = vsel %vm5618, %v5611, %v4800
  %v5713 = vsel %vm5618, %v5612, %v4802
  %v5714 = vsel %vm5618, %v5613, %v4804
  %v5715 = vsel %vm5618, %v5614, %v4806
  %v5716 = vsel %vm5618, %v5615, %v4808
  %v5717 = vsel %vm5618, %v5616, %v4810
  %v5718 = vsel %vm5618, %v5617, %v4812
  %v5719 = vld [vmem:[%s5] sm:$0xff]
  %v5720 = vld [vmem:[%s5 + $0x8] sm:$0xff]
  %v5721 = vld [vmem:[%s5 + $0x10] sm:$0xff]
  %v5722 = vld [vmem:[%s5 + $0x18] sm:$0xff]
  %v5723 = vld [vmem:[%s5 + $0x20] sm:$0xff]
  %v5724 = vld [vmem:[%s5 + $0x28] sm:$0xff]
  %v5725 = vld [vmem:[%s5 + $0x30] sm:$0xff]
  %v5726 = vld [vmem:[%s5 + $0x38] sm:$0xff]
  %v5727 = vld [vmem:[%s5 + $0x40] sm:$0xff]
  %v5728 = vld [vmem:[%s5 + $0x48] sm:$0xff]
  %v5729 = vld [vmem:[%s5 + $0x50] sm:$0xff]
  %v5730 = vld [vmem:[%s5 + $0x58] sm:$0xff]
  %v5731 = vld [vmem:[%s5 + $0x60] sm:$0xff]
  %v5732 = vld [vmem:[%s5 + $0x68] sm:$0xff]
  %v5733 = vld [vmem:[%s5 + $0x70] sm:$0xff]
  %v5734 = vld [vmem:[%s5 + $0x78] sm:$0xff]
  %v5735 = vld [vmem:[%s5 + $0x80] sm:$0xff]
  %v5736 = vld [vmem:[%s5 + $0x88] sm:$0xff]
  %v5737 = vld [vmem:[%s5 + $0x90] sm:$0xff]
  %v5738 = vld [vmem:[%s5 + $0x98] sm:$0xff]
  %v5739 = vld [vmem:[%s5 + $0xa0] sm:$0xff]
  %v5740 = vld [vmem:[%s5 + $0xa8] sm:$0xff]
  %v5741 = vld [vmem:[%s5 + $0xb0] sm:$0xff]
  %v5742 = vld [vmem:[%s5 + $0xb8] sm:$0xff]
  %v5743 = vld [vmem:[%s5 + $0xc0] sm:$0xff]
  %v5744 = vld [vmem:[%s5 + $0xc8] sm:$0xff]
  %v5745 = vld [vmem:[%s5 + $0xd0] sm:$0xff]
  %v5746 = vld [vmem:[%s5 + $0xd8] sm:$0xff]
  %v5747 = vld [vmem:[%s5 + $0xe0] sm:$0xff]
  %v5748 = vld [vmem:[%s5 + $0xe8] sm:$0xff]
  %v5749 = vld [vmem:[%s5 + $0xf0] sm:$0xff]
  %v5750 = vld [vmem:[%s5 + $0xf8] sm:$0xff]
  %v5751 = vld [vmem:[%s5 + $0x100] sm:$0xff]
  %v5752 = vld [vmem:[%s5 + $0x108] sm:$0x3f]
  %v5753 = vld [vmem:[%s6] sm:$0x1]
  %v5755 = vlaneseq
  %v5756 = vshrl.u32 %v5755, 7
  %v5757 = vsub.s32 0, %v5756
  %v5758 = vrot.slane %v5753, %v5757
  %vm5760 = vcmask 113664
  %v5761 = vsel %vm5760, %v4614, 0
  %v5763 = vsel %vm5760, %v4616, 0
  %v5765 = vsel %vm5760, %v4618, 0
  %v5767 = vsel %vm5760, %v4620, 0
  %v5769 = vsel %vm5760, %v4622, 0
  %v5771 = vsel %vm5760, %v4624, 0
  %v5773 = vsel %vm5760, %v4626, 0
  %v5775 = vsel %vm5760, %v4628, 0
  %v5777 = vsel %vm5760, %v4630, 0
  %v5779 = vsel %vm5760, %v4632, 0
  %v5781 = vsel %vm5760, %v4634, 0
  %v5783 = vsel %vm5760, %v4636, 0
  %v5785 = vsel %vm5760, %v4638, 0
  %v5787 = vsel %vm5760, %v4640, 0
  %v5789 = vsel %vm5760, %v4642, 0
  %v5791 = vsel %vm5760, %v4644, 0
  %v5793 = vsel %vm5760, %v4646, 0
  %v5795 = vsel %vm5760, %v4648, 0
  %v5797 = vsel %vm5760, %v4650, 0
  %v5799 = vsel %vm5760, %v4652, 0
  %v5801 = vsel %vm5760, %v4654, 0
  %v5803 = vsel %vm5760, %v4656, 0
  %v5805 = vsel %vm5760, %v4658, 0
  %v5807 = vsel %vm5760, %v4660, 0
  %v5809 = vsel %vm5760, %v4662, 0
  %v5811 = vsel %vm5760, %v4664, 0
  %v5813 = vsel %vm5760, %v4666, 0
  %v5815 = vsel %vm5760, %v4668, 0
  %v5817 = vsel %vm5760, %v4670, 0
  %v5819 = vsel %vm5760, %v4672, 0
  %v5821 = vsel %vm5760, %v4674, 0
  %v5823 = vsel %vm5760, %v4676, 0
  %v5825 = vsel %vm5760, %v4678, 0
  %v5827 = vsel %vm5760, %v4680, 0
  %v5829 = vsel %vm5760, %v4682, 0
  %v5831 = vsel %vm5760, %v4684, 0
  %v5833 = vsel %vm5760, %v4686, 0
  %v5835 = vsel %vm5760, %v4688, 0
  %v5837 = vsel %vm5760, %v4690, 0
  %v5839 = vsel %vm5760, %v4692, 0
  %v5841 = vsel %vm5760, %v4694, 0
  %v5843 = vsel %vm5760, %v4696, 0
  %v5845 = vsel %vm5760, %v4698, 0
  %v5847 = vsel %vm5760, %v4700, 0
  %v5849 = vsel %vm5760, %v4702, 0
  %v5851 = vsel %vm5760, %v4704, 0
  %v5853 = vsel %vm5760, %v4706, 0
  %v5855 = vsel %vm5760, %v4708, 0
  %v5857 = vsel %vm5760, %v4710, 0
  %v5859 = vsel %vm5760, %v4712, 0
  %v5861 = vsel %vm5760, %v4714, 0
  %v5863 = vsel %vm5760, %v4716, 0
  %v5865 = vsel %vm5760, %v4718, 0
  %v5867 = vsel %vm5760, %v4720, 0
  %v5869 = vsel %vm5760, %v4722, 0
  %v5871 = vsel %vm5760, %v4724, 0
  %v5873 = vsel %vm5760, %v4726, 0
  %v5875 = vsel %vm5760, %v4728, 0
  %v5877 = vsel %vm5760, %v4730, 0
  %v5879 = vsel %vm5760, %v4732, 0
  %v5881 = vsel %vm5760, %v4734, 0
  %v5883 = vsel %vm5760, %v4736, 0
  %v5885 = vsel %vm5760, %v4738, 0
  %v5887 = vsel %vm5760, %v4740, 0
  %v5889 = vsel %vm5760, %v4742, 0
  %v5891 = vsel %vm5760, %v4744, 0
  %v5893 = vsel %vm5760, %v4746, 0
  %v5895 = vsel %vm5760, %v4748, 0
  %v5897 = vsel %vm5760, %v4750, 0
  %v5899 = vsel %vm5760, %v4752, 0
  %v5901 = vsel %vm5760, %v4754, 0
  %v5903 = vsel %vm5760, %v4756, 0
  %v5905 = vsel %vm5760, %v4758, 0
  %v5907 = vsel %vm5760, %v4760, 0
  %v5909 = vsel %vm5760, %v4762, 0
  %v5911 = vsel %vm5760, %v4764, 0
  %v5913 = vsel %vm5760, %v4766, 0
  %v5915 = vsel %vm5760, %v4768, 0
  %v5917 = vsel %vm5760, %v4770, 0
  %v5919 = vsel %vm5760, %v4772, 0
  %v5921 = vsel %vm5760, %v4774, 0
  %v5923 = vsel %vm5760, %v4776, 0
  %v5925 = vsel %vm5760, %v4778, 0
  %v5927 = vsel %vm5760, %v4780, 0
  %v5929 = vsel %vm5760, %v4782, 0
  %v5931 = vsel %vm5760, %v4784, 0
  %v5933 = vsel %vm5760, %v4786, 0
  %v5935 = vsel %vm5760, %v4788, 0
  %v5937 = vsel %vm5760, %v4790, 0
  %v5939 = vsel %vm5760, %v4792, 0
  %v5941 = vsel %vm5760, %v4794, 0
  %v5943 = vsel %vm5760, %v4796, 0
  %v5945 = vsel %vm5760, %v4798, 0
  %v5947 = vsel %vm5760, %v4800, 0
  %v5949 = vsel %vm5760, %v4802, 0
  %v5951 = vsel %vm5760, %v4804, 0
  %v5953 = vsel %vm5760, %v4806, 0
  %v5955 = vsel %vm5760, %v4808, 0
  %v5957 = vsel %vm5760, %v4810, 0
  %v5959 = vsel %vm5760, %v4812, 0
  %vm5961 = vcmask 1045504
  %v5963 = vsel %vm5961, %v5752, 0
  %5965 = vmatprep.subr.mxu0 0.0
  %5966 = vmatpush1.msra.mxu0 %v5734
  %5967 = vmatprep.subr.mxu0 0.0
  %5968 = vmatpush1.msra.mxu0 %v5733
  %5969 = vmatprep.subr.mxu0 0.0
  %5970 = vmatpush1.msra.mxu0 %v5732
  %5971 = vmatprep.subr.mxu0 0.0
  %5972 = vmatpush1.msra.mxu0 %v5731
  %5973 = vmatprep.subr.mxu0 0.0
  %5974 = vmatpush1.msra.mxu0 %v5730
  %5975 = vmatprep.subr.mxu0 0.0
  %5976 = vmatpush1.msra.mxu0 %v5729
  %5977 = vmatprep.subr.mxu0 0.0
  %5978 = vmatpush1.msra.mxu0 %v5728
  %5979 = vmatprep.subr.mxu0 0.0
  %5980 = vmatpush1.msra.mxu0 %v5727
  %5981 = vmatprep.subr.mxu0 0.0
  %5982 = vmatpush1.msra.mxu0 %v5726
  %5983 = vmatprep.subr.mxu0 0.0
  %5984 = vmatpush1.msra.mxu0 %v5725
  %5985 = vmatprep.subr.mxu0 0.0
  %5986 = vmatpush1.msra.mxu0 %v5724
  %5987 = vmatprep.subr.mxu0 0.0
  %5988 = vmatpush1.msra.mxu0 %v5723
  %5989 = vmatprep.subr.mxu0 0.0
  %5990 = vmatpush1.msra.mxu0 %v5722
  %5991 = vmatprep.subr.mxu0 0.0
  %5992 = vmatpush1.msra.mxu0 %v5721
  %5993 = vmatprep.subr.mxu0 0.0
  %5994 = vmatpush1.msra.mxu0 %v5720
  %5995 = vmatprep.subr.mxu0 0.0
  %5996 = vmatpush1.msra.mxu0 %v5719
  %5997 = vmatprep.subr.mxu0 0.0
  %5998 = vmatpush2.msra.mxu0 %v5750
  %5999 = vmatprep.subr.mxu0 0.0
  %6000 = vmatpush2.msra.mxu0 %v5749
  %6001 = vmatprep.subr.mxu0 0.0
  %6002 = vmatpush2.msra.mxu0 %v5748
  %6003 = vmatprep.subr.mxu0 0.0
  %6004 = vmatpush2.msra.mxu0 %v5747
  %6005 = vmatprep.subr.mxu0 0.0
  %6006 = vmatpush2.msra.mxu0 %v5746
  %6007 = vmatprep.subr.mxu0 0.0
  %6008 = vmatpush2.msra.mxu0 %v5745
  %6009 = vmatprep.subr.mxu0 0.0
  %6010 = vmatpush2.msra.mxu0 %v5744
  %6011 = vmatprep.subr.mxu0 0.0
  %6012 = vmatpush2.msra.mxu0 %v5743
  %6013 = vmatprep.subr.mxu0 0.0
  %6014 = vmatpush2.msra.mxu0 %v5742
  %6015 = vmatprep.subr.mxu0 0.0
  %6016 = vmatpush2.msra.mxu0 %v5741
  %6017 = vmatprep.subr.mxu0 0.0
  %6018 = vmatpush2.msra.mxu0 %v5740
  %6019 = vmatprep.subr.mxu0 0.0
  %6020 = vmatpush2.msra.mxu0 %v5739
  %6021 = vmatprep.subr.mxu0 0.0
  %6022 = vmatpush2.msra.mxu0 %v5738
  %6023 = vmatprep.subr.mxu0 0.0
  %6024 = vmatpush2.msra.mxu0 %v5737
  %6025 = vmatprep.subr.mxu0 0.0
  %6026 = vmatpush2.msra.mxu0 %v5736
  %6027 = vmatprep.subr.mxu0 0.0
  %6028 = vmatpush2.msra.mxu0 %v5735
  %6029 = vmatprep.mubr.f32.mxu0 %v5619
  %6030 = vmatmul.mubr.f32.gmra.mxu0 %v5215
  %v6031 = vpop.f32.mrf.mxu0
  %v6032 = vadd.f32 %v5758, %v6031
  %v6033 = vpop.f32.mrf.mxu0
  %6034 = vmatprep.mubr.f32.mxu0 %v5620
  %6035 = vmatmul.mubr.f32.gmra.mxu0 %v5216
  %v6036 = vpop.f32.mrf.mxu0
  %v6037 = vadd.f32 %v5758, %v6036
  %v6038 = vpop.f32.mrf.mxu0
  %6039 = vmatprep.mubr.f32.mxu0 %v5621
  %6040 = vmatmul.mubr.f32.gmra.mxu0 %v5217
  %v6041 = vpop.f32.mrf.mxu0
  %v6042 = vadd.f32 %v5758, %v6041
  %v6043 = vpop.f32.mrf.mxu0
  %6044 = vmatprep.mubr.f32.mxu0 %v5622
  %6045 = vmatmul.mubr.f32.gmra.mxu0 %v5218
  %v6046 = vpop.f32.mrf.mxu0
  %v6047 = vadd.f32 %v5758, %v6046
  %v6048 = vpop.f32.mrf.mxu0
  %6049 = vmatprep.mubr.f32.mxu0 %v5623
  %6050 = vmatmul.mubr.f32.gmra.mxu0 %v5219
  %v6051 = vpop.f32.mrf.mxu0
  %v6052 = vadd.f32 %v5758, %v6051
  %v6053 = vpop.f32.mrf.mxu0
  %6054 = vmatprep.mubr.f32.mxu0 %v5624
  %6055 = vmatmul.mubr.f32.gmra.mxu0 %v5220
  %v6056 = vpop.f32.mrf.mxu0
  %v6057 = vadd.f32 %v5758, %v6056
  %v6058 = vpop.f32.mrf.mxu0
  %6059 = vmatprep.mubr.f32.mxu0 %v5625
  %6060 = vmatmul.mubr.f32.gmra.mxu0 %v5221
  %v6061 = vpop.f32.mrf.mxu0
  %v6062 = vadd.f32 %v5758, %v6061
  %v6063 = vpop.f32.mrf.mxu0
  %6064 = vmatprep.mubr.f32.mxu0 %v5626
  %6065 = vmatmul.mubr.f32.gmra.mxu0 %v5222
  %v6066 = vpop.f32.mrf.mxu0
  %v6067 = vadd.f32 %v5758, %v6066
  %v6068 = vpop.f32.mrf.mxu0
  %6069 = vmatprep.mubr.f32.mxu0 %v5627
  %6070 = vmatmul.mubr.f32.gmra.mxu0 %v5223
  %v6071 = vpop.f32.mrf.mxu0
  %v6072 = vadd.f32 %v5758, %v6071
  %v6073 = vpop.f32.mrf.mxu0
  %6074 = vmatprep.mubr.f32.mxu0 %v5628
  %6075 = vmatmul.mubr.f32.gmra.mxu0 %v5224
  %v6076 = vpop.f32.mrf.mxu0
  %v6077 = vadd.f32 %v5758, %v6076
  %v6078 = vpop.f32.mrf.mxu0
  %6079 = vmatprep.mubr.f32.mxu0 %v5629
  %6080 = vmatmul.mubr.f32.gmra.mxu0 %v5225
  %v6081 = vpop.f32.mrf.mxu0
  %v6082 = vadd.f32 %v5758, %v6081
  %v6083 = vpop.f32.mrf.mxu0
  %6084 = vmatprep.mubr.f32.mxu0 %v5630
  %6085 = vmatmul.mubr.f32.gmra.mxu0 %v5226
  %v6086 = vpop.f32.mrf.mxu0
  %v6087 = vadd.f32 %v5758, %v6086
  %v6088 = vpop.f32.mrf.mxu0
  %6089 = vmatprep.mubr.f32.mxu0 %v5631
  %6090 = vmatmul.mubr.f32.gmra.mxu0 %v5227
  %v6091 = vpop.f32.mrf.mxu0
  %v6092 = vadd.f32 %v5758, %v6091
  %v6093 = vpop.f32.mrf.mxu0
  %6094 = vmatprep.mubr.f32.mxu0 %v5632
  %6095 = vmatmul.mubr.f32.gmra.mxu0 %v5228
  %v6096 = vpop.f32.mrf.mxu0
  %v6097 = vadd.f32 %v5758, %v6096
  %v6098 = vpop.f32.mrf.mxu0
  %6099 = vmatprep.mubr.f32.mxu0 %v5633
  %6100 = vmatmul.mubr.f32.gmra.mxu0 %v5229
  %v6101 = vpop.f32.mrf.mxu0
  %v6102 = vadd.f32 %v5758, %v6101
  %v6103 = vpop.f32.mrf.mxu0
  %6104 = vmatprep.mubr.f32.mxu0 %v5634
  %6105 = vmatmul.mubr.f32.gmra.mxu0 %v5230
  %v6106 = vpop.f32.mrf.mxu0
  %v6107 = vadd.f32 %v5758, %v6106
  %v6108 = vpop.f32.mrf.mxu0
  %6109 = vmatprep.mubr.f32.mxu0 %v5635
  %6110 = vmatmul.mubr.f32.gmra.mxu0 %v5231
  %v6111 = vpop.f32.mrf.mxu0
  %v6112 = vadd.f32 %v5758, %v6111
  %v6113 = vpop.f32.mrf.mxu0
  %6114 = vmatprep.mubr.f32.mxu0 %v5636
  %6115 = vmatmul.mubr.f32.gmra.mxu0 %v5232
  %v6116 = vpop.f32.mrf.mxu0
  %v6117 = vadd.f32 %v5758, %v6116
  %v6118 = vpop.f32.mrf.mxu0
  %6119 = vmatprep.mubr.f32.mxu0 %v5637
  %6120 = vmatmul.mubr.f32.gmra.mxu0 %v5233
  %v6121 = vpop.f32.mrf.mxu0
  %v6122 = vadd.f32 %v5758, %v6121
  %v6123 = vpop.f32.mrf.mxu0
  %6124 = vmatprep.mubr.f32.mxu0 %v5638
  %6125 = vmatmul.mubr.f32.gmra.mxu0 %v5234
  %v6126 = vpop.f32.mrf.mxu0
  %v6127 = vadd.f32 %v5758, %v6126
  %v6128 = vpop.f32.mrf.mxu0
  %6129 = vmatprep.mubr.f32.mxu0 %v5639
  %6130 = vmatmul.mubr.f32.gmra.mxu0 %v5235
  %v6131 = vpop.f32.mrf.mxu0
  %v6132 = vadd.f32 %v5758, %v6131
  %v6133 = vpop.f32.mrf.mxu0
  %6134 = vmatprep.mubr.f32.mxu0 %v5640
  %6135 = vmatmul.mubr.f32.gmra.mxu0 %v5236
  %v6136 = vpop.f32.mrf.mxu0
  %v6137 = vadd.f32 %v5758, %v6136
  %v6138 = vpop.f32.mrf.mxu0
  %6139 = vmatprep.mubr.f32.mxu0 %v5641
  %6140 = vmatmul.mubr.f32.gmra.mxu0 %v5237
  %v6141 = vpop.f32.mrf.mxu0
  %v6142 = vadd.f32 %v5758, %v6141
  %v6143 = vpop.f32.mrf.mxu0
  %6144 = vmatprep.mubr.f32.mxu0 %v5642
  %6145 = vmatmul.mubr.f32.gmra.mxu0 %v5238
  %v6146 = vpop.f32.mrf.mxu0
  %v6147 = vadd.f32 %v5758, %v6146
  %v6148 = vpop.f32.mrf.mxu0
  %6149 = vmatprep.mubr.f32.mxu0 %v5643
  %6150 = vmatmul.mubr.f32.gmra.mxu0 %v5239
  %v6151 = vpop.f32.mrf.mxu0
  %v6152 = vadd.f32 %v5758, %v6151
  %v6153 = vpop.f32.mrf.mxu0
  %6154 = vmatprep.mubr.f32.mxu0 %v5644
  %6155 = vmatmul.mubr.f32.gmra.mxu0 %v5240
  %v6156 = vpop.f32.mrf.mxu0
  %v6157 = vadd.f32 %v5758, %v6156
  %v6158 = vpop.f32.mrf.mxu0
  %6159 = vmatprep.mubr.f32.mxu0 %v5645
  %6160 = vmatmul.mubr.f32.gmra.mxu0 %v5241
  %v6161 = vpop.f32.mrf.mxu0
  %v6162 = vadd.f32 %v5758, %v6161
  %v6163 = vpop.f32.mrf.mxu0
  %6164 = vmatprep.mubr.f32.mxu0 %v5646
  %6165 = vmatmul.mubr.f32.gmra.mxu0 %v5242
  %v6166 = vpop.f32.mrf.mxu0
  %v6167 = vadd.f32 %v5758, %v6166
  %v6168 = vpop.f32.mrf.mxu0
  %6169 = vmatprep.mubr.f32.mxu0 %v5647
  %6170 = vmatmul.mubr.f32.gmra.mxu0 %v5243
  %v6171 = vpop.f32.mrf.mxu0
  %v6172 = vadd.f32 %v5758, %v6171
  %v6173 = vpop.f32.mrf.mxu0
  %6174 = vmatprep.mubr.f32.mxu0 %v5648
  %6175 = vmatmul.mubr.f32.gmra.mxu0 %v5244
  %v6176 = vpop.f32.mrf.mxu0
  %v6177 = vadd.f32 %v5758, %v6176
  %v6178 = vpop.f32.mrf.mxu0
  %6179 = vmatprep.mubr.f32.mxu0 %v5649
  %6180 = vmatmul.mubr.f32.gmra.mxu0 %v5245
  %v6181 = vpop.f32.mrf.mxu0
  %v6182 = vadd.f32 %v5758, %v6181
  %v6183 = vpop.f32.mrf.mxu0
  %6184 = vmatprep.mubr.f32.mxu0 %v5650
  %6185 = vmatmul.mubr.f32.gmra.mxu0 %v5246
  %v6186 = vpop.f32.mrf.mxu0
  %v6187 = vadd.f32 %v5758, %v6186
  %v6188 = vpop.f32.mrf.mxu0
  %6189 = vmatprep.mubr.f32.mxu0 %v5651
  %6190 = vmatmul.mubr.f32.gmra.mxu0 %v5247
  %v6191 = vpop.f32.mrf.mxu0
  %v6192 = vadd.f32 %v5758, %v6191
  %v6193 = vpop.f32.mrf.mxu0
  %6194 = vmatprep.mubr.f32.mxu0 %v5652
  %6195 = vmatmul.mubr.f32.gmra.mxu0 %v5248
  %v6196 = vpop.f32.mrf.mxu0
  %v6197 = vadd.f32 %v5758, %v6196
  %v6198 = vpop.f32.mrf.mxu0
  %6199 = vmatprep.mubr.f32.mxu0 %v5653
  %6200 = vmatmul.mubr.f32.gmra.mxu0 %v5249
  %v6201 = vpop.f32.mrf.mxu0
  %v6202 = vadd.f32 %v5758, %v6201
  %v6203 = vpop.f32.mrf.mxu0
  %6204 = vmatprep.mubr.f32.mxu0 %v5654
  %6205 = vmatmul.mubr.f32.gmra.mxu0 %v5250
  %v6206 = vpop.f32.mrf.mxu0
  %v6207 = vadd.f32 %v5758, %v6206
  %v6208 = vpop.f32.mrf.mxu0
  %6209 = vmatprep.mubr.f32.mxu0 %v5655
  %6210 = vmatmul.mubr.f32.gmra.mxu0 %v5251
  %v6211 = vpop.f32.mrf.mxu0
  %v6212 = vadd.f32 %v5758, %v6211
  %v6213 = vpop.f32.mrf.mxu0
  %6214 = vmatprep.mubr.f32.mxu0 %v5656
  %6215 = vmatmul.mubr.f32.gmra.mxu0 %v5252
  %v6216 = vpop.f32.mrf.mxu0
  %v6217 = vadd.f32 %v5758, %v6216
  %v6218 = vpop.f32.mrf.mxu0
  %6219 = vmatprep.mubr.f32.mxu0 %v5657
  %6220 = vmatmul.mubr.f32.gmra.mxu0 %v5253
  %v6221 = vpop.f32.mrf.mxu0
  %v6222 = vadd.f32 %v5758, %v6221
  %v6223 = vpop.f32.mrf.mxu0
  %6224 = vmatprep.mubr.f32.mxu0 %v5658
  %6225 = vmatmul.mubr.f32.gmra.mxu0 %v5254
  %v6226 = vpop.f32.mrf.mxu0
  %v6227 = vadd.f32 %v5758, %v6226
  %v6228 = vpop.f32.mrf.mxu0
  %6229 = vmatprep.mubr.f32.mxu0 %v5659
  %6230 = vmatmul.mubr.f32.gmra.mxu0 %v5255
  %v6231 = vpop.f32.mrf.mxu0
  %v6232 = vadd.f32 %v5758, %v6231
  %v6233 = vpop.f32.mrf.mxu0
  %6234 = vmatprep.mubr.f32.mxu0 %v5660
  %6235 = vmatmul.mubr.f32.gmra.mxu0 %v5256
  %v6236 = vpop.f32.mrf.mxu0
  %v6237 = vadd.f32 %v5758, %v6236
  %v6238 = vpop.f32.mrf.mxu0
  %6239 = vmatprep.mubr.f32.mxu0 %v5661
  %6240 = vmatmul.mubr.f32.gmra.mxu0 %v5257
  %v6241 = vpop.f32.mrf.mxu0
  %v6242 = vadd.f32 %v5758, %v6241
  %v6243 = vpop.f32.mrf.mxu0
  %6244 = vmatprep.mubr.f32.mxu0 %v5662
  %6245 = vmatmul.mubr.f32.gmra.mxu0 %v5258
  %v6246 = vpop.f32.mrf.mxu0
  %v6247 = vadd.f32 %v5758, %v6246
  %v6248 = vpop.f32.mrf.mxu0
  %6249 = vmatprep.mubr.f32.mxu0 %v5663
  %6250 = vmatmul.mubr.f32.gmra.mxu0 %v5259
  %v6251 = vpop.f32.mrf.mxu0
  %v6252 = vadd.f32 %v5758, %v6251
  %v6253 = vpop.f32.mrf.mxu0
  %6254 = vmatprep.mubr.f32.mxu0 %v5664
  %6255 = vmatmul.mubr.f32.gmra.mxu0 %v5260
  %v6256 = vpop.f32.mrf.mxu0
  %v6257 = vadd.f32 %v5758, %v6256
  %v6258 = vpop.f32.mrf.mxu0
  %6259 = vmatprep.mubr.f32.mxu0 %v5665
  %6260 = vmatmul.mubr.f32.gmra.mxu0 %v5261
  %v6261 = vpop.f32.mrf.mxu0
  %v6262 = vadd.f32 %v5758, %v6261
  %v6263 = vpop.f32.mrf.mxu0
  %6264 = vmatprep.mubr.f32.mxu0 %v5666
  %6265 = vmatmul.mubr.f32.gmra.mxu0 %v5262
  %v6266 = vpop.f32.mrf.mxu0
  %v6267 = vadd.f32 %v5758, %v6266
  %v6268 = vpop.f32.mrf.mxu0
  %6269 = vmatprep.mubr.f32.mxu0 %v5667
  %6270 = vmatmul.mubr.f32.gmra.mxu0 %v5263
  %v6271 = vpop.f32.mrf.mxu0
  %v6272 = vadd.f32 %v5758, %v6271
  %v6273 = vpop.f32.mrf.mxu0
  %6274 = vmatprep.mubr.f32.mxu0 %v5668
  %6275 = vmatmul.mubr.f32.gmra.mxu0 %v5264
  %v6276 = vpop.f32.mrf.mxu0
  %v6277 = vadd.f32 %v5758, %v6276
  %v6278 = vpop.f32.mrf.mxu0
  %6279 = vmatprep.mubr.f32.mxu0 %v5669
  %6280 = vmatmul.mubr.f32.gmra.mxu0 %v5265
  %v6281 = vpop.f32.mrf.mxu0
  %v6282 = vadd.f32 %v5758, %v6281
  %v6283 = vpop.f32.mrf.mxu0
  %6284 = vmatprep.mubr.f32.mxu0 %v5670
  %6285 = vmatmul.mubr.f32.gmra.mxu0 %v5266
  %v6286 = vpop.f32.mrf.mxu0
  %v6287 = vadd.f32 %v5758, %v6286
  %v6288 = vpop.f32.mrf.mxu0
  %6289 = vmatprep.mubr.f32.mxu0 %v5671
  %6290 = vmatmul.mubr.f32.gmra.mxu0 %v5267
  %v6291 = vpop.f32.mrf.mxu0
  %v6292 = vadd.f32 %v5758, %v6291
  %v6293 = vpop.f32.mrf.mxu0
  %6294 = vmatprep.mubr.f32.mxu0 %v5672
  %6295 = vmatmul.mubr.f32.gmra.mxu0 %v5268
  %v6296 = vpop.f32.mrf.mxu0
  %v6297 = vadd.f32 %v5758, %v6296
  %v6298 = vpop.f32.mrf.mxu0
  %6299 = vmatprep.mubr.f32.mxu0 %v5673
  %6300 = vmatmul.mubr.f32.gmra.mxu0 %v5269
  %v6301 = vpop.f32.mrf.mxu0
  %v6302 = vadd.f32 %v5758, %v6301
  %v6303 = vpop.f32.mrf.mxu0
  %6304 = vmatprep.mubr.f32.mxu0 %v5674
  %6305 = vmatmul.mubr.f32.gmra.mxu0 %v5270
  %v6306 = vpop.f32.mrf.mxu0
  %v6307 = vadd.f32 %v5758, %v6306
  %v6308 = vpop.f32.mrf.mxu0
  %6309 = vmatprep.mubr.f32.mxu0 %v5675
  %6310 = vmatmul.mubr.f32.gmra.mxu0 %v5271
  %v6311 = vpop.f32.mrf.mxu0
  %v6312 = vadd.f32 %v5758, %v6311
  %v6313 = vpop.f32.mrf.mxu0
  %6314 = vmatprep.mubr.f32.mxu0 %v5676
  %6315 = vmatmul.mubr.f32.gmra.mxu0 %v5272
  %v6316 = vpop.f32.mrf.mxu0
  %v6317 = vadd.f32 %v5758, %v6316
  %v6318 = vpop.f32.mrf.mxu0
  %6319 = vmatprep.mubr.f32.mxu0 %v5677
  %6320 = vmatmul.mubr.f32.gmra.mxu0 %v5273
  %v6321 = vpop.f32.mrf.mxu0
  %v6322 = vadd.f32 %v5758, %v6321
  %v6323 = vpop.f32.mrf.mxu0
  %6324 = vmatprep.mubr.f32.mxu0 %v5678
  %6325 = vmatmul.mubr.f32.gmra.mxu0 %v5274
  %v6326 = vpop.f32.mrf.mxu0
  %v6327 = vadd.f32 %v5758, %v6326
  %v6328 = vpop.f32.mrf.mxu0
  %6329 = vmatprep.mubr.f32.mxu0 %v5679
  %6330 = vmatmul.mubr.f32.gmra.mxu0 %v5275
  %v6331 = vpop.f32.mrf.mxu0
  %v6332 = vadd.f32 %v5758, %v6331
  %v6333 = vpop.f32.mrf.mxu0
  %6334 = vmatprep.mubr.f32.mxu0 %v5680
  %6335 = vmatmul.mubr.f32.gmra.mxu0 %v5276
  %v6336 = vpop.f32.mrf.mxu0
  %v6337 = vadd.f32 %v5758, %v6336
  %v6338 = vpop.f32.mrf.mxu0
  %6339 = vmatprep.mubr.f32.mxu0 %v5681
  %6340 = vmatmul.mubr.f32.gmra.mxu0 %v5277
  %v6341 = vpop.f32.mrf.mxu0
  %v6342 = vadd.f32 %v5758, %v6341
  %v6343 = vpop.f32.mrf.mxu0
  %6344 = vmatprep.mubr.f32.mxu0 %v5682
  %6345 = vmatmul.mubr.f32.gmra.mxu0 %v5278
  %v6346 = vpop.f32.mrf.mxu0
  %v6347 = vadd.f32 %v5758, %v6346
  %v6348 = vpop.f32.mrf.mxu0
  %6349 = vmatprep.mubr.f32.mxu0 %v5683
  %6350 = vmatmul.mubr.f32.gmra.mxu0 %v5279
  %v6351 = vpop.f32.mrf.mxu0
  %v6352 = vadd.f32 %v5758, %v6351
  %v6353 = vpop.f32.mrf.mxu0
  %6354 = vmatprep.mubr.f32.mxu0 %v5684
  %6355 = vmatmul.mubr.f32.gmra.mxu0 %v5280
  %v6356 = vpop.f32.mrf.mxu0
  %v6357 = vadd.f32 %v5758, %v6356
  %v6358 = vpop.f32.mrf.mxu0
  %6359 = vmatprep.mubr.f32.mxu0 %v5685
  %6360 = vmatmul.mubr.f32.gmra.mxu0 %v5281
  %v6361 = vpop.f32.mrf.mxu0
  %v6362 = vadd.f32 %v5758, %v6361
  %v6363 = vpop.f32.mrf.mxu0
  %6364 = vmatprep.mubr.f32.mxu0 %v5686
  %6365 = vmatmul.mubr.f32.gmra.mxu0 %v5282
  %v6366 = vpop.f32.mrf.mxu0
  %v6367 = vadd.f32 %v5758, %v6366
  %v6368 = vpop.f32.mrf.mxu0
  %6369 = vmatprep.mubr.f32.mxu0 %v5687
  %6370 = vmatmul.mubr.f32.gmra.mxu0 %v5283
  %v6371 = vpop.f32.mrf.mxu0
  %v6372 = vadd.f32 %v5758, %v6371
  %v6373 = vpop.f32.mrf.mxu0
  %6374 = vmatprep.mubr.f32.mxu0 %v5688
  %6375 = vmatmul.mubr.f32.gmra.mxu0 %v5284
  %v6376 = vpop.f32.mrf.mxu0
  %v6377 = vadd.f32 %v5758, %v6376
  %v6378 = vpop.f32.mrf.mxu0
  %6379 = vmatprep.mubr.f32.mxu0 %v5689
  %6380 = vmatmul.mubr.f32.gmra.mxu0 %v5285
  %v6381 = vpop.f32.mrf.mxu0
  %v6382 = vadd.f32 %v5758, %v6381
  %v6383 = vpop.f32.mrf.mxu0
  %6384 = vmatprep.mubr.f32.mxu0 %v5690
  %6385 = vmatmul.mubr.f32.gmra.mxu0 %v5286
  %v6386 = vpop.f32.mrf.mxu0
  %v6387 = vadd.f32 %v5758, %v6386
  %v6388 = vpop.f32.mrf.mxu0
  %6389 = vmatprep.mubr.f32.mxu0 %v5691
  %6390 = vmatmul.mubr.f32.gmra.mxu0 %v5287
  %v6391 = vpop.f32.mrf.mxu0
  %v6392 = vadd.f32 %v5758, %v6391
  %v6393 = vpop.f32.mrf.mxu0
  %6394 = vmatprep.mubr.f32.mxu0 %v5692
  %6395 = vmatmul.mubr.f32.gmra.mxu0 %v5288
  %v6396 = vpop.f32.mrf.mxu0
  %v6397 = vadd.f32 %v5758, %v6396
  %v6398 = vpop.f32.mrf.mxu0
  %6399 = vmatprep.mubr.f32.mxu0 %v5693
  %6400 = vmatmul.mubr.f32.gmra.mxu0 %v5289
  %v6401 = vpop.f32.mrf.mxu0
  %v6402 = vadd.f32 %v5758, %v6401
  %v6403 = vpop.f32.mrf.mxu0
  %6404 = vmatprep.mubr.f32.mxu0 %v5694
  %6405 = vmatmul.mubr.f32.gmra.mxu0 %v5290
  %v6406 = vpop.f32.mrf.mxu0
  %v6407 = vadd.f32 %v5758, %v6406
  %v6408 = vpop.f32.mrf.mxu0
  %6409 = vmatprep.mubr.f32.mxu0 %v5695
  %6410 = vmatmul.mubr.f32.gmra.mxu0 %v5291
  %v6411 = vpop.f32.mrf.mxu0
  %v6412 = vadd.f32 %v5758, %v6411
  %v6413 = vpop.f32.mrf.mxu0
  %6414 = vmatprep.mubr.f32.mxu0 %v5696
  %6415 = vmatmul.mubr.f32.gmra.mxu0 %v5292
  %v6416 = vpop.f32.mrf.mxu0
  %v6417 = vadd.f32 %v5758, %v6416
  %v6418 = vpop.f32.mrf.mxu0
  %6419 = vmatprep.mubr.f32.mxu0 %v5697
  %6420 = vmatmul.mubr.f32.gmra.mxu0 %v5293
  %v6421 = vpop.f32.mrf.mxu0
  %v6422 = vadd.f32 %v5758, %v6421
  %v6423 = vpop.f32.mrf.mxu0
  %6424 = vmatprep.mubr.f32.mxu0 %v5698
  %6425 = vmatmul.mubr.f32.gmra.mxu0 %v5294
  %v6426 = vpop.f32.mrf.mxu0
  %v6427 = vadd.f32 %v5758, %v6426
  %v6428 = vpop.f32.mrf.mxu0
  %6429 = vmatprep.mubr.f32.mxu0 %v5699
  %6430 = vmatmul.mubr.f32.gmra.mxu0 %v5295
  %v6431 = vpop.f32.mrf.mxu0
  %v6432 = vadd.f32 %v5758, %v6431
  %v6433 = vpop.f32.mrf.mxu0
  %6434 = vmatprep.mubr.f32.mxu0 %v5700
  %6435 = vmatmul.mubr.f32.gmra.mxu0 %v5296
  %v6436 = vpop.f32.mrf.mxu0
  %v6437 = vadd.f32 %v5758, %v6436
  %v6438 = vpop.f32.mrf.mxu0
  %6439 = vmatprep.mubr.f32.mxu0 %v5701
  %6440 = vmatmul.mubr.f32.gmra.mxu0 %v5297
  %v6441 = vpop.f32.mrf.mxu0
  %v6442 = vadd.f32 %v5758, %v6441
  %v6443 = vpop.f32.mrf.mxu0
  %6444 = vmatprep.mubr.f32.mxu0 %v5702
  %6445 = vmatmul.mubr.f32.gmra.mxu0 %v5298
  %v6446 = vpop.f32.mrf.mxu0
  %v6447 = vadd.f32 %v5758, %v6446
  %v6448 = vpop.f32.mrf.mxu0
  %6449 = vmatprep.mubr.f32.mxu0 %v5703
  %6450 = vmatmul.mubr.f32.gmra.mxu0 %v5299
  %v6451 = vpop.f32.mrf.mxu0
  %v6452 = vadd.f32 %v5758, %v6451
  %v6453 = vpop.f32.mrf.mxu0
  %6454 = vmatprep.mubr.f32.mxu0 %v5704
  %6455 = vmatmul.mubr.f32.gmra.mxu0 %v5300
  %v6456 = vpop.f32.mrf.mxu0
  %v6457 = vadd.f32 %v5758, %v6456
  %v6458 = vpop.f32.mrf.mxu0
  %6459 = vmatprep.mubr.f32.mxu0 %v5705
  %6460 = vmatmul.mubr.f32.gmra.mxu0 %v5301
  %v6461 = vpop.f32.mrf.mxu0
  %v6462 = vadd.f32 %v5758, %v6461
  %v6463 = vpop.f32.mrf.mxu0
  %6464 = vmatprep.mubr.f32.mxu0 %v5706
  %6465 = vmatmul.mubr.f32.gmra.mxu0 %v5302
  %v6466 = vpop.f32.mrf.mxu0
  %v6467 = vadd.f32 %v5758, %v6466
  %v6468 = vpop.f32.mrf.mxu0
  %6469 = vmatprep.mubr.f32.mxu0 %v5707
  %6470 = vmatmul.mubr.f32.gmra.mxu0 %v5303
  %v6471 = vpop.f32.mrf.mxu0
  %v6472 = vadd.f32 %v5758, %v6471
  %v6473 = vpop.f32.mrf.mxu0
  %6474 = vmatprep.mubr.f32.mxu0 %v5708
  %6475 = vmatmul.mubr.f32.gmra.mxu0 %v5304
  %v6476 = vpop.f32.mrf.mxu0
  %v6477 = vadd.f32 %v5758, %v6476
  %v6478 = vpop.f32.mrf.mxu0
  %6479 = vmatprep.mubr.f32.mxu0 %v5709
  %6480 = vmatmul.mubr.f32.gmra.mxu0 %v5305
  %v6481 = vpop.f32.mrf.mxu0
  %v6482 = vadd.f32 %v5758, %v6481
  %v6483 = vpop.f32.mrf.mxu0
  %6484 = vmatprep.mubr.f32.mxu0 %v5710
  %6485 = vmatmul.mubr.f32.gmra.mxu0 %v5306
  %v6486 = vpop.f32.mrf.mxu0
  %v6487 = vadd.f32 %v5758, %v6486
  %v6488 = vpop.f32.mrf.mxu0
  %6489 = vmatprep.mubr.f32.mxu0 %v5711
  %6490 = vmatmul.mubr.f32.gmra.mxu0 %v5307
  %v6491 = vpop.f32.mrf.mxu0
  %v6492 = vadd.f32 %v5758, %v6491
  %v6493 = vpop.f32.mrf.mxu0
  %6494 = vmatprep.mubr.f32.mxu0 %v5712
  %6495 = vmatmul.mubr.f32.gmra.mxu0 %v5308
  %v6496 = vpop.f32.mrf.mxu0
  %v6497 = vadd.f32 %v5758, %v6496
  %v6498 = vpop.f32.mrf.mxu0
  %6499 = vmatprep.mubr.f32.mxu0 %v5713
  %6500 = vmatmul.mubr.f32.gmra.mxu0 %v5309
  %v6501 = vpop.f32.mrf.mxu0
  %v6502 = vadd.f32 %v5758, %v6501
  %v6503 = vpop.f32.mrf.mxu0
  %6504 = vmatprep.mubr.f32.mxu0 %v5714
  %6505 = vmatmul.mubr.f32.gmra.mxu0 %v5310
  %v6506 = vpop.f32.mrf.mxu0
  %v6507 = vadd.f32 %v5758, %v6506
  %v6508 = vpop.f32.mrf.mxu0
  %6509 = vmatprep.mubr.f32.mxu0 %v5715
  %6510 = vmatmul.mubr.f32.gmra.mxu0 %v5311
  %v6511 = vpop.f32.mrf.mxu0
  %v6512 = vadd.f32 %v5758, %v6511
  %v6513 = vpop.f32.mrf.mxu0
  %6514 = vmatprep.mubr.f32.mxu0 %v5716
  %6515 = vmatmul.mubr.f32.gmra.mxu0 %v5312
  %v6516 = vpop.f32.mrf.mxu0
  %v6517 = vadd.f32 %v5758, %v6516
  %v6518 = vpop.f32.mrf.mxu0
  %6519 = vmatprep.mubr.f32.mxu0 %v5717
  %6520 = vmatmul.mubr.f32.gmra.mxu0 %v5313
  %v6521 = vpop.f32.mrf.mxu0
  %v6522 = vadd.f32 %v5758, %v6521
  %v6523 = vpop.f32.mrf.mxu0
  %6524 = vmatprep.mubr.f32.mxu0 %v5718
  %6525 = vmatmul.mubr.f32.gmra.mxu0 %v5314
  %v6526 = vpop.f32.mrf.mxu0
  %v6527 = vadd.f32 %v5758, %v6526
  %v6528 = vpop.f32.mrf.mxu0
  %6529 = vdwg.mxu0
  %6530 = vmatprep.subr.mxu0 0.0
  %6531 = vmatpush1.msra.mxu0 0.0
  %6532 = vmatprep.subr.mxu0 0.0
  %6533 = vmatpush1.msra.mxu0 0.0
  %6534 = vmatprep.subr.mxu0 0.0
  %6535 = vmatpush1.msra.mxu0 0.0
  %6536 = vmatprep.subr.mxu0 0.0
  %6537 = vmatpush1.msra.mxu0 0.0
  %6538 = vmatprep.subr.mxu0 0.0
  %6539 = vmatpush1.msra.mxu0 0.0
  %6540 = vmatprep.subr.mxu0 0.0
  %6541 = vmatpush1.msra.mxu0 0.0
  %6542 = vmatprep.subr.mxu0 0.0
  %6543 = vmatpush1.msra.mxu0 0.0
  %6544 = vmatprep.subr.mxu0 0.0
  %6545 = vmatpush1.msra.mxu0 0.0
  %6546 = vmatprep.subr.mxu0 0.0
  %6547 = vmatpush1.msra.mxu0 0.0
  %6548 = vmatprep.subr.mxu0 0.0
  %6549 = vmatpush1.msra.mxu0 0.0
  %6550 = vmatprep.subr.mxu0 0.0
  %6551 = vmatpush1.msra.mxu0 0.0
  %6552 = vmatprep.subr.mxu0 0.0
  %6553 = vmatpush1.msra.mxu0 0.0
  %6554 = vmatprep.subr.mxu0 0.0
  %6555 = vmatpush1.msra.mxu0 0.0
  %6556 = vmatprep.subr.mxu0 0.0
  %6557 = vmatpush1.msra.mxu0 0.0
  %6558 = vmatprep.subr.mxu0 0.0
  %6559 = vmatpush1.msra.mxu0 %v5963
  %6560 = vmatprep.subr.mxu0 0.0
  %6561 = vmatpush1.msra.mxu0 %v5751
  %6562 = vmatprep.subr.mxu0 0.0
  %6563 = vmatpush2.msra.mxu0 0.0
  %6564 = vmatprep.subr.mxu0 0.0
  %6565 = vmatpush2.msra.mxu0 0.0
  %6566 = vmatprep.subr.mxu0 0.0
  %6567 = vmatpush2.msra.mxu0 0.0
  %6568 = vmatprep.subr.mxu0 0.0
  %6569 = vmatpush2.msra.mxu0 0.0
  %6570 = vmatprep.subr.mxu0 0.0
  %6571 = vmatpush2.msra.mxu0 0.0
  %6572 = vmatprep.subr.mxu0 0.0
  %6573 = vmatpush2.msra.mxu0 0.0
  %6574 = vmatprep.subr.mxu0 0.0
  %6575 = vmatpush2.msra.mxu0 0.0
  %6576 = vmatprep.subr.mxu0 0.0
  %6577 = vmatpush2.msra.mxu0 0.0
  %6578 = vmatprep.subr.mxu0 0.0
  %6579 = vmatpush2.msra.mxu0 0.0
  %6580 = vmatprep.subr.mxu0 0.0
  %6581 = vmatpush2.msra.mxu0 0.0
  %6582 = vmatprep.subr.mxu0 0.0
  %6583 = vmatpush2.msra.mxu0 0.0
  %6584 = vmatprep.subr.mxu0 0.0
  %6585 = vmatpush2.msra.mxu0 0.0
  %6586 = vmatprep.subr.mxu0 0.0
  %6587 = vmatpush2.msra.mxu0 0.0
  %6588 = vmatprep.subr.mxu0 0.0
  %6589 = vmatpush2.msra.mxu0 0.0
  %6590 = vmatprep.subr.mxu0 0.0
  %6591 = vmatpush2.msra.mxu0 0.0
  %6592 = vmatprep.subr.mxu0 0.0
  %6593 = vmatpush2.msra.mxu0 0.0
  %6594 = vmatprep.mubr.f32.mxu0 0.0
  %6595 = vmatmul.mubr.f32.gmra.mxu0 %v5761
  %v6596 = vpop.f32.mrf.mxu0
  %v6597 = vadd.f32 %v6032, %v6596
  %v6598 = vpop.f32.mrf.mxu0
  %6599 = vmatprep.mubr.f32.mxu0 0.0
  %6600 = vmatmul.mubr.f32.gmra.mxu0 %v5763
  %v6601 = vpop.f32.mrf.mxu0
  %v6602 = vadd.f32 %v6037, %v6601
  %v6603 = vpop.f32.mrf.mxu0
  %6604 = vmatprep.mubr.f32.mxu0 0.0
  %6605 = vmatmul.mubr.f32.gmra.mxu0 %v5765
  %v6606 = vpop.f32.mrf.mxu0
  %v6607 = vadd.f32 %v6042, %v6606
  %v6608 = vpop.f32.mrf.mxu0
  %6609 = vmatprep.mubr.f32.mxu0 0.0
  %6610 = vmatmul.mubr.f32.gmra.mxu0 %v5767
  %v6611 = vpop.f32.mrf.mxu0
  %v6612 = vadd.f32 %v6047, %v6611
  %v6613 = vpop.f32.mrf.mxu0
  %6614 = vmatprep.mubr.f32.mxu0 0.0
  %6615 = vmatmul.mubr.f32.gmra.mxu0 %v5769
  %v6616 = vpop.f32.mrf.mxu0
  %v6617 = vadd.f32 %v6052, %v6616
  %v6618 = vpop.f32.mrf.mxu0
  %6619 = vmatprep.mubr.f32.mxu0 0.0
  %6620 = vmatmul.mubr.f32.gmra.mxu0 %v5771
  %v6621 = vpop.f32.mrf.mxu0
  %v6622 = vadd.f32 %v6057, %v6621
  %v6623 = vpop.f32.mrf.mxu0
  %6624 = vmatprep.mubr.f32.mxu0 0.0
  %6625 = vmatmul.mubr.f32.gmra.mxu0 %v5773
  %v6626 = vpop.f32.mrf.mxu0
  %v6627 = vadd.f32 %v6062, %v6626
  %v6628 = vpop.f32.mrf.mxu0
  %6629 = vmatprep.mubr.f32.mxu0 0.0
  %6630 = vmatmul.mubr.f32.gmra.mxu0 %v5775
  %v6631 = vpop.f32.mrf.mxu0
  %v6632 = vadd.f32 %v6067, %v6631
  %v6633 = vpop.f32.mrf.mxu0
  %6634 = vmatprep.mubr.f32.mxu0 0.0
  %6635 = vmatmul.mubr.f32.gmra.mxu0 %v5777
  %v6636 = vpop.f32.mrf.mxu0
  %v6637 = vadd.f32 %v6072, %v6636
  %v6638 = vpop.f32.mrf.mxu0
  %6639 = vmatprep.mubr.f32.mxu0 0.0
  %6640 = vmatmul.mubr.f32.gmra.mxu0 %v5779
  %v6641 = vpop.f32.mrf.mxu0
  %v6642 = vadd.f32 %v6077, %v6641
  %v6643 = vpop.f32.mrf.mxu0
  %6644 = vmatprep.mubr.f32.mxu0 0.0
  %6645 = vmatmul.mubr.f32.gmra.mxu0 %v5781
  %v6646 = vpop.f32.mrf.mxu0
  %v6647 = vadd.f32 %v6082, %v6646
  %v6648 = vpop.f32.mrf.mxu0
  %6649 = vmatprep.mubr.f32.mxu0 0.0
  %6650 = vmatmul.mubr.f32.gmra.mxu0 %v5783
  %v6651 = vpop.f32.mrf.mxu0
  %v6652 = vadd.f32 %v6087, %v6651
  %v6653 = vpop.f32.mrf.mxu0
  %6654 = vmatprep.mubr.f32.mxu0 0.0
  %6655 = vmatmul.mubr.f32.gmra.mxu0 %v5785
  %v6656 = vpop.f32.mrf.mxu0
  %v6657 = vadd.f32 %v6092, %v6656
  %v6658 = vpop.f32.mrf.mxu0
  %6659 = vmatprep.mubr.f32.mxu0 0.0
  %6660 = vmatmul.mubr.f32.gmra.mxu0 %v5787
  %v6661 = vpop.f32.mrf.mxu0
  %v6662 = vadd.f32 %v6097, %v6661
  %v6663 = vpop.f32.mrf.mxu0
  %6664 = vmatprep.mubr.f32.mxu0 0.0
  %6665 = vmatmul.mubr.f32.gmra.mxu0 %v5789
  %v6666 = vpop.f32.mrf.mxu0
  %v6667 = vadd.f32 %v6102, %v6666
  %v6668 = vpop.f32.mrf.mxu0
  %6669 = vmatprep.mubr.f32.mxu0 0.0
  %6670 = vmatmul.mubr.f32.gmra.mxu0 %v5791
  %v6671 = vpop.f32.mrf.mxu0
  %v6672 = vadd.f32 %v6107, %v6671
  %v6673 = vpop.f32.mrf.mxu0
  %6674 = vmatprep.mubr.f32.mxu0 0.0
  %6675 = vmatmul.mubr.f32.gmra.mxu0 %v5793
  %v6676 = vpop.f32.mrf.mxu0
  %v6677 = vadd.f32 %v6112, %v6676
  %v6678 = vpop.f32.mrf.mxu0
  %6679 = vmatprep.mubr.f32.mxu0 0.0
  %6680 = vmatmul.mubr.f32.gmra.mxu0 %v5795
  %v6681 = vpop.f32.mrf.mxu0
  %v6682 = vadd.f32 %v6117, %v6681
  %v6683 = vpop.f32.mrf.mxu0
  %6684 = vmatprep.mubr.f32.mxu0 0.0
  %6685 = vmatmul.mubr.f32.gmra.mxu0 %v5797
  %v6686 = vpop.f32.mrf.mxu0
  %v6687 = vadd.f32 %v6122, %v6686
  %v6688 = vpop.f32.mrf.mxu0
  %6689 = vmatprep.mubr.f32.mxu0 0.0
  %6690 = vmatmul.mubr.f32.gmra.mxu0 %v5799
  %v6691 = vpop.f32.mrf.mxu0
  %v6692 = vadd.f32 %v6127, %v6691
  %v6693 = vpop.f32.mrf.mxu0
  %6694 = vmatprep.mubr.f32.mxu0 0.0
  %6695 = vmatmul.mubr.f32.gmra.mxu0 %v5801
  %v6696 = vpop.f32.mrf.mxu0
  %v6697 = vadd.f32 %v6132, %v6696
  %v6698 = vpop.f32.mrf.mxu0
  %6699 = vmatprep.mubr.f32.mxu0 0.0
  %6700 = vmatmul.mubr.f32.gmra.mxu0 %v5803
  %v6701 = vpop.f32.mrf.mxu0
  %v6702 = vadd.f32 %v6137, %v6701
  %v6703 = vpop.f32.mrf.mxu0
  %6704 = vmatprep.mubr.f32.mxu0 0.0
  %6705 = vmatmul.mubr.f32.gmra.mxu0 %v5805
  %v6706 = vpop.f32.mrf.mxu0
  %v6707 = vadd.f32 %v6142, %v6706
  %v6708 = vpop.f32.mrf.mxu0
  %6709 = vmatprep.mubr.f32.mxu0 0.0
  %6710 = vmatmul.mubr.f32.gmra.mxu0 %v5807
  %v6711 = vpop.f32.mrf.mxu0
  %v6712 = vadd.f32 %v6147, %v6711
  %v6713 = vpop.f32.mrf.mxu0
  %6714 = vmatprep.mubr.f32.mxu0 0.0
  %6715 = vmatmul.mubr.f32.gmra.mxu0 %v5809
  %v6716 = vpop.f32.mrf.mxu0
  %v6717 = vadd.f32 %v6152, %v6716
  %v6718 = vpop.f32.mrf.mxu0
  %6719 = vmatprep.mubr.f32.mxu0 0.0
  %6720 = vmatmul.mubr.f32.gmra.mxu0 %v5811
  %v6721 = vpop.f32.mrf.mxu0
  %v6722 = vadd.f32 %v6157, %v6721
  %v6723 = vpop.f32.mrf.mxu0
  %6724 = vmatprep.mubr.f32.mxu0 0.0
  %6725 = vmatmul.mubr.f32.gmra.mxu0 %v5813
  %v6726 = vpop.f32.mrf.mxu0
  %v6727 = vadd.f32 %v6162, %v6726
  %v6728 = vpop.f32.mrf.mxu0
  %6729 = vmatprep.mubr.f32.mxu0 0.0
  %6730 = vmatmul.mubr.f32.gmra.mxu0 %v5815
  %v6731 = vpop.f32.mrf.mxu0
  %v6732 = vadd.f32 %v6167, %v6731
  %v6733 = vpop.f32.mrf.mxu0
  %6734 = vmatprep.mubr.f32.mxu0 0.0
  %6735 = vmatmul.mubr.f32.gmra.mxu0 %v5817
  %v6736 = vpop.f32.mrf.mxu0
  %v6737 = vadd.f32 %v6172, %v6736
  %v6738 = vpop.f32.mrf.mxu0
  %6739 = vmatprep.mubr.f32.mxu0 0.0
  %6740 = vmatmul.mubr.f32.gmra.mxu0 %v5819
  %v6741 = vpop.f32.mrf.mxu0
  %v6742 = vadd.f32 %v6177, %v6741
  %v6743 = vpop.f32.mrf.mxu0
  %6744 = vmatprep.mubr.f32.mxu0 0.0
  %6745 = vmatmul.mubr.f32.gmra.mxu0 %v5821
  %v6746 = vpop.f32.mrf.mxu0
  %v6747 = vadd.f32 %v6182, %v6746
  %v6748 = vpop.f32.mrf.mxu0
  %6749 = vmatprep.mubr.f32.mxu0 0.0
  %6750 = vmatmul.mubr.f32.gmra.mxu0 %v5823
  %v6751 = vpop.f32.mrf.mxu0
  %v6752 = vadd.f32 %v6187, %v6751
  %v6753 = vpop.f32.mrf.mxu0
  %6754 = vmatprep.mubr.f32.mxu0 0.0
  %6755 = vmatmul.mubr.f32.gmra.mxu0 %v5825
  %v6756 = vpop.f32.mrf.mxu0
  %v6757 = vadd.f32 %v6192, %v6756
  %v6758 = vpop.f32.mrf.mxu0
  %6759 = vmatprep.mubr.f32.mxu0 0.0
  %6760 = vmatmul.mubr.f32.gmra.mxu0 %v5827
  %v6761 = vpop.f32.mrf.mxu0
  %v6762 = vadd.f32 %v6197, %v6761
  %v6763 = vpop.f32.mrf.mxu0
  %6764 = vmatprep.mubr.f32.mxu0 0.0
  %6765 = vmatmul.mubr.f32.gmra.mxu0 %v5829
  %v6766 = vpop.f32.mrf.mxu0
  %v6767 = vadd.f32 %v6202, %v6766
  %v6768 = vpop.f32.mrf.mxu0
  %6769 = vmatprep.mubr.f32.mxu0 0.0
  %6770 = vmatmul.mubr.f32.gmra.mxu0 %v5831
  %v6771 = vpop.f32.mrf.mxu0
  %v6772 = vadd.f32 %v6207, %v6771
  %v6773 = vpop.f32.mrf.mxu0
  %6774 = vmatprep.mubr.f32.mxu0 0.0
  %6775 = vmatmul.mubr.f32.gmra.mxu0 %v5833
  %v6776 = vpop.f32.mrf.mxu0
  %v6777 = vadd.f32 %v6212, %v6776
  %v6778 = vpop.f32.mrf.mxu0
  %6779 = vmatprep.mubr.f32.mxu0 0.0
  %6780 = vmatmul.mubr.f32.gmra.mxu0 %v5835
  %v6781 = vpop.f32.mrf.mxu0
  %v6782 = vadd.f32 %v6217, %v6781
  %v6783 = vpop.f32.mrf.mxu0
  %6784 = vmatprep.mubr.f32.mxu0 0.0
  %6785 = vmatmul.mubr.f32.gmra.mxu0 %v5837
  %v6786 = vpop.f32.mrf.mxu0
  %v6787 = vadd.f32 %v6222, %v6786
  %v6788 = vpop.f32.mrf.mxu0
  %6789 = vmatprep.mubr.f32.mxu0 0.0
  %6790 = vmatmul.mubr.f32.gmra.mxu0 %v5839
  %v6791 = vpop.f32.mrf.mxu0
  %v6792 = vadd.f32 %v6227, %v6791
  %v6793 = vpop.f32.mrf.mxu0
  %6794 = vmatprep.mubr.f32.mxu0 0.0
  %6795 = vmatmul.mubr.f32.gmra.mxu0 %v5841
  %v6796 = vpop.f32.mrf.mxu0
  %v6797 = vadd.f32 %v6232, %v6796
  %v6798 = vpop.f32.mrf.mxu0
  %6799 = vmatprep.mubr.f32.mxu0 0.0
  %6800 = vmatmul.mubr.f32.gmra.mxu0 %v5843
  %v6801 = vpop.f32.mrf.mxu0
  %v6802 = vadd.f32 %v6237, %v6801
  %v6803 = vpop.f32.mrf.mxu0
  %6804 = vmatprep.mubr.f32.mxu0 0.0
  %6805 = vmatmul.mubr.f32.gmra.mxu0 %v5845
  %v6806 = vpop.f32.mrf.mxu0
  %v6807 = vadd.f32 %v6242, %v6806
  %v6808 = vpop.f32.mrf.mxu0
  %6809 = vmatprep.mubr.f32.mxu0 0.0
  %6810 = vmatmul.mubr.f32.gmra.mxu0 %v5847
  %v6811 = vpop.f32.mrf.mxu0
  %v6812 = vadd.f32 %v6247, %v6811
  %v6813 = vpop.f32.mrf.mxu0
  %6814 = vmatprep.mubr.f32.mxu0 0.0
  %6815 = vmatmul.mubr.f32.gmra.mxu0 %v5849
  %v6816 = vpop.f32.mrf.mxu0
  %v6817 = vadd.f32 %v6252, %v6816
  %v6818 = vpop.f32.mrf.mxu0
  %6819 = vmatprep.mubr.f32.mxu0 0.0
  %6820 = vmatmul.mubr.f32.gmra.mxu0 %v5851
  %v6821 = vpop.f32.mrf.mxu0
  %v6822 = vadd.f32 %v6257, %v6821
  %v6823 = vpop.f32.mrf.mxu0
  %6824 = vmatprep.mubr.f32.mxu0 0.0
  %6825 = vmatmul.mubr.f32.gmra.mxu0 %v5853
  %v6826 = vpop.f32.mrf.mxu0
  %v6827 = vadd.f32 %v6262, %v6826
  %v6828 = vpop.f32.mrf.mxu0
  %6829 = vmatprep.mubr.f32.mxu0 0.0
  %6830 = vmatmul.mubr.f32.gmra.mxu0 %v5855
  %v6831 = vpop.f32.mrf.mxu0
  %v6832 = vadd.f32 %v6267, %v6831
  %v6833 = vpop.f32.mrf.mxu0
  %6834 = vmatprep.mubr.f32.mxu0 0.0
  %6835 = vmatmul.mubr.f32.gmra.mxu0 %v5857
  %v6836 = vpop.f32.mrf.mxu0
  %v6837 = vadd.f32 %v6272, %v6836
  %v6838 = vpop.f32.mrf.mxu0
  %6839 = vmatprep.mubr.f32.mxu0 0.0
  %6840 = vmatmul.mubr.f32.gmra.mxu0 %v5859
  %v6841 = vpop.f32.mrf.mxu0
  %v6842 = vadd.f32 %v6277, %v6841
  %v6843 = vpop.f32.mrf.mxu0
  %6844 = vmatprep.mubr.f32.mxu0 0.0
  %6845 = vmatmul.mubr.f32.gmra.mxu0 %v5861
  %v6846 = vpop.f32.mrf.mxu0
  %v6847 = vadd.f32 %v6282, %v6846
  %v6848 = vpop.f32.mrf.mxu0
  %6849 = vmatprep.mubr.f32.mxu0 0.0
  %6850 = vmatmul.mubr.f32.gmra.mxu0 %v5863
  %v6851 = vpop.f32.mrf.mxu0
  %v6852 = vadd.f32 %v6287, %v6851
  %v6853 = vpop.f32.mrf.mxu0
  %6854 = vmatprep.mubr.f32.mxu0 0.0
  %6855 = vmatmul.mubr.f32.gmra.mxu0 %v5865
  %v6856 = vpop.f32.mrf.mxu0
  %v6857 = vadd.f32 %v6292, %v6856
  %v6858 = vpop.f32.mrf.mxu0
  %6859 = vmatprep.mubr.f32.mxu0 0.0
  %6860 = vmatmul.mubr.f32.gmra.mxu0 %v5867
  %v6861 = vpop.f32.mrf.mxu0
  %v6862 = vadd.f32 %v6297, %v6861
  %v6863 = vpop.f32.mrf.mxu0
  %6864 = vmatprep.mubr.f32.mxu0 0.0
  %6865 = vmatmul.mubr.f32.gmra.mxu0 %v5869
  %v6866 = vpop.f32.mrf.mxu0
  %v6867 = vadd.f32 %v6302, %v6866
  %v6868 = vpop.f32.mrf.mxu0
  %6869 = vmatprep.mubr.f32.mxu0 0.0
  %6870 = vmatmul.mubr.f32.gmra.mxu0 %v5871
  %v6871 = vpop.f32.mrf.mxu0
  %v6872 = vadd.f32 %v6307, %v6871
  %v6873 = vpop.f32.mrf.mxu0
  %6874 = vmatprep.mubr.f32.mxu0 0.0
  %6875 = vmatmul.mubr.f32.gmra.mxu0 %v5873
  %v6876 = vpop.f32.mrf.mxu0
  %v6877 = vadd.f32 %v6312, %v6876
  %v6878 = vpop.f32.mrf.mxu0
  %6879 = vmatprep.mubr.f32.mxu0 0.0
  %6880 = vmatmul.mubr.f32.gmra.mxu0 %v5875
  %v6881 = vpop.f32.mrf.mxu0
  %v6882 = vadd.f32 %v6317, %v6881
  %v6883 = vpop.f32.mrf.mxu0
  %6884 = vmatprep.mubr.f32.mxu0 0.0
  %6885 = vmatmul.mubr.f32.gmra.mxu0 %v5877
  %v6886 = vpop.f32.mrf.mxu0
  %v6887 = vadd.f32 %v6322, %v6886
  %v6888 = vpop.f32.mrf.mxu0
  %6889 = vmatprep.mubr.f32.mxu0 0.0
  %6890 = vmatmul.mubr.f32.gmra.mxu0 %v5879
  %v6891 = vpop.f32.mrf.mxu0
  %v6892 = vadd.f32 %v6327, %v6891
  %v6893 = vpop.f32.mrf.mxu0
  %6894 = vmatprep.mubr.f32.mxu0 0.0
  %6895 = vmatmul.mubr.f32.gmra.mxu0 %v5881
  %v6896 = vpop.f32.mrf.mxu0
  %v6897 = vadd.f32 %v6332, %v6896
  %v6898 = vpop.f32.mrf.mxu0
  %6899 = vmatprep.mubr.f32.mxu0 0.0
  %6900 = vmatmul.mubr.f32.gmra.mxu0 %v5883
  %v6901 = vpop.f32.mrf.mxu0
  %v6902 = vadd.f32 %v6337, %v6901
  %v6903 = vpop.f32.mrf.mxu0
  %6904 = vmatprep.mubr.f32.mxu0 0.0
  %6905 = vmatmul.mubr.f32.gmra.mxu0 %v5885
  %v6906 = vpop.f32.mrf.mxu0
  %v6907 = vadd.f32 %v6342, %v6906
  %v6908 = vpop.f32.mrf.mxu0
  %6909 = vmatprep.mubr.f32.mxu0 0.0
  %6910 = vmatmul.mubr.f32.gmra.mxu0 %v5887
  %v6911 = vpop.f32.mrf.mxu0
  %v6912 = vadd.f32 %v6347, %v6911
  %v6913 = vpop.f32.mrf.mxu0
  %6914 = vmatprep.mubr.f32.mxu0 0.0
  %6915 = vmatmul.mubr.f32.gmra.mxu0 %v5889
  %v6916 = vpop.f32.mrf.mxu0
  %v6917 = vadd.f32 %v6352, %v6916
  %v6918 = vpop.f32.mrf.mxu0
  %6919 = vmatprep.mubr.f32.mxu0 0.0
  %6920 = vmatmul.mubr.f32.gmra.mxu0 %v5891
  %v6921 = vpop.f32.mrf.mxu0
  %v6922 = vadd.f32 %v6357, %v6921
  %v6923 = vpop.f32.mrf.mxu0
  %6924 = vmatprep.mubr.f32.mxu0 0.0
  %6925 = vmatmul.mubr.f32.gmra.mxu0 %v5893
  %v6926 = vpop.f32.mrf.mxu0
  %v6927 = vadd.f32 %v6362, %v6926
  %v6928 = vpop.f32.mrf.mxu0
  %6929 = vmatprep.mubr.f32.mxu0 0.0
  %6930 = vmatmul.mubr.f32.gmra.mxu0 %v5895
  %v6931 = vpop.f32.mrf.mxu0
  %v6932 = vadd.f32 %v6367, %v6931
  %v6933 = vpop.f32.mrf.mxu0
  %6934 = vmatprep.mubr.f32.mxu0 0.0
  %6935 = vmatmul.mubr.f32.gmra.mxu0 %v5897
  %v6936 = vpop.f32.mrf.mxu0
  %v6937 = vadd.f32 %v6372, %v6936
  %v6938 = vpop.f32.mrf.mxu0
  %6939 = vmatprep.mubr.f32.mxu0 0.0
  %6940 = vmatmul.mubr.f32.gmra.mxu0 %v5899
  %v6941 = vpop.f32.mrf.mxu0
  %v6942 = vadd.f32 %v6377, %v6941
  %v6943 = vpop.f32.mrf.mxu0
  %6944 = vmatprep.mubr.f32.mxu0 0.0
  %6945 = vmatmul.mubr.f32.gmra.mxu0 %v5901
  %v6946 = vpop.f32.mrf.mxu0
  %v6947 = vadd.f32 %v6382, %v6946
  %v6948 = vpop.f32.mrf.mxu0
  %6949 = vmatprep.mubr.f32.mxu0 0.0
  %6950 = vmatmul.mubr.f32.gmra.mxu0 %v5903
  %v6951 = vpop.f32.mrf.mxu0
  %v6952 = vadd.f32 %v6387, %v6951
  %v6953 = vpop.f32.mrf.mxu0
  %6954 = vmatprep.mubr.f32.mxu0 0.0
  %6955 = vmatmul.mubr.f32.gmra.mxu0 %v5905
  %v6956 = vpop.f32.mrf.mxu0
  %v6957 = vadd.f32 %v6392, %v6956
  %v6958 = vpop.f32.mrf.mxu0
  %6959 = vmatprep.mubr.f32.mxu0 0.0
  %6960 = vmatmul.mubr.f32.gmra.mxu0 %v5907
  %v6961 = vpop.f32.mrf.mxu0
  %v6962 = vadd.f32 %v6397, %v6961
  %v6963 = vpop.f32.mrf.mxu0
  %6964 = vmatprep.mubr.f32.mxu0 0.0
  %6965 = vmatmul.mubr.f32.gmra.mxu0 %v5909
  %v6966 = vpop.f32.mrf.mxu0
  %v6967 = vadd.f32 %v6402, %v6966
  %v6968 = vpop.f32.mrf.mxu0
  %6969 = vmatprep.mubr.f32.mxu0 0.0
  %6970 = vmatmul.mubr.f32.gmra.mxu0 %v5911
  %v6971 = vpop.f32.mrf.mxu0
  %v6972 = vadd.f32 %v6407, %v6971
  %v6973 = vpop.f32.mrf.mxu0
  %6974 = vmatprep.mubr.f32.mxu0 0.0
  %6975 = vmatmul.mubr.f32.gmra.mxu0 %v5913
  %v6976 = vpop.f32.mrf.mxu0
  %v6977 = vadd.f32 %v6412, %v6976
  %v6978 = vpop.f32.mrf.mxu0
  %6979 = vmatprep.mubr.f32.mxu0 0.0
  %6980 = vmatmul.mubr.f32.gmra.mxu0 %v5915
  %v6981 = vpop.f32.mrf.mxu0
  %v6982 = vadd.f32 %v6417, %v6981
  %v6983 = vpop.f32.mrf.mxu0
  %6984 = vmatprep.mubr.f32.mxu0 0.0
  %6985 = vmatmul.mubr.f32.gmra.mxu0 %v5917
  %v6986 = vpop.f32.mrf.mxu0
  %v6987 = vadd.f32 %v6422, %v6986
  %v6988 = vpop.f32.mrf.mxu0
  %6989 = vmatprep.mubr.f32.mxu0 0.0
  %6990 = vmatmul.mubr.f32.gmra.mxu0 %v5919
  %v6991 = vpop.f32.mrf.mxu0
  %v6992 = vadd.f32 %v6427, %v6991
  %v6993 = vpop.f32.mrf.mxu0
  %6994 = vmatprep.mubr.f32.mxu0 0.0
  %6995 = vmatmul.mubr.f32.gmra.mxu0 %v5921
  %v6996 = vpop.f32.mrf.mxu0
  %v6997 = vadd.f32 %v6432, %v6996
  %v6998 = vpop.f32.mrf.mxu0
  %6999 = vmatprep.mubr.f32.mxu0 0.0
  %7000 = vmatmul.mubr.f32.gmra.mxu0 %v5923
  %v7001 = vpop.f32.mrf.mxu0
  %v7002 = vadd.f32 %v6437, %v7001
  %v7003 = vpop.f32.mrf.mxu0
  %7004 = vmatprep.mubr.f32.mxu0 0.0
  %7005 = vmatmul.mubr.f32.gmra.mxu0 %v5925
  %v7006 = vpop.f32.mrf.mxu0
  %v7007 = vadd.f32 %v6442, %v7006
  %v7008 = vpop.f32.mrf.mxu0
  %7009 = vmatprep.mubr.f32.mxu0 0.0
  %7010 = vmatmul.mubr.f32.gmra.mxu0 %v5927
  %v7011 = vpop.f32.mrf.mxu0
  %v7012 = vadd.f32 %v6447, %v7011
  %v7013 = vpop.f32.mrf.mxu0
  %7014 = vmatprep.mubr.f32.mxu0 0.0
  %7015 = vmatmul.mubr.f32.gmra.mxu0 %v5929
  %v7016 = vpop.f32.mrf.mxu0
  %v7017 = vadd.f32 %v6452, %v7016
  %v7018 = vpop.f32.mrf.mxu0
  %7019 = vmatprep.mubr.f32.mxu0 0.0
  %7020 = vmatmul.mubr.f32.gmra.mxu0 %v5931
  %v7021 = vpop.f32.mrf.mxu0
  %v7022 = vadd.f32 %v6457, %v7021
  %v7023 = vpop.f32.mrf.mxu0
  %7024 = vmatprep.mubr.f32.mxu0 0.0
  %7025 = vmatmul.mubr.f32.gmra.mxu0 %v5933
  %v7026 = vpop.f32.mrf.mxu0
  %v7027 = vadd.f32 %v6462, %v7026
  %v7028 = vpop.f32.mrf.mxu0
  %7029 = vmatprep.mubr.f32.mxu0 0.0
  %7030 = vmatmul.mubr.f32.gmra.mxu0 %v5935
  %v7031 = vpop.f32.mrf.mxu0
  %v7032 = vadd.f32 %v6467, %v7031
  %v7033 = vpop.f32.mrf.mxu0
  %7034 = vmatprep.mubr.f32.mxu0 0.0
  %7035 = vmatmul.mubr.f32.gmra.mxu0 %v5937
  %v7036 = vpop.f32.mrf.mxu0
  %v7037 = vadd.f32 %v6472, %v7036
  %v7038 = vpop.f32.mrf.mxu0
  %7039 = vmatprep.mubr.f32.mxu0 0.0
  %7040 = vmatmul.mubr.f32.gmra.mxu0 %v5939
  %v7041 = vpop.f32.mrf.mxu0
  %v7042 = vadd.f32 %v6477, %v7041
  %v7043 = vpop.f32.mrf.mxu0
  %7044 = vmatprep.mubr.f32.mxu0 0.0
  %7045 = vmatmul.mubr.f32.gmra.mxu0 %v5941
  %v7046 = vpop.f32.mrf.mxu0
  %v7047 = vadd.f32 %v6482, %v7046
  %v7048 = vpop.f32.mrf.mxu0
  %7049 = vmatprep.mubr.f32.mxu0 0.0
  %7050 = vmatmul.mubr.f32.gmra.mxu0 %v5943
  %v7051 = vpop.f32.mrf.mxu0
  %v7052 = vadd.f32 %v6487, %v7051
  %v7053 = vpop.f32.mrf.mxu0
  %7054 = vmatprep.mubr.f32.mxu0 0.0
  %7055 = vmatmul.mubr.f32.gmra.mxu0 %v5945
  %v7056 = vpop.f32.mrf.mxu0
  %v7057 = vadd.f32 %v6492, %v7056
  %v7058 = vpop.f32.mrf.mxu0
  %7059 = vmatprep.mubr.f32.mxu0 0.0
  %7060 = vmatmul.mubr.f32.gmra.mxu0 %v5947
  %v7061 = vpop.f32.mrf.mxu0
  %v7062 = vadd.f32 %v6497, %v7061
  %v7063 = vpop.f32.mrf.mxu0
  %7064 = vmatprep.mubr.f32.mxu0 0.0
  %7065 = vmatmul.mubr.f32.gmra.mxu0 %v5949
  %v7066 = vpop.f32.mrf.mxu0
  %v7067 = vadd.f32 %v6502, %v7066
  %v7068 = vpop.f32.mrf.mxu0
  %7069 = vmatprep.mubr.f32.mxu0 0.0
  %7070 = vmatmul.mubr.f32.gmra.mxu0 %v5951
  %v7071 = vpop.f32.mrf.mxu0
  %v7072 = vadd.f32 %v6507, %v7071
  %v7073 = vpop.f32.mrf.mxu0
  %7074 = vmatprep.mubr.f32.mxu0 0.0
  %7075 = vmatmul.mubr.f32.gmra.mxu0 %v5953
  %v7076 = vpop.f32.mrf.mxu0
  %v7077 = vadd.f32 %v6512, %v7076
  %v7078 = vpop.f32.mrf.mxu0
  %7079 = vmatprep.mubr.f32.mxu0 0.0
  %7080 = vmatmul.mubr.f32.gmra.mxu0 %v5955
  %v7081 = vpop.f32.mrf.mxu0
  %v7082 = vadd.f32 %v6517, %v7081
  %v7083 = vpop.f32.mrf.mxu0
  %7084 = vmatprep.mubr.f32.mxu0 0.0
  %7085 = vmatmul.mubr.f32.gmra.mxu0 %v5957
  %v7086 = vpop.f32.mrf.mxu0
  %v7087 = vadd.f32 %v6522, %v7086
  %v7088 = vpop.f32.mrf.mxu0
  %7089 = vmatprep.mubr.f32.mxu0 0.0
  %7090 = vmatmul.mubr.f32.gmra.mxu0 %v5959
  %v7091 = vpop.f32.mrf.mxu0
  %v7092 = vadd.f32 %v6527, %v7091
  %v7093 = vpop.f32.mrf.mxu0
  %7094 = vdwg.mxu0
  %v7095 = vmax.f32 %v6597, 0.0
  %v7096 = vmax.f32 %v6602, 0.0
  %v7097 = vmax.f32 %v6607, 0.0
  %v7098 = vmax.f32 %v6612, 0.0
  %v7099 = vmax.f32 %v6617, 0.0
  %v7100 = vmax.f32 %v6622, 0.0
  %v7101 = vmax.f32 %v6627, 0.0
  %v7102 = vmax.f32 %v6632, 0.0
  %v7103 = vmax.f32 %v6637, 0.0
  %v7104 = vmax.f32 %v6642, 0.0
  %v7105 = vmax.f32 %v6647, 0.0
  %v7106 = vmax.f32 %v6652, 0.0
  %v7107 = vmax.f32 %v6657, 0.0
  %v7108 = vmax.f32 %v6662, 0.0
  %v7109 = vmax.f32 %v6667, 0.0
  %v7110 = vmax.f32 %v6672, 0.0
  %v7111 = vmax.f32 %v6677, 0.0
  %v7112 = vmax.f32 %v6682, 0.0
  %v7113 = vmax.f32 %v6687, 0.0
  %v7114 = vmax.f32 %v6692, 0.0
  %v7115 = vmax.f32 %v6697, 0.0
  %v7116 = vmax.f32 %v6702, 0.0
  %v7117 = vmax.f32 %v6707, 0.0
  %v7118 = vmax.f32 %v6712, 0.0
  %v7119 = vmax.f32 %v6717, 0.0
  %v7120 = vmax.f32 %v6722, 0.0
  %v7121 = vmax.f32 %v6727, 0.0
  %v7122 = vmax.f32 %v6732, 0.0
  %v7123 = vmax.f32 %v6737, 0.0
  %v7124 = vmax.f32 %v6742, 0.0
  %v7125 = vmax.f32 %v6747, 0.0
  %v7126 = vmax.f32 %v6752, 0.0
  %v7127 = vmax.f32 %v6757, 0.0
  %v7128 = vmax.f32 %v6762, 0.0
  %v7129 = vmax.f32 %v6767, 0.0
  %v7130 = vmax.f32 %v6772, 0.0
  %v7131 = vmax.f32 %v6777, 0.0
  %v7132 = vmax.f32 %v6782, 0.0
  %v7133 = vmax.f32 %v6787, 0.0
  %v7134 = vmax.f32 %v6792, 0.0
  %v7135 = vmax.f32 %v6797, 0.0
  %v7136 = vmax.f32 %v6802, 0.0
  %v7137 = vmax.f32 %v6807, 0.0
  %v7138 = vmax.f32 %v6812, 0.0
  %v7139 = vmax.f32 %v6817, 0.0
  %v7140 = vmax.f32 %v6822, 0.0
  %v7141 = vmax.f32 %v6827, 0.0
  %v7142 = vmax.f32 %v6832, 0.0
  %v7143 = vmax.f32 %v6837, 0.0
  %v7144 = vmax.f32 %v6842, 0.0
  %v7145 = vmax.f32 %v6847, 0.0
  %v7146 = vmax.f32 %v6852, 0.0
  %v7147 = vmax.f32 %v6857, 0.0
  %v7148 = vmax.f32 %v6862, 0.0
  %v7149 = vmax.f32 %v6867, 0.0
  %v7150 = vmax.f32 %v6872, 0.0
  %v7151 = vmax.f32 %v6877, 0.0
  %v7152 = vmax.f32 %v6882, 0.0
  %v7153 = vmax.f32 %v6887, 0.0
  %v7154 = vmax.f32 %v6892, 0.0
  %v7155 = vmax.f32 %v6897, 0.0
  %v7156 = vmax.f32 %v6902, 0.0
  %v7157 = vmax.f32 %v6907, 0.0
  %v7158 = vmax.f32 %v6912, 0.0
  %v7159 = vmax.f32 %v6917, 0.0
  %v7160 = vmax.f32 %v6922, 0.0
  %v7161 = vmax.f32 %v6927, 0.0
  %v7162 = vmax.f32 %v6932, 0.0
  %v7163 = vmax.f32 %v6937, 0.0
  %v7164 = vmax.f32 %v6942, 0.0
  %v7165 = vmax.f32 %v6947, 0.0
  %v7166 = vmax.f32 %v6952, 0.0
  %v7167 = vmax.f32 %v6957, 0.0
  %v7168 = vmax.f32 %v6962, 0.0
  %v7169 = vmax.f32 %v6967, 0.0
  %v7170 = vmax.f32 %v6972, 0.0
  %v7171 = vmax.f32 %v6977, 0.0
  %v7172 = vmax.f32 %v6982, 0.0
  %v7173 = vmax.f32 %v6987, 0.0
  %v7174 = vmax.f32 %v6992, 0.0
  %v7175 = vmax.f32 %v6997, 0.0
  %v7176 = vmax.f32 %v7002, 0.0
  %v7177 = vmax.f32 %v7007, 0.0
  %v7178 = vmax.f32 %v7012, 0.0
  %v7179 = vmax.f32 %v7017, 0.0
  %v7180 = vmax.f32 %v7022, 0.0
  %v7181 = vmax.f32 %v7027, 0.0
  %v7182 = vmax.f32 %v7032, 0.0
  %v7183 = vmax.f32 %v7037, 0.0
  %v7184 = vmax.f32 %v7042, 0.0
  %v7185 = vmax.f32 %v7047, 0.0
  %v7186 = vmax.f32 %v7052, 0.0
  %v7187 = vmax.f32 %v7057, 0.0
  %v7188 = vmax.f32 %v7062, 0.0
  %v7189 = vmax.f32 %v7067, 0.0
  %v7190 = vmax.f32 %v7072, 0.0
  %v7191 = vmax.f32 %v7077, 0.0
  %v7192 = vmax.f32 %v7082, 0.0
  %v7193 = vmax.f32 %v7087, 0.0
  %v7194 = vmax.f32 %v7092, 0.0
  %vm7195 = vcmask 162816
  %7196 = vst.msk [vmem:[#allocation2 + $0x58] sm:$0xff] %vm7195, %v7095
  %7197 = vst.msk [vmem:[#allocation2 + $0x60] sm:$0xff] %vm7195, %v7096
  %7198 = vst.msk [vmem:[#allocation2 + $0x68] sm:$0xff] %vm7195, %v7097
  %7199 = vst.msk [vmem:[#allocation2 + $0x70] sm:$0xff] %vm7195, %v7098
  %7200 = vst.msk [vmem:[#allocation2 + $0x78] sm:$0xff] %vm7195, %v7099
  %7201 = vst.msk [vmem:[#allocation2 + $0x80] sm:$0xff] %vm7195, %v7100
  %7202 = vst.msk [vmem:[#allocation2 + $0x88] sm:$0xff] %vm7195, %v7101
  %7203 = vst.msk [vmem:[#allocation2 + $0x90] sm:$0xff] %vm7195, %v7102
  %7204 = vst.msk [vmem:[#allocation2 + $0x98] sm:$0xff] %vm7195, %v7103
  %7205 = vst.msk [vmem:[#allocation2 + $0xa0] sm:$0xff] %vm7195, %v7104
  %7206 = vst.msk [vmem:[#allocation2 + $0xa8] sm:$0xff] %vm7195, %v7105
  %7207 = vst.msk [vmem:[#allocation2 + $0xb0] sm:$0xff] %vm7195, %v7106
  %7208 = vst.msk [vmem:[#allocation2 + $0xb8] sm:$0xff] %vm7195, %v7107
  %7209 = vst.msk [vmem:[#allocation2 + $0xc0] sm:$0xff] %vm7195, %v7108
  %7210 = vst.msk [vmem:[#allocation2 + $0xc8] sm:$0xff] %vm7195, %v7109
  %7211 = vst.msk [vmem:[#allocation2 + $0xd0] sm:$0xff] %vm7195, %v7110
  %7212 = vst.msk [vmem:[#allocation2 + $0xd8] sm:$0xff] %vm7195, %v7111
  %7213 = vst.msk [vmem:[#allocation2 + $0xe0] sm:$0xff] %vm7195, %v7112
  %7214 = vst.msk [vmem:[#allocation2 + $0xe8] sm:$0xff] %vm7195, %v7113
  %7215 = vst.msk [vmem:[#allocation2 + $0xf0] sm:$0xff] %vm7195, %v7114
  %7216 = vst.msk [vmem:[#allocation2 + $0xf8] sm:$0xff] %vm7195, %v7115
  %7217 = vst.msk [vmem:[#allocation2 + $0x100] sm:$0xff] %vm7195, %v7116
  %7218 = vst.msk [vmem:[#allocation2 + $0x108] sm:$0xff] %vm7195, %v7117
  %7219 = vst.msk [vmem:[#allocation2 + $0x110] sm:$0xff] %vm7195, %v7118
  %7220 = vst.msk [vmem:[#allocation2 + $0x118] sm:$0xff] %vm7195, %v7119
  %7221 = vst.msk [vmem:[#allocation2 + $0x120] sm:$0xff] %vm7195, %v7120
  %7222 = vst.msk [vmem:[#allocation2 + $0x128] sm:$0xff] %vm7195, %v7121
  %7223 = vst.msk [vmem:[#allocation2 + $0x130] sm:$0xff] %vm7195, %v7122
  %7224 = vst.msk [vmem:[#allocation2 + $0x138] sm:$0xff] %vm7195, %v7123
  %7225 = vst.msk [vmem:[#allocation2 + $0x140] sm:$0xff] %vm7195, %v7124
  %7226 = vst.msk [vmem:[#allocation2 + $0x148] sm:$0xff] %vm7195, %v7125
  %7227 = vst.msk [vmem:[#allocation2 + $0x150] sm:$0xff] %vm7195, %v7126
  %7228 = vst.msk [vmem:[#allocation2 + $0x158] sm:$0xff] %vm7195, %v7127
  %7229 = vst.msk [vmem:[#allocation2 + $0x160] sm:$0xff] %vm7195, %v7128
  %7230 = vst.msk [vmem:[#allocation2 + $0x168] sm:$0xff] %vm7195, %v7129
  %7231 = vst.msk [vmem:[#allocation2 + $0x170] sm:$0xff] %vm7195, %v7130
  %7232 = vst.msk [vmem:[#allocation2 + $0x178] sm:$0xff] %vm7195, %v7131
  %7233 = vst.msk [vmem:[#allocation2 + $0x180] sm:$0xff] %vm7195, %v7132
  %7234 = vst.msk [vmem:[#allocation2 + $0x188] sm:$0xff] %vm7195, %v7133
  %7235 = vst.msk [vmem:[#allocation2 + $0x190] sm:$0xff] %vm7195, %v7134
  %7236 = vst.msk [vmem:[#allocation2 + $0x198] sm:$0xff] %vm7195, %v7135
  %7237 = vst.msk [vmem:[#allocation2 + $0x1a0] sm:$0xff] %vm7195, %v7136
  %7238 = vst.msk [vmem:[#allocation2 + $0x1a8] sm:$0xff] %vm7195, %v7137
  %7239 = vst.msk [vmem:[#allocation2 + $0x1b0] sm:$0xff] %vm7195, %v7138
  %7240 = vst.msk [vmem:[#allocation2 + $0x1b8] sm:$0xff] %vm7195, %v7139
  %7241 = vst.msk [vmem:[#allocation2 + $0x1c0] sm:$0xff] %vm7195, %v7140
  %7242 = vst.msk [vmem:[#allocation2 + $0x1c8] sm:$0xff] %vm7195, %v7141
  %7243 = vst.msk [vmem:[#allocation2 + $0x1d0] sm:$0xff] %vm7195, %v7142
  %7244 = vst.msk [vmem:[#allocation2 + $0x1d8] sm:$0xff] %vm7195, %v7143
  %7245 = vst.msk [vmem:[#allocation2 + $0x1e0] sm:$0xff] %vm7195, %v7144
  %7246 = vst.msk [vmem:[#allocation2 + $0x1e8] sm:$0xff] %vm7195, %v7145
  %7247 = vst.msk [vmem:[#allocation2 + $0x1f0] sm:$0xff] %vm7195, %v7146
  %7248 = vst.msk [vmem:[#allocation2 + $0x1f8] sm:$0xff] %vm7195, %v7147
  %7249 = vst.msk [vmem:[#allocation2 + $0x200] sm:$0xff] %vm7195, %v7148
  %7250 = vst.msk [vmem:[#allocation2 + $0x208] sm:$0xff] %vm7195, %v7149
  %7251 = vst.msk [vmem:[#allocation2 + $0x210] sm:$0xff] %vm7195, %v7150
  %7252 = vst.msk [vmem:[#allocation2 + $0x218] sm:$0xff] %vm7195, %v7151
  %7253 = vst.msk [vmem:[#allocation2 + $0x220] sm:$0xff] %vm7195, %v7152
  %7254 = vst.msk [vmem:[#allocation2 + $0x228] sm:$0xff] %vm7195, %v7153
  %7255 = vst.msk [vmem:[#allocation2 + $0x230] sm:$0xff] %vm7195, %v7154
  %7256 = vst.msk [vmem:[#allocation2 + $0x238] sm:$0xff] %vm7195, %v7155
  %7257 = vst.msk [vmem:[#allocation2 + $0x240] sm:$0xff] %vm7195, %v7156
  %7258 = vst.msk [vmem:[#allocation2 + $0x248] sm:$0xff] %vm7195, %v7157
  %7259 = vst.msk [vmem:[#allocation2 + $0x250] sm:$0xff] %vm7195, %v7158
  %7260 = vst.msk [vmem:[#allocation2 + $0x258] sm:$0xff] %vm7195, %v7159
  %7261 = vst.msk [vmem:[#allocation2 + $0x260] sm:$0xff] %vm7195, %v7160
  %7262 = vst.msk [vmem:[#allocation2 + $0x268] sm:$0xff] %vm7195, %v7161
  %7263 = vst.msk [vmem:[#allocation2 + $0x270] sm:$0xff] %vm7195, %v7162
  %7264 = vst.msk [vmem:[#allocation2 + $0x278] sm:$0xff] %vm7195, %v7163
  %7265 = vst.msk [vmem:[#allocation2 + $0x280] sm:$0xff] %vm7195, %v7164
  %7266 = vst.msk [vmem:[#allocation2 + $0x288] sm:$0xff] %vm7195, %v7165
  %7267 = vst.msk [vmem:[#allocation2 + $0x290] sm:$0xff] %vm7195, %v7166
  %7268 = vst.msk [vmem:[#allocation2 + $0x298] sm:$0xff] %vm7195, %v7167
  %7269 = vst.msk [vmem:[#allocation2 + $0x2a0] sm:$0xff] %vm7195, %v7168
  %7270 = vst.msk [vmem:[#allocation2 + $0x2a8] sm:$0xff] %vm7195, %v7169
  %7271 = vst.msk [vmem:[#allocation2 + $0x2b0] sm:$0xff] %vm7195, %v7170
  %7272 = vst.msk [vmem:[#allocation2 + $0x2b8] sm:$0xff] %vm7195, %v7171
  %7273 = vst.msk [vmem:[#allocation2 + $0x2c0] sm:$0xff] %vm7195, %v7172
  %7274 = vst.msk [vmem:[#allocation2 + $0x2c8] sm:$0xff] %vm7195, %v7173
  %7275 = vst.msk [vmem:[#allocation2 + $0x2d0] sm:$0xff] %vm7195, %v7174
  %7276 = vst.msk [vmem:[#allocation2 + $0x2d8] sm:$0xff] %vm7195, %v7175
  %7277 = vst.msk [vmem:[#allocation2 + $0x2e0] sm:$0xff] %vm7195, %v7176
  %7278 = vst.msk [vmem:[#allocation2 + $0x2e8] sm:$0xff] %vm7195, %v7177
  %7279 = vst.msk [vmem:[#allocation2 + $0x2f0] sm:$0xff] %vm7195, %v7178
  %7280 = vst.msk [vmem:[#allocation2 + $0x2f8] sm:$0xff] %vm7195, %v7179
  %7281 = vst.msk [vmem:[#allocation2 + $0x300] sm:$0xff] %vm7195, %v7180
  %7282 = vst.msk [vmem:[#allocation2 + $0x308] sm:$0xff] %vm7195, %v7181
  %7283 = vst.msk [vmem:[#allocation2 + $0x310] sm:$0xff] %vm7195, %v7182
  %7284 = vst.msk [vmem:[#allocation2 + $0x318] sm:$0xff] %vm7195, %v7183
  %7285 = vst.msk [vmem:[#allocation2 + $0x320] sm:$0xff] %vm7195, %v7184
  %7286 = vst.msk [vmem:[#allocation2 + $0x328] sm:$0xff] %vm7195, %v7185
  %7287 = vst.msk [vmem:[#allocation2 + $0x330] sm:$0xff] %vm7195, %v7186
  %7288 = vst.msk [vmem:[#allocation2 + $0x338] sm:$0xff] %vm7195, %v7187
  %7289 = vst.msk [vmem:[#allocation2 + $0x340] sm:$0xff] %vm7195, %v7188
  %7290 = vst.msk [vmem:[#allocation2 + $0x348] sm:$0xff] %vm7195, %v7189
  %7291 = vst.msk [vmem:[#allocation2 + $0x350] sm:$0xff] %vm7195, %v7190
  %7292 = vst.msk [vmem:[#allocation2 + $0x358] sm:$0xff] %vm7195, %v7191
  %7293 = vst.msk [vmem:[#allocation2 + $0x360] sm:$0xff] %vm7195, %v7192
  %7294 = vst.msk [vmem:[#allocation2 + $0x368] sm:$0xff] %vm7195, %v7193
  %7295 = vst.msk [vmem:[#allocation2 + $0x370] sm:$0xff] %vm7195, %v7194
  %7296 = vst.msk [vmem:[#allocation2 + $0x58] sm:$0xff] %vm7195, 0.0
  %7297 = vst.msk [vmem:[#allocation2 + $0x60] sm:$0xff] %vm7195, 0.0
  %7298 = vst.msk [vmem:[#allocation2 + $0x68] sm:$0xff] %vm7195, 0.0
  %7299 = vst.msk [vmem:[#allocation2 + $0x70] sm:$0xff] %vm7195, 0.0
  %7300 = vst.msk [vmem:[#allocation2 + $0x78] sm:$0xff] %vm7195, 0.0
  %7301 = vst.msk [vmem:[#allocation2 + $0x80] sm:$0xff] %vm7195, 0.0
  %7302 = vst.msk [vmem:[#allocation2 + $0x88] sm:$0xff] %vm7195, 0.0
  %7303 = vst.msk [vmem:[#allocation2 + $0x90] sm:$0xff] %vm7195, 0.0
  %7304 = vst.msk [vmem:[#allocation2 + $0x98] sm:$0xff] %vm7195, 0.0
  %7305 = vst.msk [vmem:[#allocation2 + $0xa0] sm:$0xff] %vm7195, 0.0
  %7306 = vst.msk [vmem:[#allocation2 + $0xa8] sm:$0xff] %vm7195, 0.0
  %7307 = vst.msk [vmem:[#allocation2 + $0xf0] sm:$0xff] %vm7195, 0.0
  %7308 = vst.msk [vmem:[#allocation2 + $0xf8] sm:$0xff] %vm7195, 0.0
  %7309 = vst.msk [vmem:[#allocation2 + $0x140] sm:$0xff] %vm7195, 0.0
  %7310 = vst.msk [vmem:[#allocation2 + $0x148] sm:$0xff] %vm7195, 0.0
  %7311 = vst.msk [vmem:[#allocation2 + $0x190] sm:$0xff] %vm7195, 0.0
  %7312 = vst.msk [vmem:[#allocation2 + $0x198] sm:$0xff] %vm7195, 0.0
  %7313 = vst.msk [vmem:[#allocation2 + $0x1e0] sm:$0xff] %vm7195, 0.0
  %7314 = vst.msk [vmem:[#allocation2 + $0x1e8] sm:$0xff] %vm7195, 0.0
  %7315 = vst.msk [vmem:[#allocation2 + $0x230] sm:$0xff] %vm7195, 0.0
  %7316 = vst.msk [vmem:[#allocation2 + $0x238] sm:$0xff] %vm7195, 0.0
  %7317 = vst.msk [vmem:[#allocation2 + $0x280] sm:$0xff] %vm7195, 0.0
  %7318 = vst.msk [vmem:[#allocation2 + $0x288] sm:$0xff] %vm7195, 0.0
  %7319 = vst.msk [vmem:[#allocation2 + $0x2d0] sm:$0xff] %vm7195, 0.0
  %7320 = vst.msk [vmem:[#allocation2 + $0x2d8] sm:$0xff] %vm7195, 0.0
  %7321 = vst.msk [vmem:[#allocation2 + $0x320] sm:$0xff] %vm7195, 0.0
  %7322 = vst.msk [vmem:[#allocation2 + $0x328] sm:$0xff] %vm7195, 0.0
  %7323 = vst.msk [vmem:[#allocation2 + $0x330] sm:$0xff] %vm7195, 0.0
  %7324 = vst.msk [vmem:[#allocation2 + $0x338] sm:$0xff] %vm7195, 0.0
  %7325 = vst.msk [vmem:[#allocation2 + $0x340] sm:$0xff] %vm7195, 0.0
  %7326 = vst.msk [vmem:[#allocation2 + $0x348] sm:$0xff] %vm7195, 0.0
  %7327 = vst.msk [vmem:[#allocation2 + $0x350] sm:$0xff] %vm7195, 0.0
  %7328 = vst.msk [vmem:[#allocation2 + $0x358] sm:$0xff] %vm7195, 0.0
  %7329 = vst.msk [vmem:[#allocation2 + $0x360] sm:$0xff] %vm7195, 0.0
  %7330 = vst.msk [vmem:[#allocation2 + $0x368] sm:$0xff] %vm7195, 0.0
  %7331 = vst.msk [vmem:[#allocation2 + $0x370] sm:$0xff] %vm7195, 0.0
  %v7332 = vld [vmem:[#allocation2] sm:$0xff]
  %v7333 = vld [vmem:[#allocation2 + $0x8] sm:$0xff]
  %v7334 = vld [vmem:[#allocation2 + $0x10] sm:$0xff]
  %v7335 = vld [vmem:[#allocation2 + $0x18] sm:$0xff]
  %v7336 = vld [vmem:[#allocation2 + $0x20] sm:$0xff]
  %v7337 = vld [vmem:[#allocation2 + $0x28] sm:$0xff]
  %v7338 = vld [vmem:[#allocation2 + $0x30] sm:$0xff]
  %v7339 = vld [vmem:[#allocation2 + $0x38] sm:$0xff]
  %v7340 = vld [vmem:[#allocation2 + $0x40] sm:$0xff]
  %v7341 = vld [vmem:[#allocation2 + $0x48] sm:$0xff]
  %v7342 = vld [vmem:[#allocation2 + $0x50] sm:$0xff]
  %v7343 = vld [vmem:[#allocation2 + $0x58] sm:$0xff]
  %v7344 = vld [vmem:[#allocation2 + $0x60] sm:$0xff]
  %v7345 = vld [vmem:[#allocation2 + $0x68] sm:$0xff]
  %v7346 = vld [vmem:[#allocation2 + $0x70] sm:$0xff]
  %v7347 = vld [vmem:[#allocation2 + $0x78] sm:$0xff]
  %v7348 = vld [vmem:[#allocation2 + $0x80] sm:$0xff]
  %v7349 = vld [vmem:[#allocation2 + $0x88] sm:$0xff]
  %v7350 = vld [vmem:[#allocation2 + $0x90] sm:$0xff]
  %v7351 = vld [vmem:[#allocation2 + $0x98] sm:$0xff]
  %v7352 = vld [vmem:[#allocation2 + $0xa0] sm:$0xff]
  %v7353 = vld [vmem:[#allocation2 + $0xa8] sm:$0xff]
  %v7354 = vld [vmem:[#allocation2 + $0xb0] sm:$0xff]
  %v7355 = vld [vmem:[#allocation2 + $0xb8] sm:$0xff]
  %v7356 = vld [vmem:[#allocation2 + $0xc0] sm:$0xff]
  %v7357 = vld [vmem:[#allocation2 + $0xc8] sm:$0xff]
  %v7358 = vld [vmem:[#allocation2 + $0xd0] sm:$0xff]
  %v7359 = vld [vmem:[#allocation2 + $0xd8] sm:$0xff]
  %v7360 = vld [vmem:[#allocation2 + $0xe0] sm:$0xff]
  %v7361 = vld [vmem:[#allocation2 + $0xe8] sm:$0xff]
  %v7362 = vld [vmem:[#allocation2 + $0xf0] sm:$0xff]
  %v7363 = vld [vmem:[#allocation2 + $0xf8] sm:$0xff]
  %v7364 = vld [vmem:[#allocation2 + $0x100] sm:$0xff]
  %v7365 = vld [vmem:[#allocation2 + $0x108] sm:$0xff]
  %v7366 = vld [vmem:[#allocation2 + $0x110] sm:$0xff]
  %v7367 = vld [vmem:[#allocation2 + $0x118] sm:$0xff]
  %v7368 = vld [vmem:[#allocation2 + $0x120] sm:$0xff]
  %v7369 = vld [vmem:[#allocation2 + $0x128] sm:$0xff]
  %v7370 = vld [vmem:[#allocation2 + $0x130] sm:$0xff]
  %v7371 = vld [vmem:[#allocation2 + $0x138] sm:$0xff]
  %v7372 = vld [vmem:[#allocation2 + $0x140] sm:$0xff]
  %v7373 = vld [vmem:[#allocation2 + $0x148] sm:$0xff]
  %v7374 = vld [vmem:[#allocation2 + $0x150] sm:$0xff]
  %v7375 = vld [vmem:[#allocation2 + $0x158] sm:$0xff]
  %v7376 = vld [vmem:[#allocation2 + $0x160] sm:$0xff]
  %v7377 = vld [vmem:[#allocation2 + $0x168] sm:$0xff]
  %v7378 = vld [vmem:[#allocation2 + $0x170] sm:$0xff]
  %v7379 = vld [vmem:[#allocation2 + $0x178] sm:$0xff]
  %v7380 = vld [vmem:[#allocation2 + $0x180] sm:$0xff]
  %v7381 = vld [vmem:[#allocation2 + $0x188] sm:$0xff]
  %v7382 = vld [vmem:[#allocation2 + $0x190] sm:$0xff]
  %v7383 = vld [vmem:[#allocation2 + $0x198] sm:$0xff]
  %v7384 = vld [vmem:[#allocation2 + $0x1a0] sm:$0xff]
  %v7385 = vld [vmem:[#allocation2 + $0x1a8] sm:$0xff]
  %v7386 = vld [vmem:[#allocation2 + $0x1b0] sm:$0xff]
  %v7387 = vld [vmem:[#allocation2 + $0x1b8] sm:$0xff]
  %v7388 = vld [vmem:[#allocation2 + $0x1c0] sm:$0xff]
  %v7389 = vld [vmem:[#allocation2 + $0x1c8] sm:$0xff]
  %v7390 = vld [vmem:[#allocation2 + $0x1d0] sm:$0xff]
  %v7391 = vld [vmem:[#allocation2 + $0x1d8] sm:$0xff]
  %v7392 = vld [vmem:[#allocation2 + $0x1e0] sm:$0xff]
  %v7393 = vld [vmem:[#allocation2 + $0x1e8] sm:$0xff]
  %v7394 = vld [vmem:[#allocation2 + $0x1f0] sm:$0xff]
  %v7395 = vld [vmem:[#allocation2 + $0x1f8] sm:$0xff]
  %v7396 = vld [vmem:[#allocation2 + $0x200] sm:$0xff]
  %v7397 = vld [vmem:[#allocation2 + $0x208] sm:$0xff]
  %v7398 = vld [vmem:[#allocation2 + $0x210] sm:$0xff]
  %v7399 = vld [vmem:[#allocation2 + $0x218] sm:$0xff]
  %v7400 = vld [vmem:[#allocation2 + $0x220] sm:$0xff]
  %v7401 = vld [vmem:[#allocation2 + $0x228] sm:$0xff]
  %v7402 = vld [vmem:[#allocation2 + $0x230] sm:$0xff]
  %v7403 = vld [vmem:[#allocation2 + $0x238] sm:$0xff]
  %v7404 = vld [vmem:[#allocation2 + $0x240] sm:$0xff]
  %v7405 = vld [vmem:[#allocation2 + $0x248] sm:$0xff]
  %v7406 = vld [vmem:[#allocation2 + $0x250] sm:$0xff]
  %v7407 = vld [vmem:[#allocation2 + $0x258] sm:$0xff]
  %v7408 = vld [vmem:[#allocation2 + $0x260] sm:$0xff]
  %v7409 = vld [vmem:[#allocation2 + $0x268] sm:$0xff]
  %v7410 = vld [vmem:[#allocation2 + $0x270] sm:$0xff]
  %v7411 = vld [vmem:[#allocation2 + $0x278] sm:$0xff]
  %v7412 = vld [vmem:[#allocation2 + $0x280] sm:$0xff]
  %v7413 = vld [vmem:[#allocation2 + $0x288] sm:$0xff]
  %v7414 = vld [vmem:[#allocation2 + $0x290] sm:$0xff]
  %v7415 = vld [vmem:[#allocation2 + $0x298] sm:$0xff]
  %v7416 = vld [vmem:[#allocation2 + $0x2a0] sm:$0xff]
  %v7417 = vld [vmem:[#allocation2 + $0x2a8] sm:$0xff]
  %v7418 = vld [vmem:[#allocation2 + $0x2b0] sm:$0xff]
  %v7419 = vld [vmem:[#allocation2 + $0x2b8] sm:$0xff]
  %v7420 = vld [vmem:[#allocation2 + $0x2c0] sm:$0xff]
  %v7421 = vld [vmem:[#allocation2 + $0x2c8] sm:$0xff]
  %v7422 = vld [vmem:[#allocation2 + $0x2d0] sm:$0xff]
  %v7423 = vld [vmem:[#allocation2 + $0x2d8] sm:$0xff]
  %v7424 = vld [vmem:[#allocation2 + $0x2e0] sm:$0xff]
  %v7425 = vld [vmem:[#allocation2 + $0x2e8] sm:$0xff]
  %v7426 = vld [vmem:[#allocation2 + $0x2f0] sm:$0xff]
  %v7427 = vld [vmem:[#allocation2 + $0x2f8] sm:$0xff]
  %v7428 = vld [vmem:[#allocation2 + $0x300] sm:$0xff]
  %v7429 = vld [vmem:[#allocation2 + $0x308] sm:$0xff]
  %v7430 = vld [vmem:[#allocation2 + $0x310] sm:$0xff]
  %v7431 = vld [vmem:[#allocation2 + $0x318] sm:$0xff]
  %v7432 = vld [vmem:[#allocation2 + $0x320] sm:$0xff]
  %v7433 = vld [vmem:[#allocation2 + $0x328] sm:$0xff]
  %v7434 = vld [vmem:[#allocation2 + $0x330] sm:$0xff]
  %v7435 = vld [vmem:[#allocation2 + $0x338] sm:$0xff]
  %v7436 = vld [vmem:[#allocation2 + $0x340] sm:$0xff]
  %v7437 = vld [vmem:[#allocation2 + $0x348] sm:$0xff]
  %v7438 = vld [vmem:[#allocation2 + $0x350] sm:$0xff]
  %v7439 = vld [vmem:[#allocation2 + $0x358] sm:$0xff]
  %v7440 = vld [vmem:[#allocation2 + $0x360] sm:$0xff]
  %v7441 = vld [vmem:[#allocation2 + $0x368] sm:$0xff]
  %v7442 = vld [vmem:[#allocation2 + $0x370] sm:$0xff]
  %v7443 = vld [vmem:[#allocation2 + $0x378] sm:$0xff]
  %v7444 = vld [vmem:[#allocation2 + $0x380] sm:$0xff]
  %v7445 = vld [vmem:[#allocation2 + $0x388] sm:$0xff]
  %v7446 = vld [vmem:[#allocation2 + $0x390] sm:$0xff]
  %v7447 = vld [vmem:[#allocation2 + $0x398] sm:$0xff]
  %v7448 = vld [vmem:[#allocation2 + $0x3a0] sm:$0xff]
  %v7449 = vld [vmem:[#allocation2 + $0x3a8] sm:$0xff]
  %v7450 = vld [vmem:[#allocation2 + $0x3b0] sm:$0xff]
  %v7451 = vld [vmem:[#allocation2 + $0x3b8] sm:$0xff]
  %v7452 = vld [vmem:[#allocation2 + $0x3c0] sm:$0xff]
  %v7453 = vld [vmem:[#allocation2 + $0x3c8] sm:$0xff]
  %7554 = vrot.lane.b32.xlu0 %v7333, 20
  %v7555 = vpop.permute.xlu0 %7554
  %7556 = vrot.lane.b32.xlu0 %v7334, 20
  %v7557 = vpop.permute.xlu0 %7556
  %7558 = vrot.lane.b32.xlu0 %v7335, 20
  %v7559 = vpop.permute.xlu0 %7558
  %7560 = vrot.lane.b32.xlu0 %v7336, 20
  %v7561 = vpop.permute.xlu0 %7560
  %7562 = vrot.lane.b32.xlu0 %v7337, 20
  %v7563 = vpop.permute.xlu0 %7562
  %7564 = vrot.lane.b32.xlu0 %v7338, 20
  %v7565 = vpop.permute.xlu0 %7564
  %7566 = vrot.lane.b32.xlu0 %v7339, 20
  %v7567 = vpop.permute.xlu0 %7566
  %7568 = vrot.lane.b32.xlu0 %v7340, 20
  %v7569 = vpop.permute.xlu0 %7568
  %7570 = vrot.lane.b32.xlu0 %v7341, 20
  %v7571 = vpop.permute.xlu0 %7570
  %7572 = vrot.lane.b32.xlu0 %v7342, 20
  %v7573 = vpop.permute.xlu0 %7572
  %7574 = vrot.lane.b32.xlu0 %v7343, 20
  %v7575 = vpop.permute.xlu0 %7574
  %7576 = vrot.lane.b32.xlu0 %v7344, 20
  %v7577 = vpop.permute.xlu0 %7576
  %7578 = vrot.lane.b32.xlu0 %v7345, 20
  %v7579 = vpop.permute.xlu0 %7578
  %7580 = vrot.lane.b32.xlu0 %v7346, 20
  %v7581 = vpop.permute.xlu0 %7580
  %7582 = vrot.lane.b32.xlu0 %v7347, 20
  %v7583 = vpop.permute.xlu0 %7582
  %7584 = vrot.lane.b32.xlu0 %v7348, 20
  %v7585 = vpop.permute.xlu0 %7584
  %7586 = vrot.lane.b32.xlu0 %v7349, 20
  %v7587 = vpop.permute.xlu0 %7586
  %7588 = vrot.lane.b32.xlu0 %v7350, 20
  %v7589 = vpop.permute.xlu0 %7588
  %7590 = vrot.lane.b32.xlu0 %v7351, 20
  %v7591 = vpop.permute.xlu0 %7590
  %7592 = vrot.lane.b32.xlu0 %v7352, 20
  %v7593 = vpop.permute.xlu0 %7592
  %7594 = vrot.lane.b32.xlu0 %v7353, 20
  %v7595 = vpop.permute.xlu0 %7594
  %7596 = vrot.lane.b32.xlu0 %v7354, 20
  %v7597 = vpop.permute.xlu0 %7596
  %7598 = vrot.lane.b32.xlu0 %v7355, 20
  %v7599 = vpop.permute.xlu0 %7598
  %7600 = vrot.lane.b32.xlu0 %v7356, 20
  %v7601 = vpop.permute.xlu0 %7600
  %7602 = vrot.lane.b32.xlu0 %v7357, 20
  %v7603 = vpop.permute.xlu0 %7602
  %7604 = vrot.lane.b32.xlu0 %v7358, 20
  %v7605 = vpop.permute.xlu0 %7604
  %7606 = vrot.lane.b32.xlu0 %v7359, 20
  %v7607 = vpop.permute.xlu0 %7606
  %7608 = vrot.lane.b32.xlu0 %v7360, 20
  %v7609 = vpop.permute.xlu0 %7608
  %7610 = vrot.lane.b32.xlu0 %v7361, 20
  %v7611 = vpop.permute.xlu0 %7610
  %7612 = vrot.lane.b32.xlu0 %v7362, 20
  %v7613 = vpop.permute.xlu0 %7612
  %7614 = vrot.lane.b32.xlu0 %v7363, 20
  %v7615 = vpop.permute.xlu0 %7614
  %7616 = vrot.lane.b32.xlu0 %v7364, 20
  %v7617 = vpop.permute.xlu0 %7616
  %7618 = vrot.lane.b32.xlu0 %v7365, 20
  %v7619 = vpop.permute.xlu0 %7618
  %7620 = vrot.lane.b32.xlu0 %v7366, 20
  %v7621 = vpop.permute.xlu0 %7620
  %7622 = vrot.lane.b32.xlu0 %v7367, 20
  %v7623 = vpop.permute.xlu0 %7622
  %7624 = vrot.lane.b32.xlu0 %v7368, 20
  %v7625 = vpop.permute.xlu0 %7624
  %7626 = vrot.lane.b32.xlu0 %v7369, 20
  %v7627 = vpop.permute.xlu0 %7626
  %7628 = vrot.lane.b32.xlu0 %v7370, 20
  %v7629 = vpop.permute.xlu0 %7628
  %7630 = vrot.lane.b32.xlu0 %v7371, 20
  %v7631 = vpop.permute.xlu0 %7630
  %7632 = vrot.lane.b32.xlu0 %v7372, 20
  %v7633 = vpop.permute.xlu0 %7632
  %7634 = vrot.lane.b32.xlu0 %v7373, 20
  %v7635 = vpop.permute.xlu0 %7634
  %7636 = vrot.lane.b32.xlu0 %v7374, 20
  %v7637 = vpop.permute.xlu0 %7636
  %7638 = vrot.lane.b32.xlu0 %v7375, 20
  %v7639 = vpop.permute.xlu0 %7638
  %7640 = vrot.lane.b32.xlu0 %v7376, 20
  %v7641 = vpop.permute.xlu0 %7640
  %7642 = vrot.lane.b32.xlu0 %v7377, 20
  %v7643 = vpop.permute.xlu0 %7642
  %7644 = vrot.lane.b32.xlu0 %v7378, 20
  %v7645 = vpop.permute.xlu0 %7644
  %7646 = vrot.lane.b32.xlu0 %v7379, 20
  %v7647 = vpop.permute.xlu0 %7646
  %7648 = vrot.lane.b32.xlu0 %v7380, 20
  %v7649 = vpop.permute.xlu0 %7648
  %7650 = vrot.lane.b32.xlu0 %v7381, 20
  %v7651 = vpop.permute.xlu0 %7650
  %7652 = vrot.lane.b32.xlu0 %v7382, 20
  %v7653 = vpop.permute.xlu0 %7652
  %7654 = vrot.lane.b32.xlu0 %v7383, 20
  %v7655 = vpop.permute.xlu0 %7654
  %7656 = vrot.lane.b32.xlu0 %v7384, 20
  %v7657 = vpop.permute.xlu0 %7656
  %7658 = vrot.lane.b32.xlu0 %v7385, 20
  %v7659 = vpop.permute.xlu0 %7658
  %7660 = vrot.lane.b32.xlu0 %v7386, 20
  %v7661 = vpop.permute.xlu0 %7660
  %7662 = vrot.lane.b32.xlu0 %v7387, 20
  %v7663 = vpop.permute.xlu0 %7662
  %7664 = vrot.lane.b32.xlu0 %v7388, 20
  %v7665 = vpop.permute.xlu0 %7664
  %7666 = vrot.lane.b32.xlu0 %v7389, 20
  %v7667 = vpop.permute.xlu0 %7666
  %7668 = vrot.lane.b32.xlu0 %v7390, 20
  %v7669 = vpop.permute.xlu0 %7668
  %7670 = vrot.lane.b32.xlu0 %v7391, 20
  %v7671 = vpop.permute.xlu0 %7670
  %7672 = vrot.lane.b32.xlu0 %v7392, 20
  %v7673 = vpop.permute.xlu0 %7672
  %7674 = vrot.lane.b32.xlu0 %v7393, 20
  %v7675 = vpop.permute.xlu0 %7674
  %7676 = vrot.lane.b32.xlu0 %v7394, 20
  %v7677 = vpop.permute.xlu0 %7676
  %7678 = vrot.lane.b32.xlu0 %v7395, 20
  %v7679 = vpop.permute.xlu0 %7678
  %7680 = vrot.lane.b32.xlu0 %v7396, 20
  %v7681 = vpop.permute.xlu0 %7680
  %7682 = vrot.lane.b32.xlu0 %v7397, 20
  %v7683 = vpop.permute.xlu0 %7682
  %7684 = vrot.lane.b32.xlu0 %v7398, 20
  %v7685 = vpop.permute.xlu0 %7684
  %7686 = vrot.lane.b32.xlu0 %v7399, 20
  %v7687 = vpop.permute.xlu0 %7686
  %7688 = vrot.lane.b32.xlu0 %v7400, 20
  %v7689 = vpop.permute.xlu0 %7688
  %7690 = vrot.lane.b32.xlu0 %v7401, 20
  %v7691 = vpop.permute.xlu0 %7690
  %7692 = vrot.lane.b32.xlu0 %v7402, 20
  %v7693 = vpop.permute.xlu0 %7692
  %7694 = vrot.lane.b32.xlu0 %v7403, 20
  %v7695 = vpop.permute.xlu0 %7694
  %7696 = vrot.lane.b32.xlu0 %v7404, 20
  %v7697 = vpop.permute.xlu0 %7696
  %7698 = vrot.lane.b32.xlu0 %v7405, 20
  %v7699 = vpop.permute.xlu0 %7698
  %7700 = vrot.lane.b32.xlu0 %v7406, 20
  %v7701 = vpop.permute.xlu0 %7700
  %7702 = vrot.lane.b32.xlu0 %v7407, 20
  %v7703 = vpop.permute.xlu0 %7702
  %7704 = vrot.lane.b32.xlu0 %v7408, 20
  %v7705 = vpop.permute.xlu0 %7704
  %7706 = vrot.lane.b32.xlu0 %v7409, 20
  %v7707 = vpop.permute.xlu0 %7706
  %7708 = vrot.lane.b32.xlu0 %v7410, 20
  %v7709 = vpop.permute.xlu0 %7708
  %7710 = vrot.lane.b32.xlu0 %v7411, 20
  %v7711 = vpop.permute.xlu0 %7710
  %7712 = vrot.lane.b32.xlu0 %v7412, 20
  %v7713 = vpop.permute.xlu0 %7712
  %7714 = vrot.lane.b32.xlu0 %v7413, 20
  %v7715 = vpop.permute.xlu0 %7714
  %7716 = vrot.lane.b32.xlu0 %v7414, 20
  %v7717 = vpop.permute.xlu0 %7716
  %7718 = vrot.lane.b32.xlu0 %v7415, 20
  %v7719 = vpop.permute.xlu0 %7718
  %7720 = vrot.lane.b32.xlu0 %v7416, 20
  %v7721 = vpop.permute.xlu0 %7720
  %7722 = vrot.lane.b32.xlu0 %v7417, 20
  %v7723 = vpop.permute.xlu0 %7722
  %7724 = vrot.lane.b32.xlu0 %v7418, 20
  %v7725 = vpop.permute.xlu0 %7724
  %7726 = vrot.lane.b32.xlu0 %v7419, 20
  %v7727 = vpop.permute.xlu0 %7726
  %7728 = vrot.lane.b32.xlu0 %v7420, 20
  %v7729 = vpop.permute.xlu0 %7728
  %7730 = vrot.lane.b32.xlu0 %v7421, 20
  %v7731 = vpop.permute.xlu0 %7730
  %7732 = vrot.lane.b32.xlu0 %v7422, 20
  %v7733 = vpop.permute.xlu0 %7732
  %7734 = vrot.lane.b32.xlu0 %v7423, 20
  %v7735 = vpop.permute.xlu0 %7734
  %7736 = vrot.lane.b32.xlu0 %v7424, 20
  %v7737 = vpop.permute.xlu0 %7736
  %7738 = vrot.lane.b32.xlu0 %v7425, 20
  %v7739 = vpop.permute.xlu0 %7738
  %7740 = vrot.lane.b32.xlu0 %v7426, 20
  %v7741 = vpop.permute.xlu0 %7740
  %7742 = vrot.lane.b32.xlu0 %v7427, 20
  %v7743 = vpop.permute.xlu0 %7742
  %7744 = vrot.lane.b32.xlu0 %v7428, 20
  %v7745 = vpop.permute.xlu0 %7744
  %7746 = vrot.lane.b32.xlu0 %v7429, 20
  %v7747 = vpop.permute.xlu0 %7746
  %7748 = vrot.lane.b32.xlu0 %v7430, 20
  %v7749 = vpop.permute.xlu0 %7748
  %7750 = vrot.lane.b32.xlu0 %v7431, 20
  %v7751 = vpop.permute.xlu0 %7750
  %7752 = vrot.lane.b32.xlu0 %v7432, 20
  %v7753 = vpop.permute.xlu0 %7752
  %7855 = vrot.lane.b32.xlu0 %v7334, 40
  %v7856 = vpop.permute.xlu0 %7855
  %7857 = vrot.lane.b32.xlu0 %v7335, 40
  %v7858 = vpop.permute.xlu0 %7857
  %7859 = vrot.lane.b32.xlu0 %v7336, 40
  %v7860 = vpop.permute.xlu0 %7859
  %7861 = vrot.lane.b32.xlu0 %v7337, 40
  %v7862 = vpop.permute.xlu0 %7861
  %7863 = vrot.lane.b32.xlu0 %v7338, 40
  %v7864 = vpop.permute.xlu0 %7863
  %7865 = vrot.lane.b32.xlu0 %v7339, 40
  %v7866 = vpop.permute.xlu0 %7865
  %7867 = vrot.lane.b32.xlu0 %v7340, 40
  %v7868 = vpop.permute.xlu0 %7867
  %7869 = vrot.lane.b32.xlu0 %v7341, 40
  %v7870 = vpop.permute.xlu0 %7869
  %7871 = vrot.lane.b32.xlu0 %v7342, 40
  %v7872 = vpop.permute.xlu0 %7871
  %7873 = vrot.lane.b32.xlu0 %v7343, 40
  %v7874 = vpop.permute.xlu0 %7873
  %7875 = vrot.lane.b32.xlu0 %v7344, 40
  %v7876 = vpop.permute.xlu0 %7875
  %7877 = vrot.lane.b32.xlu0 %v7345, 40
  %v7878 = vpop.permute.xlu0 %7877
  %7879 = vrot.lane.b32.xlu0 %v7346, 40
  %v7880 = vpop.permute.xlu0 %7879
  %7881 = vrot.lane.b32.xlu0 %v7347, 40
  %v7882 = vpop.permute.xlu0 %7881
  %7883 = vrot.lane.b32.xlu0 %v7348, 40
  %v7884 = vpop.permute.xlu0 %7883
  %7885 = vrot.lane.b32.xlu0 %v7349, 40
  %v7886 = vpop.permute.xlu0 %7885
  %7887 = vrot.lane.b32.xlu0 %v7350, 40
  %v7888 = vpop.permute.xlu0 %7887
  %7889 = vrot.lane.b32.xlu0 %v7351, 40
  %v7890 = vpop.permute.xlu0 %7889
  %7891 = vrot.lane.b32.xlu0 %v7352, 40
  %v7892 = vpop.permute.xlu0 %7891
  %7893 = vrot.lane.b32.xlu0 %v7353, 40
  %v7894 = vpop.permute.xlu0 %7893
  %7895 = vrot.lane.b32.xlu0 %v7354, 40
  %v7896 = vpop.permute.xlu0 %7895
  %7897 = vrot.lane.b32.xlu0 %v7355, 40
  %v7898 = vpop.permute.xlu0 %7897
  %7899 = vrot.lane.b32.xlu0 %v7356, 40
  %v7900 = vpop.permute.xlu0 %7899
  %7901 = vrot.lane.b32.xlu0 %v7357, 40
  %v7902 = vpop.permute.xlu0 %7901
  %7903 = vrot.lane.b32.xlu0 %v7358, 40
  %v7904 = vpop.permute.xlu0 %7903
  %7905 = vrot.lane.b32.xlu0 %v7359, 40
  %v7906 = vpop.permute.xlu0 %7905
  %7907 = vrot.lane.b32.xlu0 %v7360, 40
  %v7908 = vpop.permute.xlu0 %7907
  %7909 = vrot.lane.b32.xlu0 %v7361, 40
  %v7910 = vpop.permute.xlu0 %7909
  %7911 = vrot.lane.b32.xlu0 %v7362, 40
  %v7912 = vpop.permute.xlu0 %7911
  %7913 = vrot.lane.b32.xlu0 %v7363, 40
  %v7914 = vpop.permute.xlu0 %7913
  %7915 = vrot.lane.b32.xlu0 %v7364, 40
  %v7916 = vpop.permute.xlu0 %7915
  %7917 = vrot.lane.b32.xlu0 %v7365, 40
  %v7918 = vpop.permute.xlu0 %7917
  %7919 = vrot.lane.b32.xlu0 %v7366, 40
  %v7920 = vpop.permute.xlu0 %7919
  %7921 = vrot.lane.b32.xlu0 %v7367, 40
  %v7922 = vpop.permute.xlu0 %7921
  %7923 = vrot.lane.b32.xlu0 %v7368, 40
  %v7924 = vpop.permute.xlu0 %7923
  %7925 = vrot.lane.b32.xlu0 %v7369, 40
  %v7926 = vpop.permute.xlu0 %7925
  %7927 = vrot.lane.b32.xlu0 %v7370, 40
  %v7928 = vpop.permute.xlu0 %7927
  %7929 = vrot.lane.b32.xlu0 %v7371, 40
  %v7930 = vpop.permute.xlu0 %7929
  %7931 = vrot.lane.b32.xlu0 %v7372, 40
  %v7932 = vpop.permute.xlu0 %7931
  %7933 = vrot.lane.b32.xlu0 %v7373, 40
  %v7934 = vpop.permute.xlu0 %7933
  %7935 = vrot.lane.b32.xlu0 %v7374, 40
  %v7936 = vpop.permute.xlu0 %7935
  %7937 = vrot.lane.b32.xlu0 %v7375, 40
  %v7938 = vpop.permute.xlu0 %7937
  %7939 = vrot.lane.b32.xlu0 %v7376, 40
  %v7940 = vpop.permute.xlu0 %7939
  %7941 = vrot.lane.b32.xlu0 %v7377, 40
  %v7942 = vpop.permute.xlu0 %7941
  %7943 = vrot.lane.b32.xlu0 %v7378, 40
  %v7944 = vpop.permute.xlu0 %7943
  %7945 = vrot.lane.b32.xlu0 %v7379, 40
  %v7946 = vpop.permute.xlu0 %7945
  %7947 = vrot.lane.b32.xlu0 %v7380, 40
  %v7948 = vpop.permute.xlu0 %7947
  %7949 = vrot.lane.b32.xlu0 %v7381, 40
  %v7950 = vpop.permute.xlu0 %7949
  %7951 = vrot.lane.b32.xlu0 %v7382, 40
  %v7952 = vpop.permute.xlu0 %7951
  %7953 = vrot.lane.b32.xlu0 %v7383, 40
  %v7954 = vpop.permute.xlu0 %7953
  %7955 = vrot.lane.b32.xlu0 %v7384, 40
  %v7956 = vpop.permute.xlu0 %7955
  %7957 = vrot.lane.b32.xlu0 %v7385, 40
  %v7958 = vpop.permute.xlu0 %7957
  %7959 = vrot.lane.b32.xlu0 %v7386, 40
  %v7960 = vpop.permute.xlu0 %7959
  %7961 = vrot.lane.b32.xlu0 %v7387, 40
  %v7962 = vpop.permute.xlu0 %7961
  %7963 = vrot.lane.b32.xlu0 %v7388, 40
  %v7964 = vpop.permute.xlu0 %7963
  %7965 = vrot.lane.b32.xlu0 %v7389, 40
  %v7966 = vpop.permute.xlu0 %7965
  %7967 = vrot.lane.b32.xlu0 %v7390, 40
  %v7968 = vpop.permute.xlu0 %7967
  %7969 = vrot.lane.b32.xlu0 %v7391, 40
  %v7970 = vpop.permute.xlu0 %7969
  %7971 = vrot.lane.b32.xlu0 %v7392, 40
  %v7972 = vpop.permute.xlu0 %7971
  %7973 = vrot.lane.b32.xlu0 %v7393, 40
  %v7974 = vpop.permute.xlu0 %7973
  %7975 = vrot.lane.b32.xlu0 %v7394, 40
  %v7976 = vpop.permute.xlu0 %7975
  %7977 = vrot.lane.b32.xlu0 %v7395, 40
  %v7978 = vpop.permute.xlu0 %7977
  %7979 = vrot.lane.b32.xlu0 %v7396, 40
  %v7980 = vpop.permute.xlu0 %7979
  %7981 = vrot.lane.b32.xlu0 %v7397, 40
  %v7982 = vpop.permute.xlu0 %7981
  %7983 = vrot.lane.b32.xlu0 %v7398, 40
  %v7984 = vpop.permute.xlu0 %7983
  %7985 = vrot.lane.b32.xlu0 %v7399, 40
  %v7986 = vpop.permute.xlu0 %7985
  %7987 = vrot.lane.b32.xlu0 %v7400, 40
  %v7988 = vpop.permute.xlu0 %7987
  %7989 = vrot.lane.b32.xlu0 %v7401, 40
  %v7990 = vpop.permute.xlu0 %7989
  %7991 = vrot.lane.b32.xlu0 %v7402, 40
  %v7992 = vpop.permute.xlu0 %7991
  %7993 = vrot.lane.b32.xlu0 %v7403, 40
  %v7994 = vpop.permute.xlu0 %7993
  %7995 = vrot.lane.b32.xlu0 %v7404, 40
  %v7996 = vpop.permute.xlu0 %7995
  %7997 = vrot.lane.b32.xlu0 %v7405, 40
  %v7998 = vpop.permute.xlu0 %7997
  %7999 = vrot.lane.b32.xlu0 %v7406, 40
  %v8000 = vpop.permute.xlu0 %7999
  %8001 = vrot.lane.b32.xlu0 %v7407, 40
  %v8002 = vpop.permute.xlu0 %8001
  %8003 = vrot.lane.b32.xlu0 %v7408, 40
  %v8004 = vpop.permute.xlu0 %8003
  %8005 = vrot.lane.b32.xlu0 %v7409, 40
  %v8006 = vpop.permute.xlu0 %8005
  %8007 = vrot.lane.b32.xlu0 %v7410, 40
  %v8008 = vpop.permute.xlu0 %8007
  %8009 = vrot.lane.b32.xlu0 %v7411, 40
  %v8010 = vpop.permute.xlu0 %8009
  %8011 = vrot.lane.b32.xlu0 %v7412, 40
  %v8012 = vpop.permute.xlu0 %8011
  %8013 = vrot.lane.b32.xlu0 %v7413, 40
  %v8014 = vpop.permute.xlu0 %8013
  %8015 = vrot.lane.b32.xlu0 %v7414, 40
  %v8016 = vpop.permute.xlu0 %8015
  %8017 = vrot.lane.b32.xlu0 %v7415, 40
  %v8018 = vpop.permute.xlu0 %8017
  %8019 = vrot.lane.b32.xlu0 %v7416, 40
  %v8020 = vpop.permute.xlu0 %8019
  %8021 = vrot.lane.b32.xlu0 %v7417, 40
  %v8022 = vpop.permute.xlu0 %8021
  %8023 = vrot.lane.b32.xlu0 %v7418, 40
  %v8024 = vpop.permute.xlu0 %8023
  %8025 = vrot.lane.b32.xlu0 %v7419, 40
  %v8026 = vpop.permute.xlu0 %8025
  %8027 = vrot.lane.b32.xlu0 %v7420, 40
  %v8028 = vpop.permute.xlu0 %8027
  %8029 = vrot.lane.b32.xlu0 %v7421, 40
  %v8030 = vpop.permute.xlu0 %8029
  %8031 = vrot.lane.b32.xlu0 %v7422, 40
  %v8032 = vpop.permute.xlu0 %8031
  %8033 = vrot.lane.b32.xlu0 %v7423, 40
  %v8034 = vpop.permute.xlu0 %8033
  %8035 = vrot.lane.b32.xlu0 %v7424, 40
  %v8036 = vpop.permute.xlu0 %8035
  %8037 = vrot.lane.b32.xlu0 %v7425, 40
  %v8038 = vpop.permute.xlu0 %8037
  %8039 = vrot.lane.b32.xlu0 %v7426, 40
  %v8040 = vpop.permute.xlu0 %8039
  %8041 = vrot.lane.b32.xlu0 %v7427, 40
  %v8042 = vpop.permute.xlu0 %8041
  %8043 = vrot.lane.b32.xlu0 %v7428, 40
  %v8044 = vpop.permute.xlu0 %8043
  %8045 = vrot.lane.b32.xlu0 %v7429, 40
  %v8046 = vpop.permute.xlu0 %8045
  %8047 = vrot.lane.b32.xlu0 %v7430, 40
  %v8048 = vpop.permute.xlu0 %8047
  %8049 = vrot.lane.b32.xlu0 %v7431, 40
  %v8050 = vpop.permute.xlu0 %8049
  %8051 = vrot.lane.b32.xlu0 %v7432, 40
  %v8052 = vpop.permute.xlu0 %8051
  %8053 = vrot.lane.b32.xlu0 %v7433, 40
  %v8054 = vpop.permute.xlu0 %8053
  %8163 = vrot.lane.b32.xlu0 %v7342, 60
  %v8164 = vpop.permute.xlu0 %8163
  %8165 = vrot.lane.b32.xlu0 %v7343, 60
  %v8166 = vpop.permute.xlu0 %8165
  %8167 = vrot.lane.b32.xlu0 %v7344, 60
  %v8168 = vpop.permute.xlu0 %8167
  %8169 = vrot.lane.b32.xlu0 %v7345, 60
  %v8170 = vpop.permute.xlu0 %8169
  %8171 = vrot.lane.b32.xlu0 %v7346, 60
  %v8172 = vpop.permute.xlu0 %8171
  %8173 = vrot.lane.b32.xlu0 %v7347, 60
  %v8174 = vpop.permute.xlu0 %8173
  %8175 = vrot.lane.b32.xlu0 %v7348, 60
  %v8176 = vpop.permute.xlu0 %8175
  %8177 = vrot.lane.b32.xlu0 %v7349, 60
  %v8178 = vpop.permute.xlu0 %8177
  %8179 = vrot.lane.b32.xlu0 %v7350, 60
  %v8180 = vpop.permute.xlu0 %8179
  %8181 = vrot.lane.b32.xlu0 %v7351, 60
  %v8182 = vpop.permute.xlu0 %8181
  %8183 = vrot.lane.b32.xlu0 %v7352, 60
  %v8184 = vpop.permute.xlu0 %8183
  %8185 = vrot.lane.b32.xlu0 %v7353, 60
  %v8186 = vpop.permute.xlu0 %8185
  %8187 = vrot.lane.b32.xlu0 %v7354, 60
  %v8188 = vpop.permute.xlu0 %8187
  %8189 = vrot.lane.b32.xlu0 %v7355, 60
  %v8190 = vpop.permute.xlu0 %8189
  %8191 = vrot.lane.b32.xlu0 %v7356, 60
  %v8192 = vpop.permute.xlu0 %8191
  %8193 = vrot.lane.b32.xlu0 %v7357, 60
  %v8194 = vpop.permute.xlu0 %8193
  %8195 = vrot.lane.b32.xlu0 %v7358, 60
  %v8196 = vpop.permute.xlu0 %8195
  %8197 = vrot.lane.b32.xlu0 %v7359, 60
  %v8198 = vpop.permute.xlu0 %8197
  %8199 = vrot.lane.b32.xlu0 %v7360, 60
  %v8200 = vpop.permute.xlu0 %8199
  %8201 = vrot.lane.b32.xlu0 %v7361, 60
  %v8202 = vpop.permute.xlu0 %8201
  %8203 = vrot.lane.b32.xlu0 %v7362, 60
  %v8204 = vpop.permute.xlu0 %8203
  %8205 = vrot.lane.b32.xlu0 %v7363, 60
  %v8206 = vpop.permute.xlu0 %8205
  %8207 = vrot.lane.b32.xlu0 %v7364, 60
  %v8208 = vpop.permute.xlu0 %8207
  %8209 = vrot.lane.b32.xlu0 %v7365, 60
  %v8210 = vpop.permute.xlu0 %8209
  %8211 = vrot.lane.b32.xlu0 %v7366, 60
  %v8212 = vpop.permute.xlu0 %8211
  %8213 = vrot.lane.b32.xlu0 %v7367, 60
  %v8214 = vpop.permute.xlu0 %8213
  %8215 = vrot.lane.b32.xlu0 %v7368, 60
  %v8216 = vpop.permute.xlu0 %8215
  %8217 = vrot.lane.b32.xlu0 %v7369, 60
  %v8218 = vpop.permute.xlu0 %8217
  %8219 = vrot.lane.b32.xlu0 %v7370, 60
  %v8220 = vpop.permute.xlu0 %8219
  %8221 = vrot.lane.b32.xlu0 %v7371, 60
  %v8222 = vpop.permute.xlu0 %8221
  %8223 = vrot.lane.b32.xlu0 %v7372, 60
  %v8224 = vpop.permute.xlu0 %8223
  %8225 = vrot.lane.b32.xlu0 %v7373, 60
  %v8226 = vpop.permute.xlu0 %8225
  %8227 = vrot.lane.b32.xlu0 %v7374, 60
  %v8228 = vpop.permute.xlu0 %8227
  %8229 = vrot.lane.b32.xlu0 %v7375, 60
  %v8230 = vpop.permute.xlu0 %8229
  %8231 = vrot.lane.b32.xlu0 %v7376, 60
  %v8232 = vpop.permute.xlu0 %8231
  %8233 = vrot.lane.b32.xlu0 %v7377, 60
  %v8234 = vpop.permute.xlu0 %8233
  %8235 = vrot.lane.b32.xlu0 %v7378, 60
  %v8236 = vpop.permute.xlu0 %8235
  %8237 = vrot.lane.b32.xlu0 %v7379, 60
  %v8238 = vpop.permute.xlu0 %8237
  %8239 = vrot.lane.b32.xlu0 %v7380, 60
  %v8240 = vpop.permute.xlu0 %8239
  %8241 = vrot.lane.b32.xlu0 %v7381, 60
  %v8242 = vpop.permute.xlu0 %8241
  %8243 = vrot.lane.b32.xlu0 %v7382, 60
  %v8244 = vpop.permute.xlu0 %8243
  %8245 = vrot.lane.b32.xlu0 %v7383, 60
  %v8246 = vpop.permute.xlu0 %8245
  %8247 = vrot.lane.b32.xlu0 %v7384, 60
  %v8248 = vpop.permute.xlu0 %8247
  %8249 = vrot.lane.b32.xlu0 %v7385, 60
  %v8250 = vpop.permute.xlu0 %8249
  %8251 = vrot.lane.b32.xlu0 %v7386, 60
  %v8252 = vpop.permute.xlu0 %8251
  %8253 = vrot.lane.b32.xlu0 %v7387, 60
  %v8254 = vpop.permute.xlu0 %8253
  %8255 = vrot.lane.b32.xlu0 %v7388, 60
  %v8256 = vpop.permute.xlu0 %8255
  %8257 = vrot.lane.b32.xlu0 %v7389, 60
  %v8258 = vpop.permute.xlu0 %8257
  %8259 = vrot.lane.b32.xlu0 %v7390, 60
  %v8260 = vpop.permute.xlu0 %8259
  %8261 = vrot.lane.b32.xlu0 %v7391, 60
  %v8262 = vpop.permute.xlu0 %8261
  %8263 = vrot.lane.b32.xlu0 %v7392, 60
  %v8264 = vpop.permute.xlu0 %8263
  %8265 = vrot.lane.b32.xlu0 %v7393, 60
  %v8266 = vpop.permute.xlu0 %8265
  %8267 = vrot.lane.b32.xlu0 %v7394, 60
  %v8268 = vpop.permute.xlu0 %8267
  %8269 = vrot.lane.b32.xlu0 %v7395, 60
  %v8270 = vpop.permute.xlu0 %8269
  %8271 = vrot.lane.b32.xlu0 %v7396, 60
  %v8272 = vpop.permute.xlu0 %8271
  %8273 = vrot.lane.b32.xlu0 %v7397, 60
  %v8274 = vpop.permute.xlu0 %8273
  %8275 = vrot.lane.b32.xlu0 %v7398, 60
  %v8276 = vpop.permute.xlu0 %8275
  %8277 = vrot.lane.b32.xlu0 %v7399, 60
  %v8278 = vpop.permute.xlu0 %8277
  %8279 = vrot.lane.b32.xlu0 %v7400, 60
  %v8280 = vpop.permute.xlu0 %8279
  %8281 = vrot.lane.b32.xlu0 %v7401, 60
  %v8282 = vpop.permute.xlu0 %8281
  %8283 = vrot.lane.b32.xlu0 %v7402, 60
  %v8284 = vpop.permute.xlu0 %8283
  %8285 = vrot.lane.b32.xlu0 %v7403, 60
  %v8286 = vpop.permute.xlu0 %8285
  %8287 = vrot.lane.b32.xlu0 %v7404, 60
  %v8288 = vpop.permute.xlu0 %8287
  %8289 = vrot.lane.b32.xlu0 %v7405, 60
  %v8290 = vpop.permute.xlu0 %8289
  %8291 = vrot.lane.b32.xlu0 %v7406, 60
  %v8292 = vpop.permute.xlu0 %8291
  %8293 = vrot.lane.b32.xlu0 %v7407, 60
  %v8294 = vpop.permute.xlu0 %8293
  %8295 = vrot.lane.b32.xlu0 %v7408, 60
  %v8296 = vpop.permute.xlu0 %8295
  %8297 = vrot.lane.b32.xlu0 %v7409, 60
  %v8298 = vpop.permute.xlu0 %8297
  %8299 = vrot.lane.b32.xlu0 %v7410, 60
  %v8300 = vpop.permute.xlu0 %8299
  %8301 = vrot.lane.b32.xlu0 %v7411, 60
  %v8302 = vpop.permute.xlu0 %8301
  %8303 = vrot.lane.b32.xlu0 %v7412, 60
  %v8304 = vpop.permute.xlu0 %8303
  %8305 = vrot.lane.b32.xlu0 %v7413, 60
  %v8306 = vpop.permute.xlu0 %8305
  %8307 = vrot.lane.b32.xlu0 %v7414, 60
  %v8308 = vpop.permute.xlu0 %8307
  %8309 = vrot.lane.b32.xlu0 %v7415, 60
  %v8310 = vpop.permute.xlu0 %8309
  %8311 = vrot.lane.b32.xlu0 %v7416, 60
  %v8312 = vpop.permute.xlu0 %8311
  %8313 = vrot.lane.b32.xlu0 %v7417, 60
  %v8314 = vpop.permute.xlu0 %8313
  %8315 = vrot.lane.b32.xlu0 %v7418, 60
  %v8316 = vpop.permute.xlu0 %8315
  %8317 = vrot.lane.b32.xlu0 %v7419, 60
  %v8318 = vpop.permute.xlu0 %8317
  %8319 = vrot.lane.b32.xlu0 %v7420, 60
  %v8320 = vpop.permute.xlu0 %8319
  %8321 = vrot.lane.b32.xlu0 %v7421, 60
  %v8322 = vpop.permute.xlu0 %8321
  %8323 = vrot.lane.b32.xlu0 %v7422, 60
  %v8324 = vpop.permute.xlu0 %8323
  %8325 = vrot.lane.b32.xlu0 %v7423, 60
  %v8326 = vpop.permute.xlu0 %8325
  %8327 = vrot.lane.b32.xlu0 %v7424, 60
  %v8328 = vpop.permute.xlu0 %8327
  %8329 = vrot.lane.b32.xlu0 %v7425, 60
  %v8330 = vpop.permute.xlu0 %8329
  %8331 = vrot.lane.b32.xlu0 %v7426, 60
  %v8332 = vpop.permute.xlu0 %8331
  %8333 = vrot.lane.b32.xlu0 %v7427, 60
  %v8334 = vpop.permute.xlu0 %8333
  %8335 = vrot.lane.b32.xlu0 %v7428, 60
  %v8336 = vpop.permute.xlu0 %8335
  %8337 = vrot.lane.b32.xlu0 %v7429, 60
  %v8338 = vpop.permute.xlu0 %8337
  %8339 = vrot.lane.b32.xlu0 %v7430, 60
  %v8340 = vpop.permute.xlu0 %8339
  %8341 = vrot.lane.b32.xlu0 %v7431, 60
  %v8342 = vpop.permute.xlu0 %8341
  %8343 = vrot.lane.b32.xlu0 %v7432, 60
  %v8344 = vpop.permute.xlu0 %8343
  %8345 = vrot.lane.b32.xlu0 %v7433, 60
  %v8346 = vpop.permute.xlu0 %8345
  %8347 = vrot.lane.b32.xlu0 %v7434, 60
  %v8348 = vpop.permute.xlu0 %8347
  %8349 = vrot.lane.b32.xlu0 %v7435, 60
  %v8350 = vpop.permute.xlu0 %8349
  %8351 = vrot.lane.b32.xlu0 %v7436, 60
  %v8352 = vpop.permute.xlu0 %8351
  %8353 = vrot.lane.b32.xlu0 %v7437, 60
  %v8354 = vpop.permute.xlu0 %8353
  %8355 = vrot.lane.b32.xlu0 %v7438, 60
  %v8356 = vpop.permute.xlu0 %8355
  %8357 = vrot.lane.b32.xlu0 %v7439, 60
  %v8358 = vpop.permute.xlu0 %8357
  %8359 = vrot.lane.b32.xlu0 %v7440, 60
  %v8360 = vpop.permute.xlu0 %8359
  %8361 = vrot.lane.b32.xlu0 %v7441, 60
  %v8362 = vpop.permute.xlu0 %8361
  %8464 = vrot.lane.b32.xlu0 %v7343, 80
  %v8465 = vpop.permute.xlu0 %8464
  %8466 = vrot.lane.b32.xlu0 %v7344, 80
  %v8467 = vpop.permute.xlu0 %8466
  %8468 = vrot.lane.b32.xlu0 %v7345, 80
  %v8469 = vpop.permute.xlu0 %8468
  %8470 = vrot.lane.b32.xlu0 %v7346, 80
  %v8471 = vpop.permute.xlu0 %8470
  %8472 = vrot.lane.b32.xlu0 %v7347, 80
  %v8473 = vpop.permute.xlu0 %8472
  %8474 = vrot.lane.b32.xlu0 %v7348, 80
  %v8475 = vpop.permute.xlu0 %8474
  %8476 = vrot.lane.b32.xlu0 %v7349, 80
  %v8477 = vpop.permute.xlu0 %8476
  %8478 = vrot.lane.b32.xlu0 %v7350, 80
  %v8479 = vpop.permute.xlu0 %8478
  %8480 = vrot.lane.b32.xlu0 %v7351, 80
  %v8481 = vpop.permute.xlu0 %8480
  %8482 = vrot.lane.b32.xlu0 %v7352, 80
  %v8483 = vpop.permute.xlu0 %8482
  %8484 = vrot.lane.b32.xlu0 %v7353, 80
  %v8485 = vpop.permute.xlu0 %8484
  %8486 = vrot.lane.b32.xlu0 %v7354, 80
  %v8487 = vpop.permute.xlu0 %8486
  %8488 = vrot.lane.b32.xlu0 %v7355, 80
  %v8489 = vpop.permute.xlu0 %8488
  %8490 = vrot.lane.b32.xlu0 %v7356, 80
  %v8491 = vpop.permute.xlu0 %8490
  %8492 = vrot.lane.b32.xlu0 %v7357, 80
  %v8493 = vpop.permute.xlu0 %8492
  %8494 = vrot.lane.b32.xlu0 %v7358, 80
  %v8495 = vpop.permute.xlu0 %8494
  %8496 = vrot.lane.b32.xlu0 %v7359, 80
  %v8497 = vpop.permute.xlu0 %8496
  %8498 = vrot.lane.b32.xlu0 %v7360, 80
  %v8499 = vpop.permute.xlu0 %8498
  %8500 = vrot.lane.b32.xlu0 %v7361, 80
  %v8501 = vpop.permute.xlu0 %8500
  %8502 = vrot.lane.b32.xlu0 %v7362, 80
  %v8503 = vpop.permute.xlu0 %8502
  %8504 = vrot.lane.b32.xlu0 %v7363, 80
  %v8505 = vpop.permute.xlu0 %8504
  %8506 = vrot.lane.b32.xlu0 %v7364, 80
  %v8507 = vpop.permute.xlu0 %8506
  %8508 = vrot.lane.b32.xlu0 %v7365, 80
  %v8509 = vpop.permute.xlu0 %8508
  %8510 = vrot.lane.b32.xlu0 %v7366, 80
  %v8511 = vpop.permute.xlu0 %8510
  %8512 = vrot.lane.b32.xlu0 %v7367, 80
  %v8513 = vpop.permute.xlu0 %8512
  %8514 = vrot.lane.b32.xlu0 %v7368, 80
  %v8515 = vpop.permute.xlu0 %8514
  %8516 = vrot.lane.b32.xlu0 %v7369, 80
  %v8517 = vpop.permute.xlu0 %8516
  %8518 = vrot.lane.b32.xlu0 %v7370, 80
  %v8519 = vpop.permute.xlu0 %8518
  %8520 = vrot.lane.b32.xlu0 %v7371, 80
  %v8521 = vpop.permute.xlu0 %8520
  %8522 = vrot.lane.b32.xlu0 %v7372, 80
  %v8523 = vpop.permute.xlu0 %8522
  %8524 = vrot.lane.b32.xlu0 %v7373, 80
  %v8525 = vpop.permute.xlu0 %8524
  %8526 = vrot.lane.b32.xlu0 %v7374, 80
  %v8527 = vpop.permute.xlu0 %8526
  %8528 = vrot.lane.b32.xlu0 %v7375, 80
  %v8529 = vpop.permute.xlu0 %8528
  %8530 = vrot.lane.b32.xlu0 %v7376, 80
  %v8531 = vpop.permute.xlu0 %8530
  %8532 = vrot.lane.b32.xlu0 %v7377, 80
  %v8533 = vpop.permute.xlu0 %8532
  %8534 = vrot.lane.b32.xlu0 %v7378, 80
  %v8535 = vpop.permute.xlu0 %8534
  %8536 = vrot.lane.b32.xlu0 %v7379, 80
  %v8537 = vpop.permute.xlu0 %8536
  %8538 = vrot.lane.b32.xlu0 %v7380, 80
  %v8539 = vpop.permute.xlu0 %8538
  %8540 = vrot.lane.b32.xlu0 %v7381, 80
  %v8541 = vpop.permute.xlu0 %8540
  %8542 = vrot.lane.b32.xlu0 %v7382, 80
  %v8543 = vpop.permute.xlu0 %8542
  %8544 = vrot.lane.b32.xlu0 %v7383, 80
  %v8545 = vpop.permute.xlu0 %8544
  %8546 = vrot.lane.b32.xlu0 %v7384, 80
  %v8547 = vpop.permute.xlu0 %8546
  %8548 = vrot.lane.b32.xlu0 %v7385, 80
  %v8549 = vpop.permute.xlu0 %8548
  %8550 = vrot.lane.b32.xlu0 %v7386, 80
  %v8551 = vpop.permute.xlu0 %8550
  %8552 = vrot.lane.b32.xlu0 %v7387, 80
  %v8553 = vpop.permute.xlu0 %8552
  %8554 = vrot.lane.b32.xlu0 %v7388, 80
  %v8555 = vpop.permute.xlu0 %8554
  %8556 = vrot.lane.b32.xlu0 %v7389, 80
  %v8557 = vpop.permute.xlu0 %8556
  %8558 = vrot.lane.b32.xlu0 %v7390, 80
  %v8559 = vpop.permute.xlu0 %8558
  %8560 = vrot.lane.b32.xlu0 %v7391, 80
  %v8561 = vpop.permute.xlu0 %8560
  %8562 = vrot.lane.b32.xlu0 %v7392, 80
  %v8563 = vpop.permute.xlu0 %8562
  %8564 = vrot.lane.b32.xlu0 %v7393, 80
  %v8565 = vpop.permute.xlu0 %8564
  %8566 = vrot.lane.b32.xlu0 %v7394, 80
  %v8567 = vpop.permute.xlu0 %8566
  %8568 = vrot.lane.b32.xlu0 %v7395, 80
  %v8569 = vpop.permute.xlu0 %8568
  %8570 = vrot.lane.b32.xlu0 %v7396, 80
  %v8571 = vpop.permute.xlu0 %8570
  %8572 = vrot.lane.b32.xlu0 %v7397, 80
  %v8573 = vpop.permute.xlu0 %8572
  %8574 = vrot.lane.b32.xlu0 %v7398, 80
  %v8575 = vpop.permute.xlu0 %8574
  %8576 = vrot.lane.b32.xlu0 %v7399, 80
  %v8577 = vpop.permute.xlu0 %8576
  %8578 = vrot.lane.b32.xlu0 %v7400, 80
  %v8579 = vpop.permute.xlu0 %8578
  %8580 = vrot.lane.b32.xlu0 %v7401, 80
  %v8581 = vpop.permute.xlu0 %8580
  %8582 = vrot.lane.b32.xlu0 %v7402, 80
  %v8583 = vpop.permute.xlu0 %8582
  %8584 = vrot.lane.b32.xlu0 %v7403, 80
  %v8585 = vpop.permute.xlu0 %8584
  %8586 = vrot.lane.b32.xlu0 %v7404, 80
  %v8587 = vpop.permute.xlu0 %8586
  %8588 = vrot.lane.b32.xlu0 %v7405, 80
  %v8589 = vpop.permute.xlu0 %8588
  %8590 = vrot.lane.b32.xlu0 %v7406, 80
  %v8591 = vpop.permute.xlu0 %8590
  %8592 = vrot.lane.b32.xlu0 %v7407, 80
  %v8593 = vpop.permute.xlu0 %8592
  %8594 = vrot.lane.b32.xlu0 %v7408, 80
  %v8595 = vpop.permute.xlu0 %8594
  %8596 = vrot.lane.b32.xlu0 %v7409, 80
  %v8597 = vpop.permute.xlu0 %8596
  %8598 = vrot.lane.b32.xlu0 %v7410, 80
  %v8599 = vpop.permute.xlu0 %8598
  %8600 = vrot.lane.b32.xlu0 %v7411, 80
  %v8601 = vpop.permute.xlu0 %8600
  %8602 = vrot.lane.b32.xlu0 %v7412, 80
  %v8603 = vpop.permute.xlu0 %8602
  %8604 = vrot.lane.b32.xlu0 %v7413, 80
  %v8605 = vpop.permute.xlu0 %8604
  %8606 = vrot.lane.b32.xlu0 %v7414, 80
  %v8607 = vpop.permute.xlu0 %8606
  %8608 = vrot.lane.b32.xlu0 %v7415, 80
  %v8609 = vpop.permute.xlu0 %8608
  %8610 = vrot.lane.b32.xlu0 %v7416, 80
  %v8611 = vpop.permute.xlu0 %8610
  %8612 = vrot.lane.b32.xlu0 %v7417, 80
  %v8613 = vpop.permute.xlu0 %8612
  %8614 = vrot.lane.b32.xlu0 %v7418, 80
  %v8615 = vpop.permute.xlu0 %8614
  %8616 = vrot.lane.b32.xlu0 %v7419, 80
  %v8617 = vpop.permute.xlu0 %8616
  %8618 = vrot.lane.b32.xlu0 %v7420, 80
  %v8619 = vpop.permute.xlu0 %8618
  %8620 = vrot.lane.b32.xlu0 %v7421, 80
  %v8621 = vpop.permute.xlu0 %8620
  %8622 = vrot.lane.b32.xlu0 %v7422, 80
  %v8623 = vpop.permute.xlu0 %8622
  %8624 = vrot.lane.b32.xlu0 %v7423, 80
  %v8625 = vpop.permute.xlu0 %8624
  %8626 = vrot.lane.b32.xlu0 %v7424, 80
  %v8627 = vpop.permute.xlu0 %8626
  %8628 = vrot.lane.b32.xlu0 %v7425, 80
  %v8629 = vpop.permute.xlu0 %8628
  %8630 = vrot.lane.b32.xlu0 %v7426, 80
  %v8631 = vpop.permute.xlu0 %8630
  %8632 = vrot.lane.b32.xlu0 %v7427, 80
  %v8633 = vpop.permute.xlu0 %8632
  %8634 = vrot.lane.b32.xlu0 %v7428, 80
  %v8635 = vpop.permute.xlu0 %8634
  %8636 = vrot.lane.b32.xlu0 %v7429, 80
  %v8637 = vpop.permute.xlu0 %8636
  %8638 = vrot.lane.b32.xlu0 %v7430, 80
  %v8639 = vpop.permute.xlu0 %8638
  %8640 = vrot.lane.b32.xlu0 %v7431, 80
  %v8641 = vpop.permute.xlu0 %8640
  %8642 = vrot.lane.b32.xlu0 %v7432, 80
  %v8643 = vpop.permute.xlu0 %8642
  %8644 = vrot.lane.b32.xlu0 %v7433, 80
  %v8645 = vpop.permute.xlu0 %8644
  %8646 = vrot.lane.b32.xlu0 %v7434, 80
  %v8647 = vpop.permute.xlu0 %8646
  %8648 = vrot.lane.b32.xlu0 %v7435, 80
  %v8649 = vpop.permute.xlu0 %8648
  %8650 = vrot.lane.b32.xlu0 %v7436, 80
  %v8651 = vpop.permute.xlu0 %8650
  %8652 = vrot.lane.b32.xlu0 %v7437, 80
  %v8653 = vpop.permute.xlu0 %8652
  %8654 = vrot.lane.b32.xlu0 %v7438, 80
  %v8655 = vpop.permute.xlu0 %8654
  %8656 = vrot.lane.b32.xlu0 %v7439, 80
  %v8657 = vpop.permute.xlu0 %8656
  %8658 = vrot.lane.b32.xlu0 %v7440, 80
  %v8659 = vpop.permute.xlu0 %8658
  %8660 = vrot.lane.b32.xlu0 %v7441, 80
  %v8661 = vpop.permute.xlu0 %8660
  %8662 = vrot.lane.b32.xlu0 %v7442, 80
  %v8663 = vpop.permute.xlu0 %8662
  %8765 = vrot.lane.b32.xlu0 %v7344, 100
  %v8766 = vpop.permute.xlu0 %8765
  %8767 = vrot.lane.b32.xlu0 %v7345, 100
  %v8768 = vpop.permute.xlu0 %8767
  %8769 = vrot.lane.b32.xlu0 %v7346, 100
  %v8770 = vpop.permute.xlu0 %8769
  %8771 = vrot.lane.b32.xlu0 %v7347, 100
  %v8772 = vpop.permute.xlu0 %8771
  %8773 = vrot.lane.b32.xlu0 %v7348, 100
  %v8774 = vpop.permute.xlu0 %8773
  %8775 = vrot.lane.b32.xlu0 %v7349, 100
  %v8776 = vpop.permute.xlu0 %8775
  %8777 = vrot.lane.b32.xlu0 %v7350, 100
  %v8778 = vpop.permute.xlu0 %8777
  %8779 = vrot.lane.b32.xlu0 %v7351, 100
  %v8780 = vpop.permute.xlu0 %8779
  %8781 = vrot.lane.b32.xlu0 %v7352, 100
  %v8782 = vpop.permute.xlu0 %8781
  %8783 = vrot.lane.b32.xlu0 %v7353, 100
  %v8784 = vpop.permute.xlu0 %8783
  %8785 = vrot.lane.b32.xlu0 %v7354, 100
  %v8786 = vpop.permute.xlu0 %8785
  %8787 = vrot.lane.b32.xlu0 %v7355, 100
  %v8788 = vpop.permute.xlu0 %8787
  %8789 = vrot.lane.b32.xlu0 %v7356, 100
  %v8790 = vpop.permute.xlu0 %8789
  %8791 = vrot.lane.b32.xlu0 %v7357, 100
  %v8792 = vpop.permute.xlu0 %8791
  %8793 = vrot.lane.b32.xlu0 %v7358, 100
  %v8794 = vpop.permute.xlu0 %8793
  %8795 = vrot.lane.b32.xlu0 %v7359, 100
  %v8796 = vpop.permute.xlu0 %8795
  %8797 = vrot.lane.b32.xlu0 %v7360, 100
  %v8798 = vpop.permute.xlu0 %8797
  %8799 = vrot.lane.b32.xlu0 %v7361, 100
  %v8800 = vpop.permute.xlu0 %8799
  %8801 = vrot.lane.b32.xlu0 %v7362, 100
  %v8802 = vpop.permute.xlu0 %8801
  %8803 = vrot.lane.b32.xlu0 %v7363, 100
  %v8804 = vpop.permute.xlu0 %8803
  %8805 = vrot.lane.b32.xlu0 %v7364, 100
  %v8806 = vpop.permute.xlu0 %8805
  %8807 = vrot.lane.b32.xlu0 %v7365, 100
  %v8808 = vpop.permute.xlu0 %8807
  %8809 = vrot.lane.b32.xlu0 %v7366, 100
  %v8810 = vpop.permute.xlu0 %8809
  %8811 = vrot.lane.b32.xlu0 %v7367, 100
  %v8812 = vpop.permute.xlu0 %8811
  %8813 = vrot.lane.b32.xlu0 %v7368, 100
  %v8814 = vpop.permute.xlu0 %8813
  %8815 = vrot.lane.b32.xlu0 %v7369, 100
  %v8816 = vpop.permute.xlu0 %8815
  %8817 = vrot.lane.b32.xlu0 %v7370, 100
  %v8818 = vpop.permute.xlu0 %8817
  %8819 = vrot.lane.b32.xlu0 %v7371, 100
  %v8820 = vpop.permute.xlu0 %8819
  %8821 = vrot.lane.b32.xlu0 %v7372, 100
  %v8822 = vpop.permute.xlu0 %8821
  %8823 = vrot.lane.b32.xlu0 %v7373, 100
  %v8824 = vpop.permute.xlu0 %8823
  %8825 = vrot.lane.b32.xlu0 %v7374, 100
  %v8826 = vpop.permute.xlu0 %8825
  %8827 = vrot.lane.b32.xlu0 %v7375, 100
  %v8828 = vpop.permute.xlu0 %8827
  %8829 = vrot.lane.b32.xlu0 %v7376, 100
  %v8830 = vpop.permute.xlu0 %8829
  %8831 = vrot.lane.b32.xlu0 %v7377, 100
  %v8832 = vpop.permute.xlu0 %8831
  %8833 = vrot.lane.b32.xlu0 %v7378, 100
  %v8834 = vpop.permute.xlu0 %8833
  %8835 = vrot.lane.b32.xlu0 %v7379, 100
  %v8836 = vpop.permute.xlu0 %8835
  %8837 = vrot.lane.b32.xlu0 %v7380, 100
  %v8838 = vpop.permute.xlu0 %8837
  %8839 = vrot.lane.b32.xlu0 %v7381, 100
  %v8840 = vpop.permute.xlu0 %8839
  %8841 = vrot.lane.b32.xlu0 %v7382, 100
  %v8842 = vpop.permute.xlu0 %8841
  %8843 = vrot.lane.b32.xlu0 %v7383, 100
  %v8844 = vpop.permute.xlu0 %8843
  %8845 = vrot.lane.b32.xlu0 %v7384, 100
  %v8846 = vpop.permute.xlu0 %8845
  %8847 = vrot.lane.b32.xlu0 %v7385, 100
  %v8848 = vpop.permute.xlu0 %8847
  %8849 = vrot.lane.b32.xlu0 %v7386, 100
  %v8850 = vpop.permute.xlu0 %8849
  %8851 = vrot.lane.b32.xlu0 %v7387, 100
  %v8852 = vpop.permute.xlu0 %8851
  %8853 = vrot.lane.b32.xlu0 %v7388, 100
  %v8854 = vpop.permute.xlu0 %8853
  %8855 = vrot.lane.b32.xlu0 %v7389, 100
  %v8856 = vpop.permute.xlu0 %8855
  %8857 = vrot.lane.b32.xlu0 %v7390, 100
  %v8858 = vpop.permute.xlu0 %8857
  %8859 = vrot.lane.b32.xlu0 %v7391, 100
  %v8860 = vpop.permute.xlu0 %8859
  %8861 = vrot.lane.b32.xlu0 %v7392, 100
  %v8862 = vpop.permute.xlu0 %8861
  %8863 = vrot.lane.b32.xlu0 %v7393, 100
  %v8864 = vpop.permute.xlu0 %8863
  %8865 = vrot.lane.b32.xlu0 %v7394, 100
  %v8866 = vpop.permute.xlu0 %8865
  %8867 = vrot.lane.b32.xlu0 %v7395, 100
  %v8868 = vpop.permute.xlu0 %8867
  %8869 = vrot.lane.b32.xlu0 %v7396, 100
  %v8870 = vpop.permute.xlu0 %8869
  %8871 = vrot.lane.b32.xlu0 %v7397, 100
  %v8872 = vpop.permute.xlu0 %8871
  %8873 = vrot.lane.b32.xlu0 %v7398, 100
  %v8874 = vpop.permute.xlu0 %8873
  %8875 = vrot.lane.b32.xlu0 %v7399, 100
  %v8876 = vpop.permute.xlu0 %8875
  %8877 = vrot.lane.b32.xlu0 %v7400, 100
  %v8878 = vpop.permute.xlu0 %8877
  %8879 = vrot.lane.b32.xlu0 %v7401, 100
  %v8880 = vpop.permute.xlu0 %8879
  %8881 = vrot.lane.b32.xlu0 %v7402, 100
  %v8882 = vpop.permute.xlu0 %8881
  %8883 = vrot.lane.b32.xlu0 %v7403, 100
  %v8884 = vpop.permute.xlu0 %8883
  %8885 = vrot.lane.b32.xlu0 %v7404, 100
  %v8886 = vpop.permute.xlu0 %8885
  %8887 = vrot.lane.b32.xlu0 %v7405, 100
  %v8888 = vpop.permute.xlu0 %8887
  %8889 = vrot.lane.b32.xlu0 %v7406, 100
  %v8890 = vpop.permute.xlu0 %8889
  %8891 = vrot.lane.b32.xlu0 %v7407, 100
  %v8892 = vpop.permute.xlu0 %8891
  %8893 = vrot.lane.b32.xlu0 %v7408, 100
  %v8894 = vpop.permute.xlu0 %8893
  %8895 = vrot.lane.b32.xlu0 %v7409, 100
  %v8896 = vpop.permute.xlu0 %8895
  %8897 = vrot.lane.b32.xlu0 %v7410, 100
  %v8898 = vpop.permute.xlu0 %8897
  %8899 = vrot.lane.b32.xlu0 %v7411, 100
  %v8900 = vpop.permute.xlu0 %8899
  %8901 = vrot.lane.b32.xlu0 %v7412, 100
  %v8902 = vpop.permute.xlu0 %8901
  %8903 = vrot.lane.b32.xlu0 %v7413, 100
  %v8904 = vpop.permute.xlu0 %8903
  %8905 = vrot.lane.b32.xlu0 %v7414, 100
  %v8906 = vpop.permute.xlu0 %8905
  %8907 = vrot.lane.b32.xlu0 %v7415, 100
  %v8908 = vpop.permute.xlu0 %8907
  %8909 = vrot.lane.b32.xlu0 %v7416, 100
  %v8910 = vpop.permute.xlu0 %8909
  %8911 = vrot.lane.b32.xlu0 %v7417, 100
  %v8912 = vpop.permute.xlu0 %8911
  %8913 = vrot.lane.b32.xlu0 %v7418, 100
  %v8914 = vpop.permute.xlu0 %8913
  %8915 = vrot.lane.b32.xlu0 %v7419, 100
  %v8916 = vpop.permute.xlu0 %8915
  %8917 = vrot.lane.b32.xlu0 %v7420, 100
  %v8918 = vpop.permute.xlu0 %8917
  %8919 = vrot.lane.b32.xlu0 %v7421, 100
  %v8920 = vpop.permute.xlu0 %8919
  %8921 = vrot.lane.b32.xlu0 %v7422, 100
  %v8922 = vpop.permute.xlu0 %8921
  %8923 = vrot.lane.b32.xlu0 %v7423, 100
  %v8924 = vpop.permute.xlu0 %8923
  %8925 = vrot.lane.b32.xlu0 %v7424, 100
  %v8926 = vpop.permute.xlu0 %8925
  %8927 = vrot.lane.b32.xlu0 %v7425, 100
  %v8928 = vpop.permute.xlu0 %8927
  %8929 = vrot.lane.b32.xlu0 %v7426, 100
  %v8930 = vpop.permute.xlu0 %8929
  %8931 = vrot.lane.b32.xlu0 %v7427, 100
  %v8932 = vpop.permute.xlu0 %8931
  %8933 = vrot.lane.b32.xlu0 %v7428, 100
  %v8934 = vpop.permute.xlu0 %8933
  %8935 = vrot.lane.b32.xlu0 %v7429, 100
  %v8936 = vpop.permute.xlu0 %8935
  %8937 = vrot.lane.b32.xlu0 %v7430, 100
  %v8938 = vpop.permute.xlu0 %8937
  %8939 = vrot.lane.b32.xlu0 %v7431, 100
  %v8940 = vpop.permute.xlu0 %8939
  %8941 = vrot.lane.b32.xlu0 %v7432, 100
  %v8942 = vpop.permute.xlu0 %8941
  %8943 = vrot.lane.b32.xlu0 %v7433, 100
  %v8944 = vpop.permute.xlu0 %8943
  %8945 = vrot.lane.b32.xlu0 %v7434, 100
  %v8946 = vpop.permute.xlu0 %8945
  %8947 = vrot.lane.b32.xlu0 %v7435, 100
  %v8948 = vpop.permute.xlu0 %8947
  %8949 = vrot.lane.b32.xlu0 %v7436, 100
  %v8950 = vpop.permute.xlu0 %8949
  %8951 = vrot.lane.b32.xlu0 %v7437, 100
  %v8952 = vpop.permute.xlu0 %8951
  %8953 = vrot.lane.b32.xlu0 %v7438, 100
  %v8954 = vpop.permute.xlu0 %8953
  %8955 = vrot.lane.b32.xlu0 %v7439, 100
  %v8956 = vpop.permute.xlu0 %8955
  %8957 = vrot.lane.b32.xlu0 %v7440, 100
  %v8958 = vpop.permute.xlu0 %8957
  %8959 = vrot.lane.b32.xlu0 %v7441, 100
  %v8960 = vpop.permute.xlu0 %8959
  %8961 = vrot.lane.b32.xlu0 %v7442, 100
  %v8962 = vpop.permute.xlu0 %8961
  %8963 = vrot.lane.b32.xlu0 %v7443, 100
  %v8964 = vpop.permute.xlu0 %8963
  %9073 = vrot.lane.b32.xlu0 %v7352, 120
  %v9074 = vpop.permute.xlu0 %9073
  %9075 = vrot.lane.b32.xlu0 %v7353, 120
  %v9076 = vpop.permute.xlu0 %9075
  %9077 = vrot.lane.b32.xlu0 %v7354, 120
  %v9078 = vpop.permute.xlu0 %9077
  %9079 = vrot.lane.b32.xlu0 %v7355, 120
  %v9080 = vpop.permute.xlu0 %9079
  %9081 = vrot.lane.b32.xlu0 %v7356, 120
  %v9082 = vpop.permute.xlu0 %9081
  %9083 = vrot.lane.b32.xlu0 %v7357, 120
  %v9084 = vpop.permute.xlu0 %9083
  %9085 = vrot.lane.b32.xlu0 %v7358, 120
  %v9086 = vpop.permute.xlu0 %9085
  %9087 = vrot.lane.b32.xlu0 %v7359, 120
  %v9088 = vpop.permute.xlu0 %9087
  %9089 = vrot.lane.b32.xlu0 %v7360, 120
  %v9090 = vpop.permute.xlu0 %9089
  %9091 = vrot.lane.b32.xlu0 %v7361, 120
  %v9092 = vpop.permute.xlu0 %9091
  %9093 = vrot.lane.b32.xlu0 %v7362, 120
  %v9094 = vpop.permute.xlu0 %9093
  %9095 = vrot.lane.b32.xlu0 %v7363, 120
  %v9096 = vpop.permute.xlu0 %9095
  %9097 = vrot.lane.b32.xlu0 %v7364, 120
  %v9098 = vpop.permute.xlu0 %9097
  %9099 = vrot.lane.b32.xlu0 %v7365, 120
  %v9100 = vpop.permute.xlu0 %9099
  %9101 = vrot.lane.b32.xlu0 %v7366, 120
  %v9102 = vpop.permute.xlu0 %9101
  %9103 = vrot.lane.b32.xlu0 %v7367, 120
  %v9104 = vpop.permute.xlu0 %9103
  %9105 = vrot.lane.b32.xlu0 %v7368, 120
  %v9106 = vpop.permute.xlu0 %9105
  %9107 = vrot.lane.b32.xlu0 %v7369, 120
  %v9108 = vpop.permute.xlu0 %9107
  %9109 = vrot.lane.b32.xlu0 %v7370, 120
  %v9110 = vpop.permute.xlu0 %9109
  %9111 = vrot.lane.b32.xlu0 %v7371, 120
  %v9112 = vpop.permute.xlu0 %9111
  %9113 = vrot.lane.b32.xlu0 %v7372, 120
  %v9114 = vpop.permute.xlu0 %9113
  %9115 = vrot.lane.b32.xlu0 %v7373, 120
  %v9116 = vpop.permute.xlu0 %9115
  %9117 = vrot.lane.b32.xlu0 %v7374, 120
  %v9118 = vpop.permute.xlu0 %9117
  %9119 = vrot.lane.b32.xlu0 %v7375, 120
  %v9120 = vpop.permute.xlu0 %9119
  %9121 = vrot.lane.b32.xlu0 %v7376, 120
  %v9122 = vpop.permute.xlu0 %9121
  %9123 = vrot.lane.b32.xlu0 %v7377, 120
  %v9124 = vpop.permute.xlu0 %9123
  %9125 = vrot.lane.b32.xlu0 %v7378, 120
  %v9126 = vpop.permute.xlu0 %9125
  %9127 = vrot.lane.b32.xlu0 %v7379, 120
  %v9128 = vpop.permute.xlu0 %9127
  %9129 = vrot.lane.b32.xlu0 %v7380, 120
  %v9130 = vpop.permute.xlu0 %9129
  %9131 = vrot.lane.b32.xlu0 %v7381, 120
  %v9132 = vpop.permute.xlu0 %9131
  %9133 = vrot.lane.b32.xlu0 %v7382, 120
  %v9134 = vpop.permute.xlu0 %9133
  %9135 = vrot.lane.b32.xlu0 %v7383, 120
  %v9136 = vpop.permute.xlu0 %9135
  %9137 = vrot.lane.b32.xlu0 %v7384, 120
  %v9138 = vpop.permute.xlu0 %9137
  %9139 = vrot.lane.b32.xlu0 %v7385, 120
  %v9140 = vpop.permute.xlu0 %9139
  %9141 = vrot.lane.b32.xlu0 %v7386, 120
  %v9142 = vpop.permute.xlu0 %9141
  %9143 = vrot.lane.b32.xlu0 %v7387, 120
  %v9144 = vpop.permute.xlu0 %9143
  %9145 = vrot.lane.b32.xlu0 %v7388, 120
  %v9146 = vpop.permute.xlu0 %9145
  %9147 = vrot.lane.b32.xlu0 %v7389, 120
  %v9148 = vpop.permute.xlu0 %9147
  %9149 = vrot.lane.b32.xlu0 %v7390, 120
  %v9150 = vpop.permute.xlu0 %9149
  %9151 = vrot.lane.b32.xlu0 %v7391, 120
  %v9152 = vpop.permute.xlu0 %9151
  %9153 = vrot.lane.b32.xlu0 %v7392, 120
  %v9154 = vpop.permute.xlu0 %9153
  %9155 = vrot.lane.b32.xlu0 %v7393, 120
  %v9156 = vpop.permute.xlu0 %9155
  %9157 = vrot.lane.b32.xlu0 %v7394, 120
  %v9158 = vpop.permute.xlu0 %9157
  %9159 = vrot.lane.b32.xlu0 %v7395, 120
  %v9160 = vpop.permute.xlu0 %9159
  %9161 = vrot.lane.b32.xlu0 %v7396, 120
  %v9162 = vpop.permute.xlu0 %9161
  %9163 = vrot.lane.b32.xlu0 %v7397, 120
  %v9164 = vpop.permute.xlu0 %9163
  %9165 = vrot.lane.b32.xlu0 %v7398, 120
  %v9166 = vpop.permute.xlu0 %9165
  %9167 = vrot.lane.b32.xlu0 %v7399, 120
  %v9168 = vpop.permute.xlu0 %9167
  %9169 = vrot.lane.b32.xlu0 %v7400, 120
  %v9170 = vpop.permute.xlu0 %9169
  %9171 = vrot.lane.b32.xlu0 %v7401, 120
  %v9172 = vpop.permute.xlu0 %9171
  %9173 = vrot.lane.b32.xlu0 %v7402, 120
  %v9174 = vpop.permute.xlu0 %9173
  %9175 = vrot.lane.b32.xlu0 %v7403, 120
  %v9176 = vpop.permute.xlu0 %9175
  %9177 = vrot.lane.b32.xlu0 %v7404, 120
  %v9178 = vpop.permute.xlu0 %9177
  %9179 = vrot.lane.b32.xlu0 %v7405, 120
  %v9180 = vpop.permute.xlu0 %9179
  %9181 = vrot.lane.b32.xlu0 %v7406, 120
  %v9182 = vpop.permute.xlu0 %9181
  %9183 = vrot.lane.b32.xlu0 %v7407, 120
  %v9184 = vpop.permute.xlu0 %9183
  %9185 = vrot.lane.b32.xlu0 %v7408, 120
  %v9186 = vpop.permute.xlu0 %9185
  %9187 = vrot.lane.b32.xlu0 %v7409, 120
  %v9188 = vpop.permute.xlu0 %9187
  %9189 = vrot.lane.b32.xlu0 %v7410, 120
  %v9190 = vpop.permute.xlu0 %9189
  %9191 = vrot.lane.b32.xlu0 %v7411, 120
  %v9192 = vpop.permute.xlu0 %9191
  %9193 = vrot.lane.b32.xlu0 %v7412, 120
  %v9194 = vpop.permute.xlu0 %9193
  %9195 = vrot.lane.b32.xlu0 %v7413, 120
  %v9196 = vpop.permute.xlu0 %9195
  %9197 = vrot.lane.b32.xlu0 %v7414, 120
  %v9198 = vpop.permute.xlu0 %9197
  %9199 = vrot.lane.b32.xlu0 %v7415, 120
  %v9200 = vpop.permute.xlu0 %9199
  %9201 = vrot.lane.b32.xlu0 %v7416, 120
  %v9202 = vpop.permute.xlu0 %9201
  %9203 = vrot.lane.b32.xlu0 %v7417, 120
  %v9204 = vpop.permute.xlu0 %9203
  %9205 = vrot.lane.b32.xlu0 %v7418, 120
  %v9206 = vpop.permute.xlu0 %9205
  %9207 = vrot.lane.b32.xlu0 %v7419, 120
  %v9208 = vpop.permute.xlu0 %9207
  %9209 = vrot.lane.b32.xlu0 %v7420, 120
  %v9210 = vpop.permute.xlu0 %9209
  %9211 = vrot.lane.b32.xlu0 %v7421, 120
  %v9212 = vpop.permute.xlu0 %9211
  %9213 = vrot.lane.b32.xlu0 %v7422, 120
  %v9214 = vpop.permute.xlu0 %9213
  %9215 = vrot.lane.b32.xlu0 %v7423, 120
  %v9216 = vpop.permute.xlu0 %9215
  %9217 = vrot.lane.b32.xlu0 %v7424, 120
  %v9218 = vpop.permute.xlu0 %9217
  %9219 = vrot.lane.b32.xlu0 %v7425, 120
  %v9220 = vpop.permute.xlu0 %9219
  %9221 = vrot.lane.b32.xlu0 %v7426, 120
  %v9222 = vpop.permute.xlu0 %9221
  %9223 = vrot.lane.b32.xlu0 %v7427, 120
  %v9224 = vpop.permute.xlu0 %9223
  %9225 = vrot.lane.b32.xlu0 %v7428, 120
  %v9226 = vpop.permute.xlu0 %9225
  %9227 = vrot.lane.b32.xlu0 %v7429, 120
  %v9228 = vpop.permute.xlu0 %9227
  %9229 = vrot.lane.b32.xlu0 %v7430, 120
  %v9230 = vpop.permute.xlu0 %9229
  %9231 = vrot.lane.b32.xlu0 %v7431, 120
  %v9232 = vpop.permute.xlu0 %9231
  %9233 = vrot.lane.b32.xlu0 %v7432, 120
  %v9234 = vpop.permute.xlu0 %9233
  %9235 = vrot.lane.b32.xlu0 %v7433, 120
  %v9236 = vpop.permute.xlu0 %9235
  %9237 = vrot.lane.b32.xlu0 %v7434, 120
  %v9238 = vpop.permute.xlu0 %9237
  %9239 = vrot.lane.b32.xlu0 %v7435, 120
  %v9240 = vpop.permute.xlu0 %9239
  %9241 = vrot.lane.b32.xlu0 %v7436, 120
  %v9242 = vpop.permute.xlu0 %9241
  %9243 = vrot.lane.b32.xlu0 %v7437, 120
  %v9244 = vpop.permute.xlu0 %9243
  %9245 = vrot.lane.b32.xlu0 %v7438, 120
  %v9246 = vpop.permute.xlu0 %9245
  %9247 = vrot.lane.b32.xlu0 %v7439, 120
  %v9248 = vpop.permute.xlu0 %9247
  %9249 = vrot.lane.b32.xlu0 %v7440, 120
  %v9250 = vpop.permute.xlu0 %9249
  %9251 = vrot.lane.b32.xlu0 %v7441, 120
  %v9252 = vpop.permute.xlu0 %9251
  %9253 = vrot.lane.b32.xlu0 %v7442, 120
  %v9254 = vpop.permute.xlu0 %9253
  %9255 = vrot.lane.b32.xlu0 %v7443, 120
  %v9256 = vpop.permute.xlu0 %9255
  %9257 = vrot.lane.b32.xlu0 %v7444, 120
  %v9258 = vpop.permute.xlu0 %9257
  %9259 = vrot.lane.b32.xlu0 %v7445, 120
  %v9260 = vpop.permute.xlu0 %9259
  %9261 = vrot.lane.b32.xlu0 %v7446, 120
  %v9262 = vpop.permute.xlu0 %9261
  %9263 = vrot.lane.b32.xlu0 %v7447, 120
  %v9264 = vpop.permute.xlu0 %9263
  %9265 = vrot.lane.b32.xlu0 %v7448, 120
  %v9266 = vpop.permute.xlu0 %9265
  %9267 = vrot.lane.b32.xlu0 %v7449, 120
  %v9268 = vpop.permute.xlu0 %9267
  %9269 = vrot.lane.b32.xlu0 %v7450, 120
  %v9270 = vpop.permute.xlu0 %9269
  %9271 = vrot.lane.b32.xlu0 %v7451, 120
  %v9272 = vpop.permute.xlu0 %9271
  %9374 = vrot.lane.b32.xlu0 %v7353, 12
  %v9375 = vpop.permute.xlu0 %9374
  %9376 = vrot.lane.b32.xlu0 %v7354, 12
  %v9377 = vpop.permute.xlu0 %9376
  %9378 = vrot.lane.b32.xlu0 %v7355, 12
  %v9379 = vpop.permute.xlu0 %9378
  %9380 = vrot.lane.b32.xlu0 %v7356, 12
  %v9381 = vpop.permute.xlu0 %9380
  %9382 = vrot.lane.b32.xlu0 %v7357, 12
  %v9383 = vpop.permute.xlu0 %9382
  %9384 = vrot.lane.b32.xlu0 %v7358, 12
  %v9385 = vpop.permute.xlu0 %9384
  %9386 = vrot.lane.b32.xlu0 %v7359, 12
  %v9387 = vpop.permute.xlu0 %9386
  %9388 = vrot.lane.b32.xlu0 %v7360, 12
  %v9389 = vpop.permute.xlu0 %9388
  %9390 = vrot.lane.b32.xlu0 %v7361, 12
  %v9391 = vpop.permute.xlu0 %9390
  %9392 = vrot.lane.b32.xlu0 %v7362, 12
  %v9393 = vpop.permute.xlu0 %9392
  %9394 = vrot.lane.b32.xlu0 %v7363, 12
  %v9395 = vpop.permute.xlu0 %9394
  %9396 = vrot.lane.b32.xlu0 %v7364, 12
  %v9397 = vpop.permute.xlu0 %9396
  %9398 = vrot.lane.b32.xlu0 %v7365, 12
  %v9399 = vpop.permute.xlu0 %9398
  %9400 = vrot.lane.b32.xlu0 %v7366, 12
  %v9401 = vpop.permute.xlu0 %9400
  %9402 = vrot.lane.b32.xlu0 %v7367, 12
  %v9403 = vpop.permute.xlu0 %9402
  %9404 = vrot.lane.b32.xlu0 %v7368, 12
  %v9405 = vpop.permute.xlu0 %9404
  %9406 = vrot.lane.b32.xlu0 %v7369, 12
  %v9407 = vpop.permute.xlu0 %9406
  %9408 = vrot.lane.b32.xlu0 %v7370, 12
  %v9409 = vpop.permute.xlu0 %9408
  %9410 = vrot.lane.b32.xlu0 %v7371, 12
  %v9411 = vpop.permute.xlu0 %9410
  %9412 = vrot.lane.b32.xlu0 %v7372, 12
  %v9413 = vpop.permute.xlu0 %9412
  %9414 = vrot.lane.b32.xlu0 %v7373, 12
  %v9415 = vpop.permute.xlu0 %9414
  %9416 = vrot.lane.b32.xlu0 %v7374, 12
  %v9417 = vpop.permute.xlu0 %9416
  %9418 = vrot.lane.b32.xlu0 %v7375, 12
  %v9419 = vpop.permute.xlu0 %9418
  %9420 = vrot.lane.b32.xlu0 %v7376, 12
  %v9421 = vpop.permute.xlu0 %9420
  %9422 = vrot.lane.b32.xlu0 %v7377, 12
  %v9423 = vpop.permute.xlu0 %9422
  %9424 = vrot.lane.b32.xlu0 %v7378, 12
  %v9425 = vpop.permute.xlu0 %9424
  %9426 = vrot.lane.b32.xlu0 %v7379, 12
  %v9427 = vpop.permute.xlu0 %9426
  %9428 = vrot.lane.b32.xlu0 %v7380, 12
  %v9429 = vpop.permute.xlu0 %9428
  %9430 = vrot.lane.b32.xlu0 %v7381, 12
  %v9431 = vpop.permute.xlu0 %9430
  %9432 = vrot.lane.b32.xlu0 %v7382, 12
  %v9433 = vpop.permute.xlu0 %9432
  %9434 = vrot.lane.b32.xlu0 %v7383, 12
  %v9435 = vpop.permute.xlu0 %9434
  %9436 = vrot.lane.b32.xlu0 %v7384, 12
  %v9437 = vpop.permute.xlu0 %9436
  %9438 = vrot.lane.b32.xlu0 %v7385, 12
  %v9439 = vpop.permute.xlu0 %9438
  %9440 = vrot.lane.b32.xlu0 %v7386, 12
  %v9441 = vpop.permute.xlu0 %9440
  %9442 = vrot.lane.b32.xlu0 %v7387, 12
  %v9443 = vpop.permute.xlu0 %9442
  %9444 = vrot.lane.b32.xlu0 %v7388, 12
  %v9445 = vpop.permute.xlu0 %9444
  %9446 = vrot.lane.b32.xlu0 %v7389, 12
  %v9447 = vpop.permute.xlu0 %9446
  %9448 = vrot.lane.b32.xlu0 %v7390, 12
  %v9449 = vpop.permute.xlu0 %9448
  %9450 = vrot.lane.b32.xlu0 %v7391, 12
  %v9451 = vpop.permute.xlu0 %9450
  %9452 = vrot.lane.b32.xlu0 %v7392, 12
  %v9453 = vpop.permute.xlu0 %9452
  %9454 = vrot.lane.b32.xlu0 %v7393, 12
  %v9455 = vpop.permute.xlu0 %9454
  %9456 = vrot.lane.b32.xlu0 %v7394, 12
  %v9457 = vpop.permute.xlu0 %9456
  %9458 = vrot.lane.b32.xlu0 %v7395, 12
  %v9459 = vpop.permute.xlu0 %9458
  %9460 = vrot.lane.b32.xlu0 %v7396, 12
  %v9461 = vpop.permute.xlu0 %9460
  %9462 = vrot.lane.b32.xlu0 %v7397, 12
  %v9463 = vpop.permute.xlu0 %9462
  %9464 = vrot.lane.b32.xlu0 %v7398, 12
  %v9465 = vpop.permute.xlu0 %9464
  %9466 = vrot.lane.b32.xlu0 %v7399, 12
  %v9467 = vpop.permute.xlu0 %9466
  %9468 = vrot.lane.b32.xlu0 %v7400, 12
  %v9469 = vpop.permute.xlu0 %9468
  %9470 = vrot.lane.b32.xlu0 %v7401, 12
  %v9471 = vpop.permute.xlu0 %9470
  %9472 = vrot.lane.b32.xlu0 %v7402, 12
  %v9473 = vpop.permute.xlu0 %9472
  %9474 = vrot.lane.b32.xlu0 %v7403, 12
  %v9475 = vpop.permute.xlu0 %9474
  %9476 = vrot.lane.b32.xlu0 %v7404, 12
  %v9477 = vpop.permute.xlu0 %9476
  %9478 = vrot.lane.b32.xlu0 %v7405, 12
  %v9479 = vpop.permute.xlu0 %9478
  %9480 = vrot.lane.b32.xlu0 %v7406, 12
  %v9481 = vpop.permute.xlu0 %9480
  %9482 = vrot.lane.b32.xlu0 %v7407, 12
  %v9483 = vpop.permute.xlu0 %9482
  %9484 = vrot.lane.b32.xlu0 %v7408, 12
  %v9485 = vpop.permute.xlu0 %9484
  %9486 = vrot.lane.b32.xlu0 %v7409, 12
  %v9487 = vpop.permute.xlu0 %9486
  %9488 = vrot.lane.b32.xlu0 %v7410, 12
  %v9489 = vpop.permute.xlu0 %9488
  %9490 = vrot.lane.b32.xlu0 %v7411, 12
  %v9491 = vpop.permute.xlu0 %9490
  %9492 = vrot.lane.b32.xlu0 %v7412, 12
  %v9493 = vpop.permute.xlu0 %9492
  %9494 = vrot.lane.b32.xlu0 %v7413, 12
  %v9495 = vpop.permute.xlu0 %9494
  %9496 = vrot.lane.b32.xlu0 %v7414, 12
  %v9497 = vpop.permute.xlu0 %9496
  %9498 = vrot.lane.b32.xlu0 %v7415, 12
  %v9499 = vpop.permute.xlu0 %9498
  %9500 = vrot.lane.b32.xlu0 %v7416, 12
  %v9501 = vpop.permute.xlu0 %9500
  %9502 = vrot.lane.b32.xlu0 %v7417, 12
  %v9503 = vpop.permute.xlu0 %9502
  %9504 = vrot.lane.b32.xlu0 %v7418, 12
  %v9505 = vpop.permute.xlu0 %9504
  %9506 = vrot.lane.b32.xlu0 %v7419, 12
  %v9507 = vpop.permute.xlu0 %9506
  %9508 = vrot.lane.b32.xlu0 %v7420, 12
  %v9509 = vpop.permute.xlu0 %9508
  %9510 = vrot.lane.b32.xlu0 %v7421, 12
  %v9511 = vpop.permute.xlu0 %9510
  %9512 = vrot.lane.b32.xlu0 %v7422, 12
  %v9513 = vpop.permute.xlu0 %9512
  %9514 = vrot.lane.b32.xlu0 %v7423, 12
  %v9515 = vpop.permute.xlu0 %9514
  %9516 = vrot.lane.b32.xlu0 %v7424, 12
  %v9517 = vpop.permute.xlu0 %9516
  %9518 = vrot.lane.b32.xlu0 %v7425, 12
  %v9519 = vpop.permute.xlu0 %9518
  %9520 = vrot.lane.b32.xlu0 %v7426, 12
  %v9521 = vpop.permute.xlu0 %9520
  %9522 = vrot.lane.b32.xlu0 %v7427, 12
  %v9523 = vpop.permute.xlu0 %9522
  %9524 = vrot.lane.b32.xlu0 %v7428, 12
  %v9525 = vpop.permute.xlu0 %9524
  %9526 = vrot.lane.b32.xlu0 %v7429, 12
  %v9527 = vpop.permute.xlu0 %9526
  %9528 = vrot.lane.b32.xlu0 %v7430, 12
  %v9529 = vpop.permute.xlu0 %9528
  %9530 = vrot.lane.b32.xlu0 %v7431, 12
  %v9531 = vpop.permute.xlu0 %9530
  %9532 = vrot.lane.b32.xlu0 %v7432, 12
  %v9533 = vpop.permute.xlu0 %9532
  %9534 = vrot.lane.b32.xlu0 %v7433, 12
  %v9535 = vpop.permute.xlu0 %9534
  %9536 = vrot.lane.b32.xlu0 %v7434, 12
  %v9537 = vpop.permute.xlu0 %9536
  %9538 = vrot.lane.b32.xlu0 %v7435, 12
  %v9539 = vpop.permute.xlu0 %9538
  %9540 = vrot.lane.b32.xlu0 %v7436, 12
  %v9541 = vpop.permute.xlu0 %9540
  %9542 = vrot.lane.b32.xlu0 %v7437, 12
  %v9543 = vpop.permute.xlu0 %9542
  %9544 = vrot.lane.b32.xlu0 %v7438, 12
  %v9545 = vpop.permute.xlu0 %9544
  %9546 = vrot.lane.b32.xlu0 %v7439, 12
  %v9547 = vpop.permute.xlu0 %9546
  %9548 = vrot.lane.b32.xlu0 %v7440, 12
  %v9549 = vpop.permute.xlu0 %9548
  %9550 = vrot.lane.b32.xlu0 %v7441, 12
  %v9551 = vpop.permute.xlu0 %9550
  %9552 = vrot.lane.b32.xlu0 %v7442, 12
  %v9553 = vpop.permute.xlu0 %9552
  %9554 = vrot.lane.b32.xlu0 %v7443, 12
  %v9555 = vpop.permute.xlu0 %9554
  %9556 = vrot.lane.b32.xlu0 %v7444, 12
  %v9557 = vpop.permute.xlu0 %9556
  %9558 = vrot.lane.b32.xlu0 %v7445, 12
  %v9559 = vpop.permute.xlu0 %9558
  %9560 = vrot.lane.b32.xlu0 %v7446, 12
  %v9561 = vpop.permute.xlu0 %9560
  %9562 = vrot.lane.b32.xlu0 %v7447, 12
  %v9563 = vpop.permute.xlu0 %9562
  %9564 = vrot.lane.b32.xlu0 %v7448, 12
  %v9565 = vpop.permute.xlu0 %9564
  %9566 = vrot.lane.b32.xlu0 %v7449, 12
  %v9567 = vpop.permute.xlu0 %9566
  %9568 = vrot.lane.b32.xlu0 %v7450, 12
  %v9569 = vpop.permute.xlu0 %9568
  %9570 = vrot.lane.b32.xlu0 %v7451, 12
  %v9571 = vpop.permute.xlu0 %9570
  %9572 = vrot.lane.b32.xlu0 %v7452, 12
  %v9573 = vpop.permute.xlu0 %9572
  %9675 = vrot.lane.b32.xlu0 %v7354, 32
  %v9676 = vpop.permute.xlu0 %9675
  %9677 = vrot.lane.b32.xlu0 %v7355, 32
  %v9678 = vpop.permute.xlu0 %9677
  %9679 = vrot.lane.b32.xlu0 %v7356, 32
  %v9680 = vpop.permute.xlu0 %9679
  %9681 = vrot.lane.b32.xlu0 %v7357, 32
  %v9682 = vpop.permute.xlu0 %9681
  %9683 = vrot.lane.b32.xlu0 %v7358, 32
  %v9684 = vpop.permute.xlu0 %9683
  %9685 = vrot.lane.b32.xlu0 %v7359, 32
  %v9686 = vpop.permute.xlu0 %9685
  %9687 = vrot.lane.b32.xlu0 %v7360, 32
  %v9688 = vpop.permute.xlu0 %9687
  %9689 = vrot.lane.b32.xlu0 %v7361, 32
  %v9690 = vpop.permute.xlu0 %9689
  %9691 = vrot.lane.b32.xlu0 %v7362, 32
  %v9692 = vpop.permute.xlu0 %9691
  %9693 = vrot.lane.b32.xlu0 %v7363, 32
  %v9694 = vpop.permute.xlu0 %9693
  %9695 = vrot.lane.b32.xlu0 %v7364, 32
  %v9696 = vpop.permute.xlu0 %9695
  %9697 = vrot.lane.b32.xlu0 %v7365, 32
  %v9698 = vpop.permute.xlu0 %9697
  %9699 = vrot.lane.b32.xlu0 %v7366, 32
  %v9700 = vpop.permute.xlu0 %9699
  %9701 = vrot.lane.b32.xlu0 %v7367, 32
  %v9702 = vpop.permute.xlu0 %9701
  %9703 = vrot.lane.b32.xlu0 %v7368, 32
  %v9704 = vpop.permute.xlu0 %9703
  %9705 = vrot.lane.b32.xlu0 %v7369, 32
  %v9706 = vpop.permute.xlu0 %9705
  %9707 = vrot.lane.b32.xlu0 %v7370, 32
  %v9708 = vpop.permute.xlu0 %9707
  %9709 = vrot.lane.b32.xlu0 %v7371, 32
  %v9710 = vpop.permute.xlu0 %9709
  %9711 = vrot.lane.b32.xlu0 %v7372, 32
  %v9712 = vpop.permute.xlu0 %9711
  %9713 = vrot.lane.b32.xlu0 %v7373, 32
  %v9714 = vpop.permute.xlu0 %9713
  %9715 = vrot.lane.b32.xlu0 %v7374, 32
  %v9716 = vpop.permute.xlu0 %9715
  %9717 = vrot.lane.b32.xlu0 %v7375, 32
  %v9718 = vpop.permute.xlu0 %9717
  %9719 = vrot.lane.b32.xlu0 %v7376, 32
  %v9720 = vpop.permute.xlu0 %9719
  %9721 = vrot.lane.b32.xlu0 %v7377, 32
  %v9722 = vpop.permute.xlu0 %9721
  %9723 = vrot.lane.b32.xlu0 %v7378, 32
  %v9724 = vpop.permute.xlu0 %9723
  %9725 = vrot.lane.b32.xlu0 %v7379, 32
  %v9726 = vpop.permute.xlu0 %9725
  %9727 = vrot.lane.b32.xlu0 %v7380, 32
  %v9728 = vpop.permute.xlu0 %9727
  %9729 = vrot.lane.b32.xlu0 %v7381, 32
  %v9730 = vpop.permute.xlu0 %9729
  %9731 = vrot.lane.b32.xlu0 %v7382, 32
  %v9732 = vpop.permute.xlu0 %9731
  %9733 = vrot.lane.b32.xlu0 %v7383, 32
  %v9734 = vpop.permute.xlu0 %9733
  %9735 = vrot.lane.b32.xlu0 %v7384, 32
  %v9736 = vpop.permute.xlu0 %9735
  %9737 = vrot.lane.b32.xlu0 %v7385, 32
  %v9738 = vpop.permute.xlu0 %9737
  %9739 = vrot.lane.b32.xlu0 %v7386, 32
  %v9740 = vpop.permute.xlu0 %9739
  %9741 = vrot.lane.b32.xlu0 %v7387, 32
  %v9742 = vpop.permute.xlu0 %9741
  %9743 = vrot.lane.b32.xlu0 %v7388, 32
  %v9744 = vpop.permute.xlu0 %9743
  %9745 = vrot.lane.b32.xlu0 %v7389, 32
  %v9746 = vpop.permute.xlu0 %9745
  %9747 = vrot.lane.b32.xlu0 %v7390, 32
  %v9748 = vpop.permute.xlu0 %9747
  %9749 = vrot.lane.b32.xlu0 %v7391, 32
  %v9750 = vpop.permute.xlu0 %9749
  %9751 = vrot.lane.b32.xlu0 %v7392, 32
  %v9752 = vpop.permute.xlu0 %9751
  %9753 = vrot.lane.b32.xlu0 %v7393, 32
  %v9754 = vpop.permute.xlu0 %9753
  %9755 = vrot.lane.b32.xlu0 %v7394, 32
  %v9756 = vpop.permute.xlu0 %9755
  %9757 = vrot.lane.b32.xlu0 %v7395, 32
  %v9758 = vpop.permute.xlu0 %9757
  %9759 = vrot.lane.b32.xlu0 %v7396, 32
  %v9760 = vpop.permute.xlu0 %9759
  %9761 = vrot.lane.b32.xlu0 %v7397, 32
  %v9762 = vpop.permute.xlu0 %9761
  %9763 = vrot.lane.b32.xlu0 %v7398, 32
  %v9764 = vpop.permute.xlu0 %9763
  %9765 = vrot.lane.b32.xlu0 %v7399, 32
  %v9766 = vpop.permute.xlu0 %9765
  %9767 = vrot.lane.b32.xlu0 %v7400, 32
  %v9768 = vpop.permute.xlu0 %9767
  %9769 = vrot.lane.b32.xlu0 %v7401, 32
  %v9770 = vpop.permute.xlu0 %9769
  %9771 = vrot.lane.b32.xlu0 %v7402, 32
  %v9772 = vpop.permute.xlu0 %9771
  %9773 = vrot.lane.b32.xlu0 %v7403, 32
  %v9774 = vpop.permute.xlu0 %9773
  %9775 = vrot.lane.b32.xlu0 %v7404, 32
  %v9776 = vpop.permute.xlu0 %9775
  %9777 = vrot.lane.b32.xlu0 %v7405, 32
  %v9778 = vpop.permute.xlu0 %9777
  %9779 = vrot.lane.b32.xlu0 %v7406, 32
  %v9780 = vpop.permute.xlu0 %9779
  %9781 = vrot.lane.b32.xlu0 %v7407, 32
  %v9782 = vpop.permute.xlu0 %9781
  %9783 = vrot.lane.b32.xlu0 %v7408, 32
  %v9784 = vpop.permute.xlu0 %9783
  %9785 = vrot.lane.b32.xlu0 %v7409, 32
  %v9786 = vpop.permute.xlu0 %9785
  %9787 = vrot.lane.b32.xlu0 %v7410, 32
  %v9788 = vpop.permute.xlu0 %9787
  %9789 = vrot.lane.b32.xlu0 %v7411, 32
  %v9790 = vpop.permute.xlu0 %9789
  %9791 = vrot.lane.b32.xlu0 %v7412, 32
  %v9792 = vpop.permute.xlu0 %9791
  %9793 = vrot.lane.b32.xlu0 %v7413, 32
  %v9794 = vpop.permute.xlu0 %9793
  %9795 = vrot.lane.b32.xlu0 %v7414, 32
  %v9796 = vpop.permute.xlu0 %9795
  %9797 = vrot.lane.b32.xlu0 %v7415, 32
  %v9798 = vpop.permute.xlu0 %9797
  %9799 = vrot.lane.b32.xlu0 %v7416, 32
  %v9800 = vpop.permute.xlu0 %9799
  %9801 = vrot.lane.b32.xlu0 %v7417, 32
  %v9802 = vpop.permute.xlu0 %9801
  %9803 = vrot.lane.b32.xlu0 %v7418, 32
  %v9804 = vpop.permute.xlu0 %9803
  %9805 = vrot.lane.b32.xlu0 %v7419, 32
  %v9806 = vpop.permute.xlu0 %9805
  %9807 = vrot.lane.b32.xlu0 %v7420, 32
  %v9808 = vpop.permute.xlu0 %9807
  %9809 = vrot.lane.b32.xlu0 %v7421, 32
  %v9810 = vpop.permute.xlu0 %9809
  %9811 = vrot.lane.b32.xlu0 %v7422, 32
  %v9812 = vpop.permute.xlu0 %9811
  %9813 = vrot.lane.b32.xlu0 %v7423, 32
  %v9814 = vpop.permute.xlu0 %9813
  %9815 = vrot.lane.b32.xlu0 %v7424, 32
  %v9816 = vpop.permute.xlu0 %9815
  %9817 = vrot.lane.b32.xlu0 %v7425, 32
  %v9818 = vpop.permute.xlu0 %9817
  %9819 = vrot.lane.b32.xlu0 %v7426, 32
  %v9820 = vpop.permute.xlu0 %9819
  %9821 = vrot.lane.b32.xlu0 %v7427, 32
  %v9822 = vpop.permute.xlu0 %9821
  %9823 = vrot.lane.b32.xlu0 %v7428, 32
  %v9824 = vpop.permute.xlu0 %9823
  %9825 = vrot.lane.b32.xlu0 %v7429, 32
  %v9826 = vpop.permute.xlu0 %9825
  %9827 = vrot.lane.b32.xlu0 %v7430, 32
  %v9828 = vpop.permute.xlu0 %9827
  %9829 = vrot.lane.b32.xlu0 %v7431, 32
  %v9830 = vpop.permute.xlu0 %9829
  %9831 = vrot.lane.b32.xlu0 %v7432, 32
  %v9832 = vpop.permute.xlu0 %9831
  %9833 = vrot.lane.b32.xlu0 %v7433, 32
  %v9834 = vpop.permute.xlu0 %9833
  %9835 = vrot.lane.b32.xlu0 %v7434, 32
  %v9836 = vpop.permute.xlu0 %9835
  %9837 = vrot.lane.b32.xlu0 %v7435, 32
  %v9838 = vpop.permute.xlu0 %9837
  %9839 = vrot.lane.b32.xlu0 %v7436, 32
  %v9840 = vpop.permute.xlu0 %9839
  %9841 = vrot.lane.b32.xlu0 %v7437, 32
  %v9842 = vpop.permute.xlu0 %9841
  %9843 = vrot.lane.b32.xlu0 %v7438, 32
  %v9844 = vpop.permute.xlu0 %9843
  %9845 = vrot.lane.b32.xlu0 %v7439, 32
  %v9846 = vpop.permute.xlu0 %9845
  %9847 = vrot.lane.b32.xlu0 %v7440, 32
  %v9848 = vpop.permute.xlu0 %9847
  %9849 = vrot.lane.b32.xlu0 %v7441, 32
  %v9850 = vpop.permute.xlu0 %9849
  %9851 = vrot.lane.b32.xlu0 %v7442, 32
  %v9852 = vpop.permute.xlu0 %9851
  %9853 = vrot.lane.b32.xlu0 %v7443, 32
  %v9854 = vpop.permute.xlu0 %9853
  %9855 = vrot.lane.b32.xlu0 %v7444, 32
  %v9856 = vpop.permute.xlu0 %9855
  %9857 = vrot.lane.b32.xlu0 %v7445, 32
  %v9858 = vpop.permute.xlu0 %9857
  %9859 = vrot.lane.b32.xlu0 %v7446, 32
  %v9860 = vpop.permute.xlu0 %9859
  %9861 = vrot.lane.b32.xlu0 %v7447, 32
  %v9862 = vpop.permute.xlu0 %9861
  %9863 = vrot.lane.b32.xlu0 %v7448, 32
  %v9864 = vpop.permute.xlu0 %9863
  %9865 = vrot.lane.b32.xlu0 %v7449, 32
  %v9866 = vpop.permute.xlu0 %9865
  %9867 = vrot.lane.b32.xlu0 %v7450, 32
  %v9868 = vpop.permute.xlu0 %9867
  %9869 = vrot.lane.b32.xlu0 %v7451, 32
  %v9870 = vpop.permute.xlu0 %9869
  %9871 = vrot.lane.b32.xlu0 %v7452, 32
  %v9872 = vpop.permute.xlu0 %9871
  %9873 = vrot.lane.b32.xlu0 %v7453, 32
  %v9874 = vpop.permute.xlu0 %9873
  %v9975 = vsel %vm7195, %v7332, %v7555
  %v9976 = vsel %vm7195, %v7333, %v7557
  %v9977 = vsel %vm7195, %v7334, %v7559
  %v9978 = vsel %vm7195, %v7335, %v7561
  %v9979 = vsel %vm7195, %v7336, %v7563
  %v9980 = vsel %vm7195, %v7337, %v7565
  %v9981 = vsel %vm7195, %v7338, %v7567
  %v9982 = vsel %vm7195, %v7339, %v7569
  %v9983 = vsel %vm7195, %v7340, %v7571
  %v9984 = vsel %vm7195, %v7341, %v7573
  %v9985 = vsel %vm7195, %v7342, %v7575
  %v9986 = vsel %vm7195, %v7343, %v7577
  %v9987 = vsel %vm7195, %v7344, %v7579
  %v9988 = vsel %vm7195, %v7345, %v7581
  %v9989 = vsel %vm7195, %v7346, %v7583
  %v9990 = vsel %vm7195, %v7347, %v7585
  %v9991 = vsel %vm7195, %v7348, %v7587
  %v9992 = vsel %vm7195, %v7349, %v7589
  %v9993 = vsel %vm7195, %v7350, %v7591
  %v9994 = vsel %vm7195, %v7351, %v7593
  %v9995 = vsel %vm7195, %v7352, %v7595
  %v9996 = vsel %vm7195, %v7353, %v7597
  %v9997 = vsel %vm7195, %v7354, %v7599
  %v9998 = vsel %vm7195, %v7355, %v7601
  %v9999 = vsel %vm7195, %v7356, %v7603
  %v10000 = vsel %vm7195, %v7357, %v7605
  %v10001 = vsel %vm7195, %v7358, %v7607
  %v10002 = vsel %vm7195, %v7359, %v7609
  %v10003 = vsel %vm7195, %v7360, %v7611
  %v10004 = vsel %vm7195, %v7361, %v7613
  %v10005 = vsel %vm7195, %v7362, %v7615
  %v10006 = vsel %vm7195, %v7363, %v7617
  %v10007 = vsel %vm7195, %v7364, %v7619
  %v10008 = vsel %vm7195, %v7365, %v7621
  %v10009 = vsel %vm7195, %v7366, %v7623
  %v10010 = vsel %vm7195, %v7367, %v7625
  %v10011 = vsel %vm7195, %v7368, %v7627
  %v10012 = vsel %vm7195, %v7369, %v7629
  %v10013 = vsel %vm7195, %v7370, %v7631
  %v10014 = vsel %vm7195, %v7371, %v7633
  %v10015 = vsel %vm7195, %v7372, %v7635
  %v10016 = vsel %vm7195, %v7373, %v7637
  %v10017 = vsel %vm7195, %v7374, %v7639
  %v10018 = vsel %vm7195, %v7375, %v7641
  %v10019 = vsel %vm7195, %v7376, %v7643
  %v10020 = vsel %vm7195, %v7377, %v7645
  %v10021 = vsel %vm7195, %v7378, %v7647
  %v10022 = vsel %vm7195, %v7379, %v7649
  %v10023 = vsel %vm7195, %v7380, %v7651
  %v10024 = vsel %vm7195, %v7381, %v7653
  %v10025 = vsel %vm7195, %v7382, %v7655
  %v10026 = vsel %vm7195, %v7383, %v7657
  %v10027 = vsel %vm7195, %v7384, %v7659
  %v10028 = vsel %vm7195, %v7385, %v7661
  %v10029 = vsel %vm7195, %v7386, %v7663
  %v10030 = vsel %vm7195, %v7387, %v7665
  %v10031 = vsel %vm7195, %v7388, %v7667
  %v10032 = vsel %vm7195, %v7389, %v7669
  %v10033 = vsel %vm7195, %v7390, %v7671
  %v10034 = vsel %vm7195, %v7391, %v7673
  %v10035 = vsel %vm7195, %v7392, %v7675
  %v10036 = vsel %vm7195, %v7393, %v7677
  %v10037 = vsel %vm7195, %v7394, %v7679
  %v10038 = vsel %vm7195, %v7395, %v7681
  %v10039 = vsel %vm7195, %v7396, %v7683
  %v10040 = vsel %vm7195, %v7397, %v7685
  %v10041 = vsel %vm7195, %v7398, %v7687
  %v10042 = vsel %vm7195, %v7399, %v7689
  %v10043 = vsel %vm7195, %v7400, %v7691
  %v10044 = vsel %vm7195, %v7401, %v7693
  %v10045 = vsel %vm7195, %v7402, %v7695
  %v10046 = vsel %vm7195, %v7403, %v7697
  %v10047 = vsel %vm7195, %v7404, %v7699
  %v10048 = vsel %vm7195, %v7405, %v7701
  %v10049 = vsel %vm7195, %v7406, %v7703
  %v10050 = vsel %vm7195, %v7407, %v7705
  %v10051 = vsel %vm7195, %v7408, %v7707
  %v10052 = vsel %vm7195, %v7409, %v7709
  %v10053 = vsel %vm7195, %v7410, %v7711
  %v10054 = vsel %vm7195, %v7411, %v7713
  %v10055 = vsel %vm7195, %v7412, %v7715
  %v10056 = vsel %vm7195, %v7413, %v7717
  %v10057 = vsel %vm7195, %v7414, %v7719
  %v10058 = vsel %vm7195, %v7415, %v7721
  %v10059 = vsel %vm7195, %v7416, %v7723
  %v10060 = vsel %vm7195, %v7417, %v7725
  %v10061 = vsel %vm7195, %v7418, %v7727
  %v10062 = vsel %vm7195, %v7419, %v7729
  %v10063 = vsel %vm7195, %v7420, %v7731
  %v10064 = vsel %vm7195, %v7421, %v7733
  %v10065 = vsel %vm7195, %v7422, %v7735
  %v10066 = vsel %vm7195, %v7423, %v7737
  %v10067 = vsel %vm7195, %v7424, %v7739
  %v10068 = vsel %vm7195, %v7425, %v7741
  %v10069 = vsel %vm7195, %v7426, %v7743
  %v10070 = vsel %vm7195, %v7427, %v7745
  %v10071 = vsel %vm7195, %v7428, %v7747
  %v10072 = vsel %vm7195, %v7429, %v7749
  %v10073 = vsel %vm7195, %v7430, %v7751
  %v10074 = vsel %vm7195, %v7431, %v7753
  %vm10075 = vcmask 326656
  %v10076 = vsel %vm10075, %v9975, %v7856
  %v10077 = vsel %vm10075, %v9976, %v7858
  %v10078 = vsel %vm10075, %v9977, %v7860
  %v10079 = vsel %vm10075, %v9978, %v7862
  %v10080 = vsel %vm10075, %v9979, %v7864
  %v10081 = vsel %vm10075, %v9980, %v7866
  %v10082 = vsel %vm10075, %v9981, %v7868
  %v10083 = vsel %vm10075, %v9982, %v7870
  %v10084 = vsel %vm10075, %v9983, %v7872
  %v10085 = vsel %vm10075, %v9984, %v7874
  %v10086 = vsel %vm10075, %v9985, %v7876
  %v10087 = vsel %vm10075, %v9986, %v7878
  %v10088 = vsel %vm10075, %v9987, %v7880
  %v10089 = vsel %vm10075, %v9988, %v7882
  %v10090 = vsel %vm10075, %v9989, %v7884
  %v10091 = vsel %vm10075, %v9990, %v7886
  %v10092 = vsel %vm10075, %v9991, %v7888
  %v10093 = vsel %vm10075, %v9992, %v7890
  %v10094 = vsel %vm10075, %v9993, %v7892
  %v10095 = vsel %vm10075, %v9994, %v7894
  %v10096 = vsel %vm10075, %v9995, %v7896
  %v10097 = vsel %vm10075, %v9996, %v7898
  %v10098 = vsel %vm10075, %v9997, %v7900
  %v10099 = vsel %vm10075, %v9998, %v7902
  %v10100 = vsel %vm10075, %v9999, %v7904
  %v10101 = vsel %vm10075, %v10000, %v7906
  %v10102 = vsel %vm10075, %v10001, %v7908
  %v10103 = vsel %vm10075, %v10002, %v7910
  %v10104 = vsel %vm10075, %v10003, %v7912
  %v10105 = vsel %vm10075, %v10004, %v7914
  %v10106 = vsel %vm10075, %v10005, %v7916
  %v10107 = vsel %vm10075, %v10006, %v7918
  %v10108 = vsel %vm10075, %v10007, %v7920
  %v10109 = vsel %vm10075, %v10008, %v7922
  %v10110 = vsel %vm10075, %v10009, %v7924
  %v10111 = vsel %vm10075, %v10010, %v7926
  %v10112 = vsel %vm10075, %v10011, %v7928
  %v10113 = vsel %vm10075, %v10012, %v7930
  %v10114 = vsel %vm10075, %v10013, %v7932
  %v10115 = vsel %vm10075, %v10014, %v7934
  %v10116 = vsel %vm10075, %v10015, %v7936
  %v10117 = vsel %vm10075, %v10016, %v7938
  %v10118 = vsel %vm10075, %v10017, %v7940
  %v10119 = vsel %vm10075, %v10018, %v7942
  %v10120 = vsel %vm10075, %v10019, %v7944
  %v10121 = vsel %vm10075, %v10020, %v7946
  %v10122 = vsel %vm10075, %v10021, %v7948
  %v10123 = vsel %vm10075, %v10022, %v7950
  %v10124 = vsel %vm10075, %v10023, %v7952
  %v10125 = vsel %vm10075, %v10024, %v7954
  %v10126 = vsel %vm10075, %v10025, %v7956
  %v10127 = vsel %vm10075, %v10026, %v7958
  %v10128 = vsel %vm10075, %v10027, %v7960
  %v10129 = vsel %vm10075, %v10028, %v7962
  %v10130 = vsel %vm10075, %v10029, %v7964
  %v10131 = vsel %vm10075, %v10030, %v7966
  %v10132 = vsel %vm10075, %v10031, %v7968
  %v10133 = vsel %vm10075, %v10032, %v7970
  %v10134 = vsel %vm10075, %v10033, %v7972
  %v10135 = vsel %vm10075, %v10034, %v7974
  %v10136 = vsel %vm10075, %v10035, %v7976
  %v10137 = vsel %vm10075, %v10036, %v7978
  %v10138 = vsel %vm10075, %v10037, %v7980
  %v10139 = vsel %vm10075, %v10038, %v7982
  %v10140 = vsel %vm10075, %v10039, %v7984
  %v10141 = vsel %vm10075, %v10040, %v7986
  %v10142 = vsel %vm10075, %v10041, %v7988
  %v10143 = vsel %vm10075, %v10042, %v7990
  %v10144 = vsel %vm10075, %v10043, %v7992
  %v10145 = vsel %vm10075, %v10044, %v7994
  %v10146 = vsel %vm10075, %v10045, %v7996
  %v10147 = vsel %vm10075, %v10046, %v7998
  %v10148 = vsel %vm10075, %v10047, %v8000
  %v10149 = vsel %vm10075, %v10048, %v8002
  %v10150 = vsel %vm10075, %v10049, %v8004
  %v10151 = vsel %vm10075, %v10050, %v8006
  %v10152 = vsel %vm10075, %v10051, %v8008
  %v10153 = vsel %vm10075, %v10052, %v8010
  %v10154 = vsel %vm10075, %v10053, %v8012
  %v10155 = vsel %vm10075, %v10054, %v8014
  %v10156 = vsel %vm10075, %v10055, %v8016
  %v10157 = vsel %vm10075, %v10056, %v8018
  %v10158 = vsel %vm10075, %v10057, %v8020
  %v10159 = vsel %vm10075, %v10058, %v8022
  %v10160 = vsel %vm10075, %v10059, %v8024
  %v10161 = vsel %vm10075, %v10060, %v8026
  %v10162 = vsel %vm10075, %v10061, %v8028
  %v10163 = vsel %vm10075, %v10062, %v8030
  %v10164 = vsel %vm10075, %v10063, %v8032
  %v10165 = vsel %vm10075, %v10064, %v8034
  %v10166 = vsel %vm10075, %v10065, %v8036
  %v10167 = vsel %vm10075, %v10066, %v8038
  %v10168 = vsel %vm10075, %v10067, %v8040
  %v10169 = vsel %vm10075, %v10068, %v8042
  %v10170 = vsel %vm10075, %v10069, %v8044
  %v10171 = vsel %vm10075, %v10070, %v8046
  %v10172 = vsel %vm10075, %v10071, %v8048
  %v10173 = vsel %vm10075, %v10072, %v8050
  %v10174 = vsel %vm10075, %v10073, %v8052
  %v10175 = vsel %vm10075, %v10074, %v8054
  %v10176 = vsel %vm5013, %v10076, %v8164
  %v10177 = vsel %vm5013, %v10077, %v8166
  %v10178 = vsel %vm5013, %v10078, %v8168
  %v10179 = vsel %vm5013, %v10079, %v8170
  %v10180 = vsel %vm5013, %v10080, %v8172
  %v10181 = vsel %vm5013, %v10081, %v8174
  %v10182 = vsel %vm5013, %v10082, %v8176
  %v10183 = vsel %vm5013, %v10083, %v8178
  %v10184 = vsel %vm5013, %v10084, %v8180
  %v10185 = vsel %vm5013, %v10085, %v8182
  %v10186 = vsel %vm5013, %v10086, %v8184
  %v10187 = vsel %vm5013, %v10087, %v8186
  %v10188 = vsel %vm5013, %v10088, %v8188
  %v10189 = vsel %vm5013, %v10089, %v8190
  %v10190 = vsel %vm5013, %v10090, %v8192
  %v10191 = vsel %vm5013, %v10091, %v8194
  %v10192 = vsel %vm5013, %v10092, %v8196
  %v10193 = vsel %vm5013, %v10093, %v8198
  %v10194 = vsel %vm5013, %v10094, %v8200
  %v10195 = vsel %vm5013, %v10095, %v8202
  %v10196 = vsel %vm5013, %v10096, %v8204
  %v10197 = vsel %vm5013, %v10097, %v8206
  %v10198 = vsel %vm5013, %v10098, %v8208
  %v10199 = vsel %vm5013, %v10099, %v8210
  %v10200 = vsel %vm5013, %v10100, %v8212
  %v10201 = vsel %vm5013, %v10101, %v8214
  %v10202 = vsel %vm5013, %v10102, %v8216
  %v10203 = vsel %vm5013, %v10103, %v8218
  %v10204 = vsel %vm5013, %v10104, %v8220
  %v10205 = vsel %vm5013, %v10105, %v8222
  %v10206 = vsel %vm5013, %v10106, %v8224
  %v10207 = vsel %vm5013, %v10107, %v8226
  %v10208 = vsel %vm5013, %v10108, %v8228
  %v10209 = vsel %vm5013, %v10109, %v8230
  %v10210 = vsel %vm5013, %v10110, %v8232
  %v10211 = vsel %vm5013, %v10111, %v8234
  %v10212 = vsel %vm5013, %v10112, %v8236
  %v10213 = vsel %vm5013, %v10113, %v8238
  %v10214 = vsel %vm5013, %v10114, %v8240
  %v10215 = vsel %vm5013, %v10115, %v8242
  %v10216 = vsel %vm5013, %v10116, %v8244
  %v10217 = vsel %vm5013, %v10117, %v8246
  %v10218 = vsel %vm5013, %v10118, %v8248
  %v10219 = vsel %vm5013, %v10119, %v8250
  %v10220 = vsel %vm5013, %v10120, %v8252
  %v10221 = vsel %vm5013, %v10121, %v8254
  %v10222 = vsel %vm5013, %v10122, %v8256
  %v10223 = vsel %vm5013, %v10123, %v8258
  %v10224 = vsel %vm5013, %v10124, %v8260
  %v10225 = vsel %vm5013, %v10125, %v8262
  %v10226 = vsel %vm5013, %v10126, %v8264
  %v10227 = vsel %vm5013, %v10127, %v8266
  %v10228 = vsel %vm5013, %v10128, %v8268
  %v10229 = vsel %vm5013, %v10129, %v8270
  %v10230 = vsel %vm5013, %v10130, %v8272
  %v10231 = vsel %vm5013, %v10131, %v8274
  %v10232 = vsel %vm5013, %v10132, %v8276
  %v10233 = vsel %vm5013, %v10133, %v8278
  %v10234 = vsel %vm5013, %v10134, %v8280
  %v10235 = vsel %vm5013, %v10135, %v8282
  %v10236 = vsel %vm5013, %v10136, %v8284
  %v10237 = vsel %vm5013, %v10137, %v8286
  %v10238 = vsel %vm5013, %v10138, %v8288
  %v10239 = vsel %vm5013, %v10139, %v8290
  %v10240 = vsel %vm5013, %v10140, %v8292
  %v10241 = vsel %vm5013, %v10141, %v8294
  %v10242 = vsel %vm5013, %v10142, %v8296
  %v10243 = vsel %vm5013, %v10143, %v8298
  %v10244 = vsel %vm5013, %v10144, %v8300
  %v10245 = vsel %vm5013, %v10145, %v8302
  %v10246 = vsel %vm5013, %v10146, %v8304
  %v10247 = vsel %vm5013, %v10147, %v8306
  %v10248 = vsel %vm5013, %v10148, %v8308
  %v10249 = vsel %vm5013, %v10149, %v8310
  %v10250 = vsel %vm5013, %v10150, %v8312
  %v10251 = vsel %vm5013, %v10151, %v8314
  %v10252 = vsel %vm5013, %v10152, %v8316
  %v10253 = vsel %vm5013, %v10153, %v8318
  %v10254 = vsel %vm5013, %v10154, %v8320
  %v10255 = vsel %vm5013, %v10155, %v8322
  %v10256 = vsel %vm5013, %v10156, %v8324
  %v10257 = vsel %vm5013, %v10157, %v8326
  %v10258 = vsel %vm5013, %v10158, %v8328
  %v10259 = vsel %vm5013, %v10159, %v8330
  %v10260 = vsel %vm5013, %v10160, %v8332
  %v10261 = vsel %vm5013, %v10161, %v8334
  %v10262 = vsel %vm5013, %v10162, %v8336
  %v10263 = vsel %vm5013, %v10163, %v8338
  %v10264 = vsel %vm5013, %v10164, %v8340
  %v10265 = vsel %vm5013, %v10165, %v8342
  %v10266 = vsel %vm5013, %v10166, %v8344
  %v10267 = vsel %vm5013, %v10167, %v8346
  %v10268 = vsel %vm5013, %v10168, %v8348
  %v10269 = vsel %vm5013, %v10169, %v8350
  %v10270 = vsel %vm5013, %v10170, %v8352
  %v10271 = vsel %vm5013, %v10171, %v8354
  %v10272 = vsel %vm5013, %v10172, %v8356
  %v10273 = vsel %vm5013, %v10173, %v8358
  %v10274 = vsel %vm5013, %v10174, %v8360
  %v10275 = vsel %vm5013, %v10175, %v8362
  %vm10276 = vcmask 654336
  %v10277 = vsel %vm10276, %v10176, %v8465
  %v10278 = vsel %vm10276, %v10177, %v8467
  %v10279 = vsel %vm10276, %v10178, %v8469
  %v10280 = vsel %vm10276, %v10179, %v8471
  %v10281 = vsel %vm10276, %v10180, %v8473
  %v10282 = vsel %vm10276, %v10181, %v8475
  %v10283 = vsel %vm10276, %v10182, %v8477
  %v10284 = vsel %vm10276, %v10183, %v8479
  %v10285 = vsel %vm10276, %v10184, %v8481
  %v10286 = vsel %vm10276, %v10185, %v8483
  %v10287 = vsel %vm10276, %v10186, %v8485
  %v10288 = vsel %vm10276, %v10187, %v8487
  %v10289 = vsel %vm10276, %v10188, %v8489
  %v10290 = vsel %vm10276, %v10189, %v8491
  %v10291 = vsel %vm10276, %v10190, %v8493
  %v10292 = vsel %vm10276, %v10191, %v8495
  %v10293 = vsel %vm10276, %v10192, %v8497
  %v10294 = vsel %vm10276, %v10193, %v8499
  %v10295 = vsel %vm10276, %v10194, %v8501
  %v10296 = vsel %vm10276, %v10195, %v8503
  %v10297 = vsel %vm10276, %v10196, %v8505
  %v10298 = vsel %vm10276, %v10197, %v8507
  %v10299 = vsel %vm10276, %v10198, %v8509
  %v10300 = vsel %vm10276, %v10199, %v8511
  %v10301 = vsel %vm10276, %v10200, %v8513
  %v10302 = vsel %vm10276, %v10201, %v8515
  %v10303 = vsel %vm10276, %v10202, %v8517
  %v10304 = vsel %vm10276, %v10203, %v8519
  %v10305 = vsel %vm10276, %v10204, %v8521
  %v10306 = vsel %vm10276, %v10205, %v8523
  %v10307 = vsel %vm10276, %v10206, %v8525
  %v10308 = vsel %vm10276, %v10207, %v8527
  %v10309 = vsel %vm10276, %v10208, %v8529
  %v10310 = vsel %vm10276, %v10209, %v8531
  %v10311 = vsel %vm10276, %v10210, %v8533
  %v10312 = vsel %vm10276, %v10211, %v8535
  %v10313 = vsel %vm10276, %v10212, %v8537
  %v10314 = vsel %vm10276, %v10213, %v8539
  %v10315 = vsel %vm10276, %v10214, %v8541
  %v10316 = vsel %vm10276, %v10215, %v8543
  %v10317 = vsel %vm10276, %v10216, %v8545
  %v10318 = vsel %vm10276, %v10217, %v8547
  %v10319 = vsel %vm10276, %v10218, %v8549
  %v10320 = vsel %vm10276, %v10219, %v8551
  %v10321 = vsel %vm10276, %v10220, %v8553
  %v10322 = vsel %vm10276, %v10221, %v8555
  %v10323 = vsel %vm10276, %v10222, %v8557
  %v10324 = vsel %vm10276, %v10223, %v8559
  %v10325 = vsel %vm10276, %v10224, %v8561
  %v10326 = vsel %vm10276, %v10225, %v8563
  %v10327 = vsel %vm10276, %v10226, %v8565
  %v10328 = vsel %vm10276, %v10227, %v8567
  %v10329 = vsel %vm10276, %v10228, %v8569
  %v10330 = vsel %vm10276, %v10229, %v8571
  %v10331 = vsel %vm10276, %v10230, %v8573
  %v10332 = vsel %vm10276, %v10231, %v8575
  %v10333 = vsel %vm10276, %v10232, %v8577
  %v10334 = vsel %vm10276, %v10233, %v8579
  %v10335 = vsel %vm10276, %v10234, %v8581
  %v10336 = vsel %vm10276, %v10235, %v8583
  %v10337 = vsel %vm10276, %v10236, %v8585
  %v10338 = vsel %vm10276, %v10237, %v8587
  %v10339 = vsel %vm10276, %v10238, %v8589
  %v10340 = vsel %vm10276, %v10239, %v8591
  %v10341 = vsel %vm10276, %v10240, %v8593
  %v10342 = vsel %vm10276, %v10241, %v8595
  %v10343 = vsel %vm10276, %v10242, %v8597
  %v10344 = vsel %vm10276, %v10243, %v8599
  %v10345 = vsel %vm10276, %v10244, %v8601
  %v10346 = vsel %vm10276, %v10245, %v8603
  %v10347 = vsel %vm10276, %v10246, %v8605
  %v10348 = vsel %vm10276, %v10247, %v8607
  %v10349 = vsel %vm10276, %v10248, %v8609
  %v10350 = vsel %vm10276, %v10249, %v8611
  %v10351 = vsel %vm10276, %v10250, %v8613
  %v10352 = vsel %vm10276, %v10251, %v8615
  %v10353 = vsel %vm10276, %v10252, %v8617
  %v10354 = vsel %vm10276, %v10253, %v8619
  %v10355 = vsel %vm10276, %v10254, %v8621
  %v10356 = vsel %vm10276, %v10255, %v8623
  %v10357 = vsel %vm10276, %v10256, %v8625
  %v10358 = vsel %vm10276, %v10257, %v8627
  %v10359 = vsel %vm10276, %v10258, %v8629
  %v10360 = vsel %vm10276, %v10259, %v8631
  %v10361 = vsel %vm10276, %v10260, %v8633
  %v10362 = vsel %vm10276, %v10261, %v8635
  %v10363 = vsel %vm10276, %v10262, %v8637
  %v10364 = vsel %vm10276, %v10263, %v8639
  %v10365 = vsel %vm10276, %v10264, %v8641
  %v10366 = vsel %vm10276, %v10265, %v8643
  %v10367 = vsel %vm10276, %v10266, %v8645
  %v10368 = vsel %vm10276, %v10267, %v8647
  %v10369 = vsel %vm10276, %v10268, %v8649
  %v10370 = vsel %vm10276, %v10269, %v8651
  %v10371 = vsel %vm10276, %v10270, %v8653
  %v10372 = vsel %vm10276, %v10271, %v8655
  %v10373 = vsel %vm10276, %v10272, %v8657
  %v10374 = vsel %vm10276, %v10273, %v8659
  %v10375 = vsel %vm10276, %v10274, %v8661
  %v10376 = vsel %vm10276, %v10275, %v8663
  %vm10377 = vcmask 818176
  %v10378 = vsel %vm10377, %v10277, %v8766
  %v10379 = vsel %vm10377, %v10278, %v8768
  %v10380 = vsel %vm10377, %v10279, %v8770
  %v10381 = vsel %vm10377, %v10280, %v8772
  %v10382 = vsel %vm10377, %v10281, %v8774
  %v10383 = vsel %vm10377, %v10282, %v8776
  %v10384 = vsel %vm10377, %v10283, %v8778
  %v10385 = vsel %vm10377, %v10284, %v8780
  %v10386 = vsel %vm10377, %v10285, %v8782
  %v10387 = vsel %vm10377, %v10286, %v8784
  %v10388 = vsel %vm10377, %v10287, %v8786
  %v10389 = vsel %vm10377, %v10288, %v8788
  %v10390 = vsel %vm10377, %v10289, %v8790
  %v10391 = vsel %vm10377, %v10290, %v8792
  %v10392 = vsel %vm10377, %v10291, %v8794
  %v10393 = vsel %vm10377, %v10292, %v8796
  %v10394 = vsel %vm10377, %v10293, %v8798
  %v10395 = vsel %vm10377, %v10294, %v8800
  %v10396 = vsel %vm10377, %v10295, %v8802
  %v10397 = vsel %vm10377, %v10296, %v8804
  %v10398 = vsel %vm10377, %v10297, %v8806
  %v10399 = vsel %vm10377, %v10298, %v8808
  %v10400 = vsel %vm10377, %v10299, %v8810
  %v10401 = vsel %vm10377, %v10300, %v8812
  %v10402 = vsel %vm10377, %v10301, %v8814
  %v10403 = vsel %vm10377, %v10302, %v8816
  %v10404 = vsel %vm10377, %v10303, %v8818
  %v10405 = vsel %vm10377, %v10304, %v8820
  %v10406 = vsel %vm10377, %v10305, %v8822
  %v10407 = vsel %vm10377, %v10306, %v8824
  %v10408 = vsel %vm10377, %v10307, %v8826
  %v10409 = vsel %vm10377, %v10308, %v8828
  %v10410 = vsel %vm10377, %v10309, %v8830
  %v10411 = vsel %vm10377, %v10310, %v8832
  %v10412 = vsel %vm10377, %v10311, %v8834
  %v10413 = vsel %vm10377, %v10312, %v8836
  %v10414 = vsel %vm10377, %v10313, %v8838
  %v10415 = vsel %vm10377, %v10314, %v8840
  %v10416 = vsel %vm10377, %v10315, %v8842
  %v10417 = vsel %vm10377, %v10316, %v8844
  %v10418 = vsel %vm10377, %v10317, %v8846
  %v10419 = vsel %vm10377, %v10318, %v8848
  %v10420 = vsel %vm10377, %v10319, %v8850
  %v10421 = vsel %vm10377, %v10320, %v8852
  %v10422 = vsel %vm10377, %v10321, %v8854
  %v10423 = vsel %vm10377, %v10322, %v8856
  %v10424 = vsel %vm10377, %v10323, %v8858
  %v10425 = vsel %vm10377, %v10324, %v8860
  %v10426 = vsel %vm10377, %v10325, %v8862
  %v10427 = vsel %vm10377, %v10326, %v8864
  %v10428 = vsel %vm10377, %v10327, %v8866
  %v10429 = vsel %vm10377, %v10328, %v8868
  %v10430 = vsel %vm10377, %v10329, %v8870
  %v10431 = vsel %vm10377, %v10330, %v8872
  %v10432 = vsel %vm10377, %v10331, %v8874
  %v10433 = vsel %vm10377, %v10332, %v8876
  %v10434 = vsel %vm10377, %v10333, %v8878
  %v10435 = vsel %vm10377, %v10334, %v8880
  %v10436 = vsel %vm10377, %v10335, %v8882
  %v10437 = vsel %vm10377, %v10336, %v8884
  %v10438 = vsel %vm10377, %v10337, %v8886
  %v10439 = vsel %vm10377, %v10338, %v8888
  %v10440 = vsel %vm10377, %v10339, %v8890
  %v10441 = vsel %vm10377, %v10340, %v8892
  %v10442 = vsel %vm10377, %v10341, %v8894
  %v10443 = vsel %vm10377, %v10342, %v8896
  %v10444 = vsel %vm10377, %v10343, %v8898
  %v10445 = vsel %vm10377, %v10344, %v8900
  %v10446 = vsel %vm10377, %v10345, %v8902
  %v10447 = vsel %vm10377, %v10346, %v8904
  %v10448 = vsel %vm10377, %v10347, %v8906
  %v10449 = vsel %vm10377, %v10348, %v8908
  %v10450 = vsel %vm10377, %v10349, %v8910
  %v10451 = vsel %vm10377, %v10350, %v8912
  %v10452 = vsel %vm10377, %v10351, %v8914
  %v10453 = vsel %vm10377, %v10352, %v8916
  %v10454 = vsel %vm10377, %v10353, %v8918
  %v10455 = vsel %vm10377, %v10354, %v8920
  %v10456 = vsel %vm10377, %v10355, %v8922
  %v10457 = vsel %vm10377, %v10356, %v8924
  %v10458 = vsel %vm10377, %v10357, %v8926
  %v10459 = vsel %vm10377, %v10358, %v8928
  %v10460 = vsel %vm10377, %v10359, %v8930
  %v10461 = vsel %vm10377, %v10360, %v8932
  %v10462 = vsel %vm10377, %v10361, %v8934
  %v10463 = vsel %vm10377, %v10362, %v8936
  %v10464 = vsel %vm10377, %v10363, %v8938
  %v10465 = vsel %vm10377, %v10364, %v8940
  %v10466 = vsel %vm10377, %v10365, %v8942
  %v10467 = vsel %vm10377, %v10366, %v8944
  %v10468 = vsel %vm10377, %v10367, %v8946
  %v10469 = vsel %vm10377, %v10368, %v8948
  %v10470 = vsel %vm10377, %v10369, %v8950
  %v10471 = vsel %vm10377, %v10370, %v8952
  %v10472 = vsel %vm10377, %v10371, %v8954
  %v10473 = vsel %vm10377, %v10372, %v8956
  %v10474 = vsel %vm10377, %v10373, %v8958
  %v10475 = vsel %vm10377, %v10374, %v8960
  %v10476 = vsel %vm10377, %v10375, %v8962
  %v10477 = vsel %vm10377, %v10376, %v8964
  %v10478 = vsel %vm1145, %v10378, %v9074
  %v10479 = vsel %vm1145, %v10379, %v9076
  %v10480 = vsel %vm1145, %v10380, %v9078
  %v10481 = vsel %vm1145, %v10381, %v9080
  %v10482 = vsel %vm1145, %v10382, %v9082
  %v10483 = vsel %vm1145, %v10383, %v9084
  %v10484 = vsel %vm1145, %v10384, %v9086
  %v10485 = vsel %vm1145, %v10385, %v9088
  %v10486 = vsel %vm1145, %v10386, %v9090
  %v10487 = vsel %vm1145, %v10387, %v9092
  %v10488 = vsel %vm1145, %v10388, %v9094
  %v10489 = vsel %vm1145, %v10389, %v9096
  %v10490 = vsel %vm1145, %v10390, %v9098
  %v10491 = vsel %vm1145, %v10391, %v9100
  %v10492 = vsel %vm1145, %v10392, %v9102
  %v10493 = vsel %vm1145, %v10393, %v9104
  %v10494 = vsel %vm1145, %v10394, %v9106
  %v10495 = vsel %vm1145, %v10395, %v9108
  %v10496 = vsel %vm1145, %v10396, %v9110
  %v10497 = vsel %vm1145, %v10397, %v9112
  %v10498 = vsel %vm1145, %v10398, %v9114
  %v10499 = vsel %vm1145, %v10399, %v9116
  %v10500 = vsel %vm1145, %v10400, %v9118
  %v10501 = vsel %vm1145, %v10401, %v9120
  %v10502 = vsel %vm1145, %v10402, %v9122
  %v10503 = vsel %vm1145, %v10403, %v9124
  %v10504 = vsel %vm1145, %v10404, %v9126
  %v10505 = vsel %vm1145, %v10405, %v9128
  %v10506 = vsel %vm1145, %v10406, %v9130
  %v10507 = vsel %vm1145, %v10407, %v9132
  %v10508 = vsel %vm1145, %v10408, %v9134
  %v10509 = vsel %vm1145, %v10409, %v9136
  %v10510 = vsel %vm1145, %v10410, %v9138
  %v10511 = vsel %vm1145, %v10411, %v9140
  %v10512 = vsel %vm1145, %v10412, %v9142
  %v10513 = vsel %vm1145, %v10413, %v9144
  %v10514 = vsel %vm1145, %v10414, %v9146
  %v10515 = vsel %vm1145, %v10415, %v9148
  %v10516 = vsel %vm1145, %v10416, %v9150
  %v10517 = vsel %vm1145, %v10417, %v9152
  %v10518 = vsel %vm1145, %v10418, %v9154
  %v10519 = vsel %vm1145, %v10419, %v9156
  %v10520 = vsel %vm1145, %v10420, %v9158
  %v10521 = vsel %vm1145, %v10421, %v9160
  %v10522 = vsel %vm1145, %v10422, %v9162
  %v10523 = vsel %vm1145, %v10423, %v9164
  %v10524 = vsel %vm1145, %v10424, %v9166
  %v10525 = vsel %vm1145, %v10425, %v9168
  %v10526 = vsel %vm1145, %v10426, %v9170
  %v10527 = vsel %vm1145, %v10427, %v9172
  %v10528 = vsel %vm1145, %v10428, %v9174
  %v10529 = vsel %vm1145, %v10429, %v9176
  %v10530 = vsel %vm1145, %v10430, %v9178
  %v10531 = vsel %vm1145, %v10431, %v9180
  %v10532 = vsel %vm1145, %v10432, %v9182
  %v10533 = vsel %vm1145, %v10433, %v9184
  %v10534 = vsel %vm1145, %v10434, %v9186
  %v10535 = vsel %vm1145, %v10435, %v9188
  %v10536 = vsel %vm1145, %v10436, %v9190
  %v10537 = vsel %vm1145, %v10437, %v9192
  %v10538 = vsel %vm1145, %v10438, %v9194
  %v10539 = vsel %vm1145, %v10439, %v9196
  %v10540 = vsel %vm1145, %v10440, %v9198
  %v10541 = vsel %vm1145, %v10441, %v9200
  %v10542 = vsel %vm1145, %v10442, %v9202
  %v10543 = vsel %vm1145, %v10443, %v9204
  %v10544 = vsel %vm1145, %v10444, %v9206
  %v10545 = vsel %vm1145, %v10445, %v9208
  %v10546 = vsel %vm1145, %v10446, %v9210
  %v10547 = vsel %vm1145, %v10447, %v9212
  %v10548 = vsel %vm1145, %v10448, %v9214
  %v10549 = vsel %vm1145, %v10449, %v9216
  %v10550 = vsel %vm1145, %v10450, %v9218
  %v10551 = vsel %vm1145, %v10451, %v9220
  %v10552 = vsel %vm1145, %v10452, %v9222
  %v10553 = vsel %vm1145, %v10453, %v9224
  %v10554 = vsel %vm1145, %v10454, %v9226
  %v10555 = vsel %vm1145, %v10455, %v9228
  %v10556 = vsel %vm1145, %v10456, %v9230
  %v10557 = vsel %vm1145, %v10457, %v9232
  %v10558 = vsel %vm1145, %v10458, %v9234
  %v10559 = vsel %vm1145, %v10459, %v9236
  %v10560 = vsel %vm1145, %v10460, %v9238
  %v10561 = vsel %vm1145, %v10461, %v9240
  %v10562 = vsel %vm1145, %v10462, %v9242
  %v10563 = vsel %vm1145, %v10463, %v9244
  %v10564 = vsel %vm1145, %v10464, %v9246
  %v10565 = vsel %vm1145, %v10465, %v9248
  %v10566 = vsel %vm1145, %v10466, %v9250
  %v10567 = vsel %vm1145, %v10467, %v9252
  %v10568 = vsel %vm1145, %v10468, %v9254
  %v10569 = vsel %vm1145, %v10469, %v9256
  %v10570 = vsel %vm1145, %v10470, %v9258
  %v10571 = vsel %vm1145, %v10471, %v9260
  %v10572 = vsel %vm1145, %v10472, %v9262
  %v10573 = vsel %vm1145, %v10473, %v9264
  %v10574 = vsel %vm1145, %v10474, %v9266
  %v10575 = vsel %vm1145, %v10475, %v9268
  %v10576 = vsel %vm1145, %v10476, %v9270
  %v10577 = vsel %vm1145, %v10477, %v9272
  %vm10578 = vcmask 97280
  %v10579 = vsel %vm10578, %v9074, %v9375
  %v10580 = vsel %vm10578, %v9076, %v9377
  %v10581 = vsel %vm10578, %v9078, %v9379
  %v10582 = vsel %vm10578, %v9080, %v9381
  %v10583 = vsel %vm10578, %v9082, %v9383
  %v10584 = vsel %vm10578, %v9084, %v9385
  %v10585 = vsel %vm10578, %v9086, %v9387
  %v10586 = vsel %vm10578, %v9088, %v9389
  %v10587 = vsel %vm10578, %v9090, %v9391
  %v10588 = vsel %vm10578, %v9092, %v9393
  %v10589 = vsel %vm10578, %v9094, %v9395
  %v10590 = vsel %vm10578, %v9096, %v9397
  %v10591 = vsel %vm10578, %v9098, %v9399
  %v10592 = vsel %vm10578, %v9100, %v9401
  %v10593 = vsel %vm10578, %v9102, %v9403
  %v10594 = vsel %vm10578, %v9104, %v9405
  %v10595 = vsel %vm10578, %v9106, %v9407
  %v10596 = vsel %vm10578, %v9108, %v9409
  %v10597 = vsel %vm10578, %v9110, %v9411
  %v10598 = vsel %vm10578, %v9112, %v9413
  %v10599 = vsel %vm10578, %v9114, %v9415
  %v10600 = vsel %vm10578, %v9116, %v9417
  %v10601 = vsel %vm10578, %v9118, %v9419
  %v10602 = vsel %vm10578, %v9120, %v9421
  %v10603 = vsel %vm10578, %v9122, %v9423
  %v10604 = vsel %vm10578, %v9124, %v9425
  %v10605 = vsel %vm10578, %v9126, %v9427
  %v10606 = vsel %vm10578, %v9128, %v9429
  %v10607 = vsel %vm10578, %v9130, %v9431
  %v10608 = vsel %vm10578, %v9132, %v9433
  %v10609 = vsel %vm10578, %v9134, %v9435
  %v10610 = vsel %vm10578, %v9136, %v9437
  %v10611 = vsel %vm10578, %v9138, %v9439
  %v10612 = vsel %vm10578, %v9140, %v9441
  %v10613 = vsel %vm10578, %v9142, %v9443
  %v10614 = vsel %vm10578, %v9144, %v9445
  %v10615 = vsel %vm10578, %v9146, %v9447
  %v10616 = vsel %vm10578, %v9148, %v9449
  %v10617 = vsel %vm10578, %v9150, %v9451
  %v10618 = vsel %vm10578, %v9152, %v9453
  %v10619 = vsel %vm10578, %v9154, %v9455
  %v10620 = vsel %vm10578, %v9156, %v9457
  %v10621 = vsel %vm10578, %v9158, %v9459
  %v10622 = vsel %vm10578, %v9160, %v9461
  %v10623 = vsel %vm10578, %v9162, %v9463
  %v10624 = vsel %vm10578, %v9164, %v9465
  %v10625 = vsel %vm10578, %v9166, %v9467
  %v10626 = vsel %vm10578, %v9168, %v9469
  %v10627 = vsel %vm10578, %v9170, %v9471
  %v10628 = vsel %vm10578, %v9172, %v9473
  %v10629 = vsel %vm10578, %v9174, %v9475
  %v10630 = vsel %vm10578, %v9176, %v9477
  %v10631 = vsel %vm10578, %v9178, %v9479
  %v10632 = vsel %vm10578, %v9180, %v9481
  %v10633 = vsel %vm10578, %v9182, %v9483
  %v10634 = vsel %vm10578, %v9184, %v9485
  %v10635 = vsel %vm10578, %v9186, %v9487
  %v10636 = vsel %vm10578, %v9188, %v9489
  %v10637 = vsel %vm10578, %v9190, %v9491
  %v10638 = vsel %vm10578, %v9192, %v9493
  %v10639 = vsel %vm10578, %v9194, %v9495
  %v10640 = vsel %vm10578, %v9196, %v9497
  %v10641 = vsel %vm10578, %v9198, %v9499
  %v10642 = vsel %vm10578, %v9200, %v9501
  %v10643 = vsel %vm10578, %v9202, %v9503
  %v10644 = vsel %vm10578, %v9204, %v9505
  %v10645 = vsel %vm10578, %v9206, %v9507
  %v10646 = vsel %vm10578, %v9208, %v9509
  %v10647 = vsel %vm10578, %v9210, %v9511
  %v10648 = vsel %vm10578, %v9212, %v9513
  %v10649 = vsel %vm10578, %v9214, %v9515
  %v10650 = vsel %vm10578, %v9216, %v9517
  %v10651 = vsel %vm10578, %v9218, %v9519
  %v10652 = vsel %vm10578, %v9220, %v9521
  %v10653 = vsel %vm10578, %v9222, %v9523
  %v10654 = vsel %vm10578, %v9224, %v9525
  %v10655 = vsel %vm10578, %v9226, %v9527
  %v10656 = vsel %vm10578, %v9228, %v9529
  %v10657 = vsel %vm10578, %v9230, %v9531
  %v10658 = vsel %vm10578, %v9232, %v9533
  %v10659 = vsel %vm10578, %v9234, %v9535
  %v10660 = vsel %vm10578, %v9236, %v9537
  %v10661 = vsel %vm10578, %v9238, %v9539
  %v10662 = vsel %vm10578, %v9240, %v9541
  %v10663 = vsel %vm10578, %v9242, %v9543
  %v10664 = vsel %vm10578, %v9244, %v9545
  %v10665 = vsel %vm10578, %v9246, %v9547
  %v10666 = vsel %vm10578, %v9248, %v9549
  %v10667 = vsel %vm10578, %v9250, %v9551
  %v10668 = vsel %vm10578, %v9252, %v9553
  %v10669 = vsel %vm10578, %v9254, %v9555
  %v10670 = vsel %vm10578, %v9256, %v9557
  %v10671 = vsel %vm10578, %v9258, %v9559
  %v10672 = vsel %vm10578, %v9260, %v9561
  %v10673 = vsel %vm10578, %v9262, %v9563
  %v10674 = vsel %vm10578, %v9264, %v9565
  %v10675 = vsel %vm10578, %v9266, %v9567
  %v10676 = vsel %vm10578, %v9268, %v9569
  %v10677 = vsel %vm10578, %v9270, %v9571
  %v10678 = vsel %vm10578, %v9272, %v9573
  %vm10679 = vcmask 261120
  %v10680 = vsel %vm10679, %v10579, %v9676
  %v10681 = vsel %vm10679, %v10580, %v9678
  %v10682 = vsel %vm10679, %v10581, %v9680
  %v10683 = vsel %vm10679, %v10582, %v9682
  %v10684 = vsel %vm10679, %v10583, %v9684
  %v10685 = vsel %vm10679, %v10584, %v9686
  %v10686 = vsel %vm10679, %v10585, %v9688
  %v10687 = vsel %vm10679, %v10586, %v9690
  %v10688 = vsel %vm10679, %v10587, %v9692
  %v10689 = vsel %vm10679, %v10588, %v9694
  %v10690 = vsel %vm10679, %v10589, %v9696
  %v10691 = vsel %vm10679, %v10590, %v9698
  %v10692 = vsel %vm10679, %v10591, %v9700
  %v10693 = vsel %vm10679, %v10592, %v9702
  %v10694 = vsel %vm10679, %v10593, %v9704
  %v10695 = vsel %vm10679, %v10594, %v9706
  %v10696 = vsel %vm10679, %v10595, %v9708
  %v10697 = vsel %vm10679, %v10596, %v9710
  %v10698 = vsel %vm10679, %v10597, %v9712
  %v10699 = vsel %vm10679, %v10598, %v9714
  %v10700 = vsel %vm10679, %v10599, %v9716
  %v10701 = vsel %vm10679, %v10600, %v9718
  %v10702 = vsel %vm10679, %v10601, %v9720
  %v10703 = vsel %vm10679, %v10602, %v9722
  %v10704 = vsel %vm10679, %v10603, %v9724
  %v10705 = vsel %vm10679, %v10604, %v9726
  %v10706 = vsel %vm10679, %v10605, %v9728
  %v10707 = vsel %vm10679, %v10606, %v9730
  %v10708 = vsel %vm10679, %v10607, %v9732
  %v10709 = vsel %vm10679, %v10608, %v9734
  %v10710 = vsel %vm10679, %v10609, %v9736
  %v10711 = vsel %vm10679, %v10610, %v9738
  %v10712 = vsel %vm10679, %v10611, %v9740
  %v10713 = vsel %vm10679, %v10612, %v9742
  %v10714 = vsel %vm10679, %v10613, %v9744
  %v10715 = vsel %vm10679, %v10614, %v9746
  %v10716 = vsel %vm10679, %v10615, %v9748
  %v10717 = vsel %vm10679, %v10616, %v9750
  %v10718 = vsel %vm10679, %v10617, %v9752
  %v10719 = vsel %vm10679, %v10618, %v9754
  %v10720 = vsel %vm10679, %v10619, %v9756
  %v10721 = vsel %vm10679, %v10620, %v9758
  %v10722 = vsel %vm10679, %v10621, %v9760
  %v10723 = vsel %vm10679, %v10622, %v9762
  %v10724 = vsel %vm10679, %v10623, %v9764
  %v10725 = vsel %vm10679, %v10624, %v9766
  %v10726 = vsel %vm10679, %v10625, %v9768
  %v10727 = vsel %vm10679, %v10626, %v9770
  %v10728 = vsel %vm10679, %v10627, %v9772
  %v10729 = vsel %vm10679, %v10628, %v9774
  %v10730 = vsel %vm10679, %v10629, %v9776
  %v10731 = vsel %vm10679, %v10630, %v9778
  %v10732 = vsel %vm10679, %v10631, %v9780
  %v10733 = vsel %vm10679, %v10632, %v9782
  %v10734 = vsel %vm10679, %v10633, %v9784
  %v10735 = vsel %vm10679, %v10634, %v9786
  %v10736 = vsel %vm10679, %v10635, %v9788
  %v10737 = vsel %vm10679, %v10636, %v9790
  %v10738 = vsel %vm10679, %v10637, %v9792
  %v10739 = vsel %vm10679, %v10638, %v9794
  %v10740 = vsel %vm10679, %v10639, %v9796
  %v10741 = vsel %vm10679, %v10640, %v9798
  %v10742 = vsel %vm10679, %v10641, %v9800
  %v10743 = vsel %vm10679, %v10642, %v9802
  %v10744 = vsel %vm10679, %v10643, %v9804
  %v10745 = vsel %vm10679, %v10644, %v9806
  %v10746 = vsel %vm10679, %v10645, %v9808
  %v10747 = vsel %vm10679, %v10646, %v9810
  %v10748 = vsel %vm10679, %v10647, %v9812
  %v10749 = vsel %vm10679, %v10648, %v9814
  %v10750 = vsel %vm10679, %v10649, %v9816
  %v10751 = vsel %vm10679, %v10650, %v9818
  %v10752 = vsel %vm10679, %v10651, %v9820
  %v10753 = vsel %vm10679, %v10652, %v9822
  %v10754 = vsel %vm10679, %v10653, %v9824
  %v10755 = vsel %vm10679, %v10654, %v9826
  %v10756 = vsel %vm10679, %v10655, %v9828
  %v10757 = vsel %vm10679, %v10656, %v9830
  %v10758 = vsel %vm10679, %v10657, %v9832
  %v10759 = vsel %vm10679, %v10658, %v9834
  %v10760 = vsel %vm10679, %v10659, %v9836
  %v10761 = vsel %vm10679, %v10660, %v9838
  %v10762 = vsel %vm10679, %v10661, %v9840
  %v10763 = vsel %vm10679, %v10662, %v9842
  %v10764 = vsel %vm10679, %v10663, %v9844
  %v10765 = vsel %vm10679, %v10664, %v9846
  %v10766 = vsel %vm10679, %v10665, %v9848
  %v10767 = vsel %vm10679, %v10666, %v9850
  %v10768 = vsel %vm10679, %v10667, %v9852
  %v10769 = vsel %vm10679, %v10668, %v9854
  %v10770 = vsel %vm10679, %v10669, %v9856
  %v10771 = vsel %vm10679, %v10670, %v9858
  %v10772 = vsel %vm10679, %v10671, %v9860
  %v10773 = vsel %vm10679, %v10672, %v9862
  %v10774 = vsel %vm10679, %v10673, %v9864
  %v10775 = vsel %vm10679, %v10674, %v9866
  %v10776 = vsel %vm10679, %v10675, %v9868
  %v10777 = vsel %vm10679, %v10676, %v9870
  %v10778 = vsel %vm10679, %v10677, %v9872
  %v10779 = vsel %vm10679, %v10678, %v9874
  %v10780 = vld [vmem:[%s7] sm:$0xff]
  %v10781 = vld [vmem:[%s7 + $0x8] sm:$0xff]
  %v10782 = vld [vmem:[%s7 + $0x10] sm:$0xff]
  %v10783 = vld [vmem:[%s7 + $0x18] sm:$0xff]
  %v10784 = vld [vmem:[%s7 + $0x20] sm:$0xff]
  %v10785 = vld [vmem:[%s7 + $0x28] sm:$0xff]
  %v10786 = vld [vmem:[%s7 + $0x30] sm:$0xff]
  %v10787 = vld [vmem:[%s7 + $0x38] sm:$0xff]
  %v10788 = vld [vmem:[%s7 + $0x40] sm:$0xff]
  %v10789 = vld [vmem:[%s7 + $0x48] sm:$0xff]
  %v10790 = vld [vmem:[%s7 + $0x50] sm:$0xff]
  %v10791 = vld [vmem:[%s7 + $0x58] sm:$0xff]
  %v10792 = vld [vmem:[%s7 + $0x60] sm:$0xff]
  %v10793 = vld [vmem:[%s7 + $0x68] sm:$0xff]
  %v10794 = vld [vmem:[%s7 + $0x70] sm:$0xff]
  %v10795 = vld [vmem:[%s7 + $0x78] sm:$0xff]
  %v10796 = vld [vmem:[%s7 + $0x80] sm:$0xff]
  %v10797 = vld [vmem:[%s7 + $0x88] sm:$0xff]
  %v10798 = vld [vmem:[%s7 + $0x90] sm:$0xff]
  %v10799 = vld [vmem:[%s7 + $0x98] sm:$0xff]
  %v10800 = vld [vmem:[%s7 + $0xa0] sm:$0xff]
  %v10801 = vld [vmem:[%s7 + $0xa8] sm:$0xff]
  %v10802 = vld [vmem:[%s7 + $0xb0] sm:$0xf]
  %v10803 = vld [vmem:[%s8] sm:$0x1]
  %v10805 = vlaneseq
  %v10806 = vshrl.u32 %v10805, 7
  %v10807 = vsub.s32 0, %v10806
  %v10808 = vrot.slane %v10803, %v10807
  %v10811 = vsel %vm5416, %v10680, 0
  %v10814 = vsel %vm5416, %v10681, 0
  %v10817 = vsel %vm5416, %v10682, 0
  %v10820 = vsel %vm5416, %v10683, 0
  %v10823 = vsel %vm5416, %v10684, 0
  %v10826 = vsel %vm5416, %v10685, 0
  %v10829 = vsel %vm5416, %v10686, 0
  %v10832 = vsel %vm5416, %v10687, 0
  %v10835 = vsel %vm5416, %v10688, 0
  %v10838 = vsel %vm5416, %v10689, 0
  %v10841 = vsel %vm5416, %v10690, 0
  %v10844 = vsel %vm5416, %v10691, 0
  %v10847 = vsel %vm5416, %v10692, 0
  %v10850 = vsel %vm5416, %v10693, 0
  %v10853 = vsel %vm5416, %v10694, 0
  %v10856 = vsel %vm5416, %v10695, 0
  %v10859 = vsel %vm5416, %v10696, 0
  %v10862 = vsel %vm5416, %v10697, 0
  %v10865 = vsel %vm5416, %v10698, 0
  %v10868 = vsel %vm5416, %v10699, 0
  %v10871 = vsel %vm5416, %v10700, 0
  %v10874 = vsel %vm5416, %v10701, 0
  %v10877 = vsel %vm5416, %v10702, 0
  %v10880 = vsel %vm5416, %v10703, 0
  %v10883 = vsel %vm5416, %v10704, 0
  %v10886 = vsel %vm5416, %v10705, 0
  %v10889 = vsel %vm5416, %v10706, 0
  %v10892 = vsel %vm5416, %v10707, 0
  %v10895 = vsel %vm5416, %v10708, 0
  %v10898 = vsel %vm5416, %v10709, 0
  %v10901 = vsel %vm5416, %v10710, 0
  %v10904 = vsel %vm5416, %v10711, 0
  %v10907 = vsel %vm5416, %v10712, 0
  %v10910 = vsel %vm5416, %v10713, 0
  %v10913 = vsel %vm5416, %v10714, 0
  %v10916 = vsel %vm5416, %v10715, 0
  %v10919 = vsel %vm5416, %v10716, 0
  %v10922 = vsel %vm5416, %v10717, 0
  %v10925 = vsel %vm5416, %v10718, 0
  %v10928 = vsel %vm5416, %v10719, 0
  %v10931 = vsel %vm5416, %v10720, 0
  %v10934 = vsel %vm5416, %v10721, 0
  %v10937 = vsel %vm5416, %v10722, 0
  %v10940 = vsel %vm5416, %v10723, 0
  %v10943 = vsel %vm5416, %v10724, 0
  %v10946 = vsel %vm5416, %v10725, 0
  %v10949 = vsel %vm5416, %v10726, 0
  %v10952 = vsel %vm5416, %v10727, 0
  %v10955 = vsel %vm5416, %v10728, 0
  %v10958 = vsel %vm5416, %v10729, 0
  %v10961 = vsel %vm5416, %v10730, 0
  %v10964 = vsel %vm5416, %v10731, 0
  %v10967 = vsel %vm5416, %v10732, 0
  %v10970 = vsel %vm5416, %v10733, 0
  %v10973 = vsel %vm5416, %v10734, 0
  %v10976 = vsel %vm5416, %v10735, 0
  %v10979 = vsel %vm5416, %v10736, 0
  %v10982 = vsel %vm5416, %v10737, 0
  %v10985 = vsel %vm5416, %v10738, 0
  %v10988 = vsel %vm5416, %v10739, 0
  %v10991 = vsel %vm5416, %v10740, 0
  %v10994 = vsel %vm5416, %v10741, 0
  %v10997 = vsel %vm5416, %v10742, 0
  %v11000 = vsel %vm5416, %v10743, 0
  %v11003 = vsel %vm5416, %v10744, 0
  %v11006 = vsel %vm5416, %v10745, 0
  %v11009 = vsel %vm5416, %v10746, 0
  %v11012 = vsel %vm5416, %v10747, 0
  %v11015 = vsel %vm5416, %v10748, 0
  %v11018 = vsel %vm5416, %v10749, 0
  %v11021 = vsel %vm5416, %v10750, 0
  %v11024 = vsel %vm5416, %v10751, 0
  %v11027 = vsel %vm5416, %v10752, 0
  %v11030 = vsel %vm5416, %v10753, 0
  %v11033 = vsel %vm5416, %v10754, 0
  %v11036 = vsel %vm5416, %v10755, 0
  %v11039 = vsel %vm5416, %v10756, 0
  %v11042 = vsel %vm5416, %v10757, 0
  %v11045 = vsel %vm5416, %v10758, 0
  %v11048 = vsel %vm5416, %v10759, 0
  %v11051 = vsel %vm5416, %v10760, 0
  %v11054 = vsel %vm5416, %v10761, 0
  %v11057 = vsel %vm5416, %v10762, 0
  %v11060 = vsel %vm5416, %v10763, 0
  %v11063 = vsel %vm5416, %v10764, 0
  %v11066 = vsel %vm5416, %v10765, 0
  %v11069 = vsel %vm5416, %v10766, 0
  %v11072 = vsel %vm5416, %v10767, 0
  %v11075 = vsel %vm5416, %v10768, 0
  %v11078 = vsel %vm5416, %v10769, 0
  %v11081 = vsel %vm5416, %v10770, 0
  %v11084 = vsel %vm5416, %v10771, 0
  %v11087 = vsel %vm5416, %v10772, 0
  %v11090 = vsel %vm5416, %v10773, 0
  %v11093 = vsel %vm5416, %v10774, 0
  %v11096 = vsel %vm5416, %v10775, 0
  %v11099 = vsel %vm5416, %v10776, 0
  %v11102 = vsel %vm5416, %v10777, 0
  %v11105 = vsel %vm5416, %v10778, 0
  %v11108 = vsel %vm5416, %v10779, 0
  %v11111 = vsel %vm454, %v10802, 0
  %11113 = vmatprep.subr.mxu0 0.0
  %11114 = vmatpush1.msra.mxu0 %v10795
  %11115 = vmatprep.subr.mxu0 0.0
  %11116 = vmatpush1.msra.mxu0 %v10794
  %11117 = vmatprep.subr.mxu0 0.0
  %11118 = vmatpush1.msra.mxu0 %v10793
  %11119 = vmatprep.subr.mxu0 0.0
  %11120 = vmatpush1.msra.mxu0 %v10792
  %11121 = vmatprep.subr.mxu0 0.0
  %11122 = vmatpush1.msra.mxu0 %v10791
  %11123 = vmatprep.subr.mxu0 0.0
  %11124 = vmatpush1.msra.mxu0 %v10790
  %11125 = vmatprep.subr.mxu0 0.0
  %11126 = vmatpush1.msra.mxu0 %v10789
  %11127 = vmatprep.subr.mxu0 0.0
  %11128 = vmatpush1.msra.mxu0 %v10788
  %11129 = vmatprep.subr.mxu0 0.0
  %11130 = vmatpush1.msra.mxu0 %v10787
  %11131 = vmatprep.subr.mxu0 0.0
  %11132 = vmatpush1.msra.mxu0 %v10786
  %11133 = vmatprep.subr.mxu0 0.0
  %11134 = vmatpush1.msra.mxu0 %v10785
  %11135 = vmatprep.subr.mxu0 0.0
  %11136 = vmatpush1.msra.mxu0 %v10784
  %11137 = vmatprep.subr.mxu0 0.0
  %11138 = vmatpush1.msra.mxu0 %v10783
  %11139 = vmatprep.subr.mxu0 0.0
  %11140 = vmatpush1.msra.mxu0 %v10782
  %11141 = vmatprep.subr.mxu0 0.0
  %11142 = vmatpush1.msra.mxu0 %v10781
  %11143 = vmatprep.subr.mxu0 0.0
  %11144 = vmatpush1.msra.mxu0 %v10780
  %11145 = vmatprep.subr.mxu0 0.0
  %11146 = vmatpush2.msra.mxu0 0.0
  %11147 = vmatprep.subr.mxu0 0.0
  %11148 = vmatpush2.msra.mxu0 0.0
  %11149 = vmatprep.subr.mxu0 0.0
  %11150 = vmatpush2.msra.mxu0 0.0
  %11151 = vmatprep.subr.mxu0 0.0
  %11152 = vmatpush2.msra.mxu0 0.0
  %11153 = vmatprep.subr.mxu0 0.0
  %11154 = vmatpush2.msra.mxu0 0.0
  %11155 = vmatprep.subr.mxu0 0.0
  %11156 = vmatpush2.msra.mxu0 0.0
  %11157 = vmatprep.subr.mxu0 0.0
  %11158 = vmatpush2.msra.mxu0 0.0
  %11159 = vmatprep.subr.mxu0 0.0
  %11160 = vmatpush2.msra.mxu0 0.0
  %11161 = vmatprep.subr.mxu0 0.0
  %11162 = vmatpush2.msra.mxu0 0.0
  %11163 = vmatprep.subr.mxu0 0.0
  %11164 = vmatpush2.msra.mxu0 %v11111
  %11165 = vmatprep.subr.mxu0 0.0
  %11166 = vmatpush2.msra.mxu0 %v10801
  %11167 = vmatprep.subr.mxu0 0.0
  %11168 = vmatpush2.msra.mxu0 %v10800
  %11169 = vmatprep.subr.mxu0 0.0
  %11170 = vmatpush2.msra.mxu0 %v10799
  %11171 = vmatprep.subr.mxu0 0.0
  %11172 = vmatpush2.msra.mxu0 %v10798
  %11173 = vmatprep.subr.mxu0 0.0
  %11174 = vmatpush2.msra.mxu0 %v10797
  %11175 = vmatprep.subr.mxu0 0.0
  %11176 = vmatpush2.msra.mxu0 %v10796
  %11177 = vmatprep.mubr.f32.mxu0 %v10811
  %11178 = vmatmul.mubr.f32.gmra.mxu0 %v10478
  %v11179 = vpop.f32.mrf.mxu0
  %v11180 = vpop.f32.mrf.mxu0
  %11181 = vmatprep.mubr.f32.mxu0 %v10814
  %11182 = vmatmul.mubr.f32.gmra.mxu0 %v10479
  %v11183 = vpop.f32.mrf.mxu0
  %v11184 = vpop.f32.mrf.mxu0
  %11185 = vmatprep.mubr.f32.mxu0 %v10817
  %11186 = vmatmul.mubr.f32.gmra.mxu0 %v10480
  %v11187 = vpop.f32.mrf.mxu0
  %v11188 = vpop.f32.mrf.mxu0
  %11189 = vmatprep.mubr.f32.mxu0 %v10820
  %11190 = vmatmul.mubr.f32.gmra.mxu0 %v10481
  %v11191 = vpop.f32.mrf.mxu0
  %v11192 = vpop.f32.mrf.mxu0
  %11193 = vmatprep.mubr.f32.mxu0 %v10823
  %11194 = vmatmul.mubr.f32.gmra.mxu0 %v10482
  %v11195 = vpop.f32.mrf.mxu0
  %v11196 = vpop.f32.mrf.mxu0
  %11197 = vmatprep.mubr.f32.mxu0 %v10826
  %11198 = vmatmul.mubr.f32.gmra.mxu0 %v10483
  %v11199 = vpop.f32.mrf.mxu0
  %v11200 = vpop.f32.mrf.mxu0
  %11201 = vmatprep.mubr.f32.mxu0 %v10829
  %11202 = vmatmul.mubr.f32.gmra.mxu0 %v10484
  %v11203 = vpop.f32.mrf.mxu0
  %v11204 = vpop.f32.mrf.mxu0
  %11205 = vmatprep.mubr.f32.mxu0 %v10832
  %11206 = vmatmul.mubr.f32.gmra.mxu0 %v10485
  %v11207 = vpop.f32.mrf.mxu0
  %v11208 = vpop.f32.mrf.mxu0
  %11209 = vmatprep.mubr.f32.mxu0 %v10835
  %11210 = vmatmul.mubr.f32.gmra.mxu0 %v10486
  %v11211 = vpop.f32.mrf.mxu0
  %v11212 = vpop.f32.mrf.mxu0
  %11213 = vmatprep.mubr.f32.mxu0 %v10838
  %11214 = vmatmul.mubr.f32.gmra.mxu0 %v10487
  %v11215 = vpop.f32.mrf.mxu0
  %v11216 = vpop.f32.mrf.mxu0
  %11217 = vmatprep.mubr.f32.mxu0 %v10841
  %11218 = vmatmul.mubr.f32.gmra.mxu0 %v10488
  %v11219 = vpop.f32.mrf.mxu0
  %v11220 = vpop.f32.mrf.mxu0
  %11221 = vmatprep.mubr.f32.mxu0 %v10844
  %11222 = vmatmul.mubr.f32.gmra.mxu0 %v10489
  %v11223 = vpop.f32.mrf.mxu0
  %v11224 = vadd.f32 %v10808, %v11223
  %v11225 = vpop.f32.mrf.mxu0
  %11226 = vmatprep.mubr.f32.mxu0 %v10847
  %11227 = vmatmul.mubr.f32.gmra.mxu0 %v10490
  %v11228 = vpop.f32.mrf.mxu0
  %v11229 = vadd.f32 %v10808, %v11228
  %v11230 = vpop.f32.mrf.mxu0
  %11231 = vmatprep.mubr.f32.mxu0 %v10850
  %11232 = vmatmul.mubr.f32.gmra.mxu0 %v10491
  %v11233 = vpop.f32.mrf.mxu0
  %v11234 = vadd.f32 %v10808, %v11233
  %v11235 = vpop.f32.mrf.mxu0
  %11236 = vmatprep.mubr.f32.mxu0 %v10853
  %11237 = vmatmul.mubr.f32.gmra.mxu0 %v10492
  %v11238 = vpop.f32.mrf.mxu0
  %v11239 = vadd.f32 %v10808, %v11238
  %v11240 = vpop.f32.mrf.mxu0
  %11241 = vmatprep.mubr.f32.mxu0 %v10856
  %11242 = vmatmul.mubr.f32.gmra.mxu0 %v10493
  %v11243 = vpop.f32.mrf.mxu0
  %v11244 = vadd.f32 %v10808, %v11243
  %v11245 = vpop.f32.mrf.mxu0
  %11246 = vmatprep.mubr.f32.mxu0 %v10859
  %11247 = vmatmul.mubr.f32.gmra.mxu0 %v10494
  %v11248 = vpop.f32.mrf.mxu0
  %v11249 = vadd.f32 %v10808, %v11248
  %v11250 = vpop.f32.mrf.mxu0
  %11251 = vmatprep.mubr.f32.mxu0 %v10862
  %11252 = vmatmul.mubr.f32.gmra.mxu0 %v10495
  %v11253 = vpop.f32.mrf.mxu0
  %v11254 = vadd.f32 %v10808, %v11253
  %v11255 = vpop.f32.mrf.mxu0
  %11256 = vmatprep.mubr.f32.mxu0 %v10865
  %11257 = vmatmul.mubr.f32.gmra.mxu0 %v10496
  %v11258 = vpop.f32.mrf.mxu0
  %v11259 = vadd.f32 %v10808, %v11258
  %v11260 = vpop.f32.mrf.mxu0
  %11261 = vmatprep.mubr.f32.mxu0 %v10868
  %11262 = vmatmul.mubr.f32.gmra.mxu0 %v10497
  %v11263 = vpop.f32.mrf.mxu0
  %v11264 = vpop.f32.mrf.mxu0
  %11265 = vmatprep.mubr.f32.mxu0 %v10871
  %11266 = vmatmul.mubr.f32.gmra.mxu0 %v10498
  %v11267 = vpop.f32.mrf.mxu0
  %v11268 = vpop.f32.mrf.mxu0
  %11269 = vmatprep.mubr.f32.mxu0 %v10874
  %11270 = vmatmul.mubr.f32.gmra.mxu0 %v10499
  %v11271 = vpop.f32.mrf.mxu0
  %v11272 = vadd.f32 %v10808, %v11271
  %v11273 = vpop.f32.mrf.mxu0
  %11274 = vmatprep.mubr.f32.mxu0 %v10877
  %11275 = vmatmul.mubr.f32.gmra.mxu0 %v10500
  %v11276 = vpop.f32.mrf.mxu0
  %v11277 = vadd.f32 %v10808, %v11276
  %v11278 = vpop.f32.mrf.mxu0
  %11279 = vmatprep.mubr.f32.mxu0 %v10880
  %11280 = vmatmul.mubr.f32.gmra.mxu0 %v10501
  %v11281 = vpop.f32.mrf.mxu0
  %v11282 = vadd.f32 %v10808, %v11281
  %v11283 = vpop.f32.mrf.mxu0
  %11284 = vmatprep.mubr.f32.mxu0 %v10883
  %11285 = vmatmul.mubr.f32.gmra.mxu0 %v10502
  %v11286 = vpop.f32.mrf.mxu0
  %v11287 = vadd.f32 %v10808, %v11286
  %v11288 = vpop.f32.mrf.mxu0
  %11289 = vmatprep.mubr.f32.mxu0 %v10886
  %11290 = vmatmul.mubr.f32.gmra.mxu0 %v10503
  %v11291 = vpop.f32.mrf.mxu0
  %v11292 = vadd.f32 %v10808, %v11291
  %v11293 = vpop.f32.mrf.mxu0
  %11294 = vmatprep.mubr.f32.mxu0 %v10889
  %11295 = vmatmul.mubr.f32.gmra.mxu0 %v10504
  %v11296 = vpop.f32.mrf.mxu0
  %v11297 = vadd.f32 %v10808, %v11296
  %v11298 = vpop.f32.mrf.mxu0
  %11299 = vmatprep.mubr.f32.mxu0 %v10892
  %11300 = vmatmul.mubr.f32.gmra.mxu0 %v10505
  %v11301 = vpop.f32.mrf.mxu0
  %v11302 = vadd.f32 %v10808, %v11301
  %v11303 = vpop.f32.mrf.mxu0
  %11304 = vmatprep.mubr.f32.mxu0 %v10895
  %11305 = vmatmul.mubr.f32.gmra.mxu0 %v10506
  %v11306 = vpop.f32.mrf.mxu0
  %v11307 = vadd.f32 %v10808, %v11306
  %v11308 = vpop.f32.mrf.mxu0
  %11309 = vmatprep.mubr.f32.mxu0 %v10898
  %11310 = vmatmul.mubr.f32.gmra.mxu0 %v10507
  %v11311 = vpop.f32.mrf.mxu0
  %v11312 = vpop.f32.mrf.mxu0
  %11313 = vmatprep.mubr.f32.mxu0 %v10901
  %11314 = vmatmul.mubr.f32.gmra.mxu0 %v10508
  %v11315 = vpop.f32.mrf.mxu0
  %v11316 = vpop.f32.mrf.mxu0
  %11317 = vmatprep.mubr.f32.mxu0 %v10904
  %11318 = vmatmul.mubr.f32.gmra.mxu0 %v10509
  %v11319 = vpop.f32.mrf.mxu0
  %v11320 = vadd.f32 %v10808, %v11319
  %v11321 = vpop.f32.mrf.mxu0
  %11322 = vmatprep.mubr.f32.mxu0 %v10907
  %11323 = vmatmul.mubr.f32.gmra.mxu0 %v10510
  %v11324 = vpop.f32.mrf.mxu0
  %v11325 = vadd.f32 %v10808, %v11324
  %v11326 = vpop.f32.mrf.mxu0
  %11327 = vmatprep.mubr.f32.mxu0 %v10910
  %11328 = vmatmul.mubr.f32.gmra.mxu0 %v10511
  %v11329 = vpop.f32.mrf.mxu0
  %v11330 = vadd.f32 %v10808, %v11329
  %v11331 = vpop.f32.mrf.mxu0
  %11332 = vmatprep.mubr.f32.mxu0 %v10913
  %11333 = vmatmul.mubr.f32.gmra.mxu0 %v10512
  %v11334 = vpop.f32.mrf.mxu0
  %v11335 = vadd.f32 %v10808, %v11334
  %v11336 = vpop.f32.mrf.mxu0
  %11337 = vmatprep.mubr.f32.mxu0 %v10916
  %11338 = vmatmul.mubr.f32.gmra.mxu0 %v10513
  %v11339 = vpop.f32.mrf.mxu0
  %v11340 = vadd.f32 %v10808, %v11339
  %v11341 = vpop.f32.mrf.mxu0
  %11342 = vmatprep.mubr.f32.mxu0 %v10919
  %11343 = vmatmul.mubr.f32.gmra.mxu0 %v10514
  %v11344 = vpop.f32.mrf.mxu0
  %v11345 = vadd.f32 %v10808, %v11344
  %v11346 = vpop.f32.mrf.mxu0
  %11347 = vmatprep.mubr.f32.mxu0 %v10922
  %11348 = vmatmul.mubr.f32.gmra.mxu0 %v10515
  %v11349 = vpop.f32.mrf.mxu0
  %v11350 = vadd.f32 %v10808, %v11349
  %v11351 = vpop.f32.mrf.mxu0
  %11352 = vmatprep.mubr.f32.mxu0 %v10925
  %11353 = vmatmul.mubr.f32.gmra.mxu0 %v10516
  %v11354 = vpop.f32.mrf.mxu0
  %v11355 = vadd.f32 %v10808, %v11354
  %v11356 = vpop.f32.mrf.mxu0
  %11357 = vmatprep.mubr.f32.mxu0 %v10928
  %11358 = vmatmul.mubr.f32.gmra.mxu0 %v10517
  %v11359 = vpop.f32.mrf.mxu0
  %v11360 = vpop.f32.mrf.mxu0
  %11361 = vmatprep.mubr.f32.mxu0 %v10931
  %11362 = vmatmul.mubr.f32.gmra.mxu0 %v10518
  %v11363 = vpop.f32.mrf.mxu0
  %v11364 = vpop.f32.mrf.mxu0
  %11365 = vmatprep.mubr.f32.mxu0 %v10934
  %11366 = vmatmul.mubr.f32.gmra.mxu0 %v10519
  %v11367 = vpop.f32.mrf.mxu0
  %v11368 = vadd.f32 %v10808, %v11367
  %v11369 = vpop.f32.mrf.mxu0
  %11370 = vmatprep.mubr.f32.mxu0 %v10937
  %11371 = vmatmul.mubr.f32.gmra.mxu0 %v10520
  %v11372 = vpop.f32.mrf.mxu0
  %v11373 = vadd.f32 %v10808, %v11372
  %v11374 = vpop.f32.mrf.mxu0
  %11375 = vmatprep.mubr.f32.mxu0 %v10940
  %11376 = vmatmul.mubr.f32.gmra.mxu0 %v10521
  %v11377 = vpop.f32.mrf.mxu0
  %v11378 = vadd.f32 %v10808, %v11377
  %v11379 = vpop.f32.mrf.mxu0
  %11380 = vmatprep.mubr.f32.mxu0 %v10943
  %11381 = vmatmul.mubr.f32.gmra.mxu0 %v10522
  %v11382 = vpop.f32.mrf.mxu0
  %v11383 = vadd.f32 %v10808, %v11382
  %v11384 = vpop.f32.mrf.mxu0
  %11385 = vmatprep.mubr.f32.mxu0 %v10946
  %11386 = vmatmul.mubr.f32.gmra.mxu0 %v10523
  %v11387 = vpop.f32.mrf.mxu0
  %v11388 = vadd.f32 %v10808, %v11387
  %v11389 = vpop.f32.mrf.mxu0
  %11390 = vmatprep.mubr.f32.mxu0 %v10949
  %11391 = vmatmul.mubr.f32.gmra.mxu0 %v10524
  %v11392 = vpop.f32.mrf.mxu0
  %v11393 = vadd.f32 %v10808, %v11392
  %v11394 = vpop.f32.mrf.mxu0
  %11395 = vmatprep.mubr.f32.mxu0 %v10952
  %11396 = vmatmul.mubr.f32.gmra.mxu0 %v10525
  %v11397 = vpop.f32.mrf.mxu0
  %v11398 = vadd.f32 %v10808, %v11397
  %v11399 = vpop.f32.mrf.mxu0
  %11400 = vmatprep.mubr.f32.mxu0 %v10955
  %11401 = vmatmul.mubr.f32.gmra.mxu0 %v10526
  %v11402 = vpop.f32.mrf.mxu0
  %v11403 = vadd.f32 %v10808, %v11402
  %v11404 = vpop.f32.mrf.mxu0
  %11405 = vmatprep.mubr.f32.mxu0 %v10958
  %11406 = vmatmul.mubr.f32.gmra.mxu0 %v10527
  %v11407 = vpop.f32.mrf.mxu0
  %v11408 = vpop.f32.mrf.mxu0
  %11409 = vmatprep.mubr.f32.mxu0 %v10961
  %11410 = vmatmul.mubr.f32.gmra.mxu0 %v10528
  %v11411 = vpop.f32.mrf.mxu0
  %v11412 = vpop.f32.mrf.mxu0
  %11413 = vmatprep.mubr.f32.mxu0 %v10964
  %11414 = vmatmul.mubr.f32.gmra.mxu0 %v10529
  %v11415 = vpop.f32.mrf.mxu0
  %v11416 = vadd.f32 %v10808, %v11415
  %v11417 = vpop.f32.mrf.mxu0
  %11418 = vmatprep.mubr.f32.mxu0 %v10967
  %11419 = vmatmul.mubr.f32.gmra.mxu0 %v10530
  %v11420 = vpop.f32.mrf.mxu0
  %v11421 = vadd.f32 %v10808, %v11420
  %v11422 = vpop.f32.mrf.mxu0
  %11423 = vmatprep.mubr.f32.mxu0 %v10970
  %11424 = vmatmul.mubr.f32.gmra.mxu0 %v10531
  %v11425 = vpop.f32.mrf.mxu0
  %v11426 = vadd.f32 %v10808, %v11425
  %v11427 = vpop.f32.mrf.mxu0
  %11428 = vmatprep.mubr.f32.mxu0 %v10973
  %11429 = vmatmul.mubr.f32.gmra.mxu0 %v10532
  %v11430 = vpop.f32.mrf.mxu0
  %v11431 = vadd.f32 %v10808, %v11430
  %v11432 = vpop.f32.mrf.mxu0
  %11433 = vmatprep.mubr.f32.mxu0 %v10976
  %11434 = vmatmul.mubr.f32.gmra.mxu0 %v10533
  %v11435 = vpop.f32.mrf.mxu0
  %v11436 = vadd.f32 %v10808, %v11435
  %v11437 = vpop.f32.mrf.mxu0
  %11438 = vmatprep.mubr.f32.mxu0 %v10979
  %11439 = vmatmul.mubr.f32.gmra.mxu0 %v10534
  %v11440 = vpop.f32.mrf.mxu0
  %v11441 = vadd.f32 %v10808, %v11440
  %v11442 = vpop.f32.mrf.mxu0
  %11443 = vmatprep.mubr.f32.mxu0 %v10982
  %11444 = vmatmul.mubr.f32.gmra.mxu0 %v10535
  %v11445 = vpop.f32.mrf.mxu0
  %v11446 = vadd.f32 %v10808, %v11445
  %v11447 = vpop.f32.mrf.mxu0
  %11448 = vmatprep.mubr.f32.mxu0 %v10985
  %11449 = vmatmul.mubr.f32.gmra.mxu0 %v10536
  %v11450 = vpop.f32.mrf.mxu0
  %v11451 = vadd.f32 %v10808, %v11450
  %v11452 = vpop.f32.mrf.mxu0
  %11453 = vmatprep.mubr.f32.mxu0 %v10988
  %11454 = vmatmul.mubr.f32.gmra.mxu0 %v10537
  %v11455 = vpop.f32.mrf.mxu0
  %v11456 = vpop.f32.mrf.mxu0
  %11457 = vmatprep.mubr.f32.mxu0 %v10991
  %11458 = vmatmul.mubr.f32.gmra.mxu0 %v10538
  %v11459 = vpop.f32.mrf.mxu0
  %v11460 = vpop.f32.mrf.mxu0
  %11461 = vmatprep.mubr.f32.mxu0 %v10994
  %11462 = vmatmul.mubr.f32.gmra.mxu0 %v10539
  %v11463 = vpop.f32.mrf.mxu0
  %v11464 = vadd.f32 %v10808, %v11463
  %v11465 = vpop.f32.mrf.mxu0
  %11466 = vmatprep.mubr.f32.mxu0 %v10997
  %11467 = vmatmul.mubr.f32.gmra.mxu0 %v10540
  %v11468 = vpop.f32.mrf.mxu0
  %v11469 = vadd.f32 %v10808, %v11468
  %v11470 = vpop.f32.mrf.mxu0
  %11471 = vmatprep.mubr.f32.mxu0 %v11000
  %11472 = vmatmul.mubr.f32.gmra.mxu0 %v10541
  %v11473 = vpop.f32.mrf.mxu0
  %v11474 = vadd.f32 %v10808, %v11473
  %v11475 = vpop.f32.mrf.mxu0
  %11476 = vmatprep.mubr.f32.mxu0 %v11003
  %11477 = vmatmul.mubr.f32.gmra.mxu0 %v10542
  %v11478 = vpop.f32.mrf.mxu0
  %v11479 = vadd.f32 %v10808, %v11478
  %v11480 = vpop.f32.mrf.mxu0
  %11481 = vmatprep.mubr.f32.mxu0 %v11006
  %11482 = vmatmul.mubr.f32.gmra.mxu0 %v10543
  %v11483 = vpop.f32.mrf.mxu0
  %v11484 = vadd.f32 %v10808, %v11483
  %v11485 = vpop.f32.mrf.mxu0
  %11486 = vmatprep.mubr.f32.mxu0 %v11009
  %11487 = vmatmul.mubr.f32.gmra.mxu0 %v10544
  %v11488 = vpop.f32.mrf.mxu0
  %v11489 = vadd.f32 %v10808, %v11488
  %v11490 = vpop.f32.mrf.mxu0
  %11491 = vmatprep.mubr.f32.mxu0 %v11012
  %11492 = vmatmul.mubr.f32.gmra.mxu0 %v10545
  %v11493 = vpop.f32.mrf.mxu0
  %v11494 = vadd.f32 %v10808, %v11493
  %v11495 = vpop.f32.mrf.mxu0
  %11496 = vmatprep.mubr.f32.mxu0 %v11015
  %11497 = vmatmul.mubr.f32.gmra.mxu0 %v10546
  %v11498 = vpop.f32.mrf.mxu0
  %v11499 = vadd.f32 %v10808, %v11498
  %v11500 = vpop.f32.mrf.mxu0
  %11501 = vmatprep.mubr.f32.mxu0 %v11018
  %11502 = vmatmul.mubr.f32.gmra.mxu0 %v10547
  %v11503 = vpop.f32.mrf.mxu0
  %v11504 = vpop.f32.mrf.mxu0
  %11505 = vmatprep.mubr.f32.mxu0 %v11021
  %11506 = vmatmul.mubr.f32.gmra.mxu0 %v10548
  %v11507 = vpop.f32.mrf.mxu0
  %v11508 = vpop.f32.mrf.mxu0
  %11509 = vmatprep.mubr.f32.mxu0 %v11024
  %11510 = vmatmul.mubr.f32.gmra.mxu0 %v10549
  %v11511 = vpop.f32.mrf.mxu0
  %v11512 = vadd.f32 %v10808, %v11511
  %v11513 = vpop.f32.mrf.mxu0
  %11514 = vmatprep.mubr.f32.mxu0 %v11027
  %11515 = vmatmul.mubr.f32.gmra.mxu0 %v10550
  %v11516 = vpop.f32.mrf.mxu0
  %v11517 = vadd.f32 %v10808, %v11516
  %v11518 = vpop.f32.mrf.mxu0
  %11519 = vmatprep.mubr.f32.mxu0 %v11030
  %11520 = vmatmul.mubr.f32.gmra.mxu0 %v10551
  %v11521 = vpop.f32.mrf.mxu0
  %v11522 = vadd.f32 %v10808, %v11521
  %v11523 = vpop.f32.mrf.mxu0
  %11524 = vmatprep.mubr.f32.mxu0 %v11033
  %11525 = vmatmul.mubr.f32.gmra.mxu0 %v10552
  %v11526 = vpop.f32.mrf.mxu0
  %v11527 = vadd.f32 %v10808, %v11526
  %v11528 = vpop.f32.mrf.mxu0
  %11529 = vmatprep.mubr.f32.mxu0 %v11036
  %11530 = vmatmul.mubr.f32.gmra.mxu0 %v10553
  %v11531 = vpop.f32.mrf.mxu0
  %v11532 = vadd.f32 %v10808, %v11531
  %v11533 = vpop.f32.mrf.mxu0
  %11534 = vmatprep.mubr.f32.mxu0 %v11039
  %11535 = vmatmul.mubr.f32.gmra.mxu0 %v10554
  %v11536 = vpop.f32.mrf.mxu0
  %v11537 = vadd.f32 %v10808, %v11536
  %v11538 = vpop.f32.mrf.mxu0
  %11539 = vmatprep.mubr.f32.mxu0 %v11042
  %11540 = vmatmul.mubr.f32.gmra.mxu0 %v10555
  %v11541 = vpop.f32.mrf.mxu0
  %v11542 = vadd.f32 %v10808, %v11541
  %v11543 = vpop.f32.mrf.mxu0
  %11544 = vmatprep.mubr.f32.mxu0 %v11045
  %11545 = vmatmul.mubr.f32.gmra.mxu0 %v10556
  %v11546 = vpop.f32.mrf.mxu0
  %v11547 = vadd.f32 %v10808, %v11546
  %v11548 = vpop.f32.mrf.mxu0
  %11549 = vmatprep.mubr.f32.mxu0 %v11048
  %11550 = vmatmul.mubr.f32.gmra.mxu0 %v10557
  %v11551 = vpop.f32.mrf.mxu0
  %v11552 = vpop.f32.mrf.mxu0
  %11553 = vmatprep.mubr.f32.mxu0 %v11051
  %11554 = vmatmul.mubr.f32.gmra.mxu0 %v10558
  %v11555 = vpop.f32.mrf.mxu0
  %v11556 = vpop.f32.mrf.mxu0
  %11557 = vmatprep.mubr.f32.mxu0 %v11054
  %11558 = vmatmul.mubr.f32.gmra.mxu0 %v10559
  %v11559 = vpop.f32.mrf.mxu0
  %v11560 = vpop.f32.mrf.mxu0
  %11561 = vmatprep.mubr.f32.mxu0 %v11057
  %11562 = vmatmul.mubr.f32.gmra.mxu0 %v10560
  %v11563 = vpop.f32.mrf.mxu0
  %v11564 = vpop.f32.mrf.mxu0
  %11565 = vmatprep.mubr.f32.mxu0 %v11060
  %11566 = vmatmul.mubr.f32.gmra.mxu0 %v10561
  %v11567 = vpop.f32.mrf.mxu0
  %v11568 = vpop.f32.mrf.mxu0
  %11569 = vmatprep.mubr.f32.mxu0 %v11063
  %11570 = vmatmul.mubr.f32.gmra.mxu0 %v10562
  %v11571 = vpop.f32.mrf.mxu0
  %v11572 = vpop.f32.mrf.mxu0
  %11573 = vmatprep.mubr.f32.mxu0 %v11066
  %11574 = vmatmul.mubr.f32.gmra.mxu0 %v10563
  %v11575 = vpop.f32.mrf.mxu0
  %v11576 = vpop.f32.mrf.mxu0
  %11577 = vmatprep.mubr.f32.mxu0 %v11069
  %11578 = vmatmul.mubr.f32.gmra.mxu0 %v10564
  %v11579 = vpop.f32.mrf.mxu0
  %v11580 = vpop.f32.mrf.mxu0
  %11581 = vmatprep.mubr.f32.mxu0 %v11072
  %11582 = vmatmul.mubr.f32.gmra.mxu0 %v10565
  %v11583 = vpop.f32.mrf.mxu0
  %v11584 = vpop.f32.mrf.mxu0
  %11585 = vmatprep.mubr.f32.mxu0 %v11075
  %11586 = vmatmul.mubr.f32.gmra.mxu0 %v10566
  %v11587 = vpop.f32.mrf.mxu0
  %v11588 = vpop.f32.mrf.mxu0
  %11589 = vmatprep.mubr.f32.mxu0 %v11078
  %11590 = vmatmul.mubr.f32.gmra.mxu0 %v10567
  %v11591 = vpop.f32.mrf.mxu0
  %v11592 = vpop.f32.mrf.mxu0
  %11593 = vmatprep.mubr.f32.mxu0 %v11081
  %11594 = vmatmul.mubr.f32.gmra.mxu0 %v10568
  %v11595 = vpop.f32.mrf.mxu0
  %v11596 = vpop.f32.mrf.mxu0
  %11597 = vmatprep.mubr.f32.mxu0 %v11084
  %11598 = vmatmul.mubr.f32.gmra.mxu0 %v10569
  %v11599 = vpop.f32.mrf.mxu0
  %v11600 = vpop.f32.mrf.mxu0
  %11601 = vmatprep.mubr.f32.mxu0 %v11087
  %11602 = vmatmul.mubr.f32.gmra.mxu0 %v10570
  %v11603 = vpop.f32.mrf.mxu0
  %v11604 = vpop.f32.mrf.mxu0
  %11605 = vmatprep.mubr.f32.mxu0 %v11090
  %11606 = vmatmul.mubr.f32.gmra.mxu0 %v10571
  %v11607 = vpop.f32.mrf.mxu0
  %v11608 = vpop.f32.mrf.mxu0
  %11609 = vmatprep.mubr.f32.mxu0 %v11093
  %11610 = vmatmul.mubr.f32.gmra.mxu0 %v10572
  %v11611 = vpop.f32.mrf.mxu0
  %v11612 = vpop.f32.mrf.mxu0
  %11613 = vmatprep.mubr.f32.mxu0 %v11096
  %11614 = vmatmul.mubr.f32.gmra.mxu0 %v10573
  %v11615 = vpop.f32.mrf.mxu0
  %v11616 = vpop.f32.mrf.mxu0
  %11617 = vmatprep.mubr.f32.mxu0 %v11099
  %11618 = vmatmul.mubr.f32.gmra.mxu0 %v10574
  %v11619 = vpop.f32.mrf.mxu0
  %v11620 = vpop.f32.mrf.mxu0
  %11621 = vmatprep.mubr.f32.mxu0 %v11102
  %11622 = vmatmul.mubr.f32.gmra.mxu0 %v10575
  %v11623 = vpop.f32.mrf.mxu0
  %v11624 = vpop.f32.mrf.mxu0
  %11625 = vmatprep.mubr.f32.mxu0 %v11105
  %11626 = vmatmul.mubr.f32.gmra.mxu0 %v10576
  %v11627 = vpop.f32.mrf.mxu0
  %v11628 = vpop.f32.mrf.mxu0
  %11629 = vmatprep.mubr.f32.mxu0 %v11108
  %11630 = vmatmul.mubr.f32.gmra.mxu0 %v10577
  %v11631 = vpop.f32.mrf.mxu0
  %v11632 = vpop.f32.mrf.mxu0
  %11633 = vdwg.mxu0
  %v11634 = vmax.f32 %v11224, 0.0
  %v11635 = vmax.f32 %v11229, 0.0
  %v11636 = vmax.f32 %v11234, 0.0
  %v11637 = vmax.f32 %v11239, 0.0
  %v11638 = vmax.f32 %v11244, 0.0
  %v11639 = vmax.f32 %v11249, 0.0
  %v11640 = vmax.f32 %v11254, 0.0
  %v11641 = vmax.f32 %v11259, 0.0
  %v11642 = vmax.f32 %v11272, 0.0
  %v11643 = vmax.f32 %v11277, 0.0
  %v11644 = vmax.f32 %v11282, 0.0
  %v11645 = vmax.f32 %v11287, 0.0
  %v11646 = vmax.f32 %v11292, 0.0
  %v11647 = vmax.f32 %v11297, 0.0
  %v11648 = vmax.f32 %v11302, 0.0
  %v11649 = vmax.f32 %v11307, 0.0
  %v11650 = vmax.f32 %v11320, 0.0
  %v11651 = vmax.f32 %v11325, 0.0
  %v11652 = vmax.f32 %v11330, 0.0
  %v11653 = vmax.f32 %v11335, 0.0
  %v11654 = vmax.f32 %v11340, 0.0
  %v11655 = vmax.f32 %v11345, 0.0
  %v11656 = vmax.f32 %v11350, 0.0
  %v11657 = vmax.f32 %v11355, 0.0
  %v11658 = vmax.f32 %v11368, 0.0
  %v11659 = vmax.f32 %v11373, 0.0
  %v11660 = vmax.f32 %v11378, 0.0
  %v11661 = vmax.f32 %v11383, 0.0
  %v11662 = vmax.f32 %v11388, 0.0
  %v11663 = vmax.f32 %v11393, 0.0
  %v11664 = vmax.f32 %v11398, 0.0
  %v11665 = vmax.f32 %v11403, 0.0
  %v11666 = vmax.f32 %v11416, 0.0
  %v11667 = vmax.f32 %v11421, 0.0
  %v11668 = vmax.f32 %v11426, 0.0
  %v11669 = vmax.f32 %v11431, 0.0
  %v11670 = vmax.f32 %v11436, 0.0
  %v11671 = vmax.f32 %v11441, 0.0
  %v11672 = vmax.f32 %v11446, 0.0
  %v11673 = vmax.f32 %v11451, 0.0
  %v11674 = vmax.f32 %v11464, 0.0
  %v11675 = vmax.f32 %v11469, 0.0
  %v11676 = vmax.f32 %v11474, 0.0
  %v11677 = vmax.f32 %v11479, 0.0
  %v11678 = vmax.f32 %v11484, 0.0
  %v11679 = vmax.f32 %v11489, 0.0
  %v11680 = vmax.f32 %v11494, 0.0
  %v11681 = vmax.f32 %v11499, 0.0
  %v11682 = vmax.f32 %v11512, 0.0
  %v11683 = vmax.f32 %v11517, 0.0
  %v11684 = vmax.f32 %v11522, 0.0
  %v11685 = vmax.f32 %v11527, 0.0
  %v11686 = vmax.f32 %v11532, 0.0
  %v11687 = vmax.f32 %v11537, 0.0
  %v11688 = vmax.f32 %v11542, 0.0
  %v11689 = vmax.f32 %v11547, 0.0
  %11691 = vrot.lane.b32.xlu0 %v11635, 12
  %v11692 = vpop.permute.xlu0 %11691
  %11695 = vrot.lane.b32.xlu0 %v11636, 24
  %v11696 = vpop.permute.xlu0 %11695
  %11699 = vrot.lane.b32.xlu0 %v11637, 36
  %v11700 = vpop.permute.xlu0 %11699
  %11703 = vrot.lane.b32.xlu0 %v11638, 48
  %v11704 = vpop.permute.xlu0 %11703
  %11707 = vrot.lane.b32.xlu0 %v11639, 60
  %v11708 = vpop.permute.xlu0 %11707
  %11711 = vrot.lane.b32.xlu0 %v11640, 72
  %v11712 = vpop.permute.xlu0 %11711
  %11715 = vrot.lane.b32.xlu0 %v11641, 84
  %v11716 = vpop.permute.xlu0 %11715
  %11719 = vrot.lane.b32.xlu0 %v11642, 96
  %v11720 = vpop.permute.xlu0 %11719
  %11723 = vrot.lane.b32.xlu0 %v11643, 108
  %v11724 = vpop.permute.xlu0 %11723
  %11727 = vrot.lane.b32.xlu0 %v11644, 120
  %v11728 = vpop.permute.xlu0 %11727
  %11731 = vrot.lane.b32.xlu0 %v11645, 4
  %v11732 = vpop.permute.xlu0 %11731
  %11735 = vrot.lane.b32.xlu0 %v11646, 16
  %v11736 = vpop.permute.xlu0 %11735
  %11739 = vrot.lane.b32.xlu0 %v11647, 28
  %v11740 = vpop.permute.xlu0 %11739
  %11743 = vrot.lane.b32.xlu0 %v11648, 40
  %v11744 = vpop.permute.xlu0 %11743
  %11747 = vrot.lane.b32.xlu0 %v11649, 52
  %v11748 = vpop.permute.xlu0 %11747
  %v11750 = vsel %vm10578, %v11634, %v11692
  %vm11751 = vcmask 195584
  %v11752 = vsel %vm11751, %v11750, %v11696
  %v11753 = vsel %vm153, %v11752, %v11700
  %vm11754 = vcmask 392192
  %v11755 = vsel %vm11754, %v11753, %v11704
  %v11756 = vsel %vm5013, %v11755, %v11708
  %vm11757 = vcmask 588800
  %v11758 = vsel %vm11757, %v11756, %v11712
  %vm11759 = vcmask 687104
  %v11760 = vsel %vm11759, %v11758, %v11716
  %vm11761 = vcmask 785408
  %v11762 = vsel %vm11761, %v11760, %v11720
  %vm11763 = vcmask 883712
  %v11764 = vsel %vm11763, %v11762, %v11724
  %v11765 = vsel %vm1145, %v11764, %v11728
  %vm11766 = vcmask 31744
  %v11767 = vsel %vm11766, %v11728, %v11732
  %vm11768 = vcmask 130048
  %v11769 = vsel %vm11768, %v11767, %v11736
  %vm11770 = vcmask 228352
  %v11771 = vsel %vm11770, %v11769, %v11740
  %v11772 = vsel %vm10075, %v11771, %v11744
  %v11773 = vsel %vm5416, %v11772, %v11748
  %11775 = vrot.lane.b32.xlu0 %v11651, 12
  %v11776 = vpop.permute.xlu0 %11775
  %11779 = vrot.lane.b32.xlu0 %v11652, 24
  %v11780 = vpop.permute.xlu0 %11779
  %11783 = vrot.lane.b32.xlu0 %v11653, 36
  %v11784 = vpop.permute.xlu0 %11783
  %11787 = vrot.lane.b32.xlu0 %v11654, 48
  %v11788 = vpop.permute.xlu0 %11787
  %11791 = vrot.lane.b32.xlu0 %v11655, 60
  %v11792 = vpop.permute.xlu0 %11791
  %11795 = vrot.lane.b32.xlu0 %v11656, 72
  %v11796 = vpop.permute.xlu0 %11795
  %11799 = vrot.lane.b32.xlu0 %v11657, 84
  %v11800 = vpop.permute.xlu0 %11799
  %11803 = vrot.lane.b32.xlu0 %v11658, 96
  %v11804 = vpop.permute.xlu0 %11803
  %11807 = vrot.lane.b32.xlu0 %v11659, 108
  %v11808 = vpop.permute.xlu0 %11807
  %11811 = vrot.lane.b32.xlu0 %v11660, 120
  %v11812 = vpop.permute.xlu0 %11811
  %11815 = vrot.lane.b32.xlu0 %v11661, 4
  %v11816 = vpop.permute.xlu0 %11815
  %11819 = vrot.lane.b32.xlu0 %v11662, 16
  %v11820 = vpop.permute.xlu0 %11819
  %11823 = vrot.lane.b32.xlu0 %v11663, 28
  %v11824 = vpop.permute.xlu0 %11823
  %11827 = vrot.lane.b32.xlu0 %v11664, 40
  %v11828 = vpop.permute.xlu0 %11827
  %11831 = vrot.lane.b32.xlu0 %v11665, 52
  %v11832 = vpop.permute.xlu0 %11831
  %v11834 = vsel %vm10578, %v11650, %v11776
  %v11835 = vsel %vm11751, %v11834, %v11780
  %v11836 = vsel %vm153, %v11835, %v11784
  %v11837 = vsel %vm11754, %v11836, %v11788
  %v11838 = vsel %vm5013, %v11837, %v11792
  %v11839 = vsel %vm11757, %v11838, %v11796
  %v11840 = vsel %vm11759, %v11839, %v11800
  %v11841 = vsel %vm11761, %v11840, %v11804
  %v11842 = vsel %vm11763, %v11841, %v11808
  %v11843 = vsel %vm1145, %v11842, %v11812
  %v11844 = vsel %vm11766, %v11812, %v11816
  %v11845 = vsel %vm11768, %v11844, %v11820
  %v11846 = vsel %vm11770, %v11845, %v11824
  %v11847 = vsel %vm10075, %v11846, %v11828
  %v11848 = vsel %vm5416, %v11847, %v11832
  %11850 = vrot.lane.b32.xlu0 %v11667, 12
  %v11851 = vpop.permute.xlu0 %11850
  %11854 = vrot.lane.b32.xlu0 %v11668, 24
  %v11855 = vpop.permute.xlu0 %11854
  %11858 = vrot.lane.b32.xlu0 %v11669, 36
  %v11859 = vpop.permute.xlu0 %11858
  %11862 = vrot.lane.b32.xlu0 %v11670, 48
  %v11863 = vpop.permute.xlu0 %11862
  %11866 = vrot.lane.b32.xlu0 %v11671, 60
  %v11867 = vpop.permute.xlu0 %11866
  %11870 = vrot.lane.b32.xlu0 %v11672, 72
  %v11871 = vpop.permute.xlu0 %11870
  %11874 = vrot.lane.b32.xlu0 %v11673, 84
  %v11875 = vpop.permute.xlu0 %11874
  %11878 = vrot.lane.b32.xlu0 %v11674, 96
  %v11879 = vpop.permute.xlu0 %11878
  %11882 = vrot.lane.b32.xlu0 %v11675, 108
  %v11883 = vpop.permute.xlu0 %11882
  %11886 = vrot.lane.b32.xlu0 %v11676, 120
  %v11887 = vpop.permute.xlu0 %11886
  %11890 = vrot.lane.b32.xlu0 %v11677, 4
  %v11891 = vpop.permute.xlu0 %11890
  %11894 = vrot.lane.b32.xlu0 %v11678, 16
  %v11895 = vpop.permute.xlu0 %11894
  %11898 = vrot.lane.b32.xlu0 %v11679, 28
  %v11899 = vpop.permute.xlu0 %11898
  %11902 = vrot.lane.b32.xlu0 %v11680, 40
  %v11903 = vpop.permute.xlu0 %11902
  %11906 = vrot.lane.b32.xlu0 %v11681, 52
  %v11907 = vpop.permute.xlu0 %11906
  %v11909 = vsel %vm10578, %v11666, %v11851
  %v11910 = vsel %vm11751, %v11909, %v11855
  %v11911 = vsel %vm153, %v11910, %v11859
  %v11912 = vsel %vm11754, %v11911, %v11863
  %v11913 = vsel %vm5013, %v11912, %v11867
  %v11914 = vsel %vm11757, %v11913, %v11871
  %v11915 = vsel %vm11759, %v11914, %v11875
  %v11916 = vsel %vm11761, %v11915, %v11879
  %v11917 = vsel %vm11763, %v11916, %v11883
  %v11918 = vsel %vm1145, %v11917, %v11887
  %v11919 = vsel %vm11766, %v11887, %v11891
  %v11920 = vsel %vm11768, %v11919, %v11895
  %v11921 = vsel %vm11770, %v11920, %v11899
  %v11922 = vsel %vm10075, %v11921, %v11903
  %v11923 = vsel %vm5416, %v11922, %v11907
  %11925 = vrot.lane.b32.xlu0 %v11683, 12
  %v11926 = vpop.permute.xlu0 %11925
  %11929 = vrot.lane.b32.xlu0 %v11684, 24
  %v11930 = vpop.permute.xlu0 %11929
  %11933 = vrot.lane.b32.xlu0 %v11685, 36
  %v11934 = vpop.permute.xlu0 %11933
  %11937 = vrot.lane.b32.xlu0 %v11686, 48
  %v11938 = vpop.permute.xlu0 %11937
  %11941 = vrot.lane.b32.xlu0 %v11687, 60
  %v11942 = vpop.permute.xlu0 %11941
  %11945 = vrot.lane.b32.xlu0 %v11688, 72
  %v11946 = vpop.permute.xlu0 %11945
  %11949 = vrot.lane.b32.xlu0 %v11689, 84
  %v11950 = vpop.permute.xlu0 %11949
  %v11952 = vsel %vm10578, %v11682, %v11926
  %v11953 = vsel %vm11751, %v11952, %v11930
  %v11954 = vsel %vm153, %v11953, %v11934
  %v11955 = vsel %vm11754, %v11954, %v11938
  %v11956 = vsel %vm5013, %v11955, %v11942
  %v11957 = vsel %vm11757, %v11956, %v11946
  %v11958 = vsel %vm11759, %v11957, %v11950
  %11961 = vrot.lane.b32.xlu0 %v11843, 64
  %v11962 = vpop.permute.xlu0 %11961
  %11963 = vrot.lane.b32.xlu0 %v11848, 64
  %v11964 = vpop.permute.xlu0 %11963
  %vm11965 = vcmask 523264
  %v11966 = vsel %vm11965, %v11962, %v11964
  %11970 = vrot.lane.b32.xlu0 %v11958, 64
  %v11971 = vpop.permute.xlu0 %11970
  %v11973 = vsel %vm11965, %v11773, %v11962
  %v11974 = vsel %vm11965, %v11923, %v11971
  %v11975 = vld [vmem:[%s9] sm:$0xff]
  %v11976 = vld [vmem:[%s9 + $0x8] sm:$0xff]
  %v11977 = vld [vmem:[%s9 + $0x10] sm:$0xff]
  %v11978 = vld [vmem:[%s9 + $0x18] sm:$0xff]
  %v11979 = vld [vmem:[%s9 + $0x20] sm:$0xff]
  %v11980 = vld [vmem:[%s9 + $0x28] sm:$0xff]
  %v11981 = vld [vmem:[%s9 + $0x30] sm:$0xff]
  %v11982 = vld [vmem:[%s9 + $0x38] sm:$0xff]
  %v11983 = vld [vmem:[%s9 + $0x40] sm:$0xff]
  %v11984 = vld [vmem:[%s9 + $0x48] sm:$0xff]
  %v11985 = vld [vmem:[%s9 + $0x50] sm:$0xff]
  %v11986 = vld [vmem:[%s9 + $0x58] sm:$0xff]
  %v11987 = vld [vmem:[%s9 + $0x60] sm:$0xff]
  %v11988 = vld [vmem:[%s9 + $0x68] sm:$0xff]
  %v11989 = vld [vmem:[%s9 + $0x70] sm:$0xff]
  %v11990 = vld [vmem:[%s9 + $0x78] sm:$0xff]
  %v11991 = vld [vmem:[%s9 + $0x80] sm:$0xff]
  %v11992 = vld [vmem:[%s9 + $0x88] sm:$0xff]
  %v11993 = vld [vmem:[%s9 + $0x90] sm:$0xff]
  %v11994 = vld [vmem:[%s9 + $0x98] sm:$0xff]
  %v11995 = vld [vmem:[%s9 + $0xa0] sm:$0xff]
  %v11996 = vld [vmem:[%s9 + $0xa8] sm:$0xff]
  %v11997 = vld [vmem:[%s9 + $0xb0] sm:$0xff]
  %v11998 = vld [vmem:[%s9 + $0xb8] sm:$0xff]
  %v11999 = vld [vmem:[%s9 + $0xc0] sm:$0xff]
  %v12000 = vld [vmem:[%s9 + $0xc8] sm:$0xff]
  %v12001 = vld [vmem:[%s9 + $0xd0] sm:$0xff]
  %v12002 = vld [vmem:[%s9 + $0xd8] sm:$0xff]
  %v12003 = vld [vmem:[%s9 + $0xe0] sm:$0xff]
  %v12004 = vld [vmem:[%s9 + $0xe8] sm:$0xff]
  %v12005 = vld [vmem:[%s9 + $0xf0] sm:$0xff]
  %v12006 = vld [vmem:[%s9 + $0xf8] sm:$0xff]
  %v12007 = vld [vmem:[%s9 + $0x100] sm:$0xff]
  %v12008 = vld [vmem:[%s9 + $0x108] sm:$0xff]
  %v12009 = vld [vmem:[%s9 + $0x110] sm:$0xff]
  %v12010 = vld [vmem:[%s9 + $0x118] sm:$0xff]
  %v12011 = vld [vmem:[%s9 + $0x120] sm:$0xff]
  %v12012 = vld [vmem:[%s9 + $0x128] sm:$0xff]
  %v12013 = vld [vmem:[%s9 + $0x130] sm:$0xff]
  %v12014 = vld [vmem:[%s9 + $0x138] sm:$0xff]
  %v12015 = vld [vmem:[%s9 + $0x140] sm:$0xff]
  %v12016 = vld [vmem:[%s9 + $0x148] sm:$0xff]
  %v12017 = vld [vmem:[%s9 + $0x150] sm:$0xff]
  %v12018 = vld [vmem:[%s9 + $0x158] sm:$0xff]
  %v12019 = vld [vmem:[%s9 + $0x160] sm:$0xff]
  %v12020 = vld [vmem:[%s9 + $0x168] sm:$0xff]
  %v12021 = vld [vmem:[%s9 + $0x170] sm:$0xff]
  %v12022 = vld [vmem:[%s9 + $0x178] sm:$0xff]
  %v12023 = vld [vmem:[%s9 + $0x180] sm:$0xff]
  %v12024 = vld [vmem:[%s9 + $0x188] sm:$0xff]
  %v12025 = vld [vmem:[%s9 + $0x190] sm:$0xff]
  %v12026 = vld [vmem:[%s9 + $0x198] sm:$0xff]
  %v12027 = vld [vmem:[%s9 + $0x1a0] sm:$0xff]
  %v12028 = vld [vmem:[%s9 + $0x1a8] sm:$0xff]
  %v12029 = vld [vmem:[%s9 + $0x1b0] sm:$0xff]
  %v12030 = vld [vmem:[%s9 + $0x1b8] sm:$0xff]
  %v12031 = vld [vmem:[%s9 + $0x1c0] sm:$0xff]
  %v12032 = vld [vmem:[%s9 + $0x1c8] sm:$0xff]
  %v12033 = vld [vmem:[%s9 + $0x1d0] sm:$0xff]
  %v12034 = vld [vmem:[%s9 + $0x1d8] sm:$0xff]
  %v12035 = vld [vmem:[%s9 + $0x1e0] sm:$0xff]
  %v12036 = vld [vmem:[%s9 + $0x1e8] sm:$0xff]
  %v12037 = vld [vmem:[%s9 + $0x1f0] sm:$0xff]
  %v12038 = vld [vmem:[%s9 + $0x1f8] sm:$0xff]
  %v12039 = vld [vmem:[%s9 + $0x200] sm:$0xff]
  %v12040 = vld [vmem:[%s9 + $0x208] sm:$0xff]
  %v12041 = vld [vmem:[%s9 + $0x210] sm:$0xff]
  %v12042 = vld [vmem:[%s9 + $0x218] sm:$0xff]
  %v12043 = vld [vmem:[%s9 + $0x220] sm:$0xff]
  %v12044 = vld [vmem:[%s9 + $0x228] sm:$0xff]
  %v12045 = vld [vmem:[%s9 + $0x230] sm:$0xff]
  %v12046 = vld [vmem:[%s9 + $0x238] sm:$0xff]
  %v12047 = vld [vmem:[%s9 + $0x240] sm:$0xff]
  %v12048 = vld [vmem:[%s9 + $0x248] sm:$0xff]
  %v12049 = vld [vmem:[%s9 + $0x250] sm:$0xff]
  %v12050 = vld [vmem:[%s9 + $0x258] sm:$0xff]
  %v12051 = vld [vmem:[%s9 + $0x260] sm:$0xff]
  %v12052 = vld [vmem:[%s9 + $0x268] sm:$0xff]
  %v12053 = vld [vmem:[%s9 + $0x270] sm:$0xff]
  %v12054 = vld [vmem:[%s9 + $0x278] sm:$0xff]
  %v12055 = vld [vmem:[%s9 + $0x280] sm:$0xff]
  %v12056 = vld [vmem:[%s9 + $0x288] sm:$0xff]
  %v12057 = vld [vmem:[%s9 + $0x290] sm:$0xff]
  %v12058 = vld [vmem:[%s9 + $0x298] sm:$0xff]
  %v12059 = vld [vmem:[%s10] sm:$0x1]
  %v12061 = vlaneseq
  %v12062 = vshrl.u32 %v12061, 7
  %v12063 = vsub.s32 0, %v12062
  %v12064 = vrot.slane %v12059, %v12063
  %v12066 = vsel %vm10679, %v11971, 0
  %12068 = vmatprep.subr.mxu0 0.0
  %12069 = vmatpush1.msra.mxu0 %v11990
  %12070 = vmatprep.subr.mxu0 0.0
  %12071 = vmatpush1.msra.mxu0 %v11989
  %12072 = vmatprep.subr.mxu0 0.0
  %12073 = vmatpush1.msra.mxu0 %v11988
  %12074 = vmatprep.subr.mxu0 0.0
  %12075 = vmatpush1.msra.mxu0 %v11987
  %12076 = vmatprep.subr.mxu0 0.0
  %12077 = vmatpush1.msra.mxu0 %v11986
  %12078 = vmatprep.subr.mxu0 0.0
  %12079 = vmatpush1.msra.mxu0 %v11985
  %12080 = vmatprep.subr.mxu0 0.0
  %12081 = vmatpush1.msra.mxu0 %v11984
  %12082 = vmatprep.subr.mxu0 0.0
  %12083 = vmatpush1.msra.mxu0 %v11983
  %12084 = vmatprep.subr.mxu0 0.0
  %12085 = vmatpush1.msra.mxu0 %v11982
  %12086 = vmatprep.subr.mxu0 0.0
  %12087 = vmatpush1.msra.mxu0 %v11981
  %12088 = vmatprep.subr.mxu0 0.0
  %12089 = vmatpush1.msra.mxu0 %v11980
  %12090 = vmatprep.subr.mxu0 0.0
  %12091 = vmatpush1.msra.mxu0 %v11979
  %12092 = vmatprep.subr.mxu0 0.0
  %12093 = vmatpush1.msra.mxu0 %v11978
  %12094 = vmatprep.subr.mxu0 0.0
  %12095 = vmatpush1.msra.mxu0 %v11977
  %12096 = vmatprep.subr.mxu0 0.0
  %12097 = vmatpush1.msra.mxu0 %v11976
  %12098 = vmatprep.subr.mxu0 0.0
  %12099 = vmatpush1.msra.mxu0 %v11975
  %12100 = vmatprep.subr.mxu0 0.0
  %12101 = vmatpush2.msra.mxu0 %v12006
  %12102 = vmatprep.subr.mxu0 0.0
  %12103 = vmatpush2.msra.mxu0 %v12005
  %12104 = vmatprep.subr.mxu0 0.0
  %12105 = vmatpush2.msra.mxu0 %v12004
  %12106 = vmatprep.subr.mxu0 0.0
  %12107 = vmatpush2.msra.mxu0 %v12003
  %12108 = vmatprep.subr.mxu0 0.0
  %12109 = vmatpush2.msra.mxu0 %v12002
  %12110 = vmatprep.subr.mxu0 0.0
  %12111 = vmatpush2.msra.mxu0 %v12001
  %12112 = vmatprep.subr.mxu0 0.0
  %12113 = vmatpush2.msra.mxu0 %v12000
  %12114 = vmatprep.subr.mxu0 0.0
  %12115 = vmatpush2.msra.mxu0 %v11999
  %12116 = vmatprep.subr.mxu0 0.0
  %12117 = vmatpush2.msra.mxu0 %v11998
  %12118 = vmatprep.subr.mxu0 0.0
  %12119 = vmatpush2.msra.mxu0 %v11997
  %12120 = vmatprep.subr.mxu0 0.0
  %12121 = vmatpush2.msra.mxu0 %v11996
  %12122 = vmatprep.subr.mxu0 0.0
  %12123 = vmatpush2.msra.mxu0 %v11995
  %12124 = vmatprep.subr.mxu0 0.0
  %12125 = vmatpush2.msra.mxu0 %v11994
  %12126 = vmatprep.subr.mxu0 0.0
  %12127 = vmatpush2.msra.mxu0 %v11993
  %12128 = vmatprep.subr.mxu0 0.0
  %12129 = vmatpush2.msra.mxu0 %v11992
  %12130 = vmatprep.subr.mxu0 0.0
  %12131 = vmatpush2.msra.mxu0 %v11991
  %12132 = vmatprep.mubr.f32.mxu0 %v11973
  %12133 = vmatmul.mubr.f32.gmra.mxu0 %v11765
  %v12134 = vpop.f32.mrf.mxu0
  %v12135 = vadd.f32 %v12064, %v12134
  %v12136 = vpop.f32.mrf.mxu0
  %12137 = vdwg.mxu0
  %12138 = vmatprep.subr.mxu0 0.0
  %12139 = vmatpush1.msra.mxu0 %v12022
  %12140 = vmatprep.subr.mxu0 0.0
  %12141 = vmatpush1.msra.mxu0 %v12021
  %12142 = vmatprep.subr.mxu0 0.0
  %12143 = vmatpush1.msra.mxu0 %v12020
  %12144 = vmatprep.subr.mxu0 0.0
  %12145 = vmatpush1.msra.mxu0 %v12019
  %12146 = vmatprep.subr.mxu0 0.0
  %12147 = vmatpush1.msra.mxu0 %v12018
  %12148 = vmatprep.subr.mxu0 0.0
  %12149 = vmatpush1.msra.mxu0 %v12017
  %12150 = vmatprep.subr.mxu0 0.0
  %12151 = vmatpush1.msra.mxu0 %v12016
  %12152 = vmatprep.subr.mxu0 0.0
  %12153 = vmatpush1.msra.mxu0 %v12015
  %12154 = vmatprep.subr.mxu0 0.0
  %12155 = vmatpush1.msra.mxu0 %v12014
  %12156 = vmatprep.subr.mxu0 0.0
  %12157 = vmatpush1.msra.mxu0 %v12013
  %12158 = vmatprep.subr.mxu0 0.0
  %12159 = vmatpush1.msra.mxu0 %v12012
  %12160 = vmatprep.subr.mxu0 0.0
  %12161 = vmatpush1.msra.mxu0 %v12011
  %12162 = vmatprep.subr.mxu0 0.0
  %12163 = vmatpush1.msra.mxu0 %v12010
  %12164 = vmatprep.subr.mxu0 0.0
  %12165 = vmatpush1.msra.mxu0 %v12009
  %12166 = vmatprep.subr.mxu0 0.0
  %12167 = vmatpush1.msra.mxu0 %v12008
  %12168 = vmatprep.subr.mxu0 0.0
  %12169 = vmatpush1.msra.mxu0 %v12007
  %12170 = vmatprep.subr.mxu0 0.0
  %12171 = vmatpush2.msra.mxu0 %v12038
  %12172 = vmatprep.subr.mxu0 0.0
  %12173 = vmatpush2.msra.mxu0 %v12037
  %12174 = vmatprep.subr.mxu0 0.0
  %12175 = vmatpush2.msra.mxu0 %v12036
  %12176 = vmatprep.subr.mxu0 0.0
  %12177 = vmatpush2.msra.mxu0 %v12035
  %12178 = vmatprep.subr.mxu0 0.0
  %12179 = vmatpush2.msra.mxu0 %v12034
  %12180 = vmatprep.subr.mxu0 0.0
  %12181 = vmatpush2.msra.mxu0 %v12033
  %12182 = vmatprep.subr.mxu0 0.0
  %12183 = vmatpush2.msra.mxu0 %v12032
  %12184 = vmatprep.subr.mxu0 0.0
  %12185 = vmatpush2.msra.mxu0 %v12031
  %12186 = vmatprep.subr.mxu0 0.0
  %12187 = vmatpush2.msra.mxu0 %v12030
  %12188 = vmatprep.subr.mxu0 0.0
  %12189 = vmatpush2.msra.mxu0 %v12029
  %12190 = vmatprep.subr.mxu0 0.0
  %12191 = vmatpush2.msra.mxu0 %v12028
  %12192 = vmatprep.subr.mxu0 0.0
  %12193 = vmatpush2.msra.mxu0 %v12027
  %12194 = vmatprep.subr.mxu0 0.0
  %12195 = vmatpush2.msra.mxu0 %v12026
  %12196 = vmatprep.subr.mxu0 0.0
  %12197 = vmatpush2.msra.mxu0 %v12025
  %12198 = vmatprep.subr.mxu0 0.0
  %12199 = vmatpush2.msra.mxu0 %v12024
  %12200 = vmatprep.subr.mxu0 0.0
  %12201 = vmatpush2.msra.mxu0 %v12023
  %12202 = vmatprep.mubr.f32.mxu0 %v11918
  %12203 = vmatmul.mubr.f32.gmra.mxu0 %v11966
  %v12204 = vpop.f32.mrf.mxu0
  %v12205 = vadd.f32 %v12135, %v12204
  %v12206 = vpop.f32.mrf.mxu0
  %12207 = vdwg.mxu0
  %12208 = vmatprep.subr.mxu0 0.0
  %12209 = vmatpush1.msra.mxu0 %v12054
  %12210 = vmatprep.subr.mxu0 0.0
  %12211 = vmatpush1.msra.mxu0 %v12053
  %12212 = vmatprep.subr.mxu0 0.0
  %12213 = vmatpush1.msra.mxu0 %v12052
  %12214 = vmatprep.subr.mxu0 0.0
  %12215 = vmatpush1.msra.mxu0 %v12051
  %12216 = vmatprep.subr.mxu0 0.0
  %12217 = vmatpush1.msra.mxu0 %v12050
  %12218 = vmatprep.subr.mxu0 0.0
  %12219 = vmatpush1.msra.mxu0 %v12049
  %12220 = vmatprep.subr.mxu0 0.0
  %12221 = vmatpush1.msra.mxu0 %v12048
  %12222 = vmatprep.subr.mxu0 0.0
  %12223 = vmatpush1.msra.mxu0 %v12047
  %12224 = vmatprep.subr.mxu0 0.0
  %12225 = vmatpush1.msra.mxu0 %v12046
  %12226 = vmatprep.subr.mxu0 0.0
  %12227 = vmatpush1.msra.mxu0 %v12045
  %12228 = vmatprep.subr.mxu0 0.0
  %12229 = vmatpush1.msra.mxu0 %v12044
  %12230 = vmatprep.subr.mxu0 0.0
  %12231 = vmatpush1.msra.mxu0 %v12043
  %12232 = vmatprep.subr.mxu0 0.0
  %12233 = vmatpush1.msra.mxu0 %v12042
  %12234 = vmatprep.subr.mxu0 0.0
  %12235 = vmatpush1.msra.mxu0 %v12041
  %12236 = vmatprep.subr.mxu0 0.0
  %12237 = vmatpush1.msra.mxu0 %v12040
  %12238 = vmatprep.subr.mxu0 0.0
  %12239 = vmatpush1.msra.mxu0 %v12039
  %12240 = vmatprep.subr.mxu0 0.0
  %12241 = vmatpush2.msra.mxu0 0.0
  %12242 = vmatprep.subr.mxu0 0.0
  %12243 = vmatpush2.msra.mxu0 0.0
  %12244 = vmatprep.subr.mxu0 0.0
  %12245 = vmatpush2.msra.mxu0 0.0
  %12246 = vmatprep.subr.mxu0 0.0
  %12247 = vmatpush2.msra.mxu0 0.0
  %12248 = vmatprep.subr.mxu0 0.0
  %12249 = vmatpush2.msra.mxu0 0.0
  %12250 = vmatprep.subr.mxu0 0.0
  %12251 = vmatpush2.msra.mxu0 0.0
  %12252 = vmatprep.subr.mxu0 0.0
  %12253 = vmatpush2.msra.mxu0 0.0
  %12254 = vmatprep.subr.mxu0 0.0
  %12255 = vmatpush2.msra.mxu0 0.0
  %12256 = vmatprep.subr.mxu0 0.0
  %12257 = vmatpush2.msra.mxu0 0.0
  %12258 = vmatprep.subr.mxu0 0.0
  %12259 = vmatpush2.msra.mxu0 0.0
  %12260 = vmatprep.subr.mxu0 0.0
  %12261 = vmatpush2.msra.mxu0 0.0
  %12262 = vmatprep.subr.mxu0 0.0
  %12263 = vmatpush2.msra.mxu0 0.0
  %12264 = vmatprep.subr.mxu0 0.0
  %12265 = vmatpush2.msra.mxu0 %v12058
  %12266 = vmatprep.subr.mxu0 0.0
  %12267 = vmatpush2.msra.mxu0 %v12057
  %12268 = vmatprep.subr.mxu0 0.0
  %12269 = vmatpush2.msra.mxu0 %v12056
  %12270 = vmatprep.subr.mxu0 0.0
  %12271 = vmatpush2.msra.mxu0 %v12055
  %12272 = vmatprep.mubr.f32.mxu0 %v12066
  %12273 = vmatmul.mubr.f32.gmra.mxu0 %v11974
  %v12274 = vpop.f32.mrf.mxu0
  %v12275 = vadd.f32 %v12205, %v12274
  %v12276 = vpop.f32.mrf.mxu0
  %12277 = vdwg.mxu0
  %v12278 = vmax.f32 %v12275, 0.0
  %v12279 = vld [vmem:[%s11] sm:$0xff]
  %vm12280 = vcmask 64512
  %v12282 = vsel %vm12280, %v12278, 0
  %12284 = vmatprep.subr.mxu0 0.0
  %12285 = vmatpush1.msra.mxu0 0.0
  %12286 = vmatprep.subr.mxu0 0.0
  %12287 = vmatpush1.msra.mxu0 0.0
  %12288 = vmatprep.subr.mxu0 0.0
  %12289 = vmatpush1.msra.mxu0 0.0
  %12290 = vmatprep.subr.mxu0 0.0
  %12291 = vmatpush1.msra.mxu0 0.0
  %12292 = vmatprep.subr.mxu0 0.0
  %12293 = vmatpush1.msra.mxu0 0.0
  %12294 = vmatprep.subr.mxu0 0.0
  %12295 = vmatpush1.msra.mxu0 0.0
  %12296 = vmatprep.subr.mxu0 0.0
  %12297 = vmatpush1.msra.mxu0 0.0
  %12298 = vmatprep.subr.mxu0 0.0
  %12299 = vmatpush1.msra.mxu0 0.0
  %12300 = vmatprep.subr.mxu0 0.0
  %12301 = vmatpush1.msra.mxu0 0.0
  %12302 = vmatprep.subr.mxu0 0.0
  %12303 = vmatpush1.msra.mxu0 0.0
  %12304 = vmatprep.subr.mxu0 0.0
  %12305 = vmatpush1.msra.mxu0 0.0
  %12306 = vmatprep.subr.mxu0 0.0
  %12307 = vmatpush1.msra.mxu0 0.0
  %12308 = vmatprep.subr.mxu0 0.0
  %12309 = vmatpush1.msra.mxu0 0.0
  %12310 = vmatprep.subr.mxu0 0.0
  %12311 = vmatpush1.msra.mxu0 0.0
  %12312 = vmatprep.subr.mxu0 0.0
  %12313 = vmatpush1.msra.mxu0 0.0
  %12314 = vmatprep.subr.mxu0 0.0
  %12315 = vmatpush1.msra.mxu0 %v12279
  %12316 = vmatprep.subr.mxu0 0.0
  %12317 = vmatpush2.msra.mxu0 0.0
  %12318 = vmatprep.subr.mxu0 0.0
  %12319 = vmatpush2.msra.mxu0 0.0
  %12320 = vmatprep.subr.mxu0 0.0
  %12321 = vmatpush2.msra.mxu0 0.0
  %12322 = vmatprep.subr.mxu0 0.0
  %12323 = vmatpush2.msra.mxu0 0.0
  %12324 = vmatprep.subr.mxu0 0.0
  %12325 = vmatpush2.msra.mxu0 0.0
  %12326 = vmatprep.subr.mxu0 0.0
  %12327 = vmatpush2.msra.mxu0 0.0
  %12328 = vmatprep.subr.mxu0 0.0
  %12329 = vmatpush2.msra.mxu0 0.0
  %12330 = vmatprep.subr.mxu0 0.0
  %12331 = vmatpush2.msra.mxu0 0.0
  %12332 = vmatprep.subr.mxu0 0.0
  %12333 = vmatpush2.msra.mxu0 0.0
  %12334 = vmatprep.subr.mxu0 0.0
  %12335 = vmatpush2.msra.mxu0 0.0
  %12336 = vmatprep.subr.mxu0 0.0
  %12337 = vmatpush2.msra.mxu0 0.0
  %12338 = vmatprep.subr.mxu0 0.0
  %12339 = vmatpush2.msra.mxu0 0.0
  %12340 = vmatprep.subr.mxu0 0.0
  %12341 = vmatpush2.msra.mxu0 0.0
  %12342 = vmatprep.subr.mxu0 0.0
  %12343 = vmatpush2.msra.mxu0 0.0
  %12344 = vmatprep.subr.mxu0 0.0
  %12345 = vmatpush2.msra.mxu0 0.0
  %12346 = vmatprep.subr.mxu0 0.0
  %12347 = vmatpush2.msra.mxu0 0.0
  %12348 = vmatprep.mubr.f32.mxu0 0.0
  %12349 = vmatmul.mubr.f32.gmra.mxu0 %v12282
  %v12350 = vpop.f32.mrf.mxu0
  %v12351 = vadd.f32 0.0, %v12350
  %v12352 = vpop.f32.mrf.mxu0
  %12353 = vdwg.mxu0
  %12354 = vst.msk [vmem:[%s12] sm:$0xff] %vm11766, %v12351
  // Predicated region
  $region50: #{encoder_forward_pallas.1} parent=0 // pred_check
    _
  $region51: #{encoder_forward_pallas.1} parent=0 // pred_check_branch
    %12356 = sbr.rel (0) target = $region53
  $region52: #{encoder_forward_pallas.1} parent=0 // pred_region
    _
  $region53: #{encoder_forward_pallas.1} parent=0 // pred_fallthru
    _
  // Predicated region
  $region54: #{encoder_forward_pallas.1} parent=0 // pred_check
    _
  $region55: #{encoder_forward_pallas.1} parent=0 // pred_check_branch
    %12358 = sbr.rel (0) target = $region57
  $region56: #{encoder_forward_pallas.1} parent=0 // pred_region
    _
  $region57: #{encoder_forward_pallas.1} parent=0 // pred_fallthru
    _

</llo_original>
